<compile_context>
chip_gen: v7x
topology: tpu7x:2x2x1
jax: 0.10.0
libtpu: 0.0.40
codegen_flags: <defaults>
</compile_context>

<pallas_src>
import functools

import jax
import jax.numpy as jnp
import numpy as np
from jax.experimental import pallas as pl
from jax.experimental.pallas import tpu as pltpu

BN_EPS = 1e-5
LANES = 128            # channel padding (lane width) used everywhere


# ------------------------------- Pallas kernel ------------------------------ #

def _mnist_cnn_kernel(x_ref, w_ref, shift_ref, *rest, batch_block, spatial,
                      c_out, num_layers):
    """Fused forward for one block of `batch_block` samples (one grid step).

    x_ref:     (B, T0, 128) bf16   guarded + zero-padded input rows,
                                   T0 = (H+2)^2 + 2; pixel (h, w) lives at
                                   row 1 + (h+1)*(H+2) + (w+1)
    w_ref:     (L*9, 128, 128) bf16  conv weights (BN scale folded), layout
                                     [cin, cout], tap index t = dy*3 + dx
    shift_ref: (L, 1, 128) f32     folded BN shift (beta - mean*scale)
    rest:      L pool-selector refs (4*Q_l, M_l) bf16, then o_ref (B, 1, c_out)
    """
    sel_refs = rest[:num_layers]
    o_ref = rest[num_layers]

    @pl.loop(0, batch_block)
    def _per_sample(b):
        act = x_ref[b]                       # (T0, 128) bf16, guarded padded rows
        S = spatial
        for l in range(num_layers):
            Sp = S + 2
            M = S * Sp                       # conv rows computed (hp in [1,S], all wp)

            # ---- 3x3 conv (BN scale folded): 9 shifted-slice MXU matmuls ----
            # Conv output row m <-> padded position (1 + m//Sp, m%Sp); tap
            # (dy, dx) reads rows [dy*Sp+dx, dy*Sp+dx+M) of the guarded buffer.
            # Rows at pad columns are garbage-but-finite and are discarded by
            # the (all-zero there) pool selectors.
            acc = None
            for dy in range(3):
                for dx in range(3):
                    start = dy * Sp + dx
                    xs = act[start:start + M, :]
                    d = jnp.dot(xs, w_ref[l * 9 + dy * 3 + dx],
                                preferred_element_type=jnp.float32)
                    acc = d if acc is None else acc + d

            # ---- folded BN shift + ReLU ----
            y = jnp.maximum(acc + shift_ref[l], 0.0).astype(jnp.bfloat16)

            # ---- 2x2 max pool via one resident 0/1 selection matmul ----
            # The selector emits the 4 pool taps stacked along rows; for
            # l < L-1 it already produces the NEXT layer's guarded padded
            # layout (zero rows at guard / border positions); for the last
            # layer it produces the (S/2)^2 pooled pixels in (ho, wo) order.
            g = jnp.dot(sel_refs[l][...], y, preferred_element_type=jnp.float32)
            Q = g.shape[0] // 4
            p = jnp.maximum(jnp.maximum(g[0:Q], g[Q:2 * Q]),
                            jnp.maximum(g[2 * Q:3 * Q], g[3 * Q:4 * Q]))

            if l + 1 < num_layers:
                act = p.astype(jnp.bfloat16)     # next layer's guarded layout
                S //= 2
            else:
                # AdaptiveAvgPool2d((1,1)) + flatten (a copy when already 1x1).
                feat = p if Q == 1 else jnp.mean(p, axis=0, keepdims=True)
                o_ref[b] = feat[:, 0:c_out].astype(o_ref.dtype)


# ----------------------- host-side one-time preparation --------------------- #

def fold_bn_params(params):
    """Fold BN scale into conv weights, pad to 128 lanes, cast weights to bf16."""
    L = len(params)
    w_all = np.zeros((L * 9, LANES, LANES), np.float32)
    shift_all = np.zeros((L, 1, LANES), np.float32)
    for l, p in enumerate(params):
        w = np.asarray(p["w"], np.float32)                       # (cout, cin, 3, 3)
        cout, cin = w.shape[0], w.shape[1]
        assert cin <= LANES and cout <= LANES
        inv_std = 1.0 / np.sqrt(np.asarray(p["var"], np.float32) + BN_EPS)
        scale = np.asarray(p["gamma"], np.float32) * inv_std
        shift = (np.asarray(p["beta"], np.float32)
                 - np.asarray(p["mean"], np.float32) * scale)
        # (cout,cin,3,3) -> (ky,kx,cin,cout) -> (9,cin,cout); fold BN scale.
        wt = np.transpose(w, (2, 3, 1, 0)).reshape(9, cin, cout) * scale
        w_all[l * 9:(l + 1) * 9, :cin, :cout] = wt
        shift_all[l, 0, :cout] = shift
    return jnp.asarray(w_all, jnp.bfloat16), jnp.asarray(shift_all, jnp.float32)


def build_pool_selectors(spatial, num_layers):
    """Per-layer 0/1 matrices gathering the 4 pool taps of every output pixel
    AND emitting the next layer's guarded padded row layout (all-zero rows at
    guard/border positions).  Shapes (4*Q_l, M_l), bf16, VMEM-resident."""
    sels = []
    S = spatial
    for l in range(num_layers):
        Sp = S + 2
        M = S * Sp
        Sn = S // 2
        last = (l == num_layers - 1)
        if last:
            Q = Sn * Sn                          # plain (ho, wo) rows -> avgpool
        else:
            Spn = Sn + 2
            Q = Spn * Spn + 2                    # next layer's guarded padded rows
        sel = np.zeros((4, Q, M), np.float32)
        for ho in range(Sn):
            for wo in range(Sn):
                row = (ho * Sn + wo) if last else (1 + (ho + 1) * Spn + (wo + 1))
                for k, (a, b) in enumerate(((0, 0), (0, 1), (1, 0), (1, 1))):
                    col = (2 * ho + a) * Sp + (2 * wo + b) + 1
                    sel[k, row, col] = 1.0
        sels.append(jnp.asarray(sel.reshape(4 * Q, M), jnp.bfloat16))
        S = Sn
    return sels


# ---------------------------- JAX glue / wrapper ---------------------------- #

def mnist_cnn_forward(x_nchw, w_all, shift_all, sels, *, c_out, batch_block=8):
    """Equivalent of MNIST_CNN.forward: (N, Cin, H, W) -> (N, c_out)."""
    N, c_in, H, W = x_nchw.shape
    L = shift_all.shape[0]
    assert H == W and c_in <= LANES
    # TODO(synk): MaxPool2d's floor behaviour for odd sizes (real 28x28 MNIST:
    # 28->14->7) is not handled; H must be divisible by 2**L.
    assert H % (2 ** L) == 0 and H >= 2 ** L

    # Host-side layout prep (cheap XLA glue): guarded, zero-padded (h_pad,w_pad)
    # rows with the channels on 128 lanes, bf16 -> layer 0 needs no staging.
    Sp = H + 2
    x_nhwc = jnp.transpose(x_nchw, (0, 2, 3, 1)).astype(jnp.float32)
    xp = jnp.zeros((N, Sp, Sp, LANES), jnp.float32)
    xp = xp.at[:, 1:H + 1, 1:W + 1, :c_in].set(x_nhwc)
    xp = xp.reshape(N, Sp * Sp, LANES)
    guard = jnp.zeros((N, 1, LANES), jnp.float32)
    xp = jnp.concatenate([guard, xp, guard], axis=1).astype(jnp.bfloat16)

    # Pad the batch up to a multiple of the per-step batch block.
    Np = pl.cdiv(N, batch_block) * batch_block
    if Np != N:
        xp = jnp.concatenate(
            [xp, jnp.zeros((Np - N,) + xp.shape[1:], xp.dtype)], axis=0)
    T0 = Sp * Sp + 2

    kernel = functools.partial(_mnist_cnn_kernel, batch_block=batch_block,
                               spatial=H, c_out=c_out, num_layers=L)
    out = pl.pallas_call(
        kernel,
        out_shape=jax.ShapeDtypeStruct((Np, 1, c_out), jnp.float32),
        grid=(Np // batch_block,),
        in_specs=[
            pl.BlockSpec((batch_block, T0, LANES), lambda n: (n, 0, 0)),
            # Constant index maps: weights / shifts / pool selectors are DMA'd
            # into VMEM once and stay resident across the (pipelined,
            # megacore-parallel) batch-block grid.
            pl.BlockSpec(w_all.shape, lambda n: (0, 0, 0)),
            pl.BlockSpec(shift_all.shape, lambda n: (0, 0, 0)),
        ] + [pl.BlockSpec(s.shape, lambda n: (0, 0)) for s in sels],
        out_specs=pl.BlockSpec((batch_block, 1, c_out), lambda n: (n, 0, 0)),
        compiler_params=pltpu.CompilerParams(
            dimension_semantics=("parallel",),
            vmem_limit_bytes=32 * 1024 * 1024),
    )(xp, w_all, shift_all, *sels)
    return out.reshape(Np, c_out)[:N]


# ---------------------------- params & reference ---------------------------- #

def init_params(key, in_channels, hid_channels, out_channels):
    chans = [(in_channels, hid_channels), (hid_channels, hid_channels),
             (hid_channels, hid_channels), (hid_channels, out_channels)]
    params = []
    for cin, cout in chans:
        key, kw, kg, kb, km, kv = jax.random.split(key, 6)
        params.append(dict(
            w=jax.random.normal(kw, (cout, cin, 3, 3), jnp.float32)
              * (1.0 / np.sqrt(9.0 * cin)),
            gamma=1.0 + 0.1 * jax.random.normal(kg, (cout,), jnp.float32),
            beta=0.1 * jax.random.normal(kb, (cout,), jnp.float32),
            mean=0.1 * jax.random.normal(km, (cout,), jnp.float32),
            var=1.0 + 0.1 * jax.random.uniform(kv, (cout,), jnp.float32),
        ))
    return params


def reference_forward(x_nchw, params):
    """Pure-JAX f32 reference (conv / BN-eval / relu / maxpool / avgpool)."""
    x = jnp.transpose(x_nchw, (0, 2, 3, 1)).astype(jnp.float32)
    for p in params:
        w_hwio = jnp.transpose(p["w"], (2, 3, 1, 0))
        y = jax.lax.conv_general_dilated(
            x, w_hwio, (1, 1), "SAME",
            dimension_numbers=("NHWC", "HWIO", "NHWC"))
        y = (y - p["mean"]) / jnp.sqrt(p["var"] + BN_EPS) * p["gamma"] + p["beta"]
        y = jnp.maximum(y, 0.0)
        y = jax.lax.reduce_window(y, -jnp.inf, jax.lax.max,
                                  (1, 2, 2, 1), (1, 2, 2, 1), "VALID")
        x = y
    return jnp.mean(x, axis=(1, 2))


if __name__ == "__main__":
    key = jax.random.PRNGKey(0)
    key, kx = jax.random.split(key)

    # Small MNIST-like config: 1 input channel, 16x16 spatial, module-default
    # channel widths (hid=64, out=128).  batch=16 with an 8-sample batch block
    # per grid step (grid=(2,)) to exercise the batch-blocked pipeline.
    N, C_IN, HW = 16, 1, 16
    HID, OUT = 64, 128
    BATCH_BLOCK = 8

    x = jax.random.normal(kx, (N, C_IN, HW, HW), jnp.float32)
    params = init_params(key, C_IN, hid_channels=HID, out_channels=OUT)

    w_all, shift_all = fold_bn_params(params)        # one-time BN folding (bf16)
    sels = build_pool_selectors(HW, len(params))     # resident pool selectors

    fwd = jax.jit(functools.partial(mnist_cnn_forward, c_out=OUT,
                                    batch_block=BATCH_BLOCK))
    out = jax.block_until_ready(fwd(x, w_all, shift_all, sels))

    ref = reference_forward(x, params)
    assert out.shape == (N, OUT), out.shape
    # bf16 operands (f32 accumulation) -> slightly looser tolerance vs f32 ref.
    np.testing.assert_allclose(np.asarray(out), np.asarray(ref),
                               rtol=5e-2, atol=2e-2)
    print("KERNEL_OK")
</pallas_src>

<mosaic_0001>
module attributes {stable_mosaic.version = 11 : i64} {
  func.func @_mnist_cnn_kernel(%arg0: i32, %arg1: memref<8x326x128xbf16, #tpu.memory_space<vmem>>, %arg2: memref<36x128x128xbf16, #tpu.memory_space<vmem>>, %arg3: memref<4x1x128xf32, #tpu.memory_space<vmem>>, %arg4: memref<408x288xbf16, #tpu.memory_space<vmem>>, %arg5: memref<152x80xbf16, #tpu.memory_space<vmem>>, %arg6: memref<72x24xbf16, #tpu.memory_space<vmem>>, %arg7: memref<4x8xbf16, #tpu.memory_space<vmem>>, %arg8: memref<8x1x128xf32, #tpu.memory_space<vmem>>) attributes {dimension_semantics = [#tpu.dimension_semantics<parallel>], iteration_bounds = array<i64: 2>, scalar_prefetch = 0 : i64, scratch_operands = 0 : i64, tpu.core_type = #tpu.core_type<tc>, window_params = [{transform_indices = @transform_0, window_bounds = array<i64: 8, 326, 128>}, {pipeline_mode = #tpu.pipeline_mode<synchronous>, transform_indices = @transform_1, window_bounds = array<i64: 36, 128, 128>}, {pipeline_mode = #tpu.pipeline_mode<synchronous>, transform_indices = @transform_2, window_bounds = array<i64: 4, 1, 128>}, {pipeline_mode = #tpu.pipeline_mode<synchronous>, transform_indices = @transform_3, window_bounds = array<i64: 408, 288>}, {pipeline_mode = #tpu.pipeline_mode<synchronous>, transform_indices = @transform_4, window_bounds = array<i64: 152, 80>}, {pipeline_mode = #tpu.pipeline_mode<synchronous>, transform_indices = @transform_5, window_bounds = array<i64: 72, 24>}, {pipeline_mode = #tpu.pipeline_mode<synchronous>, transform_indices = @transform_6, window_bounds = array<i64: 4, 8>}, {transform_indices = @transform_7, window_bounds = array<i64: 8, 1, 128>}]} {
    %c0_i32 = arith.constant 0 : i32
    %c8_i32 = arith.constant 8 : i32
    %0 = arith.addi %c0_i32, %c8_i32 : i32
    %c1_i32 = arith.constant 1 : i32
    scf.for %arg9 = %c0_i32 to %0 step %c1_i32  : i32 {
      %c1_i32_1 = arith.constant 1 : i32
      %1 = arith.muli %arg9, %c1_i32_1 : i32
      %c0_i32_2 = arith.constant 0 : i32
      %2 = arith.addi %c0_i32_2, %1 : i32
      %3 = arith.index_cast %2 : i32 to index
      %c0 = arith.constant 0 : index
      %c0_3 = arith.constant 0 : index
      %4 = vector.load %arg1[%3, %c0, %c0_3] : memref<8x326x128xbf16, #tpu.memory_space<vmem>>, vector<1x326x128xbf16>
      %5 = vector.shape_cast %4 : vector<1x326x128xbf16> to vector<326x128xbf16>
      %6 = vector.extract_strided_slice %5 {offsets = [0, 0], sizes = [288, 128], strides = [1, 1]} : vector<326x128xbf16> to vector<288x128xbf16>
      %c0_4 = arith.constant 0 : index
      %c0_5 = arith.constant 0 : index
      %c0_6 = arith.constant 0 : index
      %7 = vector.load %arg2[%c0_4, %c0_5, %c0_6] : memref<36x128x128xbf16, #tpu.memory_space<vmem>>, vector<1x128x128xbf16>
      %8 = vector.shape_cast %7 : vector<1x128x128xbf16> to vector<128x128xbf16>
      %cst = arith.constant dense<0.000000e+00> : vector<288x128xf32>
      %9 = tpu.matmul %6, %8, %cst {dimension_numbers = #tpu.dot_dimension_numbers<[1], [0], [0], [1], [0, 0, 1, 1], [], []>} : vector<288x128xbf16>, vector<128x128xbf16>, vector<288x128xf32> -> vector<288x128xf32>
      %10 = vector.extract_strided_slice %5 {offsets = [1, 0], sizes = [288, 128], strides = [1, 1]} : vector<326x128xbf16> to vector<288x128xbf16>
      %c1 = arith.constant 1 : index
      %c0_7 = arith.constant 0 : index
      %c0_8 = arith.constant 0 : index
      %11 = vector.load %arg2[%c1, %c0_7, %c0_8] : memref<36x128x128xbf16, #tpu.memory_space<vmem>>, vector<1x128x128xbf16>
      %12 = vector.shape_cast %11 : vector<1x128x128xbf16> to vector<128x128xbf16>
      %cst_9 = arith.constant dense<0.000000e+00> : vector<288x128xf32>
      %13 = tpu.matmul %10, %12, %cst_9 {dimension_numbers = #tpu.dot_dimension_numbers<[1], [0], [0], [1], [0, 0, 1, 1], [], []>} : vector<288x128xbf16>, vector<128x128xbf16>, vector<288x128xf32> -> vector<288x128xf32>
      %14 = arith.addf %9, %13 : vector<288x128xf32>
      %15 = vector.extract_strided_slice %5 {offsets = [2, 0], sizes = [288, 128], strides = [1, 1]} : vector<326x128xbf16> to vector<288x128xbf16>
      %c2 = arith.constant 2 : index
      %c0_10 = arith.constant 0 : index
      %c0_11 = arith.constant 0 : index
      %16 = vector.load %arg2[%c2, %c0_10, %c0_11] : memref<36x128x128xbf16, #tpu.memory_space<vmem>>, vector<1x128x128xbf16>
      %17 = vector.shape_cast %16 : vector<1x128x128xbf16> to vector<128x128xbf16>
      %cst_12 = arith.constant dense<0.000000e+00> : vector<288x128xf32>
      %18 = tpu.matmul %15, %17, %cst_12 {dimension_numbers = #tpu.dot_dimension_numbers<[1], [0], [0], [1], [0, 0, 1, 1], [], []>} : vector<288x128xbf16>, vector<128x128xbf16>, vector<288x128xf32> -> vector<288x128xf32>
      %19 = arith.addf %14, %18 : vector<288x128xf32>
      %20 = vector.extract_strided_slice %5 {offsets = [18, 0], sizes = [288, 128], strides = [1, 1]} : vector<326x128xbf16> to vector<288x128xbf16>
      %c3 = arith.constant 3 : index
      %c0_13 = arith.constant 0 : index
      %c0_14 = arith.constant 0 : index
      %21 = vector.load %arg2[%c3, %c0_13, %c0_14] : memref<36x128x128xbf16, #tpu.memory_space<vmem>>, vector<1x128x128xbf16>
      %22 = vector.shape_cast %21 : vector<1x128x128xbf16> to vector<128x128xbf16>
      %cst_15 = arith.constant dense<0.000000e+00> : vector<288x128xf32>
      %23 = tpu.matmul %20, %22, %cst_15 {dimension_numbers = #tpu.dot_dimension_numbers<[1], [0], [0], [1], [0, 0, 1, 1], [], []>} : vector<288x128xbf16>, vector<128x128xbf16>, vector<288x128xf32> -> vector<288x128xf32>
      %24 = arith.addf %19, %23 : vector<288x128xf32>
      %25 = vector.extract_strided_slice %5 {offsets = [19, 0], sizes = [288, 128], strides = [1, 1]} : vector<326x128xbf16> to vector<288x128xbf16>
      %c4 = arith.constant 4 : index
      %c0_16 = arith.constant 0 : index
      %c0_17 = arith.constant 0 : index
      %26 = vector.load %arg2[%c4, %c0_16, %c0_17] : memref<36x128x128xbf16, #tpu.memory_space<vmem>>, vector<1x128x128xbf16>
      %27 = vector.shape_cast %26 : vector<1x128x128xbf16> to vector<128x128xbf16>
      %cst_18 = arith.constant dense<0.000000e+00> : vector<288x128xf32>
      %28 = tpu.matmul %25, %27, %cst_18 {dimension_numbers = #tpu.dot_dimension_numbers<[1], [0], [0], [1], [0, 0, 1, 1], [], []>} : vector<288x128xbf16>, vector<128x128xbf16>, vector<288x128xf32> -> vector<288x128xf32>
      %29 = arith.addf %24, %28 : vector<288x128xf32>
      %30 = vector.extract_strided_slice %5 {offsets = [20, 0], sizes = [288, 128], strides = [1, 1]} : vector<326x128xbf16> to vector<288x128xbf16>
      %c5 = arith.constant 5 : index
      %c0_19 = arith.constant 0 : index
      %c0_20 = arith.constant 0 : index
      %31 = vector.load %arg2[%c5, %c0_19, %c0_20] : memref<36x128x128xbf16, #tpu.memory_space<vmem>>, vector<1x128x128xbf16>
      %32 = vector.shape_cast %31 : vector<1x128x128xbf16> to vector<128x128xbf16>
      %cst_21 = arith.constant dense<0.000000e+00> : vector<288x128xf32>
      %33 = tpu.matmul %30, %32, %cst_21 {dimension_numbers = #tpu.dot_dimension_numbers<[1], [0], [0], [1], [0, 0, 1, 1], [], []>} : vector<288x128xbf16>, vector<128x128xbf16>, vector<288x128xf32> -> vector<288x128xf32>
      %34 = arith.addf %29, %33 : vector<288x128xf32>
      %35 = vector.extract_strided_slice %5 {offsets = [36, 0], sizes = [288, 128], strides = [1, 1]} : vector<326x128xbf16> to vector<288x128xbf16>
      %c6 = arith.constant 6 : index
      %c0_22 = arith.constant 0 : index
      %c0_23 = arith.constant 0 : index
      %36 = vector.load %arg2[%c6, %c0_22, %c0_23] : memref<36x128x128xbf16, #tpu.memory_space<vmem>>, vector<1x128x128xbf16>
      %37 = vector.shape_cast %36 : vector<1x128x128xbf16> to vector<128x128xbf16>
      %cst_24 = arith.constant dense<0.000000e+00> : vector<288x128xf32>
      %38 = tpu.matmul %35, %37, %cst_24 {dimension_numbers = #tpu.dot_dimension_numbers<[1], [0], [0], [1], [0, 0, 1, 1], [], []>} : vector<288x128xbf16>, vector<128x128xbf16>, vector<288x128xf32> -> vector<288x128xf32>
      %39 = arith.addf %34, %38 : vector<288x128xf32>
      %40 = vector.extract_strided_slice %5 {offsets = [37, 0], sizes = [288, 128], strides = [1, 1]} : vector<326x128xbf16> to vector<288x128xbf16>
      %c7 = arith.constant 7 : index
      %c0_25 = arith.constant 0 : index
      %c0_26 = arith.constant 0 : index
      %41 = vector.load %arg2[%c7, %c0_25, %c0_26] : memref<36x128x128xbf16, #tpu.memory_space<vmem>>, vector<1x128x128xbf16>
      %42 = vector.shape_cast %41 : vector<1x128x128xbf16> to vector<128x128xbf16>
      %cst_27 = arith.constant dense<0.000000e+00> : vector<288x128xf32>
      %43 = tpu.matmul %40, %42, %cst_27 {dimension_numbers = #tpu.dot_dimension_numbers<[1], [0], [0], [1], [0, 0, 1, 1], [], []>} : vector<288x128xbf16>, vector<128x128xbf16>, vector<288x128xf32> -> vector<288x128xf32>
      %44 = arith.addf %39, %43 : vector<288x128xf32>
      %45 = vector.extract_strided_slice %5 {offsets = [38, 0], sizes = [288, 128], strides = [1, 1]} : vector<326x128xbf16> to vector<288x128xbf16>
      %c8 = arith.constant 8 : index
      %c0_28 = arith.constant 0 : index
      %c0_29 = arith.constant 0 : index
      %46 = vector.load %arg2[%c8, %c0_28, %c0_29] : memref<36x128x128xbf16, #tpu.memory_space<vmem>>, vector<1x128x128xbf16>
      %47 = vector.shape_cast %46 : vector<1x128x128xbf16> to vector<128x128xbf16>
      %cst_30 = arith.constant dense<0.000000e+00> : vector<288x128xf32>
      %48 = tpu.matmul %45, %47, %cst_30 {dimension_numbers = #tpu.dot_dimension_numbers<[1], [0], [0], [1], [0, 0, 1, 1], [], []>} : vector<288x128xbf16>, vector<128x128xbf16>, vector<288x128xf32> -> vector<288x128xf32>
      %49 = arith.addf %44, %48 : vector<288x128xf32>
      %c0_31 = arith.constant 0 : index
      %c0_32 = arith.constant 0 : index
      %c0_33 = arith.constant 0 : index
      %50 = vector.load %arg3[%c0_31, %c0_32, %c0_33] : memref<4x1x128xf32, #tpu.memory_space<vmem>>, vector<1x1x128xf32>
      %51 = vector.shape_cast %50 : vector<1x1x128xf32> to vector<1x128xf32>
      %52 = vector.broadcast %51 : vector<1x128xf32> to vector<288x128xf32>
      %53 = arith.addf %49, %52 : vector<288x128xf32>
      %cst_34 = arith.constant 0.000000e+00 : f32
      %54 = vector.broadcast %cst_34 : f32 to vector<288x128xf32>
      %55 = arith.maximumf %53, %54 : vector<288x128xf32>
      %56 = arith.truncf %55 : vector<288x128xf32> to vector<288x128xbf16>
      %c0_35 = arith.constant 0 : index
      %c0_36 = arith.constant 0 : index
      %57 = vector.load %arg4[%c0_35, %c0_36] : memref<408x288xbf16, #tpu.memory_space<vmem>>, vector<408x288xbf16>
      %cst_37 = arith.constant dense<0.000000e+00> : vector<408x128xf32>
      %58 = tpu.matmul %57, %56, %cst_37 {dimension_numbers = #tpu.dot_dimension_numbers<[1], [0], [0], [1], [0, 0, 1, 1], [], []>} : vector<408x288xbf16>, vector<288x128xbf16>, vector<408x128xf32> -> vector<408x128xf32>
      %59 = vector.extract_strided_slice %58 {offsets = [0, 0], sizes = [102, 128], strides = [1, 1]} : vector<408x128xf32> to vector<102x128xf32>
      %60 = vector.extract_strided_slice %58 {offsets = [102, 0], sizes = [102, 128], strides = [1, 1]} : vector<408x128xf32> to vector<102x128xf32>
      %61 = arith.maximumf %59, %60 : vector<102x128xf32>
      %62 = vector.extract_strided_slice %58 {offsets = [204, 0], sizes = [102, 128], strides = [1, 1]} : vector<408x128xf32> to vector<102x128xf32>
      %63 = vector.extract_strided_slice %58 {offsets = [306, 0], sizes = [102, 128], strides = [1, 1]} : vector<408x128xf32> to vector<102x128xf32>
      %64 = arith.maximumf %62, %63 : vector<102x128xf32>
      %65 = arith.maximumf %61, %64 : vector<102x128xf32>
      %66 = arith.truncf %65 : vector<102x128xf32> to vector<102x128xbf16>
      %67 = vector.extract_strided_slice %66 {offsets = [0, 0], sizes = [80, 128], strides = [1, 1]} : vector<102x128xbf16> to vector<80x128xbf16>
      %c9 = arith.constant 9 : index
      %c0_38 = arith.constant 0 : index
      %c0_39 = arith.constant 0 : index
      %68 = vector.load %arg2[%c9, %c0_38, %c0_39] : memref<36x128x128xbf16, #tpu.memory_space<vmem>>, vector<1x128x128xbf16>
      %69 = vector.shape_cast %68 : vector<1x128x128xbf16> to vector<128x128xbf16>
      %cst_40 = arith.constant dense<0.000000e+00> : vector<80x128xf32>
      %70 = tpu.matmul %67, %69, %cst_40 {dimension_numbers = #tpu.dot_dimension_numbers<[1], [0], [0], [1], [0, 0, 1, 1], [], []>} : vector<80x128xbf16>, vector<128x128xbf16>, vector<80x128xf32> -> vector<80x128xf32>
      %71 = vector.extract_strided_slice %66 {offsets = [1, 0], sizes = [80, 128], strides = [1, 1]} : vector<102x128xbf16> to vector<80x128xbf16>
      %c10 = arith.constant 10 : index
      %c0_41 = arith.constant 0 : index
      %c0_42 = arith.constant 0 : index
      %72 = vector.load %arg2[%c10, %c0_41, %c0_42] : memref<36x128x128xbf16, #tpu.memory_space<vmem>>, vector<1x128x128xbf16>
      %73 = vector.shape_cast %72 : vector<1x128x128xbf16> to vector<128x128xbf16>
      %cst_43 = arith.constant dense<0.000000e+00> : vector<80x128xf32>
      %74 = tpu.matmul %71, %73, %cst_43 {dimension_numbers = #tpu.dot_dimension_numbers<[1], [0], [0], [1], [0, 0, 1, 1], [], []>} : vector<80x128xbf16>, vector<128x128xbf16>, vector<80x128xf32> -> vector<80x128xf32>
      %75 = arith.addf %70, %74 : vector<80x128xf32>
      %76 = vector.extract_strided_slice %66 {offsets = [2, 0], sizes = [80, 128], strides = [1, 1]} : vector<102x128xbf16> to vector<80x128xbf16>
      %c11 = arith.constant 11 : index
      %c0_44 = arith.constant 0 : index
      %c0_45 = arith.constant 0 : index
      %77 = vector.load %arg2[%c11, %c0_44, %c0_45] : memref<36x128x128xbf16, #tpu.memory_space<vmem>>, vector<1x128x128xbf16>
      %78 = vector.shape_cast %77 : vector<1x128x128xbf16> to vector<128x128xbf16>
      %cst_46 = arith.constant dense<0.000000e+00> : vector<80x128xf32>
      %79 = tpu.matmul %76, %78, %cst_46 {dimension_numbers = #tpu.dot_dimension_numbers<[1], [0], [0], [1], [0, 0, 1, 1], [], []>} : vector<80x128xbf16>, vector<128x128xbf16>, vector<80x128xf32> -> vector<80x128xf32>
      %80 = arith.addf %75, %79 : vector<80x128xf32>
      %81 = vector.extract_strided_slice %66 {offsets = [10, 0], sizes = [80, 128], strides = [1, 1]} : vector<102x128xbf16> to vector<80x128xbf16>
      %c12 = arith.constant 12 : index
      %c0_47 = arith.constant 0 : index
      %c0_48 = arith.constant 0 : index
      %82 = vector.load %arg2[%c12, %c0_47, %c0_48] : memref<36x128x128xbf16, #tpu.memory_space<vmem>>, vector<1x128x128xbf16>
      %83 = vector.shape_cast %82 : vector<1x128x128xbf16> to vector<128x128xbf16>
      %cst_49 = arith.constant dense<0.000000e+00> : vector<80x128xf32>
      %84 = tpu.matmul %81, %83, %cst_49 {dimension_numbers = #tpu.dot_dimension_numbers<[1], [0], [0], [1], [0, 0, 1, 1], [], []>} : vector<80x128xbf16>, vector<128x128xbf16>, vector<80x128xf32> -> vector<80x128xf32>
      %85 = arith.addf %80, %84 : vector<80x128xf32>
      %86 = vector.extract_strided_slice %66 {offsets = [11, 0], sizes = [80, 128], strides = [1, 1]} : vector<102x128xbf16> to vector<80x128xbf16>
      %c13 = arith.constant 13 : index
      %c0_50 = arith.constant 0 : index
      %c0_51 = arith.constant 0 : index
      %87 = vector.load %arg2[%c13, %c0_50, %c0_51] : memref<36x128x128xbf16, #tpu.memory_space<vmem>>, vector<1x128x128xbf16>
      %88 = vector.shape_cast %87 : vector<1x128x128xbf16> to vector<128x128xbf16>
      %cst_52 = arith.constant dense<0.000000e+00> : vector<80x128xf32>
      %89 = tpu.matmul %86, %88, %cst_52 {dimension_numbers = #tpu.dot_dimension_numbers<[1], [0], [0], [1], [0, 0, 1, 1], [], []>} : vector<80x128xbf16>, vector<128x128xbf16>, vector<80x128xf32> -> vector<80x128xf32>
      %90 = arith.addf %85, %89 : vector<80x128xf32>
      %91 = vector.extract_strided_slice %66 {offsets = [12, 0], sizes = [80, 128], strides = [1, 1]} : vector<102x128xbf16> to vector<80x128xbf16>
      %c14 = arith.constant 14 : index
      %c0_53 = arith.constant 0 : index
      %c0_54 = arith.constant 0 : index
      %92 = vector.load %arg2[%c14, %c0_53, %c0_54] : memref<36x128x128xbf16, #tpu.memory_space<vmem>>, vector<1x128x128xbf16>
      %93 = vector.shape_cast %92 : vector<1x128x128xbf16> to vector<128x128xbf16>
      %cst_55 = arith.constant dense<0.000000e+00> : vector<80x128xf32>
      %94 = tpu.matmul %91, %93, %cst_55 {dimension_numbers = #tpu.dot_dimension_numbers<[1], [0], [0], [1], [0, 0, 1, 1], [], []>} : vector<80x128xbf16>, vector<128x128xbf16>, vector<80x128xf32> -> vector<80x128xf32>
      %95 = arith.addf %90, %94 : vector<80x128xf32>
      %96 = vector.extract_strided_slice %66 {offsets = [20, 0], sizes = [80, 128], strides = [1, 1]} : vector<102x128xbf16> to vector<80x128xbf16>
      %c15 = arith.constant 15 : index
      %c0_56 = arith.constant 0 : index
      %c0_57 = arith.constant 0 : index
      %97 = vector.load %arg2[%c15, %c0_56, %c0_57] : memref<36x128x128xbf16, #tpu.memory_space<vmem>>, vector<1x128x128xbf16>
      %98 = vector.shape_cast %97 : vector<1x128x128xbf16> to vector<128x128xbf16>
      %cst_58 = arith.constant dense<0.000000e+00> : vector<80x128xf32>
      %99 = tpu.matmul %96, %98, %cst_58 {dimension_numbers = #tpu.dot_dimension_numbers<[1], [0], [0], [1], [0, 0, 1, 1], [], []>} : vector<80x128xbf16>, vector<128x128xbf16>, vector<80x128xf32> -> vector<80x128xf32>
      %100 = arith.addf %95, %99 : vector<80x128xf32>
      %101 = vector.extract_strided_slice %66 {offsets = [21, 0], sizes = [80, 128], strides = [1, 1]} : vector<102x128xbf16> to vector<80x128xbf16>
      %c16 = arith.constant 16 : index
      %c0_59 = arith.constant 0 : index
      %c0_60 = arith.constant 0 : index
      %102 = vector.load %arg2[%c16, %c0_59, %c0_60] : memref<36x128x128xbf16, #tpu.memory_space<vmem>>, vector<1x128x128xbf16>
      %103 = vector.shape_cast %102 : vector<1x128x128xbf16> to vector<128x128xbf16>
      %cst_61 = arith.constant dense<0.000000e+00> : vector<80x128xf32>
      %104 = tpu.matmul %101, %103, %cst_61 {dimension_numbers = #tpu.dot_dimension_numbers<[1], [0], [0], [1], [0, 0, 1, 1], [], []>} : vector<80x128xbf16>, vector<128x128xbf16>, vector<80x128xf32> -> vector<80x128xf32>
      %105 = arith.addf %100, %104 : vector<80x128xf32>
      %106 = vector.extract_strided_slice %66 {offsets = [22, 0], sizes = [80, 128], strides = [1, 1]} : vector<102x128xbf16> to vector<80x128xbf16>
      %c17 = arith.constant 17 : index
      %c0_62 = arith.constant 0 : index
      %c0_63 = arith.constant 0 : index
      %107 = vector.load %arg2[%c17, %c0_62, %c0_63] : memref<36x128x128xbf16, #tpu.memory_space<vmem>>, vector<1x128x128xbf16>
      %108 = vector.shape_cast %107 : vector<1x128x128xbf16> to vector<128x128xbf16>
      %cst_64 = arith.constant dense<0.000000e+00> : vector<80x128xf32>
      %109 = tpu.matmul %106, %108, %cst_64 {dimension_numbers = #tpu.dot_dimension_numbers<[1], [0], [0], [1], [0, 0, 1, 1], [], []>} : vector<80x128xbf16>, vector<128x128xbf16>, vector<80x128xf32> -> vector<80x128xf32>
      %110 = arith.addf %105, %109 : vector<80x128xf32>
      %c1_65 = arith.constant 1 : index
      %c0_66 = arith.constant 0 : index
      %c0_67 = arith.constant 0 : index
      %111 = vector.load %arg3[%c1_65, %c0_66, %c0_67] : memref<4x1x128xf32, #tpu.memory_space<vmem>>, vector<1x1x128xf32>
      %112 = vector.shape_cast %111 : vector<1x1x128xf32> to vector<1x128xf32>
      %113 = vector.broadcast %112 : vector<1x128xf32> to vector<80x128xf32>
      %114 = arith.addf %110, %113 : vector<80x128xf32>
      %cst_68 = arith.constant 0.000000e+00 : f32
      %115 = vector.broadcast %cst_68 : f32 to vector<80x128xf32>
      %116 = arith.maximumf %114, %115 : vector<80x128xf32>
      %117 = arith.truncf %116 : vector<80x128xf32> to vector<80x128xbf16>
      %c0_69 = arith.constant 0 : index
      %c0_70 = arith.constant 0 : index
      %118 = vector.load %arg5[%c0_69, %c0_70] : memref<152x80xbf16, #tpu.memory_space<vmem>>, vector<152x80xbf16>
      %cst_71 = arith.constant dense<0.000000e+00> : vector<152x128xf32>
      %119 = tpu.matmul %118, %117, %cst_71 {dimension_numbers = #tpu.dot_dimension_numbers<[1], [0], [0], [1], [0, 0, 1, 1], [], []>} : vector<152x80xbf16>, vector<80x128xbf16>, vector<152x128xf32> -> vector<152x128xf32>
      %120 = vector.extract_strided_slice %119 {offsets = [0, 0], sizes = [38, 128], strides = [1, 1]} : vector<152x128xf32> to vector<38x128xf32>
      %121 = vector.extract_strided_slice %119 {offsets = [38, 0], sizes = [38, 128], strides = [1, 1]} : vector<152x128xf32> to vector<38x128xf32>
      %122 = arith.maximumf %120, %121 : vector<38x128xf32>
      %123 = vector.extract_strided_slice %119 {offsets = [76, 0], sizes = [38, 128], strides = [1, 1]} : vector<152x128xf32> to vector<38x128xf32>
      %124 = vector.extract_strided_slice %119 {offsets = [114, 0], sizes = [38, 128], strides = [1, 1]} : vector<152x128xf32> to vector<38x128xf32>
      %125 = arith.maximumf %123, %124 : vector<38x128xf32>
      %126 = arith.maximumf %122, %125 : vector<38x128xf32>
      %127 = arith.truncf %126 : vector<38x128xf32> to vector<38x128xbf16>
      %128 = vector.extract_strided_slice %127 {offsets = [0, 0], sizes = [24, 128], strides = [1, 1]} : vector<38x128xbf16> to vector<24x128xbf16>
      %c18 = arith.constant 18 : index
      %c0_72 = arith.constant 0 : index
      %c0_73 = arith.constant 0 : index
      %129 = vector.load %arg2[%c18, %c0_72, %c0_73] : memref<36x128x128xbf16, #tpu.memory_space<vmem>>, vector<1x128x128xbf16>
      %130 = vector.shape_cast %129 : vector<1x128x128xbf16> to vector<128x128xbf16>
      %cst_74 = arith.constant dense<0.000000e+00> : vector<24x128xf32>
      %131 = tpu.matmul %128, %130, %cst_74 {dimension_numbers = #tpu.dot_dimension_numbers<[1], [0], [0], [1], [0, 0, 1, 1], [], []>} : vector<24x128xbf16>, vector<128x128xbf16>, vector<24x128xf32> -> vector<24x128xf32>
      %132 = vector.extract_strided_slice %127 {offsets = [1, 0], sizes = [24, 128], strides = [1, 1]} : vector<38x128xbf16> to vector<24x128xbf16>
      %c19 = arith.constant 19 : index
      %c0_75 = arith.constant 0 : index
      %c0_76 = arith.constant 0 : index
      %133 = vector.load %arg2[%c19, %c0_75, %c0_76] : memref<36x128x128xbf16, #tpu.memory_space<vmem>>, vector<1x128x128xbf16>
      %134 = vector.shape_cast %133 : vector<1x128x128xbf16> to vector<128x128xbf16>
      %cst_77 = arith.constant dense<0.000000e+00> : vector<24x128xf32>
      %135 = tpu.matmul %132, %134, %cst_77 {dimension_numbers = #tpu.dot_dimension_numbers<[1], [0], [0], [1], [0, 0, 1, 1], [], []>} : vector<24x128xbf16>, vector<128x128xbf16>, vector<24x128xf32> -> vector<24x128xf32>
      %136 = arith.addf %131, %135 : vector<24x128xf32>
      %137 = vector.extract_strided_slice %127 {offsets = [2, 0], sizes = [24, 128], strides = [1, 1]} : vector<38x128xbf16> to vector<24x128xbf16>
      %c20 = arith.constant 20 : index
      %c0_78 = arith.constant 0 : index
      %c0_79 = arith.constant 0 : index
      %138 = vector.load %arg2[%c20, %c0_78, %c0_79] : memref<36x128x128xbf16, #tpu.memory_space<vmem>>, vector<1x128x128xbf16>
      %139 = vector.shape_cast %138 : vector<1x128x128xbf16> to vector<128x128xbf16>
      %cst_80 = arith.constant dense<0.000000e+00> : vector<24x128xf32>
      %140 = tpu.matmul %137, %139, %cst_80 {dimension_numbers = #tpu.dot_dimension_numbers<[1], [0], [0], [1], [0, 0, 1, 1], [], []>} : vector<24x128xbf16>, vector<128x128xbf16>, vector<24x128xf32> -> vector<24x128xf32>
      %141 = arith.addf %136, %140 : vector<24x128xf32>
      %142 = vector.extract_strided_slice %127 {offsets = [6, 0], sizes = [24, 128], strides = [1, 1]} : vector<38x128xbf16> to vector<24x128xbf16>
      %c21 = arith.constant 21 : index
      %c0_81 = arith.constant 0 : index
      %c0_82 = arith.constant 0 : index
      %143 = vector.load %arg2[%c21, %c0_81, %c0_82] : memref<36x128x128xbf16, #tpu.memory_space<vmem>>, vector<1x128x128xbf16>
      %144 = vector.shape_cast %143 : vector<1x128x128xbf16> to vector<128x128xbf16>
      %cst_83 = arith.constant dense<0.000000e+00> : vector<24x128xf32>
      %145 = tpu.matmul %142, %144, %cst_83 {dimension_numbers = #tpu.dot_dimension_numbers<[1], [0], [0], [1], [0, 0, 1, 1], [], []>} : vector<24x128xbf16>, vector<128x128xbf16>, vector<24x128xf32> -> vector<24x128xf32>
      %146 = arith.addf %141, %145 : vector<24x128xf32>
      %147 = vector.extract_strided_slice %127 {offsets = [7, 0], sizes = [24, 128], strides = [1, 1]} : vector<38x128xbf16> to vector<24x128xbf16>
      %c22 = arith.constant 22 : index
      %c0_84 = arith.constant 0 : index
      %c0_85 = arith.constant 0 : index
      %148 = vector.load %arg2[%c22, %c0_84, %c0_85] : memref<36x128x128xbf16, #tpu.memory_space<vmem>>, vector<1x128x128xbf16>
      %149 = vector.shape_cast %148 : vector<1x128x128xbf16> to vector<128x128xbf16>
      %cst_86 = arith.constant dense<0.000000e+00> : vector<24x128xf32>
      %150 = tpu.matmul %147, %149, %cst_86 {dimension_numbers = #tpu.dot_dimension_numbers<[1], [0], [0], [1], [0, 0, 1, 1], [], []>} : vector<24x128xbf16>, vector<128x128xbf16>, vector<24x128xf32> -> vector<24x128xf32>
      %151 = arith.addf %146, %150 : vector<24x128xf32>
      %152 = vector.extract_strided_slice %127 {offsets = [8, 0], sizes = [24, 128], strides = [1, 1]} : vector<38x128xbf16> to vector<24x128xbf16>
      %c23 = arith.constant 23 : index
      %c0_87 = arith.constant 0 : index
      %c0_88 = arith.constant 0 : index
      %153 = vector.load %arg2[%c23, %c0_87, %c0_88] : memref<36x128x128xbf16, #tpu.memory_space<vmem>>, vector<1x128x128xbf16>
      %154 = vector.shape_cast %153 : vector<1x128x128xbf16> to vector<128x128xbf16>
      %cst_89 = arith.constant dense<0.000000e+00> : vector<24x128xf32>
      %155 = tpu.matmul %152, %154, %cst_89 {dimension_numbers = #tpu.dot_dimension_numbers<[1], [0], [0], [1], [0, 0, 1, 1], [], []>} : vector<24x128xbf16>, vector<128x128xbf16>, vector<24x128xf32> -> vector<24x128xf32>
      %156 = arith.addf %151, %155 : vector<24x128xf32>
      %157 = vector.extract_strided_slice %127 {offsets = [12, 0], sizes = [24, 128], strides = [1, 1]} : vector<38x128xbf16> to vector<24x128xbf16>
      %c24 = arith.constant 24 : index
      %c0_90 = arith.constant 0 : index
      %c0_91 = arith.constant 0 : index
      %158 = vector.load %arg2[%c24, %c0_90, %c0_91] : memref<36x128x128xbf16, #tpu.memory_space<vmem>>, vector<1x128x128xbf16>
      %159 = vector.shape_cast %158 : vector<1x128x128xbf16> to vector<128x128xbf16>
      %cst_92 = arith.constant dense<0.000000e+00> : vector<24x128xf32>
      %160 = tpu.matmul %157, %159, %cst_92 {dimension_numbers = #tpu.dot_dimension_numbers<[1], [0], [0], [1], [0, 0, 1, 1], [], []>} : vector<24x128xbf16>, vector<128x128xbf16>, vector<24x128xf32> -> vector<24x128xf32>
      %161 = arith.addf %156, %160 : vector<24x128xf32>
      %162 = vector.extract_strided_slice %127 {offsets = [13, 0], sizes = [24, 128], strides = [1, 1]} : vector<38x128xbf16> to vector<24x128xbf16>
      %c25 = arith.constant 25 : index
      %c0_93 = arith.constant 0 : index
      %c0_94 = arith.constant 0 : index
      %163 = vector.load %arg2[%c25, %c0_93, %c0_94] : memref<36x128x128xbf16, #tpu.memory_space<vmem>>, vector<1x128x128xbf16>
      %164 = vector.shape_cast %163 : vector<1x128x128xbf16> to vector<128x128xbf16>
      %cst_95 = arith.constant dense<0.000000e+00> : vector<24x128xf32>
      %165 = tpu.matmul %162, %164, %cst_95 {dimension_numbers = #tpu.dot_dimension_numbers<[1], [0], [0], [1], [0, 0, 1, 1], [], []>} : vector<24x128xbf16>, vector<128x128xbf16>, vector<24x128xf32> -> vector<24x128xf32>
      %166 = arith.addf %161, %165 : vector<24x128xf32>
      %167 = vector.extract_strided_slice %127 {offsets = [14, 0], sizes = [24, 128], strides = [1, 1]} : vector<38x128xbf16> to vector<24x128xbf16>
      %c26 = arith.constant 26 : index
      %c0_96 = arith.constant 0 : index
      %c0_97 = arith.constant 0 : index
      %168 = vector.load %arg2[%c26, %c0_96, %c0_97] : memref<36x128x128xbf16, #tpu.memory_space<vmem>>, vector<1x128x128xbf16>
      %169 = vector.shape_cast %168 : vector<1x128x128xbf16> to vector<128x128xbf16>
      %cst_98 = arith.constant dense<0.000000e+00> : vector<24x128xf32>
      %170 = tpu.matmul %167, %169, %cst_98 {dimension_numbers = #tpu.dot_dimension_numbers<[1], [0], [0], [1], [0, 0, 1, 1], [], []>} : vector<24x128xbf16>, vector<128x128xbf16>, vector<24x128xf32> -> vector<24x128xf32>
      %171 = arith.addf %166, %170 : vector<24x128xf32>
      %c2_99 = arith.constant 2 : index
      %c0_100 = arith.constant 0 : index
      %c0_101 = arith.constant 0 : index
      %172 = vector.load %arg3[%c2_99, %c0_100, %c0_101] : memref<4x1x128xf32, #tpu.memory_space<vmem>>, vector<1x1x128xf32>
      %173 = vector.shape_cast %172 : vector<1x1x128xf32> to vector<1x128xf32>
      %174 = vector.broadcast %173 : vector<1x128xf32> to vector<24x128xf32>
      %175 = arith.addf %171, %174 : vector<24x128xf32>
      %cst_102 = arith.constant 0.000000e+00 : f32
      %176 = vector.broadcast %cst_102 : f32 to vector<24x128xf32>
      %177 = arith.maximumf %175, %176 : vector<24x128xf32>
      %178 = arith.truncf %177 : vector<24x128xf32> to vector<24x128xbf16>
      %c0_103 = arith.constant 0 : index
      %c0_104 = arith.constant 0 : index
      %179 = vector.load %arg6[%c0_103, %c0_104] : memref<72x24xbf16, #tpu.memory_space<vmem>>, vector<72x24xbf16>
      %cst_105 = arith.constant dense<0.000000e+00> : vector<72x128xf32>
      %180 = tpu.matmul %179, %178, %cst_105 {dimension_numbers = #tpu.dot_dimension_numbers<[1], [0], [0], [1], [0, 0, 1, 1], [], []>} : vector<72x24xbf16>, vector<24x128xbf16>, vector<72x128xf32> -> vector<72x128xf32>
      %181 = vector.extract_strided_slice %180 {offsets = [0, 0], sizes = [18, 128], strides = [1, 1]} : vector<72x128xf32> to vector<18x128xf32>
      %182 = vector.extract_strided_slice %180 {offsets = [18, 0], sizes = [18, 128], strides = [1, 1]} : vector<72x128xf32> to vector<18x128xf32>
      %183 = arith.maximumf %181, %182 : vector<18x128xf32>
      %184 = vector.extract_strided_slice %180 {offsets = [36, 0], sizes = [18, 128], strides = [1, 1]} : vector<72x128xf32> to vector<18x128xf32>
      %185 = vector.extract_strided_slice %180 {offsets = [54, 0], sizes = [18, 128], strides = [1, 1]} : vector<72x128xf32> to vector<18x128xf32>
      %186 = arith.maximumf %184, %185 : vector<18x128xf32>
      %187 = arith.maximumf %183, %186 : vector<18x128xf32>
      %188 = arith.truncf %187 : vector<18x128xf32> to vector<18x128xbf16>
      %189 = vector.extract_strided_slice %188 {offsets = [0, 0], sizes = [8, 128], strides = [1, 1]} : vector<18x128xbf16> to vector<8x128xbf16>
      %c27 = arith.constant 27 : index
      %c0_106 = arith.constant 0 : index
      %c0_107 = arith.constant 0 : index
      %190 = vector.load %arg2[%c27, %c0_106, %c0_107] : memref<36x128x128xbf16, #tpu.memory_space<vmem>>, vector<1x128x128xbf16>
      %191 = vector.shape_cast %190 : vector<1x128x128xbf16> to vector<128x128xbf16>
      %cst_108 = arith.constant dense<0.000000e+00> : vector<8x128xf32>
      %192 = tpu.matmul %189, %191, %cst_108 {dimension_numbers = #tpu.dot_dimension_numbers<[1], [0], [0], [1], [0, 0, 1, 1], [], []>} : vector<8x128xbf16>, vector<128x128xbf16>, vector<8x128xf32> -> vector<8x128xf32>
      %193 = vector.extract_strided_slice %188 {offsets = [1, 0], sizes = [8, 128], strides = [1, 1]} : vector<18x128xbf16> to vector<8x128xbf16>
      %c28 = arith.constant 28 : index
      %c0_109 = arith.constant 0 : index
      %c0_110 = arith.constant 0 : index
      %194 = vector.load %arg2[%c28, %c0_109, %c0_110] : memref<36x128x128xbf16, #tpu.memory_space<vmem>>, vector<1x128x128xbf16>
      %195 = vector.shape_cast %194 : vector<1x128x128xbf16> to vector<128x128xbf16>
      %cst_111 = arith.constant dense<0.000000e+00> : vector<8x128xf32>
      %196 = tpu.matmul %193, %195, %cst_111 {dimension_numbers = #tpu.dot_dimension_numbers<[1], [0], [0], [1], [0, 0, 1, 1], [], []>} : vector<8x128xbf16>, vector<128x128xbf16>, vector<8x128xf32> -> vector<8x128xf32>
      %197 = arith.addf %192, %196 : vector<8x128xf32>
      %198 = vector.extract_strided_slice %188 {offsets = [2, 0], sizes = [8, 128], strides = [1, 1]} : vector<18x128xbf16> to vector<8x128xbf16>
      %c29 = arith.constant 29 : index
      %c0_112 = arith.constant 0 : index
      %c0_113 = arith.constant 0 : index
      %199 = vector.load %arg2[%c29, %c0_112, %c0_113] : memref<36x128x128xbf16, #tpu.memory_space<vmem>>, vector<1x128x128xbf16>
      %200 = vector.shape_cast %199 : vector<1x128x128xbf16> to vector<128x128xbf16>
      %cst_114 = arith.constant dense<0.000000e+00> : vector<8x128xf32>
      %201 = tpu.matmul %198, %200, %cst_114 {dimension_numbers = #tpu.dot_dimension_numbers<[1], [0], [0], [1], [0, 0, 1, 1], [], []>} : vector<8x128xbf16>, vector<128x128xbf16>, vector<8x128xf32> -> vector<8x128xf32>
      %202 = arith.addf %197, %201 : vector<8x128xf32>
      %203 = vector.extract_strided_slice %188 {offsets = [4, 0], sizes = [8, 128], strides = [1, 1]} : vector<18x128xbf16> to vector<8x128xbf16>
      %c30 = arith.constant 30 : index
      %c0_115 = arith.constant 0 : index
      %c0_116 = arith.constant 0 : index
      %204 = vector.load %arg2[%c30, %c0_115, %c0_116] : memref<36x128x128xbf16, #tpu.memory_space<vmem>>, vector<1x128x128xbf16>
      %205 = vector.shape_cast %204 : vector<1x128x128xbf16> to vector<128x128xbf16>
      %cst_117 = arith.constant dense<0.000000e+00> : vector<8x128xf32>
      %206 = tpu.matmul %203, %205, %cst_117 {dimension_numbers = #tpu.dot_dimension_numbers<[1], [0], [0], [1], [0, 0, 1, 1], [], []>} : vector<8x128xbf16>, vector<128x128xbf16>, vector<8x128xf32> -> vector<8x128xf32>
      %207 = arith.addf %202, %206 : vector<8x128xf32>
      %208 = vector.extract_strided_slice %188 {offsets = [5, 0], sizes = [8, 128], strides = [1, 1]} : vector<18x128xbf16> to vector<8x128xbf16>
      %c31 = arith.constant 31 : index
      %c0_118 = arith.constant 0 : index
      %c0_119 = arith.constant 0 : index
      %209 = vector.load %arg2[%c31, %c0_118, %c0_119] : memref<36x128x128xbf16, #tpu.memory_space<vmem>>, vector<1x128x128xbf16>
      %210 = vector.shape_cast %209 : vector<1x128x128xbf16> to vector<128x128xbf16>
      %cst_120 = arith.constant dense<0.000000e+00> : vector<8x128xf32>
      %211 = tpu.matmul %208, %210, %cst_120 {dimension_numbers = #tpu.dot_dimension_numbers<[1], [0], [0], [1], [0, 0, 1, 1], [], []>} : vector<8x128xbf16>, vector<128x128xbf16>, vector<8x128xf32> -> vector<8x128xf32>
      %212 = arith.addf %207, %211 : vector<8x128xf32>
      %213 = vector.extract_strided_slice %188 {offsets = [6, 0], sizes = [8, 128], strides = [1, 1]} : vector<18x128xbf16> to vector<8x128xbf16>
      %c32 = arith.constant 32 : index
      %c0_121 = arith.constant 0 : index
      %c0_122 = arith.constant 0 : index
      %214 = vector.load %arg2[%c32, %c0_121, %c0_122] : memref<36x128x128xbf16, #tpu.memory_space<vmem>>, vector<1x128x128xbf16>
      %215 = vector.shape_cast %214 : vector<1x128x128xbf16> to vector<128x128xbf16>
      %cst_123 = arith.constant dense<0.000000e+00> : vector<8x128xf32>
      %216 = tpu.matmul %213, %215, %cst_123 {dimension_numbers = #tpu.dot_dimension_numbers<[1], [0], [0], [1], [0, 0, 1, 1], [], []>} : vector<8x128xbf16>, vector<128x128xbf16>, vector<8x128xf32> -> vector<8x128xf32>
      %217 = arith.addf %212, %216 : vector<8x128xf32>
      %218 = vector.extract_strided_slice %188 {offsets = [8, 0], sizes = [8, 128], strides = [1, 1]} : vector<18x128xbf16> to vector<8x128xbf16>
      %c33 = arith.constant 33 : index
      %c0_124 = arith.constant 0 : index
      %c0_125 = arith.constant 0 : index
      %219 = vector.load %arg2[%c33, %c0_124, %c0_125] : memref<36x128x128xbf16, #tpu.memory_space<vmem>>, vector<1x128x128xbf16>
      %220 = vector.shape_cast %219 : vector<1x128x128xbf16> to vector<128x128xbf16>
      %cst_126 = arith.constant dense<0.000000e+00> : vector<8x128xf32>
      %221 = tpu.matmul %218, %220, %cst_126 {dimension_numbers = #tpu.dot_dimension_numbers<[1], [0], [0], [1], [0, 0, 1, 1], [], []>} : vector<8x128xbf16>, vector<128x128xbf16>, vector<8x128xf32> -> vector<8x128xf32>
      %222 = arith.addf %217, %221 : vector<8x128xf32>
      %223 = vector.extract_strided_slice %188 {offsets = [9, 0], sizes = [8, 128], strides = [1, 1]} : vector<18x128xbf16> to vector<8x128xbf16>
      %c34 = arith.constant 34 : index
      %c0_127 = arith.constant 0 : index
      %c0_128 = arith.constant 0 : index
      %224 = vector.load %arg2[%c34, %c0_127, %c0_128] : memref<36x128x128xbf16, #tpu.memory_space<vmem>>, vector<1x128x128xbf16>
      %225 = vector.shape_cast %224 : vector<1x128x128xbf16> to vector<128x128xbf16>
      %cst_129 = arith.constant dense<0.000000e+00> : vector<8x128xf32>
      %226 = tpu.matmul %223, %225, %cst_129 {dimension_numbers = #tpu.dot_dimension_numbers<[1], [0], [0], [1], [0, 0, 1, 1], [], []>} : vector<8x128xbf16>, vector<128x128xbf16>, vector<8x128xf32> -> vector<8x128xf32>
      %227 = arith.addf %222, %226 : vector<8x128xf32>
      %228 = vector.extract_strided_slice %188 {offsets = [10, 0], sizes = [8, 128], strides = [1, 1]} : vector<18x128xbf16> to vector<8x128xbf16>
      %c35 = arith.constant 35 : index
      %c0_130 = arith.constant 0 : index
      %c0_131 = arith.constant 0 : index
      %229 = vector.load %arg2[%c35, %c0_130, %c0_131] : memref<36x128x128xbf16, #tpu.memory_space<vmem>>, vector<1x128x128xbf16>
      %230 = vector.shape_cast %229 : vector<1x128x128xbf16> to vector<128x128xbf16>
      %cst_132 = arith.constant dense<0.000000e+00> : vector<8x128xf32>
      %231 = tpu.matmul %228, %230, %cst_132 {dimension_numbers = #tpu.dot_dimension_numbers<[1], [0], [0], [1], [0, 0, 1, 1], [], []>} : vector<8x128xbf16>, vector<128x128xbf16>, vector<8x128xf32> -> vector<8x128xf32>
      %232 = arith.addf %227, %231 : vector<8x128xf32>
      %c3_133 = arith.constant 3 : index
      %c0_134 = arith.constant 0 : index
      %c0_135 = arith.constant 0 : index
      %233 = vector.load %arg3[%c3_133, %c0_134, %c0_135] : memref<4x1x128xf32, #tpu.memory_space<vmem>>, vector<1x1x128xf32>
      %234 = vector.shape_cast %233 : vector<1x1x128xf32> to vector<1x128xf32>
      %235 = vector.broadcast %234 : vector<1x128xf32> to vector<8x128xf32>
      %236 = arith.addf %232, %235 : vector<8x128xf32>
      %cst_136 = arith.constant 0.000000e+00 : f32
      %237 = vector.broadcast %cst_136 : f32 to vector<8x128xf32>
      %238 = arith.maximumf %236, %237 : vector<8x128xf32>
      %239 = arith.truncf %238 : vector<8x128xf32> to vector<8x128xbf16>
      %c0_137 = arith.constant 0 : index
      %c0_138 = arith.constant 0 : index
      %240 = vector.load %arg7[%c0_137, %c0_138] : memref<4x8xbf16, #tpu.memory_space<vmem>>, vector<4x8xbf16>
      %cst_139 = arith.constant dense<0.000000e+00> : vector<4x128xf32>
      %241 = tpu.matmul %240, %239, %cst_139 {dimension_numbers = #tpu.dot_dimension_numbers<[1], [0], [0], [1], [0, 0, 1, 1], [], []>} : vector<4x8xbf16>, vector<8x128xbf16>, vector<4x128xf32> -> vector<4x128xf32>
      %242 = vector.extract_strided_slice %241 {offsets = [0, 0], sizes = [1, 128], strides = [1, 1]} : vector<4x128xf32> to vector<1x128xf32>
      %243 = vector.extract_strided_slice %241 {offsets = [1, 0], sizes = [1, 128], strides = [1, 1]} : vector<4x128xf32> to vector<1x128xf32>
      %244 = arith.maximumf %242, %243 : vector<1x128xf32>
      %245 = vector.extract_strided_slice %241 {offsets = [2, 0], sizes = [1, 128], strides = [1, 1]} : vector<4x128xf32> to vector<1x128xf32>
      %246 = vector.extract_strided_slice %241 {offsets = [3, 0], sizes = [1, 128], strides = [1, 1]} : vector<4x128xf32> to vector<1x128xf32>
      %247 = arith.maximumf %245, %246 : vector<1x128xf32>
      %248 = arith.maximumf %244, %247 : vector<1x128xf32>
      %249 = arith.index_cast %2 : i32 to index
      %c0_140 = arith.constant 0 : index
      %c0_141 = arith.constant 0 : index
      %250 = vector.load %arg8[%249, %c0_140, %c0_141] : memref<8x1x128xf32, #tpu.memory_space<vmem>>, vector<1x1x128xf32>
      %251 = vector.shape_cast %250 : vector<1x1x128xf32> to vector<1x128xf32>
      %252 = vector.shape_cast %248 : vector<1x128xf32> to vector<1x1x128xf32>
      tpu.vector_store %arg8[%249, %c0_140, %c0_141], %252 {strides = array<i32>} : memref<8x1x128xf32, #tpu.memory_space<vmem>>, vector<1x1x128xf32>,
    }
    %c8_i32_0 = arith.constant 8 : i32
    return
  }
  func.func @transform_0(%arg0: i32) -> (i32, i32, i32) {
    %c0_i32 = arith.constant 0 : i32
    %c0_i32_0 = arith.constant 0 : i32
    %c0_i32_1 = arith.constant 0 : i32
    return %arg0, %c0_i32, %c0_i32_0 : i32, i32, i32
  }
  func.func @transform_1(%arg0: i32) -> (i32, i32, i32) {
    %c0_i32 = arith.constant 0 : i32
    %c0_i32_0 = arith.constant 0 : i32
    %c0_i32_1 = arith.constant 0 : i32
    %c0_i32_2 = arith.constant 0 : i32
    return %c0_i32, %c0_i32_0, %c0_i32_1 : i32, i32, i32
  }
  func.func @transform_2(%arg0: i32) -> (i32, i32, i32) {
    %c0_i32 = arith.constant 0 : i32
    %c0_i32_0 = arith.constant 0 : i32
    %c0_i32_1 = arith.constant 0 : i32
    %c0_i32_2 = arith.constant 0 : i32
    return %c0_i32, %c0_i32_0, %c0_i32_1 : i32, i32, i32
  }
  func.func @transform_3(%arg0: i32) -> (i32, i32) {
    %c0_i32 = arith.constant 0 : i32
    %c0_i32_0 = arith.constant 0 : i32
    %c0_i32_1 = arith.constant 0 : i32
    return %c0_i32, %c0_i32_0 : i32, i32
  }
  func.func @transform_4(%arg0: i32) -> (i32, i32) {
    %c0_i32 = arith.constant 0 : i32
    %c0_i32_0 = arith.constant 0 : i32
    %c0_i32_1 = arith.constant 0 : i32
    return %c0_i32, %c0_i32_0 : i32, i32
  }
  func.func @transform_5(%arg0: i32) -> (i32, i32) {
    %c0_i32 = arith.constant 0 : i32
    %c0_i32_0 = arith.constant 0 : i32
    %c0_i32_1 = arith.constant 0 : i32
    return %c0_i32, %c0_i32_0 : i32, i32
  }
  func.func @transform_6(%arg0: i32) -> (i32, i32) {
    %c0_i32 = arith.constant 0 : i32
    %c0_i32_0 = arith.constant 0 : i32
    %c0_i32_1 = arith.constant 0 : i32
    return %c0_i32, %c0_i32_0 : i32, i32
  }
  func.func @transform_7(%arg0: i32) -> (i32, i32, i32) {
    %c0_i32 = arith.constant 0 : i32
    %c0_i32_0 = arith.constant 0 : i32
    %c0_i32_1 = arith.constant 0 : i32
    return %arg0, %c0_i32, %c0_i32_0 : i32, i32, i32
  }
}

</mosaic_0001>

<llo_original>
// kernel: mnist_cnn_forward.1
$region0: #{mnist_cnn_forward.1}
  #allocation0 [shape = 'u32[]', space=smem, size = 0x4, offset = 0x4, fixed_abs, tag = 'smem constant byte address 0x4 - core index']
  #allocation1 [shape = 'u32[144,128]{1,0:T(1,128)}', space=vmem, size = 0x12000, scoped, tag = 'internal scratch']
  %s0 = inlined_call_operand.vmem [shape: bf16[16,326,128], index: 0, kind: input, shape index: {}]
  %s1 = inlined_call_operand.vmem [shape: bf16[36,128,128], index: 1, kind: input, shape index: {}]
  %s2 = inlined_call_operand.vmem [shape: f32[4,1,128], index: 2, kind: input, shape index: {}]
  %s3 = inlined_call_operand.vmem [shape: bf16[408,288], index: 3, kind: input, shape index: {}]
  %s4 = inlined_call_operand.vmem [shape: bf16[152,80], index: 4, kind: input, shape index: {}]
  %s5 = inlined_call_operand.vmem [shape: bf16[72,24], index: 5, kind: input, shape index: {}]
  %s6 = inlined_call_operand.vmem [shape: bf16[4,8], index: 6, kind: input, shape index: {}]
  %s7 = inlined_call_operand.hbm [shape: f32[16,1,128], index: 7, kind: output, shape index: {}]
  %s8 = sld [smem:[#allocation0]]
  $region68: #{mnist_cnn_forward.1} parent=0
    _
  %s10 = ssub.s32 1, %s8
  %s11 = scalar_select 0, %s10, %s8
  $region1: #{mnist_cnn_forward.1} parent=0
    #allocation2 [shape = 'u8[8192]{0}', space=vmem, size = 0x2000, scoped, tag = 'output window, operand 0']
    #allocation3 [shape = 's32[2]{0}', space=sflag, size = 0x8, scoped, tag = 'scoped memory for mnist_cnn_forward.1']
    %12 = vsyncpa [#allocation3], 0
    %s13 = scalar_lea.sflag [#allocation3], 1
    %14 = vsyncpa %s13, 0
    loop: start=0, step=1, limit=4
    $region2: #{mnist_cnn_forward.1} parent=1 // loop_pre_header
      _
    $region3: #{mnist_cnn_forward.1} parent=1 // loop_header
      %s16 = sphi 0, %s20
      %p17 = scmp.ge.s32.totalorder %s16, 4
      %s26 = sphi 0, %s28
      %s29 = sphi 0, %s26
      %s30 = sphi 0, %s29
      %s46 = sphi 0, %s30
      %s50 = sphi 0, %s50
      %s52 = sphi 0, %s50
      %s53 = sphi 0, %s52
      %s67 = sphi 0, %s53
      %s71 = sphi 0, %s71
      %s73 = sphi 0, %s71
      %s74 = sphi 0, %s73
      %s88 = sphi 0, %s74
      %s92 = sphi 0, %s92
      %s94 = sphi 0, %s92
      %s95 = sphi 0, %s94
      %s109 = sphi 0, %s95
      %s113 = sphi 0, %s113
      %s115 = sphi 0, %s113
      %s116 = sphi 0, %s115
      %s130 = sphi 0, %s116
      %s134 = sphi 0, %s134
      %s136 = sphi 0, %s134
      %s137 = sphi 0, %s136
      %s151 = sphi 0, %s137
      %s155 = sphi 0, %s155
      %s157 = sphi 0, %s155
      %s158 = sphi 0, %s157
      %s172 = sphi 0, %s158
      %s178 = sphi 0, %s180
      %s181 = sphi 0, %s178
      %s182 = sphi 0, %s181
      %s198 = sphi 0, %s182
    $region4: #{mnist_cnn_forward.1} parent=1 // loop_header_branch
      %19 = sbr.rel (%p17) target = $region8
    $region5: #{mnist_cnn_forward.1} parent=1 // loop_body
      %s21 = ssub.s32 %s16, 1
      %s22 = ssub.s32 %s16, 2
      %s23 = sadd.s32 %s16, 1
      %s24 = ssub.s32 %s16, %s23
      %p25 = scmp.eq.s32.totalorder %s24, 0
      %s27 = sadd.s32 %s26, 1
      %s28 = scalar_select %p25, %s26, %s27
      %p31 = pneg %p25
      %p32 = scmp.eq.s32.totalorder %s16, 1
      %p33 = por %p31, %p32
      %p34 = scmp.ne.s32.totalorder %s26, %s29
      %p35 = scmp.eq.s32.totalorder %s16, 0
      %p36 = por %p34, %p35
      %p37 = scmp.ne.s32.totalorder %s26, %s29
      %p38 = scmp.eq.s32.totalorder %s21, 1
      %p39 = por %p37, %p38
      %p40 = scmp.ne.s32.totalorder %s29, %s30
      %p41 = scmp.eq.s32.totalorder %s21, 0
      %p42 = por %p40, %p41
      %p43 = scmp.ne.s32.totalorder %s29, %s30
      %p44 = scmp.eq.s32.totalorder %s22, 1
      %p45 = por %p43, %p44
      %p47 = scmp.ne.s32.totalorder %s30, %s46
      %p48 = scmp.eq.s32.totalorder %s22, 0
      %p49 = por %p47, %p48
      %s51 = sadd.s32 %s50, 1
      %p54 = scmp.eq.s32.totalorder %s16, 1
      %p55 = scmp.ne.s32.totalorder %s50, %s52
      %p56 = scmp.eq.s32.totalorder %s16, 0
      %p57 = por %p55, %p56
      %p58 = scmp.ne.s32.totalorder %s50, %s52
      %p59 = scmp.eq.s32.totalorder %s21, 1
      %p60 = por %p58, %p59
      %p61 = scmp.ne.s32.totalorder %s52, %s53
      %p62 = scmp.eq.s32.totalorder %s21, 0
      %p63 = por %p61, %p62
      %p64 = scmp.ne.s32.totalorder %s52, %s53
      %p65 = scmp.eq.s32.totalorder %s22, 1
      %p66 = por %p64, %p65
      %p68 = scmp.ne.s32.totalorder %s53, %s67
      %p69 = scmp.eq.s32.totalorder %s22, 0
      %p70 = por %p68, %p69
      %s72 = sadd.s32 %s71, 1
      %p75 = scmp.eq.s32.totalorder %s16, 1
      %p76 = scmp.ne.s32.totalorder %s71, %s73
      %p77 = scmp.eq.s32.totalorder %s16, 0
      %p78 = por %p76, %p77
      %p79 = scmp.ne.s32.totalorder %s71, %s73
      %p80 = scmp.eq.s32.totalorder %s21, 1
      %p81 = por %p79, %p80
      %p82 = scmp.ne.s32.totalorder %s73, %s74
      %p83 = scmp.eq.s32.totalorder %s21, 0
      %p84 = por %p82, %p83
      %p85 = scmp.ne.s32.totalorder %s73, %s74
      %p86 = scmp.eq.s32.totalorder %s22, 1
      %p87 = por %p85, %p86
      %p89 = scmp.ne.s32.totalorder %s74, %s88
      %p90 = scmp.eq.s32.totalorder %s22, 0
      %p91 = por %p89, %p90
      %s93 = sadd.s32 %s92, 1
      %p96 = scmp.eq.s32.totalorder %s16, 1
      %p97 = scmp.ne.s32.totalorder %s92, %s94
      %p98 = scmp.eq.s32.totalorder %s16, 0
      %p99 = por %p97, %p98
      %p100 = scmp.ne.s32.totalorder %s92, %s94
      %p101 = scmp.eq.s32.totalorder %s21, 1
      %p102 = por %p100, %p101
      %p103 = scmp.ne.s32.totalorder %s94, %s95
      %p104 = scmp.eq.s32.totalorder %s21, 0
      %p105 = por %p103, %p104
      %p106 = scmp.ne.s32.totalorder %s94, %s95
      %p107 = scmp.eq.s32.totalorder %s22, 1
      %p108 = por %p106, %p107
      %p110 = scmp.ne.s32.totalorder %s95, %s109
      %p111 = scmp.eq.s32.totalorder %s22, 0
      %p112 = por %p110, %p111
      %s114 = sadd.s32 %s113, 1
      %p117 = scmp.eq.s32.totalorder %s16, 1
      %p118 = scmp.ne.s32.totalorder %s113, %s115
      %p119 = scmp.eq.s32.totalorder %s16, 0
      %p120 = por %p118, %p119
      %p121 = scmp.ne.s32.totalorder %s113, %s115
      %p122 = scmp.eq.s32.totalorder %s21, 1
      %p123 = por %p121, %p122
      %p124 = scmp.ne.s32.totalorder %s115, %s116
      %p125 = scmp.eq.s32.totalorder %s21, 0
      %p126 = por %p124, %p125
      %p127 = scmp.ne.s32.totalorder %s115, %s116
      %p128 = scmp.eq.s32.totalorder %s22, 1
      %p129 = por %p127, %p128
      %p131 = scmp.ne.s32.totalorder %s116, %s130
      %p132 = scmp.eq.s32.totalorder %s22, 0
      %p133 = por %p131, %p132
      %s135 = sadd.s32 %s134, 1
      %p138 = scmp.eq.s32.totalorder %s16, 1
      %p139 = scmp.ne.s32.totalorder %s134, %s136
      %p140 = scmp.eq.s32.totalorder %s16, 0
      %p141 = por %p139, %p140
      %p142 = scmp.ne.s32.totalorder %s134, %s136
      %p143 = scmp.eq.s32.totalorder %s21, 1
      %p144 = por %p142, %p143
      %p145 = scmp.ne.s32.totalorder %s136, %s137
      %p146 = scmp.eq.s32.totalorder %s21, 0
      %p147 = por %p145, %p146
      %p148 = scmp.ne.s32.totalorder %s136, %s137
      %p149 = scmp.eq.s32.totalorder %s22, 1
      %p150 = por %p148, %p149
      %p152 = scmp.ne.s32.totalorder %s137, %s151
      %p153 = scmp.eq.s32.totalorder %s22, 0
      %p154 = por %p152, %p153
      %s156 = sadd.s32 %s155, 1
      %p159 = scmp.eq.s32.totalorder %s16, 1
      %p160 = scmp.ne.s32.totalorder %s155, %s157
      %p161 = scmp.eq.s32.totalorder %s16, 0
      %p162 = por %p160, %p161
      %p163 = scmp.ne.s32.totalorder %s155, %s157
      %p164 = scmp.eq.s32.totalorder %s21, 1
      %p165 = por %p163, %p164
      %p166 = scmp.ne.s32.totalorder %s157, %s158
      %p167 = scmp.eq.s32.totalorder %s21, 0
      %p168 = por %p166, %p167
      %p169 = scmp.ne.s32.totalorder %s157, %s158
      %p170 = scmp.eq.s32.totalorder %s22, 1
      %p171 = por %p169, %p170
      %p173 = scmp.ne.s32.totalorder %s158, %s172
      %p174 = scmp.eq.s32.totalorder %s22, 0
      %p175 = por %p173, %p174
      %s176 = ssub.s32 %s16, %s23
      %p177 = scmp.eq.s32.totalorder %s176, 0
      %s179 = sadd.s32 %s178, 1
      %s180 = scalar_select %p177, %s178, %s179
      %p183 = pneg %p177
      %p184 = scmp.eq.s32.totalorder %s16, 1
      %p185 = por %p183, %p184
      %p186 = scmp.ne.s32.totalorder %s178, %s181
      %p187 = scmp.eq.s32.totalorder %s16, 0
      %p188 = por %p186, %p187
      %p189 = scmp.ne.s32.totalorder %s178, %s181
      %p190 = scmp.eq.s32.totalorder %s21, 1
      %p191 = por %p189, %p190
      %p192 = scmp.ne.s32.totalorder %s181, %s182
      %p193 = scmp.eq.s32.totalorder %s21, 0
      %p194 = por %p192, %p193
      %p195 = scmp.ne.s32.totalorder %s181, %s182
      %p196 = scmp.eq.s32.totalorder %s22, 1
      %p197 = por %p195, %p196
      %p199 = scmp.ne.s32.totalorder %s182, %s198
      %p200 = scmp.eq.s32.totalorder %s22, 0
      %p201 = por %p199, %p200
      %p202 = scmp.le.s32.totalorder 1, %s16
      %p203 = scmp.lt.s32.totalorder %s16, 3
      %p204 = pnand %p202, %p203
      %p205 = pneg %p204
      // Predicated region
      $region9: #{mnist_cnn_forward.1} parent=5 // pred_check
        _
      $region10: #{mnist_cnn_forward.1} parent=5 // pred_check_branch
        %207 = sbr.rel (%p204) target = $region12
      $region11: #{mnist_cnn_forward.1} parent=5 // pred_region
        %s208 = ssub.s32 %s16, 1
        // Predicated region
        $region13: #{mnist_cnn_forward.1} parent=11 // pred_check
          %p209 = pneg %p63
        $region14: #{mnist_cnn_forward.1} parent=11 // pred_check_branch
          %211 = sbr.rel (%p209) target = $region16
        $region15: #{mnist_cnn_forward.1} parent=11 // pred_region
          _
        $region16: #{mnist_cnn_forward.1} parent=11 // pred_fallthru
          _
        // Predicated region
        $region17: #{mnist_cnn_forward.1} parent=11 // pred_check
          %p212 = pneg %p84
        $region18: #{mnist_cnn_forward.1} parent=11 // pred_check_branch
          %214 = sbr.rel (%p212) target = $region20
        $region19: #{mnist_cnn_forward.1} parent=11 // pred_region
          _
        $region20: #{mnist_cnn_forward.1} parent=11 // pred_fallthru
          _
        // Predicated region
        $region21: #{mnist_cnn_forward.1} parent=11 // pred_check
          %p215 = pneg %p105
        $region22: #{mnist_cnn_forward.1} parent=11 // pred_check_branch
          %217 = sbr.rel (%p215) target = $region24
        $region23: #{mnist_cnn_forward.1} parent=11 // pred_region
          _
        $region24: #{mnist_cnn_forward.1} parent=11 // pred_fallthru
          _
        // Predicated region
        $region25: #{mnist_cnn_forward.1} parent=11 // pred_check
          %p218 = pneg %p126
        $region26: #{mnist_cnn_forward.1} parent=11 // pred_check_branch
          %220 = sbr.rel (%p218) target = $region28
        $region27: #{mnist_cnn_forward.1} parent=11 // pred_region
          _
        $region28: #{mnist_cnn_forward.1} parent=11 // pred_fallthru
          _
        // Predicated region
        $region29: #{mnist_cnn_forward.1} parent=11 // pred_check
          %p221 = pneg %p147
        $region30: #{mnist_cnn_forward.1} parent=11 // pred_check_branch
          %223 = sbr.rel (%p221) target = $region32
        $region31: #{mnist_cnn_forward.1} parent=11 // pred_region
          _
        $region32: #{mnist_cnn_forward.1} parent=11 // pred_fallthru
          _
        // Predicated region
        $region33: #{mnist_cnn_forward.1} parent=11 // pred_check
          %p224 = pneg %p168
        $region34: #{mnist_cnn_forward.1} parent=11 // pred_check_branch
          %226 = sbr.rel (%p224) target = $region36
        $region35: #{mnist_cnn_forward.1} parent=11 // pred_region
          _
        $region36: #{mnist_cnn_forward.1} parent=11 // pred_fallthru
          _
      $region12: #{mnist_cnn_forward.1} parent=5 // pred_fallthru
        _
      %p227 = scmp.lt.s32.totalorder %s16, 2
      // Predicated region
      $region37: #{mnist_cnn_forward.1} parent=5 // pred_check
        %p228 = pneg %p227
      $region38: #{mnist_cnn_forward.1} parent=5 // pred_check_branch
        %230 = sbr.rel (%p228) target = $region40
      $region39: #{mnist_cnn_forward.1} parent=5 // pred_region
        // Predicated region
        $region41: #{mnist_cnn_forward.1} parent=39 // pred_check
          %p231 = pneg %p36
        $region42: #{mnist_cnn_forward.1} parent=39 // pred_check_branch
          %233 = sbr.rel (%p231) target = $region44
        $region43: #{mnist_cnn_forward.1} parent=39 // pred_region
          %s234 = smul.u32 8, %s16
          %p235 = scmp.lt.s32.totalorder %s234, 15
          %s236 = scalar_select %p235, %s234, 15
          %s237 = smul.addr %s236, 41
          %s238 = smul.addr %s237, 4
          %s239 = scalar_lea.vmem %s0, %s238
          %s240 = smul.u32 8, %s16
        $region44: #{mnist_cnn_forward.1} parent=39 // pred_fallthru
          _
      $region40: #{mnist_cnn_forward.1} parent=5 // pred_fallthru
        _
      %p241 = scmp.le.s32.totalorder 1, %s16
      %p242 = scmp.lt.s32.totalorder %s16, 3
      %p243 = pnand %p241, %p242
      %p244 = pneg %p243
      // Predicated region
      $region45: #{mnist_cnn_forward.1} parent=5 // pred_check
        _
      $region46: #{mnist_cnn_forward.1} parent=5 // pred_check_branch
        %246 = sbr.rel (%p243) target = $region48
      $region47: #{mnist_cnn_forward.1} parent=5 // pred_region
        %s247 = ssub.s32 %s16, 1
        %s248 = smul.u32 8, %s21
        %p249 = scmp.lt.s32.totalorder %s248, 15
        %s250 = scalar_select %p249, %s248, 15
        %s251 = smul.addr %s250, 41
        %s252 = smul.addr %s251, 4
        %s253 = scalar_lea.vmem %s0, %s252
        %p254 = pneg %p42
        %p255 = pneg %p39
        %p256 = pneg %p63
        %p257 = pneg %p60
        %p258 = pneg %p84
        %p259 = pneg %p81
        %p260 = pneg %p105
        %p261 = pneg %p102
        %p262 = pneg %p126
        %p263 = pneg %p123
        %p264 = pneg %p147
        %p265 = pneg %p144
        %p266 = pneg %p168
        %p267 = pneg %p165
        %p268 = pneg %p194
        %p269 = pneg %p191
        %s270 = sand.u32 %s181, 1
        %s271 = scalar_lea.sflag [#allocation3], %s270
        %s272 = sand.u32 %s181, 1
        %s273 = smul.addr %s272, 8
        %s274 = scalar_lea.vmem [#allocation2], %s273
        %s275 = smul.u32 8, %s21
        %p276 = scmp.lt.s32.totalorder %s275, 15
        %s277 = scalar_select %p276, %s275, 15
        %s278 = smul.addr %s277, 41
        %s279 = smul.addr %s278, 4
        %s280 = scalar_lea.vmem %s0, %s279
        %s281 = smul.u32 8, %s21
        %s282 = smul.u32 8, %s21
        loop: start=0, step=1, limit=8
        $region49: #{mnist_cnn_forward.1} parent=47 // loop_pre_header
          _
        $region50: #{mnist_cnn_forward.1} parent=47 // loop_header
          %s285 = sphi 0, %s289
          %p286 = scmp.ge.s32.totalorder %s285, 8
        $region51: #{mnist_cnn_forward.1} parent=47 // loop_header_branch
          %288 = sbr.rel (%p286) target = $region55
        $region52: #{mnist_cnn_forward.1} parent=47 // loop_body
          %s290 = smul.u32 %s285, 41
          %s291 = smul.addr %s290, 4
          %s292 = scalar_lea.vmem %s280, %s291
          %v293 = vld [vmem:[%s292] sm:$0xf]
          %v294 = vld [vmem:[%s292 + $0x4] sm:$0xf]
          %v295 = vld [vmem:[%s292 + $0x8] sm:$0xf]
          %v296 = vld [vmem:[%s292 + $0xc] sm:$0xf]
          %v297 = vld [vmem:[%s292 + $0x10] sm:$0xf]
          %v298 = vld [vmem:[%s292 + $0x14] sm:$0xf]
          %v299 = vld [vmem:[%s292 + $0x18] sm:$0xf]
          %v300 = vld [vmem:[%s292 + $0x1c] sm:$0xf]
          %v301 = vld [vmem:[%s292 + $0x20] sm:$0xf]
          %v302 = vld [vmem:[%s292 + $0x24] sm:$0xf]
          %v303 = vld [vmem:[%s292 + $0x28] sm:$0xf]
          %v304 = vld [vmem:[%s292 + $0x2c] sm:$0xf]
          %v305 = vld [vmem:[%s292 + $0x30] sm:$0xf]
          %v306 = vld [vmem:[%s292 + $0x34] sm:$0xf]
          %v307 = vld [vmem:[%s292 + $0x38] sm:$0xf]
          %v308 = vld [vmem:[%s292 + $0x3c] sm:$0xf]
          %v309 = vld [vmem:[%s292 + $0x40] sm:$0xf]
          %v310 = vld [vmem:[%s292 + $0x44] sm:$0xf]
          %v311 = vld [vmem:[%s292 + $0x48] sm:$0xf]
          %v312 = vld [vmem:[%s292 + $0x4c] sm:$0xf]
          %v313 = vld [vmem:[%s292 + $0x50] sm:$0xf]
          %v314 = vld [vmem:[%s292 + $0x54] sm:$0xf]
          %v315 = vld [vmem:[%s292 + $0x58] sm:$0xf]
          %v316 = vld [vmem:[%s292 + $0x5c] sm:$0xf]
          %v317 = vld [vmem:[%s292 + $0x60] sm:$0xf]
          %v318 = vld [vmem:[%s292 + $0x64] sm:$0xf]
          %v319 = vld [vmem:[%s292 + $0x68] sm:$0xf]
          %v320 = vld [vmem:[%s292 + $0x6c] sm:$0xf]
          %v321 = vld [vmem:[%s292 + $0x70] sm:$0xf]
          %v322 = vld [vmem:[%s292 + $0x74] sm:$0xf]
          %v323 = vld [vmem:[%s292 + $0x78] sm:$0xf]
          %v324 = vld [vmem:[%s292 + $0x7c] sm:$0xf]
          %v325 = vld [vmem:[%s292 + $0x80] sm:$0xf]
          %v326 = vld [vmem:[%s292 + $0x84] sm:$0xf]
          %v327 = vld [vmem:[%s292 + $0x88] sm:$0xf]
          %v328 = vld [vmem:[%s292 + $0x8c] sm:$0xf]
          %v329 = vld [vmem:[%s292 + $0x90] sm:$0xf]
          %v330 = vld [vmem:[%s292 + $0x94] sm:$0xf]
          %v331 = vld [vmem:[%s292 + $0x98] sm:$0xf]
          %v332 = vld [vmem:[%s292 + $0x9c] sm:$0xf]
          %v333 = vld [vmem:[%s292 + $0xa0] sm:$0x7]
          %v334 = vld [vmem:[%s1] sm:$0xf]
          %v335 = vld [vmem:[%s1 + $0x4] sm:$0xf]
          %v336 = vld [vmem:[%s1 + $0x8] sm:$0xf]
          %v337 = vld [vmem:[%s1 + $0xc] sm:$0xf]
          %v338 = vld [vmem:[%s1 + $0x10] sm:$0xf]
          %v339 = vld [vmem:[%s1 + $0x14] sm:$0xf]
          %v340 = vld [vmem:[%s1 + $0x18] sm:$0xf]
          %v341 = vld [vmem:[%s1 + $0x1c] sm:$0xf]
          %v342 = vld [vmem:[%s1 + $0x20] sm:$0xf]
          %v343 = vld [vmem:[%s1 + $0x24] sm:$0xf]
          %v344 = vld [vmem:[%s1 + $0x28] sm:$0xf]
          %v345 = vld [vmem:[%s1 + $0x2c] sm:$0xf]
          %v346 = vld [vmem:[%s1 + $0x30] sm:$0xf]
          %v347 = vld [vmem:[%s1 + $0x34] sm:$0xf]
          %v348 = vld [vmem:[%s1 + $0x38] sm:$0xf]
          %v349 = vld [vmem:[%s1 + $0x3c] sm:$0xf]
          %s350 = scalar_lea.vmem %s1, 64
          %v351 = vld [vmem:[%s350] sm:$0xf]
          %v352 = vld [vmem:[%s350 + $0x4] sm:$0xf]
          %v353 = vld [vmem:[%s350 + $0x8] sm:$0xf]
          %v354 = vld [vmem:[%s350 + $0xc] sm:$0xf]
          %v355 = vld [vmem:[%s350 + $0x10] sm:$0xf]
          %v356 = vld [vmem:[%s350 + $0x14] sm:$0xf]
          %v357 = vld [vmem:[%s350 + $0x18] sm:$0xf]
          %v358 = vld [vmem:[%s350 + $0x1c] sm:$0xf]
          %v359 = vld [vmem:[%s350 + $0x20] sm:$0xf]
          %v360 = vld [vmem:[%s350 + $0x24] sm:$0xf]
          %v361 = vld [vmem:[%s350 + $0x28] sm:$0xf]
          %v362 = vld [vmem:[%s350 + $0x2c] sm:$0xf]
          %v363 = vld [vmem:[%s350 + $0x30] sm:$0xf]
          %v364 = vld [vmem:[%s350 + $0x34] sm:$0xf]
          %v365 = vld [vmem:[%s350 + $0x38] sm:$0xf]
          %v366 = vld [vmem:[%s350 + $0x3c] sm:$0xf]
          %v404 = vunpack.c.l.b16 %v293
          %v405 = vunpack.c.l.b16 %v294
          %v406 = vunpack.c.l.b16 %v295
          %v407 = vunpack.c.l.b16 %v296
          %v408 = vunpack.c.l.b16 %v297
          %v409 = vunpack.c.l.b16 %v298
          %v410 = vunpack.c.l.b16 %v299
          %v411 = vunpack.c.l.b16 %v300
          %v412 = vunpack.c.l.b16 %v301
          %v413 = vunpack.c.l.b16 %v302
          %v414 = vunpack.c.l.b16 %v303
          %v415 = vunpack.c.l.b16 %v304
          %v416 = vunpack.c.l.b16 %v305
          %v417 = vunpack.c.l.b16 %v306
          %v418 = vunpack.c.l.b16 %v307
          %v419 = vunpack.c.l.b16 %v308
          %v420 = vunpack.c.l.b16 %v309
          %v421 = vunpack.c.l.b16 %v310
          %v422 = vunpack.c.l.b16 %v311
          %v423 = vunpack.c.l.b16 %v312
          %v424 = vunpack.c.l.b16 %v313
          %v425 = vunpack.c.l.b16 %v314
          %v426 = vunpack.c.l.b16 %v315
          %v427 = vunpack.c.l.b16 %v316
          %v428 = vunpack.c.l.b16 %v317
          %v429 = vunpack.c.l.b16 %v318
          %v430 = vunpack.c.l.b16 %v319
          %v431 = vunpack.c.l.b16 %v320
          %v432 = vunpack.c.l.b16 %v321
          %v433 = vunpack.c.l.b16 %v322
          %v434 = vunpack.c.l.b16 %v323
          %v435 = vunpack.c.l.b16 %v324
          %v436 = vunpack.c.l.b16 %v325
          %v437 = vunpack.c.l.b16 %v326
          %v438 = vunpack.c.l.b16 %v327
          %v439 = vunpack.c.l.b16 %v328
          %v440 = vunpack.c.l.b16 %v329
          %v441 = vpack.c.b16 %v405, %v404
          %v442 = vpack.c.b16 %v407, %v406
          %v443 = vpack.c.b16 %v409, %v408
          %v444 = vpack.c.b16 %v411, %v410
          %v445 = vpack.c.b16 %v413, %v412
          %v446 = vpack.c.b16 %v415, %v414
          %v447 = vpack.c.b16 %v417, %v416
          %v448 = vpack.c.b16 %v419, %v418
          %v449 = vpack.c.b16 %v421, %v420
          %v450 = vpack.c.b16 %v423, %v422
          %v451 = vpack.c.b16 %v425, %v424
          %v452 = vpack.c.b16 %v427, %v426
          %v453 = vpack.c.b16 %v429, %v428
          %v454 = vpack.c.b16 %v431, %v430
          %v455 = vpack.c.b16 %v433, %v432
          %v456 = vpack.c.b16 %v435, %v434
          %v457 = vpack.c.b16 %v437, %v436
          %v458 = vpack.c.b16 %v439, %v438
          %v459 = vpack.c.b16 %v440, %v440
          %vm460 = vsmask.f32 7424
          %v462 = vshrl.u32 %v441, 16
          %v464 = vshll.u32 %v441, 16
          %v466 = vrot.slane %v464, 1
          %v467 = vor.u32 %v462, %v466
          %v469 = vshll.u32 %v442, 16
          %v471 = vrot.slane %v469, 1
          %v472 = vsel %vm460, %v467, %v471
          %v473 = vshrl.u32 %v442, 16
          %v475 = vor.u32 %v473, %v471
          %v477 = vshll.u32 %v443, 16
          %v479 = vrot.slane %v477, 1
          %v480 = vsel %vm460, %v475, %v479
          %v481 = vshrl.u32 %v443, 16
          %v483 = vor.u32 %v481, %v479
          %v485 = vshll.u32 %v444, 16
          %v487 = vrot.slane %v485, 1
          %v488 = vsel %vm460, %v483, %v487
          %v489 = vshrl.u32 %v444, 16
          %v491 = vor.u32 %v489, %v487
          %v493 = vshll.u32 %v445, 16
          %v495 = vrot.slane %v493, 1
          %v496 = vsel %vm460, %v491, %v495
          %v497 = vshrl.u32 %v445, 16
          %v499 = vor.u32 %v497, %v495
          %v501 = vshll.u32 %v446, 16
          %v503 = vrot.slane %v501, 1
          %v504 = vsel %vm460, %v499, %v503
          %v505 = vshrl.u32 %v446, 16
          %v507 = vor.u32 %v505, %v503
          %v509 = vshll.u32 %v447, 16
          %v511 = vrot.slane %v509, 1
          %v512 = vsel %vm460, %v507, %v511
          %v513 = vshrl.u32 %v447, 16
          %v515 = vor.u32 %v513, %v511
          %v517 = vshll.u32 %v448, 16
          %v519 = vrot.slane %v517, 1
          %v520 = vsel %vm460, %v515, %v519
          %v521 = vshrl.u32 %v448, 16
          %v523 = vor.u32 %v521, %v519
          %v525 = vshll.u32 %v449, 16
          %v527 = vrot.slane %v525, 1
          %v528 = vsel %vm460, %v523, %v527
          %v529 = vshrl.u32 %v449, 16
          %v531 = vor.u32 %v529, %v527
          %v533 = vshll.u32 %v450, 16
          %v535 = vrot.slane %v533, 1
          %v536 = vsel %vm460, %v531, %v535
          %v537 = vshrl.u32 %v450, 16
          %v539 = vor.u32 %v537, %v535
          %v541 = vshll.u32 %v451, 16
          %v543 = vrot.slane %v541, 1
          %v544 = vsel %vm460, %v539, %v543
          %v545 = vshrl.u32 %v451, 16
          %v547 = vor.u32 %v545, %v543
          %v549 = vshll.u32 %v452, 16
          %v551 = vrot.slane %v549, 1
          %v552 = vsel %vm460, %v547, %v551
          %v553 = vshrl.u32 %v452, 16
          %v555 = vor.u32 %v553, %v551
          %v557 = vshll.u32 %v453, 16
          %v559 = vrot.slane %v557, 1
          %v560 = vsel %vm460, %v555, %v559
          %v561 = vshrl.u32 %v453, 16
          %v563 = vor.u32 %v561, %v559
          %v565 = vshll.u32 %v454, 16
          %v567 = vrot.slane %v565, 1
          %v568 = vsel %vm460, %v563, %v567
          %v569 = vshrl.u32 %v454, 16
          %v571 = vor.u32 %v569, %v567
          %v573 = vshll.u32 %v455, 16
          %v575 = vrot.slane %v573, 1
          %v576 = vsel %vm460, %v571, %v575
          %v577 = vshrl.u32 %v455, 16
          %v579 = vor.u32 %v577, %v575
          %v581 = vshll.u32 %v456, 16
          %v583 = vrot.slane %v581, 1
          %v584 = vsel %vm460, %v579, %v583
          %v585 = vshrl.u32 %v456, 16
          %v587 = vor.u32 %v585, %v583
          %v589 = vshll.u32 %v457, 16
          %v591 = vrot.slane %v589, 1
          %v592 = vsel %vm460, %v587, %v591
          %v593 = vshrl.u32 %v457, 16
          %v595 = vor.u32 %v593, %v591
          %v597 = vshll.u32 %v458, 16
          %v599 = vrot.slane %v597, 1
          %v600 = vsel %vm460, %v595, %v599
          %v601 = vshrl.u32 %v458, 16
          %v603 = vor.u32 %v601, %v599
          %v605 = vshll.u32 %v459, 16
          %v607 = vrot.slane %v605, 1
          %v608 = vsel %vm460, %v603, %v607
          %v643 = vunpack.c.l.b16 %v351
          %v644 = vunpack.c.l.b16 %v352
          %v645 = vunpack.c.l.b16 %v353
          %v646 = vunpack.c.l.b16 %v354
          %v647 = vunpack.c.l.b16 %v355
          %v648 = vunpack.c.l.b16 %v356
          %v649 = vunpack.c.l.b16 %v357
          %v650 = vunpack.c.l.b16 %v358
          %v651 = vunpack.c.l.b16 %v359
          %v652 = vunpack.c.l.b16 %v360
          %v653 = vunpack.c.l.b16 %v361
          %v654 = vunpack.c.l.b16 %v362
          %v655 = vunpack.c.l.b16 %v363
          %v656 = vunpack.c.l.b16 %v364
          %v657 = vunpack.c.l.b16 %v365
          %v658 = vunpack.c.l.b16 %v366
          %v659 = vpack.c.b16 %v644, %v643
          %v660 = vpack.c.b16 %v646, %v645
          %v661 = vpack.c.b16 %v648, %v647
          %v662 = vpack.c.b16 %v650, %v649
          %v663 = vpack.c.b16 %v652, %v651
          %v664 = vpack.c.b16 %v654, %v653
          %v665 = vpack.c.b16 %v656, %v655
          %v666 = vpack.c.b16 %v658, %v657
          %675 = vmatprep.subr.bf16.mxu0 0
          %676 = vmatpush1.bf16.msra.mxu0 %v659
          %677 = vmatprep.subr.bf16.mxu0 0
          %678 = vmatpush1.bf16.msra.mxu0 %v660
          %679 = vmatprep.subr.bf16.mxu0 0
          %680 = vmatpush1.bf16.msra.mxu0 %v661
          %681 = vmatprep.subr.bf16.mxu0 0
          %682 = vmatpush1.bf16.msra.mxu0 %v662
          %683 = vmatprep.subr.bf16.mxu0 0
          %684 = vmatpush1.bf16.msra.mxu0 %v663
          %685 = vmatprep.subr.bf16.mxu0 0
          %686 = vmatpush1.bf16.msra.mxu0 %v664
          %687 = vmatprep.subr.bf16.mxu0 0
          %688 = vmatpush1.bf16.msra.mxu0 %v665
          %689 = vmatprep.subr.bf16.mxu0 0
          %690 = vmatpush1.bf16.msra.mxu0 %v666
          %691 = vmatprep.subr.bf16.mxu0 0
          %692 = vmatpush1.bf16.msra.mxu0 0
          %693 = vmatprep.subr.bf16.mxu0 0
          %694 = vmatpush1.bf16.msra.mxu0 0
          %695 = vmatprep.subr.bf16.mxu0 0
          %696 = vmatpush1.bf16.msra.mxu0 0
          %697 = vmatprep.subr.bf16.mxu0 0
          %698 = vmatpush1.bf16.msra.mxu0 0
          %699 = vmatprep.subr.bf16.mxu0 0
          %700 = vmatpush1.bf16.msra.mxu0 0
          %701 = vmatprep.subr.bf16.mxu0 0
          %702 = vmatpush1.bf16.msra.mxu0 0
          %703 = vmatprep.subr.bf16.mxu0 0
          %704 = vmatpush1.bf16.msra.mxu0 0
          %705 = vmatprep.subr.bf16.mxu0 0
          %706 = vmatpush1.bf16.msra.mxu0 0
          %707 = vmatprep.mubr.bf16.mxu0 0
          %708 = vmatmul.mubr.bf16.gmra.mrb[0].mxu0 %v472
          %v709 = vpop.f32.mrb[0].mxu0
          %v710 = vadd.f32 0.0, %v709
          %v711 = vpop.f32.mrb[0].mxu0
          %v712 = vpop.f32.mrb[0].mxu0
          %v713 = vadd.f32 0.0, %v712
          %v714 = vpop.f32.mrb[0].mxu0
          %715 = vmatprep.mubr.bf16.mxu0 0
          %716 = vmatmul.mubr.bf16.gmra.mrb[0].mxu0 %v480
          %v717 = vpop.f32.mrb[0].mxu0
          %v718 = vadd.f32 0.0, %v717
          %v719 = vpop.f32.mrb[0].mxu0
          %v720 = vpop.f32.mrb[0].mxu0
          %v721 = vadd.f32 0.0, %v720
          %v722 = vpop.f32.mrb[0].mxu0
          %723 = vmatprep.mubr.bf16.mxu0 0
          %724 = vmatmul.mubr.bf16.gmra.mrb[0].mxu0 %v488
          %v725 = vpop.f32.mrb[0].mxu0
          %v726 = vadd.f32 0.0, %v725
          %v727 = vpop.f32.mrb[0].mxu0
          %v728 = vpop.f32.mrb[0].mxu0
          %v729 = vadd.f32 0.0, %v728
          %v730 = vpop.f32.mrb[0].mxu0
          %731 = vmatprep.mubr.bf16.mxu0 0
          %732 = vmatmul.mubr.bf16.gmra.mrb[0].mxu0 %v496
          %v733 = vpop.f32.mrb[0].mxu0
          %v734 = vadd.f32 0.0, %v733
          %v735 = vpop.f32.mrb[0].mxu0
          %v736 = vpop.f32.mrb[0].mxu0
          %v737 = vadd.f32 0.0, %v736
          %v738 = vpop.f32.mrb[0].mxu0
          %739 = vmatprep.mubr.bf16.mxu0 0
          %740 = vmatmul.mubr.bf16.gmra.mrb[0].mxu0 %v504
          %v741 = vpop.f32.mrb[0].mxu0
          %v742 = vadd.f32 0.0, %v741
          %v743 = vpop.f32.mrb[0].mxu0
          %v744 = vpop.f32.mrb[0].mxu0
          %v745 = vadd.f32 0.0, %v744
          %v746 = vpop.f32.mrb[0].mxu0
          %747 = vmatprep.mubr.bf16.mxu0 0
          %748 = vmatmul.mubr.bf16.gmra.mrb[0].mxu0 %v512
          %v749 = vpop.f32.mrb[0].mxu0
          %v750 = vadd.f32 0.0, %v749
          %v751 = vpop.f32.mrb[0].mxu0
          %v752 = vpop.f32.mrb[0].mxu0
          %v753 = vadd.f32 0.0, %v752
          %v754 = vpop.f32.mrb[0].mxu0
          %755 = vmatprep.mubr.bf16.mxu0 0
          %756 = vmatmul.mubr.bf16.gmra.mrb[0].mxu0 %v520
          %v757 = vpop.f32.mrb[0].mxu0
          %v758 = vadd.f32 0.0, %v757
          %v759 = vpop.f32.mrb[0].mxu0
          %v760 = vpop.f32.mrb[0].mxu0
          %v761 = vadd.f32 0.0, %v760
          %v762 = vpop.f32.mrb[0].mxu0
          %763 = vmatprep.mubr.bf16.mxu0 0
          %764 = vmatmul.mubr.bf16.gmra.mrb[0].mxu0 %v528
          %v765 = vpop.f32.mrb[0].mxu0
          %v766 = vadd.f32 0.0, %v765
          %v767 = vpop.f32.mrb[0].mxu0
          %v768 = vpop.f32.mrb[0].mxu0
          %v769 = vadd.f32 0.0, %v768
          %v770 = vpop.f32.mrb[0].mxu0
          %771 = vmatprep.mubr.bf16.mxu0 0
          %772 = vmatmul.mubr.bf16.gmra.mrb[0].mxu0 %v536
          %v773 = vpop.f32.mrb[0].mxu0
          %v774 = vadd.f32 0.0, %v773
          %v775 = vpop.f32.mrb[0].mxu0
          %v776 = vpop.f32.mrb[0].mxu0
          %v777 = vadd.f32 0.0, %v776
          %v778 = vpop.f32.mrb[0].mxu0
          %779 = vmatprep.mubr.bf16.mxu0 0
          %780 = vmatmul.mubr.bf16.gmra.mrb[0].mxu0 %v544
          %v781 = vpop.f32.mrb[0].mxu0
          %v782 = vadd.f32 0.0, %v781
          %v783 = vpop.f32.mrb[0].mxu0
          %v784 = vpop.f32.mrb[0].mxu0
          %v785 = vadd.f32 0.0, %v784
          %v786 = vpop.f32.mrb[0].mxu0
          %787 = vmatprep.mubr.bf16.mxu0 0
          %788 = vmatmul.mubr.bf16.gmra.mrb[0].mxu0 %v552
          %v789 = vpop.f32.mrb[0].mxu0
          %v790 = vadd.f32 0.0, %v789
          %v791 = vpop.f32.mrb[0].mxu0
          %v792 = vpop.f32.mrb[0].mxu0
          %v793 = vadd.f32 0.0, %v792
          %v794 = vpop.f32.mrb[0].mxu0
          %795 = vmatprep.mubr.bf16.mxu0 0
          %796 = vmatmul.mubr.bf16.gmra.mrb[0].mxu0 %v560
          %v797 = vpop.f32.mrb[0].mxu0
          %v798 = vadd.f32 0.0, %v797
          %v799 = vpop.f32.mrb[0].mxu0
          %v800 = vpop.f32.mrb[0].mxu0
          %v801 = vadd.f32 0.0, %v800
          %v802 = vpop.f32.mrb[0].mxu0
          %803 = vmatprep.mubr.bf16.mxu0 0
          %804 = vmatmul.mubr.bf16.gmra.mrb[0].mxu0 %v568
          %v805 = vpop.f32.mrb[0].mxu0
          %v806 = vadd.f32 0.0, %v805
          %v807 = vpop.f32.mrb[0].mxu0
          %v808 = vpop.f32.mrb[0].mxu0
          %v809 = vadd.f32 0.0, %v808
          %v810 = vpop.f32.mrb[0].mxu0
          %811 = vmatprep.mubr.bf16.mxu0 0
          %812 = vmatmul.mubr.bf16.gmra.mrb[0].mxu0 %v576
          %v813 = vpop.f32.mrb[0].mxu0
          %v814 = vadd.f32 0.0, %v813
          %v815 = vpop.f32.mrb[0].mxu0
          %v816 = vpop.f32.mrb[0].mxu0
          %v817 = vadd.f32 0.0, %v816
          %v818 = vpop.f32.mrb[0].mxu0
          %819 = vmatprep.mubr.bf16.mxu0 0
          %820 = vmatmul.mubr.bf16.gmra.mrb[0].mxu0 %v584
          %v821 = vpop.f32.mrb[0].mxu0
          %v822 = vadd.f32 0.0, %v821
          %v823 = vpop.f32.mrb[0].mxu0
          %v824 = vpop.f32.mrb[0].mxu0
          %v825 = vadd.f32 0.0, %v824
          %v826 = vpop.f32.mrb[0].mxu0
          %827 = vmatprep.mubr.bf16.mxu0 0
          %828 = vmatmul.mubr.bf16.gmra.mrb[0].mxu0 %v592
          %v829 = vpop.f32.mrb[0].mxu0
          %v830 = vadd.f32 0.0, %v829
          %v831 = vpop.f32.mrb[0].mxu0
          %v832 = vpop.f32.mrb[0].mxu0
          %v833 = vadd.f32 0.0, %v832
          %v834 = vpop.f32.mrb[0].mxu0
          %835 = vmatprep.mubr.bf16.mxu0 0
          %836 = vmatmul.mubr.bf16.gmra.mrb[0].mxu0 %v600
          %v837 = vpop.f32.mrb[0].mxu0
          %v838 = vadd.f32 0.0, %v837
          %v839 = vpop.f32.mrb[0].mxu0
          %v840 = vpop.f32.mrb[0].mxu0
          %v841 = vadd.f32 0.0, %v840
          %v842 = vpop.f32.mrb[0].mxu0
          %843 = vmatprep.mubr.bf16.mxu0 0
          %844 = vmatmul.mubr.bf16.gmra.mrb[0].mxu0 %v608
          %v845 = vpop.f32.mrb[0].mxu0
          %v846 = vadd.f32 0.0, %v845
          %v847 = vpop.f32.mrb[0].mxu0
          %v848 = vpop.f32.mrb[0].mxu0
          %v849 = vadd.f32 0.0, %v848
          %v850 = vpop.f32.mrb[0].mxu0
          %851 = vdwg.mxu0
          %v886 = vunpack.c.l.b16 %v334
          %v887 = vunpack.c.l.b16 %v335
          %v888 = vunpack.c.l.b16 %v336
          %v889 = vunpack.c.l.b16 %v337
          %v890 = vunpack.c.l.b16 %v338
          %v891 = vunpack.c.l.b16 %v339
          %v892 = vunpack.c.l.b16 %v340
          %v893 = vunpack.c.l.b16 %v341
          %v894 = vunpack.c.l.b16 %v342
          %v895 = vunpack.c.l.b16 %v343
          %v896 = vunpack.c.l.b16 %v344
          %v897 = vunpack.c.l.b16 %v345
          %v898 = vunpack.c.l.b16 %v346
          %v899 = vunpack.c.l.b16 %v347
          %v900 = vunpack.c.l.b16 %v348
          %v901 = vunpack.c.l.b16 %v349
          %v902 = vpack.c.b16 %v887, %v886
          %v903 = vpack.c.b16 %v889, %v888
          %v904 = vpack.c.b16 %v891, %v890
          %v905 = vpack.c.b16 %v893, %v892
          %v906 = vpack.c.b16 %v895, %v894
          %v907 = vpack.c.b16 %v897, %v896
          %v908 = vpack.c.b16 %v899, %v898
          %v909 = vpack.c.b16 %v901, %v900
          %918 = vmatprep.subr.bf16.mxu0 0
          %919 = vmatpush1.bf16.msra.mxu0 %v902
          %920 = vmatprep.subr.bf16.mxu0 0
          %921 = vmatpush1.bf16.msra.mxu0 %v903
          %922 = vmatprep.subr.bf16.mxu0 0
          %923 = vmatpush1.bf16.msra.mxu0 %v904
          %924 = vmatprep.subr.bf16.mxu0 0
          %925 = vmatpush1.bf16.msra.mxu0 %v905
          %926 = vmatprep.subr.bf16.mxu0 0
          %927 = vmatpush1.bf16.msra.mxu0 %v906
          %928 = vmatprep.subr.bf16.mxu0 0
          %929 = vmatpush1.bf16.msra.mxu0 %v907
          %930 = vmatprep.subr.bf16.mxu0 0
          %931 = vmatpush1.bf16.msra.mxu0 %v908
          %932 = vmatprep.subr.bf16.mxu0 0
          %933 = vmatpush1.bf16.msra.mxu0 %v909
          %934 = vmatprep.subr.bf16.mxu0 0
          %935 = vmatpush1.bf16.msra.mxu0 0
          %936 = vmatprep.subr.bf16.mxu0 0
          %937 = vmatpush1.bf16.msra.mxu0 0
          %938 = vmatprep.subr.bf16.mxu0 0
          %939 = vmatpush1.bf16.msra.mxu0 0
          %940 = vmatprep.subr.bf16.mxu0 0
          %941 = vmatpush1.bf16.msra.mxu0 0
          %942 = vmatprep.subr.bf16.mxu0 0
          %943 = vmatpush1.bf16.msra.mxu0 0
          %944 = vmatprep.subr.bf16.mxu0 0
          %945 = vmatpush1.bf16.msra.mxu0 0
          %946 = vmatprep.subr.bf16.mxu0 0
          %947 = vmatpush1.bf16.msra.mxu0 0
          %948 = vmatprep.subr.bf16.mxu0 0
          %949 = vmatpush1.bf16.msra.mxu0 0
          %950 = vmatprep.mubr.bf16.mxu0 0
          %951 = vmatmul.mubr.bf16.gmra.mrb[0].mxu0 %v441
          %v952 = vpop.f32.mrb[0].mxu0
          %v953 = vadd.f32 %v710, %v952
          %v954 = vpop.f32.mrb[0].mxu0
          %v955 = vpop.f32.mrb[0].mxu0
          %v956 = vadd.f32 %v713, %v955
          %v957 = vpop.f32.mrb[0].mxu0
          %958 = vmatprep.mubr.bf16.mxu0 0
          %959 = vmatmul.mubr.bf16.gmra.mrb[0].mxu0 %v442
          %v960 = vpop.f32.mrb[0].mxu0
          %v961 = vadd.f32 %v718, %v960
          %v962 = vpop.f32.mrb[0].mxu0
          %v963 = vpop.f32.mrb[0].mxu0
          %v964 = vadd.f32 %v721, %v963
          %v965 = vpop.f32.mrb[0].mxu0
          %966 = vmatprep.mubr.bf16.mxu0 0
          %967 = vmatmul.mubr.bf16.gmra.mrb[0].mxu0 %v443
          %v968 = vpop.f32.mrb[0].mxu0
          %v969 = vadd.f32 %v726, %v968
          %v970 = vpop.f32.mrb[0].mxu0
          %v971 = vpop.f32.mrb[0].mxu0
          %v972 = vadd.f32 %v729, %v971
          %v973 = vpop.f32.mrb[0].mxu0
          %974 = vmatprep.mubr.bf16.mxu0 0
          %975 = vmatmul.mubr.bf16.gmra.mrb[0].mxu0 %v444
          %v976 = vpop.f32.mrb[0].mxu0
          %v977 = vadd.f32 %v734, %v976
          %v978 = vpop.f32.mrb[0].mxu0
          %v979 = vpop.f32.mrb[0].mxu0
          %v980 = vadd.f32 %v737, %v979
          %v981 = vpop.f32.mrb[0].mxu0
          %982 = vmatprep.mubr.bf16.mxu0 0
          %983 = vmatmul.mubr.bf16.gmra.mrb[0].mxu0 %v445
          %v984 = vpop.f32.mrb[0].mxu0
          %v985 = vadd.f32 %v742, %v984
          %v986 = vpop.f32.mrb[0].mxu0
          %v987 = vpop.f32.mrb[0].mxu0
          %v988 = vadd.f32 %v745, %v987
          %v989 = vpop.f32.mrb[0].mxu0
          %990 = vmatprep.mubr.bf16.mxu0 0
          %991 = vmatmul.mubr.bf16.gmra.mrb[0].mxu0 %v446
          %v992 = vpop.f32.mrb[0].mxu0
          %v993 = vadd.f32 %v750, %v992
          %v994 = vpop.f32.mrb[0].mxu0
          %v995 = vpop.f32.mrb[0].mxu0
          %v996 = vadd.f32 %v753, %v995
          %v997 = vpop.f32.mrb[0].mxu0
          %998 = vmatprep.mubr.bf16.mxu0 0
          %999 = vmatmul.mubr.bf16.gmra.mrb[0].mxu0 %v447
          %v1000 = vpop.f32.mrb[0].mxu0
          %v1001 = vadd.f32 %v758, %v1000
          %v1002 = vpop.f32.mrb[0].mxu0
          %v1003 = vpop.f32.mrb[0].mxu0
          %v1004 = vadd.f32 %v761, %v1003
          %v1005 = vpop.f32.mrb[0].mxu0
          %1006 = vmatprep.mubr.bf16.mxu0 0
          %1007 = vmatmul.mubr.bf16.gmra.mrb[0].mxu0 %v448
          %v1008 = vpop.f32.mrb[0].mxu0
          %v1009 = vadd.f32 %v766, %v1008
          %v1010 = vpop.f32.mrb[0].mxu0
          %v1011 = vpop.f32.mrb[0].mxu0
          %v1012 = vadd.f32 %v769, %v1011
          %v1013 = vpop.f32.mrb[0].mxu0
          %1014 = vmatprep.mubr.bf16.mxu0 0
          %1015 = vmatmul.mubr.bf16.gmra.mrb[0].mxu0 %v449
          %v1016 = vpop.f32.mrb[0].mxu0
          %v1017 = vadd.f32 %v774, %v1016
          %v1018 = vpop.f32.mrb[0].mxu0
          %v1019 = vpop.f32.mrb[0].mxu0
          %v1020 = vadd.f32 %v777, %v1019
          %v1021 = vpop.f32.mrb[0].mxu0
          %1022 = vmatprep.mubr.bf16.mxu0 0
          %1023 = vmatmul.mubr.bf16.gmra.mrb[0].mxu0 %v450
          %v1024 = vpop.f32.mrb[0].mxu0
          %v1025 = vadd.f32 %v782, %v1024
          %v1026 = vpop.f32.mrb[0].mxu0
          %v1027 = vpop.f32.mrb[0].mxu0
          %v1028 = vadd.f32 %v785, %v1027
          %v1029 = vpop.f32.mrb[0].mxu0
          %1030 = vmatprep.mubr.bf16.mxu0 0
          %1031 = vmatmul.mubr.bf16.gmra.mrb[0].mxu0 %v451
          %v1032 = vpop.f32.mrb[0].mxu0
          %v1033 = vadd.f32 %v790, %v1032
          %v1034 = vpop.f32.mrb[0].mxu0
          %v1035 = vpop.f32.mrb[0].mxu0
          %v1036 = vadd.f32 %v793, %v1035
          %v1037 = vpop.f32.mrb[0].mxu0
          %1038 = vmatprep.mubr.bf16.mxu0 0
          %1039 = vmatmul.mubr.bf16.gmra.mrb[0].mxu0 %v452
          %v1040 = vpop.f32.mrb[0].mxu0
          %v1041 = vadd.f32 %v798, %v1040
          %v1042 = vpop.f32.mrb[0].mxu0
          %v1043 = vpop.f32.mrb[0].mxu0
          %v1044 = vadd.f32 %v801, %v1043
          %v1045 = vpop.f32.mrb[0].mxu0
          %1046 = vmatprep.mubr.bf16.mxu0 0
          %1047 = vmatmul.mubr.bf16.gmra.mrb[0].mxu0 %v453
          %v1048 = vpop.f32.mrb[0].mxu0
          %v1049 = vadd.f32 %v806, %v1048
          %v1050 = vpop.f32.mrb[0].mxu0
          %v1051 = vpop.f32.mrb[0].mxu0
          %v1052 = vadd.f32 %v809, %v1051
          %v1053 = vpop.f32.mrb[0].mxu0
          %1054 = vmatprep.mubr.bf16.mxu0 0
          %1055 = vmatmul.mubr.bf16.gmra.mrb[0].mxu0 %v454
          %v1056 = vpop.f32.mrb[0].mxu0
          %v1057 = vadd.f32 %v814, %v1056
          %v1058 = vpop.f32.mrb[0].mxu0
          %v1059 = vpop.f32.mrb[0].mxu0
          %v1060 = vadd.f32 %v817, %v1059
          %v1061 = vpop.f32.mrb[0].mxu0
          %1062 = vmatprep.mubr.bf16.mxu0 0
          %1063 = vmatmul.mubr.bf16.gmra.mrb[0].mxu0 %v455
          %v1064 = vpop.f32.mrb[0].mxu0
          %v1065 = vadd.f32 %v822, %v1064
          %v1066 = vpop.f32.mrb[0].mxu0
          %v1067 = vpop.f32.mrb[0].mxu0
          %v1068 = vadd.f32 %v825, %v1067
          %v1069 = vpop.f32.mrb[0].mxu0
          %1070 = vmatprep.mubr.bf16.mxu0 0
          %1071 = vmatmul.mubr.bf16.gmra.mrb[0].mxu0 %v456
          %v1072 = vpop.f32.mrb[0].mxu0
          %v1073 = vadd.f32 %v830, %v1072
          %v1074 = vpop.f32.mrb[0].mxu0
          %v1075 = vpop.f32.mrb[0].mxu0
          %v1076 = vadd.f32 %v833, %v1075
          %v1077 = vpop.f32.mrb[0].mxu0
          %1078 = vmatprep.mubr.bf16.mxu0 0
          %1079 = vmatmul.mubr.bf16.gmra.mrb[0].mxu0 %v457
          %v1080 = vpop.f32.mrb[0].mxu0
          %v1081 = vadd.f32 %v838, %v1080
          %v1082 = vpop.f32.mrb[0].mxu0
          %v1083 = vpop.f32.mrb[0].mxu0
          %v1084 = vadd.f32 %v841, %v1083
          %v1085 = vpop.f32.mrb[0].mxu0
          %1086 = vmatprep.mubr.bf16.mxu0 0
          %1087 = vmatmul.mubr.bf16.gmra.mrb[0].mxu0 %v458
          %v1088 = vpop.f32.mrb[0].mxu0
          %v1089 = vadd.f32 %v846, %v1088
          %v1090 = vpop.f32.mrb[0].mxu0
          %v1091 = vpop.f32.mrb[0].mxu0
          %v1092 = vadd.f32 %v849, %v1091
          %v1093 = vpop.f32.mrb[0].mxu0
          %1094 = vdwg.mxu0
          %s1095 = scalar_lea.vmem %s1, 128
          %v1096 = vld [vmem:[%s1095] sm:$0xf]
          %v1097 = vld [vmem:[%s1095 + $0x4] sm:$0xf]
          %v1098 = vld [vmem:[%s1095 + $0x8] sm:$0xf]
          %v1099 = vld [vmem:[%s1095 + $0xc] sm:$0xf]
          %v1100 = vld [vmem:[%s1095 + $0x10] sm:$0xf]
          %v1101 = vld [vmem:[%s1095 + $0x14] sm:$0xf]
          %v1102 = vld [vmem:[%s1095 + $0x18] sm:$0xf]
          %v1103 = vld [vmem:[%s1095 + $0x1c] sm:$0xf]
          %v1104 = vld [vmem:[%s1095 + $0x20] sm:$0xf]
          %v1105 = vld [vmem:[%s1095 + $0x24] sm:$0xf]
          %v1106 = vld [vmem:[%s1095 + $0x28] sm:$0xf]
          %v1107 = vld [vmem:[%s1095 + $0x2c] sm:$0xf]
          %v1108 = vld [vmem:[%s1095 + $0x30] sm:$0xf]
          %v1109 = vld [vmem:[%s1095 + $0x34] sm:$0xf]
          %v1110 = vld [vmem:[%s1095 + $0x38] sm:$0xf]
          %v1111 = vld [vmem:[%s1095 + $0x3c] sm:$0xf]
          %vm1112 = vcmask 1046528
          %v1113 = vrot.slane %v441, 1
          %v1114 = vrot.slane %v442, 1
          %v1115 = vsel %vm1112, %v1113, %v1114
          %v1116 = vrot.slane %v443, 1
          %v1117 = vsel %vm1112, %v1114, %v1116
          %v1118 = vrot.slane %v444, 1
          %v1119 = vsel %vm1112, %v1116, %v1118
          %v1120 = vrot.slane %v445, 1
          %v1121 = vsel %vm1112, %v1118, %v1120
          %v1122 = vrot.slane %v446, 1
          %v1123 = vsel %vm1112, %v1120, %v1122
          %v1124 = vrot.slane %v447, 1
          %v1125 = vsel %vm1112, %v1122, %v1124
          %v1126 = vrot.slane %v448, 1
          %v1127 = vsel %vm1112, %v1124, %v1126
          %v1128 = vrot.slane %v449, 1
          %v1129 = vsel %vm1112, %v1126, %v1128
          %v1130 = vrot.slane %v450, 1
          %v1131 = vsel %vm1112, %v1128, %v1130
          %v1132 = vrot.slane %v451, 1
          %v1133 = vsel %vm1112, %v1130, %v1132
          %v1134 = vrot.slane %v452, 1
          %v1135 = vsel %vm1112, %v1132, %v1134
          %v1136 = vrot.slane %v453, 1
          %v1137 = vsel %vm1112, %v1134, %v1136
          %v1138 = vrot.slane %v454, 1
          %v1139 = vsel %vm1112, %v1136, %v1138
          %v1140 = vrot.slane %v455, 1
          %v1141 = vsel %vm1112, %v1138, %v1140
          %v1142 = vrot.slane %v456, 1
          %v1143 = vsel %vm1112, %v1140, %v1142
          %v1144 = vrot.slane %v457, 1
          %v1145 = vsel %vm1112, %v1142, %v1144
          %v1146 = vrot.slane %v458, 1
          %v1147 = vsel %vm1112, %v1144, %v1146
          %v1148 = vrot.slane %v459, 1
          %v1149 = vsel %vm1112, %v1146, %v1148
          %v1184 = vunpack.c.l.b16 %v1096
          %v1185 = vunpack.c.l.b16 %v1097
          %v1186 = vunpack.c.l.b16 %v1098
          %v1187 = vunpack.c.l.b16 %v1099
          %v1188 = vunpack.c.l.b16 %v1100
          %v1189 = vunpack.c.l.b16 %v1101
          %v1190 = vunpack.c.l.b16 %v1102
          %v1191 = vunpack.c.l.b16 %v1103
          %v1192 = vunpack.c.l.b16 %v1104
          %v1193 = vunpack.c.l.b16 %v1105
          %v1194 = vunpack.c.l.b16 %v1106
          %v1195 = vunpack.c.l.b16 %v1107
          %v1196 = vunpack.c.l.b16 %v1108
          %v1197 = vunpack.c.l.b16 %v1109
          %v1198 = vunpack.c.l.b16 %v1110
          %v1199 = vunpack.c.l.b16 %v1111
          %v1200 = vpack.c.b16 %v1185, %v1184
          %v1201 = vpack.c.b16 %v1187, %v1186
          %v1202 = vpack.c.b16 %v1189, %v1188
          %v1203 = vpack.c.b16 %v1191, %v1190
          %v1204 = vpack.c.b16 %v1193, %v1192
          %v1205 = vpack.c.b16 %v1195, %v1194
          %v1206 = vpack.c.b16 %v1197, %v1196
          %v1207 = vpack.c.b16 %v1199, %v1198
          %1216 = vmatprep.subr.bf16.mxu0 0
          %1217 = vmatpush1.bf16.msra.mxu0 %v1200
          %1218 = vmatprep.subr.bf16.mxu0 0
          %1219 = vmatpush1.bf16.msra.mxu0 %v1201
          %1220 = vmatprep.subr.bf16.mxu0 0
          %1221 = vmatpush1.bf16.msra.mxu0 %v1202
          %1222 = vmatprep.subr.bf16.mxu0 0
          %1223 = vmatpush1.bf16.msra.mxu0 %v1203
          %1224 = vmatprep.subr.bf16.mxu0 0
          %1225 = vmatpush1.bf16.msra.mxu0 %v1204
          %1226 = vmatprep.subr.bf16.mxu0 0
          %1227 = vmatpush1.bf16.msra.mxu0 %v1205
          %1228 = vmatprep.subr.bf16.mxu0 0
          %1229 = vmatpush1.bf16.msra.mxu0 %v1206
          %1230 = vmatprep.subr.bf16.mxu0 0
          %1231 = vmatpush1.bf16.msra.mxu0 %v1207
          %1232 = vmatprep.subr.bf16.mxu0 0
          %1233 = vmatpush1.bf16.msra.mxu0 0
          %1234 = vmatprep.subr.bf16.mxu0 0
          %1235 = vmatpush1.bf16.msra.mxu0 0
          %1236 = vmatprep.subr.bf16.mxu0 0
          %1237 = vmatpush1.bf16.msra.mxu0 0
          %1238 = vmatprep.subr.bf16.mxu0 0
          %1239 = vmatpush1.bf16.msra.mxu0 0
          %1240 = vmatprep.subr.bf16.mxu0 0
          %1241 = vmatpush1.bf16.msra.mxu0 0
          %1242 = vmatprep.subr.bf16.mxu0 0
          %1243 = vmatpush1.bf16.msra.mxu0 0
          %1244 = vmatprep.subr.bf16.mxu0 0
          %1245 = vmatpush1.bf16.msra.mxu0 0
          %1246 = vmatprep.subr.bf16.mxu0 0
          %1247 = vmatpush1.bf16.msra.mxu0 0
          %1248 = vmatprep.mubr.bf16.mxu0 0
          %1249 = vmatmul.mubr.bf16.gmra.mrb[0].mxu0 %v1115
          %v1250 = vpop.f32.mrb[0].mxu0
          %v1251 = vadd.f32 0.0, %v1250
          %v1252 = vpop.f32.mrb[0].mxu0
          %v1253 = vpop.f32.mrb[0].mxu0
          %v1254 = vadd.f32 0.0, %v1253
          %v1255 = vpop.f32.mrb[0].mxu0
          %1256 = vmatprep.mubr.bf16.mxu0 0
          %1257 = vmatmul.mubr.bf16.gmra.mrb[0].mxu0 %v1117
          %v1258 = vpop.f32.mrb[0].mxu0
          %v1259 = vadd.f32 0.0, %v1258
          %v1260 = vpop.f32.mrb[0].mxu0
          %v1261 = vpop.f32.mrb[0].mxu0
          %v1262 = vadd.f32 0.0, %v1261
          %v1263 = vpop.f32.mrb[0].mxu0
          %1264 = vmatprep.mubr.bf16.mxu0 0
          %1265 = vmatmul.mubr.bf16.gmra.mrb[0].mxu0 %v1119
          %v1266 = vpop.f32.mrb[0].mxu0
          %v1267 = vadd.f32 0.0, %v1266
          %v1268 = vpop.f32.mrb[0].mxu0
          %v1269 = vpop.f32.mrb[0].mxu0
          %v1270 = vadd.f32 0.0, %v1269
          %v1271 = vpop.f32.mrb[0].mxu0
          %1272 = vmatprep.mubr.bf16.mxu0 0
          %1273 = vmatmul.mubr.bf16.gmra.mrb[0].mxu0 %v1121
          %v1274 = vpop.f32.mrb[0].mxu0
          %v1275 = vadd.f32 0.0, %v1274
          %v1276 = vpop.f32.mrb[0].mxu0
          %v1277 = vpop.f32.mrb[0].mxu0
          %v1278 = vadd.f32 0.0, %v1277
          %v1279 = vpop.f32.mrb[0].mxu0
          %1280 = vmatprep.mubr.bf16.mxu0 0
          %1281 = vmatmul.mubr.bf16.gmra.mrb[0].mxu0 %v1123
          %v1282 = vpop.f32.mrb[0].mxu0
          %v1283 = vadd.f32 0.0, %v1282
          %v1284 = vpop.f32.mrb[0].mxu0
          %v1285 = vpop.f32.mrb[0].mxu0
          %v1286 = vadd.f32 0.0, %v1285
          %v1287 = vpop.f32.mrb[0].mxu0
          %1288 = vmatprep.mubr.bf16.mxu0 0
          %1289 = vmatmul.mubr.bf16.gmra.mrb[0].mxu0 %v1125
          %v1290 = vpop.f32.mrb[0].mxu0
          %v1291 = vadd.f32 0.0, %v1290
          %v1292 = vpop.f32.mrb[0].mxu0
          %v1293 = vpop.f32.mrb[0].mxu0
          %v1294 = vadd.f32 0.0, %v1293
          %v1295 = vpop.f32.mrb[0].mxu0
          %1296 = vmatprep.mubr.bf16.mxu0 0
          %1297 = vmatmul.mubr.bf16.gmra.mrb[0].mxu0 %v1127
          %v1298 = vpop.f32.mrb[0].mxu0
          %v1299 = vadd.f32 0.0, %v1298
          %v1300 = vpop.f32.mrb[0].mxu0
          %v1301 = vpop.f32.mrb[0].mxu0
          %v1302 = vadd.f32 0.0, %v1301
          %v1303 = vpop.f32.mrb[0].mxu0
          %1304 = vmatprep.mubr.bf16.mxu0 0
          %1305 = vmatmul.mubr.bf16.gmra.mrb[0].mxu0 %v1129
          %v1306 = vpop.f32.mrb[0].mxu0
          %v1307 = vadd.f32 0.0, %v1306
          %v1308 = vpop.f32.mrb[0].mxu0
          %v1309 = vpop.f32.mrb[0].mxu0
          %v1310 = vadd.f32 0.0, %v1309
          %v1311 = vpop.f32.mrb[0].mxu0
          %1312 = vmatprep.mubr.bf16.mxu0 0
          %1313 = vmatmul.mubr.bf16.gmra.mrb[0].mxu0 %v1131
          %v1314 = vpop.f32.mrb[0].mxu0
          %v1315 = vadd.f32 0.0, %v1314
          %v1316 = vpop.f32.mrb[0].mxu0
          %v1317 = vpop.f32.mrb[0].mxu0
          %v1318 = vadd.f32 0.0, %v1317
          %v1319 = vpop.f32.mrb[0].mxu0
          %1320 = vmatprep.mubr.bf16.mxu0 0
          %1321 = vmatmul.mubr.bf16.gmra.mrb[0].mxu0 %v1133
          %v1322 = vpop.f32.mrb[0].mxu0
          %v1323 = vadd.f32 0.0, %v1322
          %v1324 = vpop.f32.mrb[0].mxu0
          %v1325 = vpop.f32.mrb[0].mxu0
          %v1326 = vadd.f32 0.0, %v1325
          %v1327 = vpop.f32.mrb[0].mxu0
          %1328 = vmatprep.mubr.bf16.mxu0 0
          %1329 = vmatmul.mubr.bf16.gmra.mrb[0].mxu0 %v1135
          %v1330 = vpop.f32.mrb[0].mxu0
          %v1331 = vadd.f32 0.0, %v1330
          %v1332 = vpop.f32.mrb[0].mxu0
          %v1333 = vpop.f32.mrb[0].mxu0
          %v1334 = vadd.f32 0.0, %v1333
          %v1335 = vpop.f32.mrb[0].mxu0
          %1336 = vmatprep.mubr.bf16.mxu0 0
          %1337 = vmatmul.mubr.bf16.gmra.mrb[0].mxu0 %v1137
          %v1338 = vpop.f32.mrb[0].mxu0
          %v1339 = vadd.f32 0.0, %v1338
          %v1340 = vpop.f32.mrb[0].mxu0
          %v1341 = vpop.f32.mrb[0].mxu0
          %v1342 = vadd.f32 0.0, %v1341
          %v1343 = vpop.f32.mrb[0].mxu0
          %1344 = vmatprep.mubr.bf16.mxu0 0
          %1345 = vmatmul.mubr.bf16.gmra.mrb[0].mxu0 %v1139
          %v1346 = vpop.f32.mrb[0].mxu0
          %v1347 = vadd.f32 0.0, %v1346
          %v1348 = vpop.f32.mrb[0].mxu0
          %v1349 = vpop.f32.mrb[0].mxu0
          %v1350 = vadd.f32 0.0, %v1349
          %v1351 = vpop.f32.mrb[0].mxu0
          %1352 = vmatprep.mubr.bf16.mxu0 0
          %1353 = vmatmul.mubr.bf16.gmra.mrb[0].mxu0 %v1141
          %v1354 = vpop.f32.mrb[0].mxu0
          %v1355 = vadd.f32 0.0, %v1354
          %v1356 = vpop.f32.mrb[0].mxu0
          %v1357 = vpop.f32.mrb[0].mxu0
          %v1358 = vadd.f32 0.0, %v1357
          %v1359 = vpop.f32.mrb[0].mxu0
          %1360 = vmatprep.mubr.bf16.mxu0 0
          %1361 = vmatmul.mubr.bf16.gmra.mrb[0].mxu0 %v1143
          %v1362 = vpop.f32.mrb[0].mxu0
          %v1363 = vadd.f32 0.0, %v1362
          %v1364 = vpop.f32.mrb[0].mxu0
          %v1365 = vpop.f32.mrb[0].mxu0
          %v1366 = vadd.f32 0.0, %v1365
          %v1367 = vpop.f32.mrb[0].mxu0
          %1368 = vmatprep.mubr.bf16.mxu0 0
          %1369 = vmatmul.mubr.bf16.gmra.mrb[0].mxu0 %v1145
          %v1370 = vpop.f32.mrb[0].mxu0
          %v1371 = vadd.f32 0.0, %v1370
          %v1372 = vpop.f32.mrb[0].mxu0
          %v1373 = vpop.f32.mrb[0].mxu0
          %v1374 = vadd.f32 0.0, %v1373
          %v1375 = vpop.f32.mrb[0].mxu0
          %1376 = vmatprep.mubr.bf16.mxu0 0
          %1377 = vmatmul.mubr.bf16.gmra.mrb[0].mxu0 %v1147
          %v1378 = vpop.f32.mrb[0].mxu0
          %v1379 = vadd.f32 0.0, %v1378
          %v1380 = vpop.f32.mrb[0].mxu0
          %v1381 = vpop.f32.mrb[0].mxu0
          %v1382 = vadd.f32 0.0, %v1381
          %v1383 = vpop.f32.mrb[0].mxu0
          %1384 = vmatprep.mubr.bf16.mxu0 0
          %1385 = vmatmul.mubr.bf16.gmra.mrb[0].mxu0 %v1149
          %v1386 = vpop.f32.mrb[0].mxu0
          %v1387 = vadd.f32 0.0, %v1386
          %v1388 = vpop.f32.mrb[0].mxu0
          %v1389 = vpop.f32.mrb[0].mxu0
          %v1390 = vadd.f32 0.0, %v1389
          %v1391 = vpop.f32.mrb[0].mxu0
          %1392 = vdwg.mxu0
          %v1393 = vadd.f32 %v953, %v1251
          %v1394 = vadd.f32 %v956, %v1254
          %v1395 = vadd.f32 %v961, %v1259
          %v1396 = vadd.f32 %v964, %v1262
          %v1397 = vadd.f32 %v969, %v1267
          %v1398 = vadd.f32 %v972, %v1270
          %v1399 = vadd.f32 %v977, %v1275
          %v1400 = vadd.f32 %v980, %v1278
          %v1401 = vadd.f32 %v985, %v1283
          %v1402 = vadd.f32 %v988, %v1286
          %v1403 = vadd.f32 %v993, %v1291
          %v1404 = vadd.f32 %v996, %v1294
          %v1405 = vadd.f32 %v1001, %v1299
          %v1406 = vadd.f32 %v1004, %v1302
          %v1407 = vadd.f32 %v1009, %v1307
          %v1408 = vadd.f32 %v1012, %v1310
          %v1409 = vadd.f32 %v1017, %v1315
          %v1410 = vadd.f32 %v1020, %v1318
          %v1411 = vadd.f32 %v1025, %v1323
          %v1412 = vadd.f32 %v1028, %v1326
          %v1413 = vadd.f32 %v1033, %v1331
          %v1414 = vadd.f32 %v1036, %v1334
          %v1415 = vadd.f32 %v1041, %v1339
          %v1416 = vadd.f32 %v1044, %v1342
          %v1417 = vadd.f32 %v1049, %v1347
          %v1418 = vadd.f32 %v1052, %v1350
          %v1419 = vadd.f32 %v1057, %v1355
          %v1420 = vadd.f32 %v1060, %v1358
          %v1421 = vadd.f32 %v1065, %v1363
          %v1422 = vadd.f32 %v1068, %v1366
          %v1423 = vadd.f32 %v1073, %v1371
          %v1424 = vadd.f32 %v1076, %v1374
          %v1425 = vadd.f32 %v1081, %v1379
          %v1426 = vadd.f32 %v1084, %v1382
          %v1427 = vadd.f32 %v1089, %v1387
          %v1428 = vadd.f32 %v1092, %v1390
          %s1429 = scalar_lea.vmem %s1, 192
          %v1430 = vld [vmem:[%s1429] sm:$0xf]
          %v1431 = vld [vmem:[%s1429 + $0x4] sm:$0xf]
          %v1432 = vld [vmem:[%s1429 + $0x8] sm:$0xf]
          %v1433 = vld [vmem:[%s1429 + $0xc] sm:$0xf]
          %v1434 = vld [vmem:[%s1429 + $0x10] sm:$0xf]
          %v1435 = vld [vmem:[%s1429 + $0x14] sm:$0xf]
          %v1436 = vld [vmem:[%s1429 + $0x18] sm:$0xf]
          %v1437 = vld [vmem:[%s1429 + $0x1c] sm:$0xf]
          %v1438 = vld [vmem:[%s1429 + $0x20] sm:$0xf]
          %v1439 = vld [vmem:[%s1429 + $0x24] sm:$0xf]
          %v1440 = vld [vmem:[%s1429 + $0x28] sm:$0xf]
          %v1441 = vld [vmem:[%s1429 + $0x2c] sm:$0xf]
          %v1442 = vld [vmem:[%s1429 + $0x30] sm:$0xf]
          %v1443 = vld [vmem:[%s1429 + $0x34] sm:$0xf]
          %v1444 = vld [vmem:[%s1429 + $0x38] sm:$0xf]
          %v1445 = vld [vmem:[%s1429 + $0x3c] sm:$0xf]
          %v1448 = vunpack.c.l.b16 %v330
          %v1449 = vunpack.c.l.b16 %v331
          %v1450 = vpack.c.b16 %v1448, %v440
          %v1451 = vpack.c.b16 %v1449, %v1449
          %v1452 = vrot.slane %v1450, 1
          %v1453 = vsel %vm1112, %v1146, %v1452
          %v1454 = vrot.slane %v1451, 1
          %v1455 = vsel %vm1112, %v1452, %v1454
          %v1474 = vunpack.c.l.b16 %v1430
          %v1475 = vunpack.c.l.b16 %v1431
          %v1476 = vunpack.c.l.b16 %v1432
          %v1477 = vunpack.c.l.b16 %v1433
          %v1478 = vunpack.c.l.b16 %v1434
          %v1479 = vunpack.c.l.b16 %v1435
          %v1480 = vunpack.c.l.b16 %v1436
          %v1481 = vunpack.c.l.b16 %v1437
          %v1482 = vunpack.c.l.b16 %v1438
          %v1483 = vunpack.c.l.b16 %v1439
          %v1484 = vunpack.c.l.b16 %v1440
          %v1485 = vunpack.c.l.b16 %v1441
          %v1486 = vunpack.c.l.b16 %v1442
          %v1487 = vunpack.c.l.b16 %v1443
          %v1488 = vunpack.c.l.b16 %v1444
          %v1489 = vunpack.c.l.b16 %v1445
          %v1490 = vpack.c.b16 %v1475, %v1474
          %v1491 = vpack.c.b16 %v1477, %v1476
          %v1492 = vpack.c.b16 %v1479, %v1478
          %v1493 = vpack.c.b16 %v1481, %v1480
          %v1494 = vpack.c.b16 %v1483, %v1482
          %v1495 = vpack.c.b16 %v1485, %v1484
          %v1496 = vpack.c.b16 %v1487, %v1486
          %v1497 = vpack.c.b16 %v1489, %v1488
          %1506 = vmatprep.subr.bf16.mxu0 0
          %1507 = vmatpush1.bf16.msra.mxu0 %v1490
          %1508 = vmatprep.subr.bf16.mxu0 0
          %1509 = vmatpush1.bf16.msra.mxu0 %v1491
          %1510 = vmatprep.subr.bf16.mxu0 0
          %1511 = vmatpush1.bf16.msra.mxu0 %v1492
          %1512 = vmatprep.subr.bf16.mxu0 0
          %1513 = vmatpush1.bf16.msra.mxu0 %v1493
          %1514 = vmatprep.subr.bf16.mxu0 0
          %1515 = vmatpush1.bf16.msra.mxu0 %v1494
          %1516 = vmatprep.subr.bf16.mxu0 0
          %1517 = vmatpush1.bf16.msra.mxu0 %v1495
          %1518 = vmatprep.subr.bf16.mxu0 0
          %1519 = vmatpush1.bf16.msra.mxu0 %v1496
          %1520 = vmatprep.subr.bf16.mxu0 0
          %1521 = vmatpush1.bf16.msra.mxu0 %v1497
          %1522 = vmatprep.subr.bf16.mxu0 0
          %1523 = vmatpush1.bf16.msra.mxu0 0
          %1524 = vmatprep.subr.bf16.mxu0 0
          %1525 = vmatpush1.bf16.msra.mxu0 0
          %1526 = vmatprep.subr.bf16.mxu0 0
          %1527 = vmatpush1.bf16.msra.mxu0 0
          %1528 = vmatprep.subr.bf16.mxu0 0
          %1529 = vmatpush1.bf16.msra.mxu0 0
          %1530 = vmatprep.subr.bf16.mxu0 0
          %1531 = vmatpush1.bf16.msra.mxu0 0
          %1532 = vmatprep.subr.bf16.mxu0 0
          %1533 = vmatpush1.bf16.msra.mxu0 0
          %1534 = vmatprep.subr.bf16.mxu0 0
          %1535 = vmatpush1.bf16.msra.mxu0 0
          %1536 = vmatprep.subr.bf16.mxu0 0
          %1537 = vmatpush1.bf16.msra.mxu0 0
          %1538 = vmatprep.mubr.bf16.mxu0 0
          %1539 = vmatmul.mubr.bf16.gmra.mrb[0].mxu0 %v1117
          %v1540 = vpop.f32.mrb[0].mxu0
          %v1541 = vadd.f32 0.0, %v1540
          %v1542 = vpop.f32.mrb[0].mxu0
          %v1543 = vpop.f32.mrb[0].mxu0
          %v1544 = vadd.f32 0.0, %v1543
          %v1545 = vpop.f32.mrb[0].mxu0
          %1546 = vmatprep.mubr.bf16.mxu0 0
          %1547 = vmatmul.mubr.bf16.gmra.mrb[0].mxu0 %v1119
          %v1548 = vpop.f32.mrb[0].mxu0
          %v1549 = vadd.f32 0.0, %v1548
          %v1550 = vpop.f32.mrb[0].mxu0
          %v1551 = vpop.f32.mrb[0].mxu0
          %v1552 = vadd.f32 0.0, %v1551
          %v1553 = vpop.f32.mrb[0].mxu0
          %1554 = vmatprep.mubr.bf16.mxu0 0
          %1555 = vmatmul.mubr.bf16.gmra.mrb[0].mxu0 %v1121
          %v1556 = vpop.f32.mrb[0].mxu0
          %v1557 = vadd.f32 0.0, %v1556
          %v1558 = vpop.f32.mrb[0].mxu0
          %v1559 = vpop.f32.mrb[0].mxu0
          %v1560 = vadd.f32 0.0, %v1559
          %v1561 = vpop.f32.mrb[0].mxu0
          %1562 = vmatprep.mubr.bf16.mxu0 0
          %1563 = vmatmul.mubr.bf16.gmra.mrb[0].mxu0 %v1123
          %v1564 = vpop.f32.mrb[0].mxu0
          %v1565 = vadd.f32 0.0, %v1564
          %v1566 = vpop.f32.mrb[0].mxu0
          %v1567 = vpop.f32.mrb[0].mxu0
          %v1568 = vadd.f32 0.0, %v1567
          %v1569 = vpop.f32.mrb[0].mxu0
          %1570 = vmatprep.mubr.bf16.mxu0 0
          %1571 = vmatmul.mubr.bf16.gmra.mrb[0].mxu0 %v1125
          %v1572 = vpop.f32.mrb[0].mxu0
          %v1573 = vadd.f32 0.0, %v1572
          %v1574 = vpop.f32.mrb[0].mxu0
          %v1575 = vpop.f32.mrb[0].mxu0
          %v1576 = vadd.f32 0.0, %v1575
          %v1577 = vpop.f32.mrb[0].mxu0
          %1578 = vmatprep.mubr.bf16.mxu0 0
          %1579 = vmatmul.mubr.bf16.gmra.mrb[0].mxu0 %v1127
          %v1580 = vpop.f32.mrb[0].mxu0
          %v1581 = vadd.f32 0.0, %v1580
          %v1582 = vpop.f32.mrb[0].mxu0
          %v1583 = vpop.f32.mrb[0].mxu0
          %v1584 = vadd.f32 0.0, %v1583
          %v1585 = vpop.f32.mrb[0].mxu0
          %1586 = vmatprep.mubr.bf16.mxu0 0
          %1587 = vmatmul.mubr.bf16.gmra.mrb[0].mxu0 %v1129
          %v1588 = vpop.f32.mrb[0].mxu0
          %v1589 = vadd.f32 0.0, %v1588
          %v1590 = vpop.f32.mrb[0].mxu0
          %v1591 = vpop.f32.mrb[0].mxu0
          %v1592 = vadd.f32 0.0, %v1591
          %v1593 = vpop.f32.mrb[0].mxu0
          %1594 = vmatprep.mubr.bf16.mxu0 0
          %1595 = vmatmul.mubr.bf16.gmra.mrb[0].mxu0 %v1131
          %v1596 = vpop.f32.mrb[0].mxu0
          %v1597 = vadd.f32 0.0, %v1596
          %v1598 = vpop.f32.mrb[0].mxu0
          %v1599 = vpop.f32.mrb[0].mxu0
          %v1600 = vadd.f32 0.0, %v1599
          %v1601 = vpop.f32.mrb[0].mxu0
          %1602 = vmatprep.mubr.bf16.mxu0 0
          %1603 = vmatmul.mubr.bf16.gmra.mrb[0].mxu0 %v1133
          %v1604 = vpop.f32.mrb[0].mxu0
          %v1605 = vadd.f32 0.0, %v1604
          %v1606 = vpop.f32.mrb[0].mxu0
          %v1607 = vpop.f32.mrb[0].mxu0
          %v1608 = vadd.f32 0.0, %v1607
          %v1609 = vpop.f32.mrb[0].mxu0
          %1610 = vmatprep.mubr.bf16.mxu0 0
          %1611 = vmatmul.mubr.bf16.gmra.mrb[0].mxu0 %v1135
          %v1612 = vpop.f32.mrb[0].mxu0
          %v1613 = vadd.f32 0.0, %v1612
          %v1614 = vpop.f32.mrb[0].mxu0
          %v1615 = vpop.f32.mrb[0].mxu0
          %v1616 = vadd.f32 0.0, %v1615
          %v1617 = vpop.f32.mrb[0].mxu0
          %1618 = vmatprep.mubr.bf16.mxu0 0
          %1619 = vmatmul.mubr.bf16.gmra.mrb[0].mxu0 %v1137
          %v1620 = vpop.f32.mrb[0].mxu0
          %v1621 = vadd.f32 0.0, %v1620
          %v1622 = vpop.f32.mrb[0].mxu0
          %v1623 = vpop.f32.mrb[0].mxu0
          %v1624 = vadd.f32 0.0, %v1623
          %v1625 = vpop.f32.mrb[0].mxu0
          %1626 = vmatprep.mubr.bf16.mxu0 0
          %1627 = vmatmul.mubr.bf16.gmra.mrb[0].mxu0 %v1139
          %v1628 = vpop.f32.mrb[0].mxu0
          %v1629 = vadd.f32 0.0, %v1628
          %v1630 = vpop.f32.mrb[0].mxu0
          %v1631 = vpop.f32.mrb[0].mxu0
          %v1632 = vadd.f32 0.0, %v1631
          %v1633 = vpop.f32.mrb[0].mxu0
          %1634 = vmatprep.mubr.bf16.mxu0 0
          %1635 = vmatmul.mubr.bf16.gmra.mrb[0].mxu0 %v1141
          %v1636 = vpop.f32.mrb[0].mxu0
          %v1637 = vadd.f32 0.0, %v1636
          %v1638 = vpop.f32.mrb[0].mxu0
          %v1639 = vpop.f32.mrb[0].mxu0
          %v1640 = vadd.f32 0.0, %v1639
          %v1641 = vpop.f32.mrb[0].mxu0
          %1642 = vmatprep.mubr.bf16.mxu0 0
          %1643 = vmatmul.mubr.bf16.gmra.mrb[0].mxu0 %v1143
          %v1644 = vpop.f32.mrb[0].mxu0
          %v1645 = vadd.f32 0.0, %v1644
          %v1646 = vpop.f32.mrb[0].mxu0
          %v1647 = vpop.f32.mrb[0].mxu0
          %v1648 = vadd.f32 0.0, %v1647
          %v1649 = vpop.f32.mrb[0].mxu0
          %1650 = vmatprep.mubr.bf16.mxu0 0
          %1651 = vmatmul.mubr.bf16.gmra.mrb[0].mxu0 %v1145
          %v1652 = vpop.f32.mrb[0].mxu0
          %v1653 = vadd.f32 0.0, %v1652
          %v1654 = vpop.f32.mrb[0].mxu0
          %v1655 = vpop.f32.mrb[0].mxu0
          %v1656 = vadd.f32 0.0, %v1655
          %v1657 = vpop.f32.mrb[0].mxu0
          %1658 = vmatprep.mubr.bf16.mxu0 0
          %1659 = vmatmul.mubr.bf16.gmra.mrb[0].mxu0 %v1147
          %v1660 = vpop.f32.mrb[0].mxu0
          %v1661 = vadd.f32 0.0, %v1660
          %v1662 = vpop.f32.mrb[0].mxu0
          %v1663 = vpop.f32.mrb[0].mxu0
          %v1664 = vadd.f32 0.0, %v1663
          %v1665 = vpop.f32.mrb[0].mxu0
          %1666 = vmatprep.mubr.bf16.mxu0 0
          %1667 = vmatmul.mubr.bf16.gmra.mrb[0].mxu0 %v1453
          %v1668 = vpop.f32.mrb[0].mxu0
          %v1669 = vadd.f32 0.0, %v1668
          %v1670 = vpop.f32.mrb[0].mxu0
          %v1671 = vpop.f32.mrb[0].mxu0
          %v1672 = vadd.f32 0.0, %v1671
          %v1673 = vpop.f32.mrb[0].mxu0
          %1674 = vmatprep.mubr.bf16.mxu0 0
          %1675 = vmatmul.mubr.bf16.gmra.mrb[0].mxu0 %v1455
          %v1676 = vpop.f32.mrb[0].mxu0
          %v1677 = vadd.f32 0.0, %v1676
          %v1678 = vpop.f32.mrb[0].mxu0
          %v1679 = vpop.f32.mrb[0].mxu0
          %v1680 = vadd.f32 0.0, %v1679
          %v1681 = vpop.f32.mrb[0].mxu0
          %1682 = vdwg.mxu0
          %v1683 = vadd.f32 %v1393, %v1541
          %v1684 = vadd.f32 %v1394, %v1544
          %v1685 = vadd.f32 %v1395, %v1549
          %v1686 = vadd.f32 %v1396, %v1552
          %v1687 = vadd.f32 %v1397, %v1557
          %v1688 = vadd.f32 %v1398, %v1560
          %v1689 = vadd.f32 %v1399, %v1565
          %v1690 = vadd.f32 %v1400, %v1568
          %v1691 = vadd.f32 %v1401, %v1573
          %v1692 = vadd.f32 %v1402, %v1576
          %v1693 = vadd.f32 %v1403, %v1581
          %v1694 = vadd.f32 %v1404, %v1584
          %v1695 = vadd.f32 %v1405, %v1589
          %v1696 = vadd.f32 %v1406, %v1592
          %v1697 = vadd.f32 %v1407, %v1597
          %v1698 = vadd.f32 %v1408, %v1600
          %v1699 = vadd.f32 %v1409, %v1605
          %v1700 = vadd.f32 %v1410, %v1608
          %v1701 = vadd.f32 %v1411, %v1613
          %v1702 = vadd.f32 %v1412, %v1616
          %v1703 = vadd.f32 %v1413, %v1621
          %v1704 = vadd.f32 %v1414, %v1624
          %v1705 = vadd.f32 %v1415, %v1629
          %v1706 = vadd.f32 %v1416, %v1632
          %v1707 = vadd.f32 %v1417, %v1637
          %v1708 = vadd.f32 %v1418, %v1640
          %v1709 = vadd.f32 %v1419, %v1645
          %v1710 = vadd.f32 %v1420, %v1648
          %v1711 = vadd.f32 %v1421, %v1653
          %v1712 = vadd.f32 %v1422, %v1656
          %v1713 = vadd.f32 %v1423, %v1661
          %v1714 = vadd.f32 %v1424, %v1664
          %v1715 = vadd.f32 %v1425, %v1669
          %v1716 = vadd.f32 %v1426, %v1672
          %v1717 = vadd.f32 %v1427, %v1677
          %v1718 = vadd.f32 %v1428, %v1680
          %s1719 = scalar_lea.vmem %s1, 256
          %v1720 = vld [vmem:[%s1719] sm:$0xf]
          %v1721 = vld [vmem:[%s1719 + $0x4] sm:$0xf]
          %v1722 = vld [vmem:[%s1719 + $0x8] sm:$0xf]
          %v1723 = vld [vmem:[%s1719 + $0xc] sm:$0xf]
          %v1724 = vld [vmem:[%s1719 + $0x10] sm:$0xf]
          %v1725 = vld [vmem:[%s1719 + $0x14] sm:$0xf]
          %v1726 = vld [vmem:[%s1719 + $0x18] sm:$0xf]
          %v1727 = vld [vmem:[%s1719 + $0x1c] sm:$0xf]
          %v1728 = vld [vmem:[%s1719 + $0x20] sm:$0xf]
          %v1729 = vld [vmem:[%s1719 + $0x24] sm:$0xf]
          %v1730 = vld [vmem:[%s1719 + $0x28] sm:$0xf]
          %v1731 = vld [vmem:[%s1719 + $0x2c] sm:$0xf]
          %v1732 = vld [vmem:[%s1719 + $0x30] sm:$0xf]
          %v1733 = vld [vmem:[%s1719 + $0x34] sm:$0xf]
          %v1734 = vld [vmem:[%s1719 + $0x38] sm:$0xf]
          %v1735 = vld [vmem:[%s1719 + $0x3c] sm:$0xf]
          %vm1736 = vsmask.f32 6400
          %v1737 = vrot.slane %v473, 1
          %v1738 = vrot.slane %v469, 2
          %v1739 = vor.u32 %v1737, %v1738
          %v1740 = vrot.slane %v481, 1
          %v1741 = vrot.slane %v477, 2
          %v1742 = vor.u32 %v1740, %v1741
          %v1743 = vsel %vm1736, %v1739, %v1742
          %v1744 = vrot.slane %v489, 1
          %v1745 = vrot.slane %v485, 2
          %v1746 = vor.u32 %v1744, %v1745
          %v1747 = vsel %vm1736, %v1742, %v1746
          %v1748 = vrot.slane %v497, 1
          %v1749 = vrot.slane %v493, 2
          %v1750 = vor.u32 %v1748, %v1749
          %v1751 = vsel %vm1736, %v1746, %v1750
          %v1752 = vrot.slane %v505, 1
          %v1753 = vrot.slane %v501, 2
          %v1754 = vor.u32 %v1752, %v1753
          %v1755 = vsel %vm1736, %v1750, %v1754
          %v1756 = vrot.slane %v513, 1
          %v1757 = vrot.slane %v509, 2
          %v1758 = vor.u32 %v1756, %v1757
          %v1759 = vsel %vm1736, %v1754, %v1758
          %v1760 = vrot.slane %v521, 1
          %v1761 = vrot.slane %v517, 2
          %v1762 = vor.u32 %v1760, %v1761
          %v1763 = vsel %vm1736, %v1758, %v1762
          %v1764 = vrot.slane %v529, 1
          %v1765 = vrot.slane %v525, 2
          %v1766 = vor.u32 %v1764, %v1765
          %v1767 = vsel %vm1736, %v1762, %v1766
          %v1768 = vrot.slane %v537, 1
          %v1769 = vrot.slane %v533, 2
          %v1770 = vor.u32 %v1768, %v1769
          %v1771 = vsel %vm1736, %v1766, %v1770
          %v1772 = vrot.slane %v545, 1
          %v1773 = vrot.slane %v541, 2
          %v1774 = vor.u32 %v1772, %v1773
          %v1775 = vsel %vm1736, %v1770, %v1774
          %v1776 = vrot.slane %v553, 1
          %v1777 = vrot.slane %v549, 2
          %v1778 = vor.u32 %v1776, %v1777
          %v1779 = vsel %vm1736, %v1774, %v1778
          %v1780 = vrot.slane %v561, 1
          %v1781 = vrot.slane %v557, 2
          %v1782 = vor.u32 %v1780, %v1781
          %v1783 = vsel %vm1736, %v1778, %v1782
          %v1784 = vrot.slane %v569, 1
          %v1785 = vrot.slane %v565, 2
          %v1786 = vor.u32 %v1784, %v1785
          %v1787 = vsel %vm1736, %v1782, %v1786
          %v1788 = vrot.slane %v577, 1
          %v1789 = vrot.slane %v573, 2
          %v1790 = vor.u32 %v1788, %v1789
          %v1791 = vsel %vm1736, %v1786, %v1790
          %v1792 = vrot.slane %v585, 1
          %v1793 = vrot.slane %v581, 2
          %v1794 = vor.u32 %v1792, %v1793
          %v1795 = vsel %vm1736, %v1790, %v1794
          %v1796 = vrot.slane %v593, 1
          %v1797 = vrot.slane %v589, 2
          %v1798 = vor.u32 %v1796, %v1797
          %v1799 = vsel %vm1736, %v1794, %v1798
          %v1800 = vrot.slane %v601, 1
          %v1801 = vrot.slane %v597, 2
          %v1802 = vor.u32 %v1800, %v1801
          %v1803 = vsel %vm1736, %v1798, %v1802
          %v1805 = vshrl.u32 %v1450, 16
          %v1807 = vrot.slane %v1805, 1
          %v1808 = vshll.u32 %v1450, 16
          %v1810 = vrot.slane %v1808, 2
          %v1811 = vor.u32 %v1807, %v1810
          %v1812 = vsel %vm1736, %v1802, %v1811
          %v1814 = vshrl.u32 %v1451, 16
          %v1816 = vrot.slane %v1814, 1
          %v1817 = vshll.u32 %v1451, 16
          %v1819 = vrot.slane %v1817, 2
          %v1820 = vor.u32 %v1816, %v1819
          %v1821 = vsel %vm1736, %v1811, %v1820
          %v1856 = vunpack.c.l.b16 %v1720
          %v1857 = vunpack.c.l.b16 %v1721
          %v1858 = vunpack.c.l.b16 %v1722
          %v1859 = vunpack.c.l.b16 %v1723
          %v1860 = vunpack.c.l.b16 %v1724
          %v1861 = vunpack.c.l.b16 %v1725
          %v1862 = vunpack.c.l.b16 %v1726
          %v1863 = vunpack.c.l.b16 %v1727
          %v1864 = vunpack.c.l.b16 %v1728
          %v1865 = vunpack.c.l.b16 %v1729
          %v1866 = vunpack.c.l.b16 %v1730
          %v1867 = vunpack.c.l.b16 %v1731
          %v1868 = vunpack.c.l.b16 %v1732
          %v1869 = vunpack.c.l.b16 %v1733
          %v1870 = vunpack.c.l.b16 %v1734
          %v1871 = vunpack.c.l.b16 %v1735
          %v1872 = vpack.c.b16 %v1857, %v1856
          %v1873 = vpack.c.b16 %v1859, %v1858
          %v1874 = vpack.c.b16 %v1861, %v1860
          %v1875 = vpack.c.b16 %v1863, %v1862
          %v1876 = vpack.c.b16 %v1865, %v1864
          %v1877 = vpack.c.b16 %v1867, %v1866
          %v1878 = vpack.c.b16 %v1869, %v1868
          %v1879 = vpack.c.b16 %v1871, %v1870
          %1888 = vmatprep.subr.bf16.mxu0 0
          %1889 = vmatpush1.bf16.msra.mxu0 %v1872
          %1890 = vmatprep.subr.bf16.mxu0 0
          %1891 = vmatpush1.bf16.msra.mxu0 %v1873
          %1892 = vmatprep.subr.bf16.mxu0 0
          %1893 = vmatpush1.bf16.msra.mxu0 %v1874
          %1894 = vmatprep.subr.bf16.mxu0 0
          %1895 = vmatpush1.bf16.msra.mxu0 %v1875
          %1896 = vmatprep.subr.bf16.mxu0 0
          %1897 = vmatpush1.bf16.msra.mxu0 %v1876
          %1898 = vmatprep.subr.bf16.mxu0 0
          %1899 = vmatpush1.bf16.msra.mxu0 %v1877
          %1900 = vmatprep.subr.bf16.mxu0 0
          %1901 = vmatpush1.bf16.msra.mxu0 %v1878
          %1902 = vmatprep.subr.bf16.mxu0 0
          %1903 = vmatpush1.bf16.msra.mxu0 %v1879
          %1904 = vmatprep.subr.bf16.mxu0 0
          %1905 = vmatpush1.bf16.msra.mxu0 0
          %1906 = vmatprep.subr.bf16.mxu0 0
          %1907 = vmatpush1.bf16.msra.mxu0 0
          %1908 = vmatprep.subr.bf16.mxu0 0
          %1909 = vmatpush1.bf16.msra.mxu0 0
          %1910 = vmatprep.subr.bf16.mxu0 0
          %1911 = vmatpush1.bf16.msra.mxu0 0
          %1912 = vmatprep.subr.bf16.mxu0 0
          %1913 = vmatpush1.bf16.msra.mxu0 0
          %1914 = vmatprep.subr.bf16.mxu0 0
          %1915 = vmatpush1.bf16.msra.mxu0 0
          %1916 = vmatprep.subr.bf16.mxu0 0
          %1917 = vmatpush1.bf16.msra.mxu0 0
          %1918 = vmatprep.subr.bf16.mxu0 0
          %1919 = vmatpush1.bf16.msra.mxu0 0
          %1920 = vmatprep.mubr.bf16.mxu0 0
          %1921 = vmatmul.mubr.bf16.gmra.mrb[0].mxu0 %v1743
          %v1922 = vpop.f32.mrb[0].mxu0
          %v1923 = vadd.f32 0.0, %v1922
          %v1924 = vpop.f32.mrb[0].mxu0
          %v1925 = vpop.f32.mrb[0].mxu0
          %v1926 = vadd.f32 0.0, %v1925
          %v1927 = vpop.f32.mrb[0].mxu0
          %1928 = vmatprep.mubr.bf16.mxu0 0
          %1929 = vmatmul.mubr.bf16.gmra.mrb[0].mxu0 %v1747
          %v1930 = vpop.f32.mrb[0].mxu0
          %v1931 = vadd.f32 0.0, %v1930
          %v1932 = vpop.f32.mrb[0].mxu0
          %v1933 = vpop.f32.mrb[0].mxu0
          %v1934 = vadd.f32 0.0, %v1933
          %v1935 = vpop.f32.mrb[0].mxu0
          %1936 = vmatprep.mubr.bf16.mxu0 0
          %1937 = vmatmul.mubr.bf16.gmra.mrb[0].mxu0 %v1751
          %v1938 = vpop.f32.mrb[0].mxu0
          %v1939 = vadd.f32 0.0, %v1938
          %v1940 = vpop.f32.mrb[0].mxu0
          %v1941 = vpop.f32.mrb[0].mxu0
          %v1942 = vadd.f32 0.0, %v1941
          %v1943 = vpop.f32.mrb[0].mxu0
          %1944 = vmatprep.mubr.bf16.mxu0 0
          %1945 = vmatmul.mubr.bf16.gmra.mrb[0].mxu0 %v1755
          %v1946 = vpop.f32.mrb[0].mxu0
          %v1947 = vadd.f32 0.0, %v1946
          %v1948 = vpop.f32.mrb[0].mxu0
          %v1949 = vpop.f32.mrb[0].mxu0
          %v1950 = vadd.f32 0.0, %v1949
          %v1951 = vpop.f32.mrb[0].mxu0
          %1952 = vmatprep.mubr.bf16.mxu0 0
          %1953 = vmatmul.mubr.bf16.gmra.mrb[0].mxu0 %v1759
          %v1954 = vpop.f32.mrb[0].mxu0
          %v1955 = vadd.f32 0.0, %v1954
          %v1956 = vpop.f32.mrb[0].mxu0
          %v1957 = vpop.f32.mrb[0].mxu0
          %v1958 = vadd.f32 0.0, %v1957
          %v1959 = vpop.f32.mrb[0].mxu0
          %1960 = vmatprep.mubr.bf16.mxu0 0
          %1961 = vmatmul.mubr.bf16.gmra.mrb[0].mxu0 %v1763
          %v1962 = vpop.f32.mrb[0].mxu0
          %v1963 = vadd.f32 0.0, %v1962
          %v1964 = vpop.f32.mrb[0].mxu0
          %v1965 = vpop.f32.mrb[0].mxu0
          %v1966 = vadd.f32 0.0, %v1965
          %v1967 = vpop.f32.mrb[0].mxu0
          %1968 = vmatprep.mubr.bf16.mxu0 0
          %1969 = vmatmul.mubr.bf16.gmra.mrb[0].mxu0 %v1767
          %v1970 = vpop.f32.mrb[0].mxu0
          %v1971 = vadd.f32 0.0, %v1970
          %v1972 = vpop.f32.mrb[0].mxu0
          %v1973 = vpop.f32.mrb[0].mxu0
          %v1974 = vadd.f32 0.0, %v1973
          %v1975 = vpop.f32.mrb[0].mxu0
          %1976 = vmatprep.mubr.bf16.mxu0 0
          %1977 = vmatmul.mubr.bf16.gmra.mrb[0].mxu0 %v1771
          %v1978 = vpop.f32.mrb[0].mxu0
          %v1979 = vadd.f32 0.0, %v1978
          %v1980 = vpop.f32.mrb[0].mxu0
          %v1981 = vpop.f32.mrb[0].mxu0
          %v1982 = vadd.f32 0.0, %v1981
          %v1983 = vpop.f32.mrb[0].mxu0
          %1984 = vmatprep.mubr.bf16.mxu0 0
          %1985 = vmatmul.mubr.bf16.gmra.mrb[0].mxu0 %v1775
          %v1986 = vpop.f32.mrb[0].mxu0
          %v1987 = vadd.f32 0.0, %v1986
          %v1988 = vpop.f32.mrb[0].mxu0
          %v1989 = vpop.f32.mrb[0].mxu0
          %v1990 = vadd.f32 0.0, %v1989
          %v1991 = vpop.f32.mrb[0].mxu0
          %1992 = vmatprep.mubr.bf16.mxu0 0
          %1993 = vmatmul.mubr.bf16.gmra.mrb[0].mxu0 %v1779
          %v1994 = vpop.f32.mrb[0].mxu0
          %v1995 = vadd.f32 0.0, %v1994
          %v1996 = vpop.f32.mrb[0].mxu0
          %v1997 = vpop.f32.mrb[0].mxu0
          %v1998 = vadd.f32 0.0, %v1997
          %v1999 = vpop.f32.mrb[0].mxu0
          %2000 = vmatprep.mubr.bf16.mxu0 0
          %2001 = vmatmul.mubr.bf16.gmra.mrb[0].mxu0 %v1783
          %v2002 = vpop.f32.mrb[0].mxu0
          %v2003 = vadd.f32 0.0, %v2002
          %v2004 = vpop.f32.mrb[0].mxu0
          %v2005 = vpop.f32.mrb[0].mxu0
          %v2006 = vadd.f32 0.0, %v2005
          %v2007 = vpop.f32.mrb[0].mxu0
          %2008 = vmatprep.mubr.bf16.mxu0 0
          %2009 = vmatmul.mubr.bf16.gmra.mrb[0].mxu0 %v1787
          %v2010 = vpop.f32.mrb[0].mxu0
          %v2011 = vadd.f32 0.0, %v2010
          %v2012 = vpop.f32.mrb[0].mxu0
          %v2013 = vpop.f32.mrb[0].mxu0
          %v2014 = vadd.f32 0.0, %v2013
          %v2015 = vpop.f32.mrb[0].mxu0
          %2016 = vmatprep.mubr.bf16.mxu0 0
          %2017 = vmatmul.mubr.bf16.gmra.mrb[0].mxu0 %v1791
          %v2018 = vpop.f32.mrb[0].mxu0
          %v2019 = vadd.f32 0.0, %v2018
          %v2020 = vpop.f32.mrb[0].mxu0
          %v2021 = vpop.f32.mrb[0].mxu0
          %v2022 = vadd.f32 0.0, %v2021
          %v2023 = vpop.f32.mrb[0].mxu0
          %2024 = vmatprep.mubr.bf16.mxu0 0
          %2025 = vmatmul.mubr.bf16.gmra.mrb[0].mxu0 %v1795
          %v2026 = vpop.f32.mrb[0].mxu0
          %v2027 = vadd.f32 0.0, %v2026
          %v2028 = vpop.f32.mrb[0].mxu0
          %v2029 = vpop.f32.mrb[0].mxu0
          %v2030 = vadd.f32 0.0, %v2029
          %v2031 = vpop.f32.mrb[0].mxu0
          %2032 = vmatprep.mubr.bf16.mxu0 0
          %2033 = vmatmul.mubr.bf16.gmra.mrb[0].mxu0 %v1799
          %v2034 = vpop.f32.mrb[0].mxu0
          %v2035 = vadd.f32 0.0, %v2034
          %v2036 = vpop.f32.mrb[0].mxu0
          %v2037 = vpop.f32.mrb[0].mxu0
          %v2038 = vadd.f32 0.0, %v2037
          %v2039 = vpop.f32.mrb[0].mxu0
          %2040 = vmatprep.mubr.bf16.mxu0 0
          %2041 = vmatmul.mubr.bf16.gmra.mrb[0].mxu0 %v1803
          %v2042 = vpop.f32.mrb[0].mxu0
          %v2043 = vadd.f32 0.0, %v2042
          %v2044 = vpop.f32.mrb[0].mxu0
          %v2045 = vpop.f32.mrb[0].mxu0
          %v2046 = vadd.f32 0.0, %v2045
          %v2047 = vpop.f32.mrb[0].mxu0
          %2048 = vmatprep.mubr.bf16.mxu0 0
          %2049 = vmatmul.mubr.bf16.gmra.mrb[0].mxu0 %v1812
          %v2050 = vpop.f32.mrb[0].mxu0
          %v2051 = vadd.f32 0.0, %v2050
          %v2052 = vpop.f32.mrb[0].mxu0
          %v2053 = vpop.f32.mrb[0].mxu0
          %v2054 = vadd.f32 0.0, %v2053
          %v2055 = vpop.f32.mrb[0].mxu0
          %2056 = vmatprep.mubr.bf16.mxu0 0
          %2057 = vmatmul.mubr.bf16.gmra.mrb[0].mxu0 %v1821
          %v2058 = vpop.f32.mrb[0].mxu0
          %v2059 = vadd.f32 0.0, %v2058
          %v2060 = vpop.f32.mrb[0].mxu0
          %v2061 = vpop.f32.mrb[0].mxu0
          %v2062 = vadd.f32 0.0, %v2061
          %v2063 = vpop.f32.mrb[0].mxu0
          %2064 = vdwg.mxu0
          %v2065 = vadd.f32 %v1683, %v1923
          %v2066 = vadd.f32 %v1684, %v1926
          %v2067 = vadd.f32 %v1685, %v1931
          %v2068 = vadd.f32 %v1686, %v1934
          %v2069 = vadd.f32 %v1687, %v1939
          %v2070 = vadd.f32 %v1688, %v1942
          %v2071 = vadd.f32 %v1689, %v1947
          %v2072 = vadd.f32 %v1690, %v1950
          %v2073 = vadd.f32 %v1691, %v1955
          %v2074 = vadd.f32 %v1692, %v1958
          %v2075 = vadd.f32 %v1693, %v1963
          %v2076 = vadd.f32 %v1694, %v1966
          %v2077 = vadd.f32 %v1695, %v1971
          %v2078 = vadd.f32 %v1696, %v1974
          %v2079 = vadd.f32 %v1697, %v1979
          %v2080 = vadd.f32 %v1698, %v1982
          %v2081 = vadd.f32 %v1699, %v1987
          %v2082 = vadd.f32 %v1700, %v1990
          %v2083 = vadd.f32 %v1701, %v1995
          %v2084 = vadd.f32 %v1702, %v1998
          %v2085 = vadd.f32 %v1703, %v2003
          %v2086 = vadd.f32 %v1704, %v2006
          %v2087 = vadd.f32 %v1705, %v2011
          %v2088 = vadd.f32 %v1706, %v2014
          %v2089 = vadd.f32 %v1707, %v2019
          %v2090 = vadd.f32 %v1708, %v2022
          %v2091 = vadd.f32 %v1709, %v2027
          %v2092 = vadd.f32 %v1710, %v2030
          %v2093 = vadd.f32 %v1711, %v2035
          %v2094 = vadd.f32 %v1712, %v2038
          %v2095 = vadd.f32 %v1713, %v2043
          %v2096 = vadd.f32 %v1714, %v2046
          %v2097 = vadd.f32 %v1715, %v2051
          %v2098 = vadd.f32 %v1716, %v2054
          %v2099 = vadd.f32 %v1717, %v2059
          %v2100 = vadd.f32 %v1718, %v2062
          %s2101 = scalar_lea.vmem %s1, 320
          %v2102 = vld [vmem:[%s2101] sm:$0xf]
          %v2103 = vld [vmem:[%s2101 + $0x4] sm:$0xf]
          %v2104 = vld [vmem:[%s2101 + $0x8] sm:$0xf]
          %v2105 = vld [vmem:[%s2101 + $0xc] sm:$0xf]
          %v2106 = vld [vmem:[%s2101 + $0x10] sm:$0xf]
          %v2107 = vld [vmem:[%s2101 + $0x14] sm:$0xf]
          %v2108 = vld [vmem:[%s2101 + $0x18] sm:$0xf]
          %v2109 = vld [vmem:[%s2101 + $0x1c] sm:$0xf]
          %v2110 = vld [vmem:[%s2101 + $0x20] sm:$0xf]
          %v2111 = vld [vmem:[%s2101 + $0x24] sm:$0xf]
          %v2112 = vld [vmem:[%s2101 + $0x28] sm:$0xf]
          %v2113 = vld [vmem:[%s2101 + $0x2c] sm:$0xf]
          %v2114 = vld [vmem:[%s2101 + $0x30] sm:$0xf]
          %v2115 = vld [vmem:[%s2101 + $0x34] sm:$0xf]
          %v2116 = vld [vmem:[%s2101 + $0x38] sm:$0xf]
          %v2117 = vld [vmem:[%s2101 + $0x3c] sm:$0xf]
          %vm2118 = vcmask 1045504
          %v2119 = vrot.slane %v442, 2
          %v2120 = vrot.slane %v443, 2
          %v2121 = vsel %vm2118, %v2119, %v2120
          %v2122 = vrot.slane %v444, 2
          %v2123 = vsel %vm2118, %v2120, %v2122
          %v2124 = vrot.slane %v445, 2
          %v2125 = vsel %vm2118, %v2122, %v2124
          %v2126 = vrot.slane %v446, 2
          %v2127 = vsel %vm2118, %v2124, %v2126
          %v2128 = vrot.slane %v447, 2
          %v2129 = vsel %vm2118, %v2126, %v2128
          %v2130 = vrot.slane %v448, 2
          %v2131 = vsel %vm2118, %v2128, %v2130
          %v2132 = vrot.slane %v449, 2
          %v2133 = vsel %vm2118, %v2130, %v2132
          %v2134 = vrot.slane %v450, 2
          %v2135 = vsel %vm2118, %v2132, %v2134
          %v2136 = vrot.slane %v451, 2
          %v2137 = vsel %vm2118, %v2134, %v2136
          %v2138 = vrot.slane %v452, 2
          %v2139 = vsel %vm2118, %v2136, %v2138
          %v2140 = vrot.slane %v453, 2
          %v2141 = vsel %vm2118, %v2138, %v2140
          %v2142 = vrot.slane %v454, 2
          %v2143 = vsel %vm2118, %v2140, %v2142
          %v2144 = vrot.slane %v455, 2
          %v2145 = vsel %vm2118, %v2142, %v2144
          %v2146 = vrot.slane %v456, 2
          %v2147 = vsel %vm2118, %v2144, %v2146
          %v2148 = vrot.slane %v457, 2
          %v2149 = vsel %vm2118, %v2146, %v2148
          %v2150 = vrot.slane %v458, 2
          %v2151 = vsel %vm2118, %v2148, %v2150
          %v2152 = vrot.slane %v1450, 2
          %v2153 = vsel %vm2118, %v2150, %v2152
          %v2154 = vrot.slane %v1451, 2
          %v2155 = vsel %vm2118, %v2152, %v2154
          %v2190 = vunpack.c.l.b16 %v2102
          %v2191 = vunpack.c.l.b16 %v2103
          %v2192 = vunpack.c.l.b16 %v2104
          %v2193 = vunpack.c.l.b16 %v2105
          %v2194 = vunpack.c.l.b16 %v2106
          %v2195 = vunpack.c.l.b16 %v2107
          %v2196 = vunpack.c.l.b16 %v2108
          %v2197 = vunpack.c.l.b16 %v2109
          %v2198 = vunpack.c.l.b16 %v2110
          %v2199 = vunpack.c.l.b16 %v2111
          %v2200 = vunpack.c.l.b16 %v2112
          %v2201 = vunpack.c.l.b16 %v2113
          %v2202 = vunpack.c.l.b16 %v2114
          %v2203 = vunpack.c.l.b16 %v2115
          %v2204 = vunpack.c.l.b16 %v2116
          %v2205 = vunpack.c.l.b16 %v2117
          %v2206 = vpack.c.b16 %v2191, %v2190
          %v2207 = vpack.c.b16 %v2193, %v2192
          %v2208 = vpack.c.b16 %v2195, %v2194
          %v2209 = vpack.c.b16 %v2197, %v2196
          %v2210 = vpack.c.b16 %v2199, %v2198
          %v2211 = vpack.c.b16 %v2201, %v2200
          %v2212 = vpack.c.b16 %v2203, %v2202
          %v2213 = vpack.c.b16 %v2205, %v2204
          %2222 = vmatprep.subr.bf16.mxu0 0
          %2223 = vmatpush1.bf16.msra.mxu0 %v2206
          %2224 = vmatprep.subr.bf16.mxu0 0
          %2225 = vmatpush1.bf16.msra.mxu0 %v2207
          %2226 = vmatprep.subr.bf16.mxu0 0
          %2227 = vmatpush1.bf16.msra.mxu0 %v2208
          %2228 = vmatprep.subr.bf16.mxu0 0
          %2229 = vmatpush1.bf16.msra.mxu0 %v2209
          %2230 = vmatprep.subr.bf16.mxu0 0
          %2231 = vmatpush1.bf16.msra.mxu0 %v2210
          %2232 = vmatprep.subr.bf16.mxu0 0
          %2233 = vmatpush1.bf16.msra.mxu0 %v2211
          %2234 = vmatprep.subr.bf16.mxu0 0
          %2235 = vmatpush1.bf16.msra.mxu0 %v2212
          %2236 = vmatprep.subr.bf16.mxu0 0
          %2237 = vmatpush1.bf16.msra.mxu0 %v2213
          %2238 = vmatprep.subr.bf16.mxu0 0
          %2239 = vmatpush1.bf16.msra.mxu0 0
          %2240 = vmatprep.subr.bf16.mxu0 0
          %2241 = vmatpush1.bf16.msra.mxu0 0
          %2242 = vmatprep.subr.bf16.mxu0 0
          %2243 = vmatpush1.bf16.msra.mxu0 0
          %2244 = vmatprep.subr.bf16.mxu0 0
          %2245 = vmatpush1.bf16.msra.mxu0 0
          %2246 = vmatprep.subr.bf16.mxu0 0
          %2247 = vmatpush1.bf16.msra.mxu0 0
          %2248 = vmatprep.subr.bf16.mxu0 0
          %2249 = vmatpush1.bf16.msra.mxu0 0
          %2250 = vmatprep.subr.bf16.mxu0 0
          %2251 = vmatpush1.bf16.msra.mxu0 0
          %2252 = vmatprep.subr.bf16.mxu0 0
          %2253 = vmatpush1.bf16.msra.mxu0 0
          %2254 = vmatprep.mubr.bf16.mxu0 0
          %2255 = vmatmul.mubr.bf16.gmra.mrb[0].mxu0 %v2121
          %v2256 = vpop.f32.mrb[0].mxu0
          %v2257 = vadd.f32 0.0, %v2256
          %v2258 = vpop.f32.mrb[0].mxu0
          %v2259 = vpop.f32.mrb[0].mxu0
          %v2260 = vadd.f32 0.0, %v2259
          %v2261 = vpop.f32.mrb[0].mxu0
          %2262 = vmatprep.mubr.bf16.mxu0 0
          %2263 = vmatmul.mubr.bf16.gmra.mrb[0].mxu0 %v2123
          %v2264 = vpop.f32.mrb[0].mxu0
          %v2265 = vadd.f32 0.0, %v2264
          %v2266 = vpop.f32.mrb[0].mxu0
          %v2267 = vpop.f32.mrb[0].mxu0
          %v2268 = vadd.f32 0.0, %v2267
          %v2269 = vpop.f32.mrb[0].mxu0
          %2270 = vmatprep.mubr.bf16.mxu0 0
          %2271 = vmatmul.mubr.bf16.gmra.mrb[0].mxu0 %v2125
          %v2272 = vpop.f32.mrb[0].mxu0
          %v2273 = vadd.f32 0.0, %v2272
          %v2274 = vpop.f32.mrb[0].mxu0
          %v2275 = vpop.f32.mrb[0].mxu0
          %v2276 = vadd.f32 0.0, %v2275
          %v2277 = vpop.f32.mrb[0].mxu0
          %2278 = vmatprep.mubr.bf16.mxu0 0
          %2279 = vmatmul.mubr.bf16.gmra.mrb[0].mxu0 %v2127
          %v2280 = vpop.f32.mrb[0].mxu0
          %v2281 = vadd.f32 0.0, %v2280
          %v2282 = vpop.f32.mrb[0].mxu0
          %v2283 = vpop.f32.mrb[0].mxu0
          %v2284 = vadd.f32 0.0, %v2283
          %v2285 = vpop.f32.mrb[0].mxu0
          %2286 = vmatprep.mubr.bf16.mxu0 0
          %2287 = vmatmul.mubr.bf16.gmra.mrb[0].mxu0 %v2129
          %v2288 = vpop.f32.mrb[0].mxu0
          %v2289 = vadd.f32 0.0, %v2288
          %v2290 = vpop.f32.mrb[0].mxu0
          %v2291 = vpop.f32.mrb[0].mxu0
          %v2292 = vadd.f32 0.0, %v2291
          %v2293 = vpop.f32.mrb[0].mxu0
          %2294 = vmatprep.mubr.bf16.mxu0 0
          %2295 = vmatmul.mubr.bf16.gmra.mrb[0].mxu0 %v2131
          %v2296 = vpop.f32.mrb[0].mxu0
          %v2297 = vadd.f32 0.0, %v2296
          %v2298 = vpop.f32.mrb[0].mxu0
          %v2299 = vpop.f32.mrb[0].mxu0
          %v2300 = vadd.f32 0.0, %v2299
          %v2301 = vpop.f32.mrb[0].mxu0
          %2302 = vmatprep.mubr.bf16.mxu0 0
          %2303 = vmatmul.mubr.bf16.gmra.mrb[0].mxu0 %v2133
          %v2304 = vpop.f32.mrb[0].mxu0
          %v2305 = vadd.f32 0.0, %v2304
          %v2306 = vpop.f32.mrb[0].mxu0
          %v2307 = vpop.f32.mrb[0].mxu0
          %v2308 = vadd.f32 0.0, %v2307
          %v2309 = vpop.f32.mrb[0].mxu0
          %2310 = vmatprep.mubr.bf16.mxu0 0
          %2311 = vmatmul.mubr.bf16.gmra.mrb[0].mxu0 %v2135
          %v2312 = vpop.f32.mrb[0].mxu0
          %v2313 = vadd.f32 0.0, %v2312
          %v2314 = vpop.f32.mrb[0].mxu0
          %v2315 = vpop.f32.mrb[0].mxu0
          %v2316 = vadd.f32 0.0, %v2315
          %v2317 = vpop.f32.mrb[0].mxu0
          %2318 = vmatprep.mubr.bf16.mxu0 0
          %2319 = vmatmul.mubr.bf16.gmra.mrb[0].mxu0 %v2137
          %v2320 = vpop.f32.mrb[0].mxu0
          %v2321 = vadd.f32 0.0, %v2320
          %v2322 = vpop.f32.mrb[0].mxu0
          %v2323 = vpop.f32.mrb[0].mxu0
          %v2324 = vadd.f32 0.0, %v2323
          %v2325 = vpop.f32.mrb[0].mxu0
          %2326 = vmatprep.mubr.bf16.mxu0 0
          %2327 = vmatmul.mubr.bf16.gmra.mrb[0].mxu0 %v2139
          %v2328 = vpop.f32.mrb[0].mxu0
          %v2329 = vadd.f32 0.0, %v2328
          %v2330 = vpop.f32.mrb[0].mxu0
          %v2331 = vpop.f32.mrb[0].mxu0
          %v2332 = vadd.f32 0.0, %v2331
          %v2333 = vpop.f32.mrb[0].mxu0
          %2334 = vmatprep.mubr.bf16.mxu0 0
          %2335 = vmatmul.mubr.bf16.gmra.mrb[0].mxu0 %v2141
          %v2336 = vpop.f32.mrb[0].mxu0
          %v2337 = vadd.f32 0.0, %v2336
          %v2338 = vpop.f32.mrb[0].mxu0
          %v2339 = vpop.f32.mrb[0].mxu0
          %v2340 = vadd.f32 0.0, %v2339
          %v2341 = vpop.f32.mrb[0].mxu0
          %2342 = vmatprep.mubr.bf16.mxu0 0
          %2343 = vmatmul.mubr.bf16.gmra.mrb[0].mxu0 %v2143
          %v2344 = vpop.f32.mrb[0].mxu0
          %v2345 = vadd.f32 0.0, %v2344
          %v2346 = vpop.f32.mrb[0].mxu0
          %v2347 = vpop.f32.mrb[0].mxu0
          %v2348 = vadd.f32 0.0, %v2347
          %v2349 = vpop.f32.mrb[0].mxu0
          %2350 = vmatprep.mubr.bf16.mxu0 0
          %2351 = vmatmul.mubr.bf16.gmra.mrb[0].mxu0 %v2145
          %v2352 = vpop.f32.mrb[0].mxu0
          %v2353 = vadd.f32 0.0, %v2352
          %v2354 = vpop.f32.mrb[0].mxu0
          %v2355 = vpop.f32.mrb[0].mxu0
          %v2356 = vadd.f32 0.0, %v2355
          %v2357 = vpop.f32.mrb[0].mxu0
          %2358 = vmatprep.mubr.bf16.mxu0 0
          %2359 = vmatmul.mubr.bf16.gmra.mrb[0].mxu0 %v2147
          %v2360 = vpop.f32.mrb[0].mxu0
          %v2361 = vadd.f32 0.0, %v2360
          %v2362 = vpop.f32.mrb[0].mxu0
          %v2363 = vpop.f32.mrb[0].mxu0
          %v2364 = vadd.f32 0.0, %v2363
          %v2365 = vpop.f32.mrb[0].mxu0
          %2366 = vmatprep.mubr.bf16.mxu0 0
          %2367 = vmatmul.mubr.bf16.gmra.mrb[0].mxu0 %v2149
          %v2368 = vpop.f32.mrb[0].mxu0
          %v2369 = vadd.f32 0.0, %v2368
          %v2370 = vpop.f32.mrb[0].mxu0
          %v2371 = vpop.f32.mrb[0].mxu0
          %v2372 = vadd.f32 0.0, %v2371
          %v2373 = vpop.f32.mrb[0].mxu0
          %2374 = vmatprep.mubr.bf16.mxu0 0
          %2375 = vmatmul.mubr.bf16.gmra.mrb[0].mxu0 %v2151
          %v2376 = vpop.f32.mrb[0].mxu0
          %v2377 = vadd.f32 0.0, %v2376
          %v2378 = vpop.f32.mrb[0].mxu0
          %v2379 = vpop.f32.mrb[0].mxu0
          %v2380 = vadd.f32 0.0, %v2379
          %v2381 = vpop.f32.mrb[0].mxu0
          %2382 = vmatprep.mubr.bf16.mxu0 0
          %2383 = vmatmul.mubr.bf16.gmra.mrb[0].mxu0 %v2153
          %v2384 = vpop.f32.mrb[0].mxu0
          %v2385 = vadd.f32 0.0, %v2384
          %v2386 = vpop.f32.mrb[0].mxu0
          %v2387 = vpop.f32.mrb[0].mxu0
          %v2388 = vadd.f32 0.0, %v2387
          %v2389 = vpop.f32.mrb[0].mxu0
          %2390 = vmatprep.mubr.bf16.mxu0 0
          %2391 = vmatmul.mubr.bf16.gmra.mrb[0].mxu0 %v2155
          %v2392 = vpop.f32.mrb[0].mxu0
          %v2393 = vadd.f32 0.0, %v2392
          %v2394 = vpop.f32.mrb[0].mxu0
          %v2395 = vpop.f32.mrb[0].mxu0
          %v2396 = vadd.f32 0.0, %v2395
          %v2397 = vpop.f32.mrb[0].mxu0
          %2398 = vdwg.mxu0
          %v2399 = vadd.f32 %v2065, %v2257
          %v2400 = vadd.f32 %v2066, %v2260
          %v2401 = vadd.f32 %v2067, %v2265
          %v2402 = vadd.f32 %v2068, %v2268
          %v2403 = vadd.f32 %v2069, %v2273
          %v2404 = vadd.f32 %v2070, %v2276
          %v2405 = vadd.f32 %v2071, %v2281
          %v2406 = vadd.f32 %v2072, %v2284
          %v2407 = vadd.f32 %v2073, %v2289
          %v2408 = vadd.f32 %v2074, %v2292
          %v2409 = vadd.f32 %v2075, %v2297
          %v2410 = vadd.f32 %v2076, %v2300
          %v2411 = vadd.f32 %v2077, %v2305
          %v2412 = vadd.f32 %v2078, %v2308
          %v2413 = vadd.f32 %v2079, %v2313
          %v2414 = vadd.f32 %v2080, %v2316
          %v2415 = vadd.f32 %v2081, %v2321
          %v2416 = vadd.f32 %v2082, %v2324
          %v2417 = vadd.f32 %v2083, %v2329
          %v2418 = vadd.f32 %v2084, %v2332
          %v2419 = vadd.f32 %v2085, %v2337
          %v2420 = vadd.f32 %v2086, %v2340
          %v2421 = vadd.f32 %v2087, %v2345
          %v2422 = vadd.f32 %v2088, %v2348
          %v2423 = vadd.f32 %v2089, %v2353
          %v2424 = vadd.f32 %v2090, %v2356
          %v2425 = vadd.f32 %v2091, %v2361
          %v2426 = vadd.f32 %v2092, %v2364
          %v2427 = vadd.f32 %v2093, %v2369
          %v2428 = vadd.f32 %v2094, %v2372
          %v2429 = vadd.f32 %v2095, %v2377
          %v2430 = vadd.f32 %v2096, %v2380
          %v2431 = vadd.f32 %v2097, %v2385
          %v2432 = vadd.f32 %v2098, %v2388
          %v2433 = vadd.f32 %v2099, %v2393
          %v2434 = vadd.f32 %v2100, %v2396
          %s2435 = scalar_lea.vmem %s1, 384
          %v2436 = vld [vmem:[%s2435] sm:$0xf]
          %v2437 = vld [vmem:[%s2435 + $0x4] sm:$0xf]
          %v2438 = vld [vmem:[%s2435 + $0x8] sm:$0xf]
          %v2439 = vld [vmem:[%s2435 + $0xc] sm:$0xf]
          %v2440 = vld [vmem:[%s2435 + $0x10] sm:$0xf]
          %v2441 = vld [vmem:[%s2435 + $0x14] sm:$0xf]
          %v2442 = vld [vmem:[%s2435 + $0x18] sm:$0xf]
          %v2443 = vld [vmem:[%s2435 + $0x1c] sm:$0xf]
          %v2444 = vld [vmem:[%s2435 + $0x20] sm:$0xf]
          %v2445 = vld [vmem:[%s2435 + $0x24] sm:$0xf]
          %v2446 = vld [vmem:[%s2435 + $0x28] sm:$0xf]
          %v2447 = vld [vmem:[%s2435 + $0x2c] sm:$0xf]
          %v2448 = vld [vmem:[%s2435 + $0x30] sm:$0xf]
          %v2449 = vld [vmem:[%s2435 + $0x34] sm:$0xf]
          %v2450 = vld [vmem:[%s2435 + $0x38] sm:$0xf]
          %v2451 = vld [vmem:[%s2435 + $0x3c] sm:$0xf]
          %v2454 = vunpack.c.l.b16 %v332
          %v2455 = vunpack.c.l.b16 %v333
          %v2456 = vpack.c.b16 %v2454, %v1449
          %v2457 = vpack.c.b16 %v2455, %v2455
          %v2458 = vrot.slane %v2456, 2
          %v2459 = vsel %vm2118, %v2152, %v2458
          %v2460 = vrot.slane %v2457, 2
          %v2461 = vsel %vm2118, %v2458, %v2460
          %v2480 = vunpack.c.l.b16 %v2436
          %v2481 = vunpack.c.l.b16 %v2437
          %v2482 = vunpack.c.l.b16 %v2438
          %v2483 = vunpack.c.l.b16 %v2439
          %v2484 = vunpack.c.l.b16 %v2440
          %v2485 = vunpack.c.l.b16 %v2441
          %v2486 = vunpack.c.l.b16 %v2442
          %v2487 = vunpack.c.l.b16 %v2443
          %v2488 = vunpack.c.l.b16 %v2444
          %v2489 = vunpack.c.l.b16 %v2445
          %v2490 = vunpack.c.l.b16 %v2446
          %v2491 = vunpack.c.l.b16 %v2447
          %v2492 = vunpack.c.l.b16 %v2448
          %v2493 = vunpack.c.l.b16 %v2449
          %v2494 = vunpack.c.l.b16 %v2450
          %v2495 = vunpack.c.l.b16 %v2451
          %v2496 = vpack.c.b16 %v2481, %v2480
          %v2497 = vpack.c.b16 %v2483, %v2482
          %v2498 = vpack.c.b16 %v2485, %v2484
          %v2499 = vpack.c.b16 %v2487, %v2486
          %v2500 = vpack.c.b16 %v2489, %v2488
          %v2501 = vpack.c.b16 %v2491, %v2490
          %v2502 = vpack.c.b16 %v2493, %v2492
          %v2503 = vpack.c.b16 %v2495, %v2494
          %2512 = vmatprep.subr.bf16.mxu0 0
          %2513 = vmatpush1.bf16.msra.mxu0 %v2496
          %2514 = vmatprep.subr.bf16.mxu0 0
          %2515 = vmatpush1.bf16.msra.mxu0 %v2497
          %2516 = vmatprep.subr.bf16.mxu0 0
          %2517 = vmatpush1.bf16.msra.mxu0 %v2498
          %2518 = vmatprep.subr.bf16.mxu0 0
          %2519 = vmatpush1.bf16.msra.mxu0 %v2499
          %2520 = vmatprep.subr.bf16.mxu0 0
          %2521 = vmatpush1.bf16.msra.mxu0 %v2500
          %2522 = vmatprep.subr.bf16.mxu0 0
          %2523 = vmatpush1.bf16.msra.mxu0 %v2501
          %2524 = vmatprep.subr.bf16.mxu0 0
          %2525 = vmatpush1.bf16.msra.mxu0 %v2502
          %2526 = vmatprep.subr.bf16.mxu0 0
          %2527 = vmatpush1.bf16.msra.mxu0 %v2503
          %2528 = vmatprep.subr.bf16.mxu0 0
          %2529 = vmatpush1.bf16.msra.mxu0 0
          %2530 = vmatprep.subr.bf16.mxu0 0
          %2531 = vmatpush1.bf16.msra.mxu0 0
          %2532 = vmatprep.subr.bf16.mxu0 0
          %2533 = vmatpush1.bf16.msra.mxu0 0
          %2534 = vmatprep.subr.bf16.mxu0 0
          %2535 = vmatpush1.bf16.msra.mxu0 0
          %2536 = vmatprep.subr.bf16.mxu0 0
          %2537 = vmatpush1.bf16.msra.mxu0 0
          %2538 = vmatprep.subr.bf16.mxu0 0
          %2539 = vmatpush1.bf16.msra.mxu0 0
          %2540 = vmatprep.subr.bf16.mxu0 0
          %2541 = vmatpush1.bf16.msra.mxu0 0
          %2542 = vmatprep.subr.bf16.mxu0 0
          %2543 = vmatpush1.bf16.msra.mxu0 0
          %2544 = vmatprep.mubr.bf16.mxu0 0
          %2545 = vmatmul.mubr.bf16.gmra.mrb[0].mxu0 %v2123
          %v2546 = vpop.f32.mrb[0].mxu0
          %v2547 = vadd.f32 0.0, %v2546
          %v2548 = vpop.f32.mrb[0].mxu0
          %v2549 = vpop.f32.mrb[0].mxu0
          %v2550 = vadd.f32 0.0, %v2549
          %v2551 = vpop.f32.mrb[0].mxu0
          %2552 = vmatprep.mubr.bf16.mxu0 0
          %2553 = vmatmul.mubr.bf16.gmra.mrb[0].mxu0 %v2125
          %v2554 = vpop.f32.mrb[0].mxu0
          %v2555 = vadd.f32 0.0, %v2554
          %v2556 = vpop.f32.mrb[0].mxu0
          %v2557 = vpop.f32.mrb[0].mxu0
          %v2558 = vadd.f32 0.0, %v2557
          %v2559 = vpop.f32.mrb[0].mxu0
          %2560 = vmatprep.mubr.bf16.mxu0 0
          %2561 = vmatmul.mubr.bf16.gmra.mrb[0].mxu0 %v2127
          %v2562 = vpop.f32.mrb[0].mxu0
          %v2563 = vadd.f32 0.0, %v2562
          %v2564 = vpop.f32.mrb[0].mxu0
          %v2565 = vpop.f32.mrb[0].mxu0
          %v2566 = vadd.f32 0.0, %v2565
          %v2567 = vpop.f32.mrb[0].mxu0
          %2568 = vmatprep.mubr.bf16.mxu0 0
          %2569 = vmatmul.mubr.bf16.gmra.mrb[0].mxu0 %v2129
          %v2570 = vpop.f32.mrb[0].mxu0
          %v2571 = vadd.f32 0.0, %v2570
          %v2572 = vpop.f32.mrb[0].mxu0
          %v2573 = vpop.f32.mrb[0].mxu0
          %v2574 = vadd.f32 0.0, %v2573
          %v2575 = vpop.f32.mrb[0].mxu0
          %2576 = vmatprep.mubr.bf16.mxu0 0
          %2577 = vmatmul.mubr.bf16.gmra.mrb[0].mxu0 %v2131
          %v2578 = vpop.f32.mrb[0].mxu0
          %v2579 = vadd.f32 0.0, %v2578
          %v2580 = vpop.f32.mrb[0].mxu0
          %v2581 = vpop.f32.mrb[0].mxu0
          %v2582 = vadd.f32 0.0, %v2581
          %v2583 = vpop.f32.mrb[0].mxu0
          %2584 = vmatprep.mubr.bf16.mxu0 0
          %2585 = vmatmul.mubr.bf16.gmra.mrb[0].mxu0 %v2133
          %v2586 = vpop.f32.mrb[0].mxu0
          %v2587 = vadd.f32 0.0, %v2586
          %v2588 = vpop.f32.mrb[0].mxu0
          %v2589 = vpop.f32.mrb[0].mxu0
          %v2590 = vadd.f32 0.0, %v2589
          %v2591 = vpop.f32.mrb[0].mxu0
          %2592 = vmatprep.mubr.bf16.mxu0 0
          %2593 = vmatmul.mubr.bf16.gmra.mrb[0].mxu0 %v2135
          %v2594 = vpop.f32.mrb[0].mxu0
          %v2595 = vadd.f32 0.0, %v2594
          %v2596 = vpop.f32.mrb[0].mxu0
          %v2597 = vpop.f32.mrb[0].mxu0
          %v2598 = vadd.f32 0.0, %v2597
          %v2599 = vpop.f32.mrb[0].mxu0
          %2600 = vmatprep.mubr.bf16.mxu0 0
          %2601 = vmatmul.mubr.bf16.gmra.mrb[0].mxu0 %v2137
          %v2602 = vpop.f32.mrb[0].mxu0
          %v2603 = vadd.f32 0.0, %v2602
          %v2604 = vpop.f32.mrb[0].mxu0
          %v2605 = vpop.f32.mrb[0].mxu0
          %v2606 = vadd.f32 0.0, %v2605
          %v2607 = vpop.f32.mrb[0].mxu0
          %2608 = vmatprep.mubr.bf16.mxu0 0
          %2609 = vmatmul.mubr.bf16.gmra.mrb[0].mxu0 %v2139
          %v2610 = vpop.f32.mrb[0].mxu0
          %v2611 = vadd.f32 0.0, %v2610
          %v2612 = vpop.f32.mrb[0].mxu0
          %v2613 = vpop.f32.mrb[0].mxu0
          %v2614 = vadd.f32 0.0, %v2613
          %v2615 = vpop.f32.mrb[0].mxu0
          %2616 = vmatprep.mubr.bf16.mxu0 0
          %2617 = vmatmul.mubr.bf16.gmra.mrb[0].mxu0 %v2141
          %v2618 = vpop.f32.mrb[0].mxu0
          %v2619 = vadd.f32 0.0, %v2618
          %v2620 = vpop.f32.mrb[0].mxu0
          %v2621 = vpop.f32.mrb[0].mxu0
          %v2622 = vadd.f32 0.0, %v2621
          %v2623 = vpop.f32.mrb[0].mxu0
          %2624 = vmatprep.mubr.bf16.mxu0 0
          %2625 = vmatmul.mubr.bf16.gmra.mrb[0].mxu0 %v2143
          %v2626 = vpop.f32.mrb[0].mxu0
          %v2627 = vadd.f32 0.0, %v2626
          %v2628 = vpop.f32.mrb[0].mxu0
          %v2629 = vpop.f32.mrb[0].mxu0
          %v2630 = vadd.f32 0.0, %v2629
          %v2631 = vpop.f32.mrb[0].mxu0
          %2632 = vmatprep.mubr.bf16.mxu0 0
          %2633 = vmatmul.mubr.bf16.gmra.mrb[0].mxu0 %v2145
          %v2634 = vpop.f32.mrb[0].mxu0
          %v2635 = vadd.f32 0.0, %v2634
          %v2636 = vpop.f32.mrb[0].mxu0
          %v2637 = vpop.f32.mrb[0].mxu0
          %v2638 = vadd.f32 0.0, %v2637
          %v2639 = vpop.f32.mrb[0].mxu0
          %2640 = vmatprep.mubr.bf16.mxu0 0
          %2641 = vmatmul.mubr.bf16.gmra.mrb[0].mxu0 %v2147
          %v2642 = vpop.f32.mrb[0].mxu0
          %v2643 = vadd.f32 0.0, %v2642
          %v2644 = vpop.f32.mrb[0].mxu0
          %v2645 = vpop.f32.mrb[0].mxu0
          %v2646 = vadd.f32 0.0, %v2645
          %v2647 = vpop.f32.mrb[0].mxu0
          %2648 = vmatprep.mubr.bf16.mxu0 0
          %2649 = vmatmul.mubr.bf16.gmra.mrb[0].mxu0 %v2149
          %v2650 = vpop.f32.mrb[0].mxu0
          %v2651 = vadd.f32 0.0, %v2650
          %v2652 = vpop.f32.mrb[0].mxu0
          %v2653 = vpop.f32.mrb[0].mxu0
          %v2654 = vadd.f32 0.0, %v2653
          %v2655 = vpop.f32.mrb[0].mxu0
          %2656 = vmatprep.mubr.bf16.mxu0 0
          %2657 = vmatmul.mubr.bf16.gmra.mrb[0].mxu0 %v2151
          %v2658 = vpop.f32.mrb[0].mxu0
          %v2659 = vadd.f32 0.0, %v2658
          %v2660 = vpop.f32.mrb[0].mxu0
          %v2661 = vpop.f32.mrb[0].mxu0
          %v2662 = vadd.f32 0.0, %v2661
          %v2663 = vpop.f32.mrb[0].mxu0
          %2664 = vmatprep.mubr.bf16.mxu0 0
          %2665 = vmatmul.mubr.bf16.gmra.mrb[0].mxu0 %v2153
          %v2666 = vpop.f32.mrb[0].mxu0
          %v2667 = vadd.f32 0.0, %v2666
          %v2668 = vpop.f32.mrb[0].mxu0
          %v2669 = vpop.f32.mrb[0].mxu0
          %v2670 = vadd.f32 0.0, %v2669
          %v2671 = vpop.f32.mrb[0].mxu0
          %2672 = vmatprep.mubr.bf16.mxu0 0
          %2673 = vmatmul.mubr.bf16.gmra.mrb[0].mxu0 %v2459
          %v2674 = vpop.f32.mrb[0].mxu0
          %v2675 = vadd.f32 0.0, %v2674
          %v2676 = vpop.f32.mrb[0].mxu0
          %v2677 = vpop.f32.mrb[0].mxu0
          %v2678 = vadd.f32 0.0, %v2677
          %v2679 = vpop.f32.mrb[0].mxu0
          %2680 = vmatprep.mubr.bf16.mxu0 0
          %2681 = vmatmul.mubr.bf16.gmra.mrb[0].mxu0 %v2461
          %v2682 = vpop.f32.mrb[0].mxu0
          %v2683 = vadd.f32 0.0, %v2682
          %v2684 = vpop.f32.mrb[0].mxu0
          %v2685 = vpop.f32.mrb[0].mxu0
          %v2686 = vadd.f32 0.0, %v2685
          %v2687 = vpop.f32.mrb[0].mxu0
          %2688 = vdwg.mxu0
          %v2689 = vadd.f32 %v2399, %v2547
          %v2690 = vadd.f32 %v2400, %v2550
          %v2691 = vadd.f32 %v2401, %v2555
          %v2692 = vadd.f32 %v2402, %v2558
          %v2693 = vadd.f32 %v2403, %v2563
          %v2694 = vadd.f32 %v2404, %v2566
          %v2695 = vadd.f32 %v2405, %v2571
          %v2696 = vadd.f32 %v2406, %v2574
          %v2697 = vadd.f32 %v2407, %v2579
          %v2698 = vadd.f32 %v2408, %v2582
          %v2699 = vadd.f32 %v2409, %v2587
          %v2700 = vadd.f32 %v2410, %v2590
          %v2701 = vadd.f32 %v2411, %v2595
          %v2702 = vadd.f32 %v2412, %v2598
          %v2703 = vadd.f32 %v2413, %v2603
          %v2704 = vadd.f32 %v2414, %v2606
          %v2705 = vadd.f32 %v2415, %v2611
          %v2706 = vadd.f32 %v2416, %v2614
          %v2707 = vadd.f32 %v2417, %v2619
          %v2708 = vadd.f32 %v2418, %v2622
          %v2709 = vadd.f32 %v2419, %v2627
          %v2710 = vadd.f32 %v2420, %v2630
          %v2711 = vadd.f32 %v2421, %v2635
          %v2712 = vadd.f32 %v2422, %v2638
          %v2713 = vadd.f32 %v2423, %v2643
          %v2714 = vadd.f32 %v2424, %v2646
          %v2715 = vadd.f32 %v2425, %v2651
          %v2716 = vadd.f32 %v2426, %v2654
          %v2717 = vadd.f32 %v2427, %v2659
          %v2718 = vadd.f32 %v2428, %v2662
          %v2719 = vadd.f32 %v2429, %v2667
          %v2720 = vadd.f32 %v2430, %v2670
          %v2721 = vadd.f32 %v2431, %v2675
          %v2722 = vadd.f32 %v2432, %v2678
          %v2723 = vadd.f32 %v2433, %v2683
          %v2724 = vadd.f32 %v2434, %v2686
          %s2725 = scalar_lea.vmem %s1, 448
          %v2726 = vld [vmem:[%s2725] sm:$0xf]
          %v2727 = vld [vmem:[%s2725 + $0x4] sm:$0xf]
          %v2728 = vld [vmem:[%s2725 + $0x8] sm:$0xf]
          %v2729 = vld [vmem:[%s2725 + $0xc] sm:$0xf]
          %v2730 = vld [vmem:[%s2725 + $0x10] sm:$0xf]
          %v2731 = vld [vmem:[%s2725 + $0x14] sm:$0xf]
          %v2732 = vld [vmem:[%s2725 + $0x18] sm:$0xf]
          %v2733 = vld [vmem:[%s2725 + $0x1c] sm:$0xf]
          %v2734 = vld [vmem:[%s2725 + $0x20] sm:$0xf]
          %v2735 = vld [vmem:[%s2725 + $0x24] sm:$0xf]
          %v2736 = vld [vmem:[%s2725 + $0x28] sm:$0xf]
          %v2737 = vld [vmem:[%s2725 + $0x2c] sm:$0xf]
          %v2738 = vld [vmem:[%s2725 + $0x30] sm:$0xf]
          %v2739 = vld [vmem:[%s2725 + $0x34] sm:$0xf]
          %v2740 = vld [vmem:[%s2725 + $0x38] sm:$0xf]
          %v2741 = vld [vmem:[%s2725 + $0x3c] sm:$0xf]
          %vm2742 = vsmask.f32 5376
          %v2743 = vrot.slane %v481, 2
          %v2744 = vrot.slane %v477, 3
          %v2745 = vor.u32 %v2743, %v2744
          %v2746 = vrot.slane %v489, 2
          %v2747 = vrot.slane %v485, 3
          %v2748 = vor.u32 %v2746, %v2747
          %v2749 = vsel %vm2742, %v2745, %v2748
          %v2750 = vrot.slane %v497, 2
          %v2751 = vrot.slane %v493, 3
          %v2752 = vor.u32 %v2750, %v2751
          %v2753 = vsel %vm2742, %v2748, %v2752
          %v2754 = vrot.slane %v505, 2
          %v2755 = vrot.slane %v501, 3
          %v2756 = vor.u32 %v2754, %v2755
          %v2757 = vsel %vm2742, %v2752, %v2756
          %v2758 = vrot.slane %v513, 2
          %v2759 = vrot.slane %v509, 3
          %v2760 = vor.u32 %v2758, %v2759
          %v2761 = vsel %vm2742, %v2756, %v2760
          %v2762 = vrot.slane %v521, 2
          %v2763 = vrot.slane %v517, 3
          %v2764 = vor.u32 %v2762, %v2763
          %v2765 = vsel %vm2742, %v2760, %v2764
          %v2766 = vrot.slane %v529, 2
          %v2767 = vrot.slane %v525, 3
          %v2768 = vor.u32 %v2766, %v2767
          %v2769 = vsel %vm2742, %v2764, %v2768
          %v2770 = vrot.slane %v537, 2
          %v2771 = vrot.slane %v533, 3
          %v2772 = vor.u32 %v2770, %v2771
          %v2773 = vsel %vm2742, %v2768, %v2772
          %v2774 = vrot.slane %v545, 2
          %v2775 = vrot.slane %v541, 3
          %v2776 = vor.u32 %v2774, %v2775
          %v2777 = vsel %vm2742, %v2772, %v2776
          %v2778 = vrot.slane %v553, 2
          %v2779 = vrot.slane %v549, 3
          %v2780 = vor.u32 %v2778, %v2779
          %v2781 = vsel %vm2742, %v2776, %v2780
          %v2782 = vrot.slane %v561, 2
          %v2783 = vrot.slane %v557, 3
          %v2784 = vor.u32 %v2782, %v2783
          %v2785 = vsel %vm2742, %v2780, %v2784
          %v2786 = vrot.slane %v569, 2
          %v2787 = vrot.slane %v565, 3
          %v2788 = vor.u32 %v2786, %v2787
          %v2789 = vsel %vm2742, %v2784, %v2788
          %v2790 = vrot.slane %v577, 2
          %v2791 = vrot.slane %v573, 3
          %v2792 = vor.u32 %v2790, %v2791
          %v2793 = vsel %vm2742, %v2788, %v2792
          %v2794 = vrot.slane %v585, 2
          %v2795 = vrot.slane %v581, 3
          %v2796 = vor.u32 %v2794, %v2795
          %v2797 = vsel %vm2742, %v2792, %v2796
          %v2798 = vrot.slane %v593, 2
          %v2799 = vrot.slane %v589, 3
          %v2800 = vor.u32 %v2798, %v2799
          %v2801 = vsel %vm2742, %v2796, %v2800
          %v2802 = vrot.slane %v601, 2
          %v2803 = vrot.slane %v597, 3
          %v2804 = vor.u32 %v2802, %v2803
          %v2805 = vsel %vm2742, %v2800, %v2804
          %v2806 = vrot.slane %v1805, 2
          %v2807 = vrot.slane %v1808, 3
          %v2808 = vor.u32 %v2806, %v2807
          %v2809 = vsel %vm2742, %v2804, %v2808
          %v2811 = vshrl.u32 %v2456, 16
          %v2813 = vrot.slane %v2811, 2
          %v2814 = vshll.u32 %v2456, 16
          %v2816 = vrot.slane %v2814, 3
          %v2817 = vor.u32 %v2813, %v2816
          %v2818 = vsel %vm2742, %v2808, %v2817
          %v2820 = vshrl.u32 %v2457, 16
          %v2822 = vrot.slane %v2820, 2
          %v2823 = vshll.u32 %v2457, 16
          %v2825 = vrot.slane %v2823, 3
          %v2826 = vor.u32 %v2822, %v2825
          %v2827 = vsel %vm2742, %v2817, %v2826
          %v2862 = vunpack.c.l.b16 %v2726
          %v2863 = vunpack.c.l.b16 %v2727
          %v2864 = vunpack.c.l.b16 %v2728
          %v2865 = vunpack.c.l.b16 %v2729
          %v2866 = vunpack.c.l.b16 %v2730
          %v2867 = vunpack.c.l.b16 %v2731
          %v2868 = vunpack.c.l.b16 %v2732
          %v2869 = vunpack.c.l.b16 %v2733
          %v2870 = vunpack.c.l.b16 %v2734
          %v2871 = vunpack.c.l.b16 %v2735
          %v2872 = vunpack.c.l.b16 %v2736
          %v2873 = vunpack.c.l.b16 %v2737
          %v2874 = vunpack.c.l.b16 %v2738
          %v2875 = vunpack.c.l.b16 %v2739
          %v2876 = vunpack.c.l.b16 %v2740
          %v2877 = vunpack.c.l.b16 %v2741
          %v2878 = vpack.c.b16 %v2863, %v2862
          %v2879 = vpack.c.b16 %v2865, %v2864
          %v2880 = vpack.c.b16 %v2867, %v2866
          %v2881 = vpack.c.b16 %v2869, %v2868
          %v2882 = vpack.c.b16 %v2871, %v2870
          %v2883 = vpack.c.b16 %v2873, %v2872
          %v2884 = vpack.c.b16 %v2875, %v2874
          %v2885 = vpack.c.b16 %v2877, %v2876
          %2894 = vmatprep.subr.bf16.mxu0 0
          %2895 = vmatpush1.bf16.msra.mxu0 %v2878
          %2896 = vmatprep.subr.bf16.mxu0 0
          %2897 = vmatpush1.bf16.msra.mxu0 %v2879
          %2898 = vmatprep.subr.bf16.mxu0 0
          %2899 = vmatpush1.bf16.msra.mxu0 %v2880
          %2900 = vmatprep.subr.bf16.mxu0 0
          %2901 = vmatpush1.bf16.msra.mxu0 %v2881
          %2902 = vmatprep.subr.bf16.mxu0 0
          %2903 = vmatpush1.bf16.msra.mxu0 %v2882
          %2904 = vmatprep.subr.bf16.mxu0 0
          %2905 = vmatpush1.bf16.msra.mxu0 %v2883
          %2906 = vmatprep.subr.bf16.mxu0 0
          %2907 = vmatpush1.bf16.msra.mxu0 %v2884
          %2908 = vmatprep.subr.bf16.mxu0 0
          %2909 = vmatpush1.bf16.msra.mxu0 %v2885
          %2910 = vmatprep.subr.bf16.mxu0 0
          %2911 = vmatpush1.bf16.msra.mxu0 0
          %2912 = vmatprep.subr.bf16.mxu0 0
          %2913 = vmatpush1.bf16.msra.mxu0 0
          %2914 = vmatprep.subr.bf16.mxu0 0
          %2915 = vmatpush1.bf16.msra.mxu0 0
          %2916 = vmatprep.subr.bf16.mxu0 0
          %2917 = vmatpush1.bf16.msra.mxu0 0
          %2918 = vmatprep.subr.bf16.mxu0 0
          %2919 = vmatpush1.bf16.msra.mxu0 0
          %2920 = vmatprep.subr.bf16.mxu0 0
          %2921 = vmatpush1.bf16.msra.mxu0 0
          %2922 = vmatprep.subr.bf16.mxu0 0
          %2923 = vmatpush1.bf16.msra.mxu0 0
          %2924 = vmatprep.subr.bf16.mxu0 0
          %2925 = vmatpush1.bf16.msra.mxu0 0
          %2926 = vmatprep.mubr.bf16.mxu0 0
          %2927 = vmatmul.mubr.bf16.gmra.mrb[0].mxu0 %v2749
          %v2928 = vpop.f32.mrb[0].mxu0
          %v2929 = vadd.f32 0.0, %v2928
          %v2930 = vpop.f32.mrb[0].mxu0
          %v2931 = vpop.f32.mrb[0].mxu0
          %v2932 = vadd.f32 0.0, %v2931
          %v2933 = vpop.f32.mrb[0].mxu0
          %2934 = vmatprep.mubr.bf16.mxu0 0
          %2935 = vmatmul.mubr.bf16.gmra.mrb[0].mxu0 %v2753
          %v2936 = vpop.f32.mrb[0].mxu0
          %v2937 = vadd.f32 0.0, %v2936
          %v2938 = vpop.f32.mrb[0].mxu0
          %v2939 = vpop.f32.mrb[0].mxu0
          %v2940 = vadd.f32 0.0, %v2939
          %v2941 = vpop.f32.mrb[0].mxu0
          %2942 = vmatprep.mubr.bf16.mxu0 0
          %2943 = vmatmul.mubr.bf16.gmra.mrb[0].mxu0 %v2757
          %v2944 = vpop.f32.mrb[0].mxu0
          %v2945 = vadd.f32 0.0, %v2944
          %v2946 = vpop.f32.mrb[0].mxu0
          %v2947 = vpop.f32.mrb[0].mxu0
          %v2948 = vadd.f32 0.0, %v2947
          %v2949 = vpop.f32.mrb[0].mxu0
          %2950 = vmatprep.mubr.bf16.mxu0 0
          %2951 = vmatmul.mubr.bf16.gmra.mrb[0].mxu0 %v2761
          %v2952 = vpop.f32.mrb[0].mxu0
          %v2953 = vadd.f32 0.0, %v2952
          %v2954 = vpop.f32.mrb[0].mxu0
          %v2955 = vpop.f32.mrb[0].mxu0
          %v2956 = vadd.f32 0.0, %v2955
          %v2957 = vpop.f32.mrb[0].mxu0
          %2958 = vmatprep.mubr.bf16.mxu0 0
          %2959 = vmatmul.mubr.bf16.gmra.mrb[0].mxu0 %v2765
          %v2960 = vpop.f32.mrb[0].mxu0
          %v2961 = vadd.f32 0.0, %v2960
          %v2962 = vpop.f32.mrb[0].mxu0
          %v2963 = vpop.f32.mrb[0].mxu0
          %v2964 = vadd.f32 0.0, %v2963
          %v2965 = vpop.f32.mrb[0].mxu0
          %2966 = vmatprep.mubr.bf16.mxu0 0
          %2967 = vmatmul.mubr.bf16.gmra.mrb[0].mxu0 %v2769
          %v2968 = vpop.f32.mrb[0].mxu0
          %v2969 = vadd.f32 0.0, %v2968
          %v2970 = vpop.f32.mrb[0].mxu0
          %v2971 = vpop.f32.mrb[0].mxu0
          %v2972 = vadd.f32 0.0, %v2971
          %v2973 = vpop.f32.mrb[0].mxu0
          %2974 = vmatprep.mubr.bf16.mxu0 0
          %2975 = vmatmul.mubr.bf16.gmra.mrb[0].mxu0 %v2773
          %v2976 = vpop.f32.mrb[0].mxu0
          %v2977 = vadd.f32 0.0, %v2976
          %v2978 = vpop.f32.mrb[0].mxu0
          %v2979 = vpop.f32.mrb[0].mxu0
          %v2980 = vadd.f32 0.0, %v2979
          %v2981 = vpop.f32.mrb[0].mxu0
          %2982 = vmatprep.mubr.bf16.mxu0 0
          %2983 = vmatmul.mubr.bf16.gmra.mrb[0].mxu0 %v2777
          %v2984 = vpop.f32.mrb[0].mxu0
          %v2985 = vadd.f32 0.0, %v2984
          %v2986 = vpop.f32.mrb[0].mxu0
          %v2987 = vpop.f32.mrb[0].mxu0
          %v2988 = vadd.f32 0.0, %v2987
          %v2989 = vpop.f32.mrb[0].mxu0
          %2990 = vmatprep.mubr.bf16.mxu0 0
          %2991 = vmatmul.mubr.bf16.gmra.mrb[0].mxu0 %v2781
          %v2992 = vpop.f32.mrb[0].mxu0
          %v2993 = vadd.f32 0.0, %v2992
          %v2994 = vpop.f32.mrb[0].mxu0
          %v2995 = vpop.f32.mrb[0].mxu0
          %v2996 = vadd.f32 0.0, %v2995
          %v2997 = vpop.f32.mrb[0].mxu0
          %2998 = vmatprep.mubr.bf16.mxu0 0
          %2999 = vmatmul.mubr.bf16.gmra.mrb[0].mxu0 %v2785
          %v3000 = vpop.f32.mrb[0].mxu0
          %v3001 = vadd.f32 0.0, %v3000
          %v3002 = vpop.f32.mrb[0].mxu0
          %v3003 = vpop.f32.mrb[0].mxu0
          %v3004 = vadd.f32 0.0, %v3003
          %v3005 = vpop.f32.mrb[0].mxu0
          %3006 = vmatprep.mubr.bf16.mxu0 0
          %3007 = vmatmul.mubr.bf16.gmra.mrb[0].mxu0 %v2789
          %v3008 = vpop.f32.mrb[0].mxu0
          %v3009 = vadd.f32 0.0, %v3008
          %v3010 = vpop.f32.mrb[0].mxu0
          %v3011 = vpop.f32.mrb[0].mxu0
          %v3012 = vadd.f32 0.0, %v3011
          %v3013 = vpop.f32.mrb[0].mxu0
          %3014 = vmatprep.mubr.bf16.mxu0 0
          %3015 = vmatmul.mubr.bf16.gmra.mrb[0].mxu0 %v2793
          %v3016 = vpop.f32.mrb[0].mxu0
          %v3017 = vadd.f32 0.0, %v3016
          %v3018 = vpop.f32.mrb[0].mxu0
          %v3019 = vpop.f32.mrb[0].mxu0
          %v3020 = vadd.f32 0.0, %v3019
          %v3021 = vpop.f32.mrb[0].mxu0
          %3022 = vmatprep.mubr.bf16.mxu0 0
          %3023 = vmatmul.mubr.bf16.gmra.mrb[0].mxu0 %v2797
          %v3024 = vpop.f32.mrb[0].mxu0
          %v3025 = vadd.f32 0.0, %v3024
          %v3026 = vpop.f32.mrb[0].mxu0
          %v3027 = vpop.f32.mrb[0].mxu0
          %v3028 = vadd.f32 0.0, %v3027
          %v3029 = vpop.f32.mrb[0].mxu0
          %3030 = vmatprep.mubr.bf16.mxu0 0
          %3031 = vmatmul.mubr.bf16.gmra.mrb[0].mxu0 %v2801
          %v3032 = vpop.f32.mrb[0].mxu0
          %v3033 = vadd.f32 0.0, %v3032
          %v3034 = vpop.f32.mrb[0].mxu0
          %v3035 = vpop.f32.mrb[0].mxu0
          %v3036 = vadd.f32 0.0, %v3035
          %v3037 = vpop.f32.mrb[0].mxu0
          %3038 = vmatprep.mubr.bf16.mxu0 0
          %3039 = vmatmul.mubr.bf16.gmra.mrb[0].mxu0 %v2805
          %v3040 = vpop.f32.mrb[0].mxu0
          %v3041 = vadd.f32 0.0, %v3040
          %v3042 = vpop.f32.mrb[0].mxu0
          %v3043 = vpop.f32.mrb[0].mxu0
          %v3044 = vadd.f32 0.0, %v3043
          %v3045 = vpop.f32.mrb[0].mxu0
          %3046 = vmatprep.mubr.bf16.mxu0 0
          %3047 = vmatmul.mubr.bf16.gmra.mrb[0].mxu0 %v2809
          %v3048 = vpop.f32.mrb[0].mxu0
          %v3049 = vadd.f32 0.0, %v3048
          %v3050 = vpop.f32.mrb[0].mxu0
          %v3051 = vpop.f32.mrb[0].mxu0
          %v3052 = vadd.f32 0.0, %v3051
          %v3053 = vpop.f32.mrb[0].mxu0
          %3054 = vmatprep.mubr.bf16.mxu0 0
          %3055 = vmatmul.mubr.bf16.gmra.mrb[0].mxu0 %v2818
          %v3056 = vpop.f32.mrb[0].mxu0
          %v3057 = vadd.f32 0.0, %v3056
          %v3058 = vpop.f32.mrb[0].mxu0
          %v3059 = vpop.f32.mrb[0].mxu0
          %v3060 = vadd.f32 0.0, %v3059
          %v3061 = vpop.f32.mrb[0].mxu0
          %3062 = vmatprep.mubr.bf16.mxu0 0
          %3063 = vmatmul.mubr.bf16.gmra.mrb[0].mxu0 %v2827
          %v3064 = vpop.f32.mrb[0].mxu0
          %v3065 = vadd.f32 0.0, %v3064
          %v3066 = vpop.f32.mrb[0].mxu0
          %v3067 = vpop.f32.mrb[0].mxu0
          %v3068 = vadd.f32 0.0, %v3067
          %v3069 = vpop.f32.mrb[0].mxu0
          %3070 = vdwg.mxu0
          %v3071 = vadd.f32 %v2689, %v2929
          %v3072 = vadd.f32 %v2690, %v2932
          %v3073 = vadd.f32 %v2691, %v2937
          %v3074 = vadd.f32 %v2692, %v2940
          %v3075 = vadd.f32 %v2693, %v2945
          %v3076 = vadd.f32 %v2694, %v2948
          %v3077 = vadd.f32 %v2695, %v2953
          %v3078 = vadd.f32 %v2696, %v2956
          %v3079 = vadd.f32 %v2697, %v2961
          %v3080 = vadd.f32 %v2698, %v2964
          %v3081 = vadd.f32 %v2699, %v2969
          %v3082 = vadd.f32 %v2700, %v2972
          %v3083 = vadd.f32 %v2701, %v2977
          %v3084 = vadd.f32 %v2702, %v2980
          %v3085 = vadd.f32 %v2703, %v2985
          %v3086 = vadd.f32 %v2704, %v2988
          %v3087 = vadd.f32 %v2705, %v2993
          %v3088 = vadd.f32 %v2706, %v2996
          %v3089 = vadd.f32 %v2707, %v3001
          %v3090 = vadd.f32 %v2708, %v3004
          %v3091 = vadd.f32 %v2709, %v3009
          %v3092 = vadd.f32 %v2710, %v3012
          %v3093 = vadd.f32 %v2711, %v3017
          %v3094 = vadd.f32 %v2712, %v3020
          %v3095 = vadd.f32 %v2713, %v3025
          %v3096 = vadd.f32 %v2714, %v3028
          %v3097 = vadd.f32 %v2715, %v3033
          %v3098 = vadd.f32 %v2716, %v3036
          %v3099 = vadd.f32 %v2717, %v3041
          %v3100 = vadd.f32 %v2718, %v3044
          %v3101 = vadd.f32 %v2719, %v3049
          %v3102 = vadd.f32 %v2720, %v3052
          %v3103 = vadd.f32 %v2721, %v3057
          %v3104 = vadd.f32 %v2722, %v3060
          %v3105 = vadd.f32 %v2723, %v3065
          %v3106 = vadd.f32 %v2724, %v3068
          %s3107 = scalar_lea.vmem %s1, 512
          %v3108 = vld [vmem:[%s3107] sm:$0xf]
          %v3109 = vld [vmem:[%s3107 + $0x4] sm:$0xf]
          %v3110 = vld [vmem:[%s3107 + $0x8] sm:$0xf]
          %v3111 = vld [vmem:[%s3107 + $0xc] sm:$0xf]
          %v3112 = vld [vmem:[%s3107 + $0x10] sm:$0xf]
          %v3113 = vld [vmem:[%s3107 + $0x14] sm:$0xf]
          %v3114 = vld [vmem:[%s3107 + $0x18] sm:$0xf]
          %v3115 = vld [vmem:[%s3107 + $0x1c] sm:$0xf]
          %v3116 = vld [vmem:[%s3107 + $0x20] sm:$0xf]
          %v3117 = vld [vmem:[%s3107 + $0x24] sm:$0xf]
          %v3118 = vld [vmem:[%s3107 + $0x28] sm:$0xf]
          %v3119 = vld [vmem:[%s3107 + $0x2c] sm:$0xf]
          %v3120 = vld [vmem:[%s3107 + $0x30] sm:$0xf]
          %v3121 = vld [vmem:[%s3107 + $0x34] sm:$0xf]
          %v3122 = vld [vmem:[%s3107 + $0x38] sm:$0xf]
          %v3123 = vld [vmem:[%s3107 + $0x3c] sm:$0xf]
          %vm3124 = vcmask 1044480
          %v3125 = vrot.slane %v443, 3
          %v3126 = vrot.slane %v444, 3
          %v3127 = vsel %vm3124, %v3125, %v3126
          %v3128 = vrot.slane %v445, 3
          %v3129 = vsel %vm3124, %v3126, %v3128
          %v3130 = vrot.slane %v446, 3
          %v3131 = vsel %vm3124, %v3128, %v3130
          %v3132 = vrot.slane %v447, 3
          %v3133 = vsel %vm3124, %v3130, %v3132
          %v3134 = vrot.slane %v448, 3
          %v3135 = vsel %vm3124, %v3132, %v3134
          %v3136 = vrot.slane %v449, 3
          %v3137 = vsel %vm3124, %v3134, %v3136
          %v3138 = vrot.slane %v450, 3
          %v3139 = vsel %vm3124, %v3136, %v3138
          %v3140 = vrot.slane %v451, 3
          %v3141 = vsel %vm3124, %v3138, %v3140
          %v3142 = vrot.slane %v452, 3
          %v3143 = vsel %vm3124, %v3140, %v3142
          %v3144 = vrot.slane %v453, 3
          %v3145 = vsel %vm3124, %v3142, %v3144
          %v3146 = vrot.slane %v454, 3
          %v3147 = vsel %vm3124, %v3144, %v3146
          %v3148 = vrot.slane %v455, 3
          %v3149 = vsel %vm3124, %v3146, %v3148
          %v3150 = vrot.slane %v456, 3
          %v3151 = vsel %vm3124, %v3148, %v3150
          %v3152 = vrot.slane %v457, 3
          %v3153 = vsel %vm3124, %v3150, %v3152
          %v3154 = vrot.slane %v458, 3
          %v3155 = vsel %vm3124, %v3152, %v3154
          %v3156 = vrot.slane %v1450, 3
          %v3157 = vsel %vm3124, %v3154, %v3156
          %v3158 = vrot.slane %v2456, 3
          %v3159 = vsel %vm3124, %v3156, %v3158
          %v3160 = vrot.slane %v2457, 3
          %v3161 = vsel %vm3124, %v3158, %v3160
          %v3196 = vunpack.c.l.b16 %v3108
          %v3197 = vunpack.c.l.b16 %v3109
          %v3198 = vunpack.c.l.b16 %v3110
          %v3199 = vunpack.c.l.b16 %v3111
          %v3200 = vunpack.c.l.b16 %v3112
          %v3201 = vunpack.c.l.b16 %v3113
          %v3202 = vunpack.c.l.b16 %v3114
          %v3203 = vunpack.c.l.b16 %v3115
          %v3204 = vunpack.c.l.b16 %v3116
          %v3205 = vunpack.c.l.b16 %v3117
          %v3206 = vunpack.c.l.b16 %v3118
          %v3207 = vunpack.c.l.b16 %v3119
          %v3208 = vunpack.c.l.b16 %v3120
          %v3209 = vunpack.c.l.b16 %v3121
          %v3210 = vunpack.c.l.b16 %v3122
          %v3211 = vunpack.c.l.b16 %v3123
          %v3212 = vpack.c.b16 %v3197, %v3196
          %v3213 = vpack.c.b16 %v3199, %v3198
          %v3214 = vpack.c.b16 %v3201, %v3200
          %v3215 = vpack.c.b16 %v3203, %v3202
          %v3216 = vpack.c.b16 %v3205, %v3204
          %v3217 = vpack.c.b16 %v3207, %v3206
          %v3218 = vpack.c.b16 %v3209, %v3208
          %v3219 = vpack.c.b16 %v3211, %v3210
          %3228 = vmatprep.subr.bf16.mxu0 0
          %3229 = vmatpush1.bf16.msra.mxu0 %v3212
          %3230 = vmatprep.subr.bf16.mxu0 0
          %3231 = vmatpush1.bf16.msra.mxu0 %v3213
          %3232 = vmatprep.subr.bf16.mxu0 0
          %3233 = vmatpush1.bf16.msra.mxu0 %v3214
          %3234 = vmatprep.subr.bf16.mxu0 0
          %3235 = vmatpush1.bf16.msra.mxu0 %v3215
          %3236 = vmatprep.subr.bf16.mxu0 0
          %3237 = vmatpush1.bf16.msra.mxu0 %v3216
          %3238 = vmatprep.subr.bf16.mxu0 0
          %3239 = vmatpush1.bf16.msra.mxu0 %v3217
          %3240 = vmatprep.subr.bf16.mxu0 0
          %3241 = vmatpush1.bf16.msra.mxu0 %v3218
          %3242 = vmatprep.subr.bf16.mxu0 0
          %3243 = vmatpush1.bf16.msra.mxu0 %v3219
          %3244 = vmatprep.subr.bf16.mxu0 0
          %3245 = vmatpush1.bf16.msra.mxu0 0
          %3246 = vmatprep.subr.bf16.mxu0 0
          %3247 = vmatpush1.bf16.msra.mxu0 0
          %3248 = vmatprep.subr.bf16.mxu0 0
          %3249 = vmatpush1.bf16.msra.mxu0 0
          %3250 = vmatprep.subr.bf16.mxu0 0
          %3251 = vmatpush1.bf16.msra.mxu0 0
          %3252 = vmatprep.subr.bf16.mxu0 0
          %3253 = vmatpush1.bf16.msra.mxu0 0
          %3254 = vmatprep.subr.bf16.mxu0 0
          %3255 = vmatpush1.bf16.msra.mxu0 0
          %3256 = vmatprep.subr.bf16.mxu0 0
          %3257 = vmatpush1.bf16.msra.mxu0 0
          %3258 = vmatprep.subr.bf16.mxu0 0
          %3259 = vmatpush1.bf16.msra.mxu0 0
          %3260 = vmatprep.mubr.bf16.mxu0 0
          %3261 = vmatmul.mubr.bf16.gmra.mrb[0].mxu0 %v3127
          %v3262 = vpop.f32.mrb[0].mxu0
          %v3263 = vadd.f32 0.0, %v3262
          %v3264 = vpop.f32.mrb[0].mxu0
          %v3265 = vpop.f32.mrb[0].mxu0
          %v3266 = vadd.f32 0.0, %v3265
          %v3267 = vpop.f32.mrb[0].mxu0
          %3268 = vmatprep.mubr.bf16.mxu0 0
          %3269 = vmatmul.mubr.bf16.gmra.mrb[0].mxu0 %v3129
          %v3270 = vpop.f32.mrb[0].mxu0
          %v3271 = vadd.f32 0.0, %v3270
          %v3272 = vpop.f32.mrb[0].mxu0
          %v3273 = vpop.f32.mrb[0].mxu0
          %v3274 = vadd.f32 0.0, %v3273
          %v3275 = vpop.f32.mrb[0].mxu0
          %3276 = vmatprep.mubr.bf16.mxu0 0
          %3277 = vmatmul.mubr.bf16.gmra.mrb[0].mxu0 %v3131
          %v3278 = vpop.f32.mrb[0].mxu0
          %v3279 = vadd.f32 0.0, %v3278
          %v3280 = vpop.f32.mrb[0].mxu0
          %v3281 = vpop.f32.mrb[0].mxu0
          %v3282 = vadd.f32 0.0, %v3281
          %v3283 = vpop.f32.mrb[0].mxu0
          %3284 = vmatprep.mubr.bf16.mxu0 0
          %3285 = vmatmul.mubr.bf16.gmra.mrb[0].mxu0 %v3133
          %v3286 = vpop.f32.mrb[0].mxu0
          %v3287 = vadd.f32 0.0, %v3286
          %v3288 = vpop.f32.mrb[0].mxu0
          %v3289 = vpop.f32.mrb[0].mxu0
          %v3290 = vadd.f32 0.0, %v3289
          %v3291 = vpop.f32.mrb[0].mxu0
          %3292 = vmatprep.mubr.bf16.mxu0 0
          %3293 = vmatmul.mubr.bf16.gmra.mrb[0].mxu0 %v3135
          %v3294 = vpop.f32.mrb[0].mxu0
          %v3295 = vadd.f32 0.0, %v3294
          %v3296 = vpop.f32.mrb[0].mxu0
          %v3297 = vpop.f32.mrb[0].mxu0
          %v3298 = vadd.f32 0.0, %v3297
          %v3299 = vpop.f32.mrb[0].mxu0
          %3300 = vmatprep.mubr.bf16.mxu0 0
          %3301 = vmatmul.mubr.bf16.gmra.mrb[0].mxu0 %v3137
          %v3302 = vpop.f32.mrb[0].mxu0
          %v3303 = vadd.f32 0.0, %v3302
          %v3304 = vpop.f32.mrb[0].mxu0
          %v3305 = vpop.f32.mrb[0].mxu0
          %v3306 = vadd.f32 0.0, %v3305
          %v3307 = vpop.f32.mrb[0].mxu0
          %3308 = vmatprep.mubr.bf16.mxu0 0
          %3309 = vmatmul.mubr.bf16.gmra.mrb[0].mxu0 %v3139
          %v3310 = vpop.f32.mrb[0].mxu0
          %v3311 = vadd.f32 0.0, %v3310
          %v3312 = vpop.f32.mrb[0].mxu0
          %v3313 = vpop.f32.mrb[0].mxu0
          %v3314 = vadd.f32 0.0, %v3313
          %v3315 = vpop.f32.mrb[0].mxu0
          %3316 = vmatprep.mubr.bf16.mxu0 0
          %3317 = vmatmul.mubr.bf16.gmra.mrb[0].mxu0 %v3141
          %v3318 = vpop.f32.mrb[0].mxu0
          %v3319 = vadd.f32 0.0, %v3318
          %v3320 = vpop.f32.mrb[0].mxu0
          %v3321 = vpop.f32.mrb[0].mxu0
          %v3322 = vadd.f32 0.0, %v3321
          %v3323 = vpop.f32.mrb[0].mxu0
          %3324 = vmatprep.mubr.bf16.mxu0 0
          %3325 = vmatmul.mubr.bf16.gmra.mrb[0].mxu0 %v3143
          %v3326 = vpop.f32.mrb[0].mxu0
          %v3327 = vadd.f32 0.0, %v3326
          %v3328 = vpop.f32.mrb[0].mxu0
          %v3329 = vpop.f32.mrb[0].mxu0
          %v3330 = vadd.f32 0.0, %v3329
          %v3331 = vpop.f32.mrb[0].mxu0
          %3332 = vmatprep.mubr.bf16.mxu0 0
          %3333 = vmatmul.mubr.bf16.gmra.mrb[0].mxu0 %v3145
          %v3334 = vpop.f32.mrb[0].mxu0
          %v3335 = vadd.f32 0.0, %v3334
          %v3336 = vpop.f32.mrb[0].mxu0
          %v3337 = vpop.f32.mrb[0].mxu0
          %v3338 = vadd.f32 0.0, %v3337
          %v3339 = vpop.f32.mrb[0].mxu0
          %3340 = vmatprep.mubr.bf16.mxu0 0
          %3341 = vmatmul.mubr.bf16.gmra.mrb[0].mxu0 %v3147
          %v3342 = vpop.f32.mrb[0].mxu0
          %v3343 = vadd.f32 0.0, %v3342
          %v3344 = vpop.f32.mrb[0].mxu0
          %v3345 = vpop.f32.mrb[0].mxu0
          %v3346 = vadd.f32 0.0, %v3345
          %v3347 = vpop.f32.mrb[0].mxu0
          %3348 = vmatprep.mubr.bf16.mxu0 0
          %3349 = vmatmul.mubr.bf16.gmra.mrb[0].mxu0 %v3149
          %v3350 = vpop.f32.mrb[0].mxu0
          %v3351 = vadd.f32 0.0, %v3350
          %v3352 = vpop.f32.mrb[0].mxu0
          %v3353 = vpop.f32.mrb[0].mxu0
          %v3354 = vadd.f32 0.0, %v3353
          %v3355 = vpop.f32.mrb[0].mxu0
          %3356 = vmatprep.mubr.bf16.mxu0 0
          %3357 = vmatmul.mubr.bf16.gmra.mrb[0].mxu0 %v3151
          %v3358 = vpop.f32.mrb[0].mxu0
          %v3359 = vadd.f32 0.0, %v3358
          %v3360 = vpop.f32.mrb[0].mxu0
          %v3361 = vpop.f32.mrb[0].mxu0
          %v3362 = vadd.f32 0.0, %v3361
          %v3363 = vpop.f32.mrb[0].mxu0
          %3364 = vmatprep.mubr.bf16.mxu0 0
          %3365 = vmatmul.mubr.bf16.gmra.mrb[0].mxu0 %v3153
          %v3366 = vpop.f32.mrb[0].mxu0
          %v3367 = vadd.f32 0.0, %v3366
          %v3368 = vpop.f32.mrb[0].mxu0
          %v3369 = vpop.f32.mrb[0].mxu0
          %v3370 = vadd.f32 0.0, %v3369
          %v3371 = vpop.f32.mrb[0].mxu0
          %3372 = vmatprep.mubr.bf16.mxu0 0
          %3373 = vmatmul.mubr.bf16.gmra.mrb[0].mxu0 %v3155
          %v3374 = vpop.f32.mrb[0].mxu0
          %v3375 = vadd.f32 0.0, %v3374
          %v3376 = vpop.f32.mrb[0].mxu0
          %v3377 = vpop.f32.mrb[0].mxu0
          %v3378 = vadd.f32 0.0, %v3377
          %v3379 = vpop.f32.mrb[0].mxu0
          %3380 = vmatprep.mubr.bf16.mxu0 0
          %3381 = vmatmul.mubr.bf16.gmra.mrb[0].mxu0 %v3157
          %v3382 = vpop.f32.mrb[0].mxu0
          %v3383 = vadd.f32 0.0, %v3382
          %v3384 = vpop.f32.mrb[0].mxu0
          %v3385 = vpop.f32.mrb[0].mxu0
          %v3386 = vadd.f32 0.0, %v3385
          %v3387 = vpop.f32.mrb[0].mxu0
          %3388 = vmatprep.mubr.bf16.mxu0 0
          %3389 = vmatmul.mubr.bf16.gmra.mrb[0].mxu0 %v3159
          %v3390 = vpop.f32.mrb[0].mxu0
          %v3391 = vadd.f32 0.0, %v3390
          %v3392 = vpop.f32.mrb[0].mxu0
          %v3393 = vpop.f32.mrb[0].mxu0
          %v3394 = vadd.f32 0.0, %v3393
          %v3395 = vpop.f32.mrb[0].mxu0
          %3396 = vmatprep.mubr.bf16.mxu0 0
          %3397 = vmatmul.mubr.bf16.gmra.mrb[0].mxu0 %v3161
          %v3398 = vpop.f32.mrb[0].mxu0
          %v3399 = vadd.f32 0.0, %v3398
          %v3400 = vpop.f32.mrb[0].mxu0
          %v3401 = vpop.f32.mrb[0].mxu0
          %v3402 = vadd.f32 0.0, %v3401
          %v3403 = vpop.f32.mrb[0].mxu0
          %3404 = vdwg.mxu0
          %v3405 = vadd.f32 %v3071, %v3263
          %v3406 = vadd.f32 %v3072, %v3266
          %v3407 = vadd.f32 %v3073, %v3271
          %v3408 = vadd.f32 %v3074, %v3274
          %v3409 = vadd.f32 %v3075, %v3279
          %v3410 = vadd.f32 %v3076, %v3282
          %v3411 = vadd.f32 %v3077, %v3287
          %v3412 = vadd.f32 %v3078, %v3290
          %v3413 = vadd.f32 %v3079, %v3295
          %v3414 = vadd.f32 %v3080, %v3298
          %v3415 = vadd.f32 %v3081, %v3303
          %v3416 = vadd.f32 %v3082, %v3306
          %v3417 = vadd.f32 %v3083, %v3311
          %v3418 = vadd.f32 %v3084, %v3314
          %v3419 = vadd.f32 %v3085, %v3319
          %v3420 = vadd.f32 %v3086, %v3322
          %v3421 = vadd.f32 %v3087, %v3327
          %v3422 = vadd.f32 %v3088, %v3330
          %v3423 = vadd.f32 %v3089, %v3335
          %v3424 = vadd.f32 %v3090, %v3338
          %v3425 = vadd.f32 %v3091, %v3343
          %v3426 = vadd.f32 %v3092, %v3346
          %v3427 = vadd.f32 %v3093, %v3351
          %v3428 = vadd.f32 %v3094, %v3354
          %v3429 = vadd.f32 %v3095, %v3359
          %v3430 = vadd.f32 %v3096, %v3362
          %v3431 = vadd.f32 %v3097, %v3367
          %v3432 = vadd.f32 %v3098, %v3370
          %v3433 = vadd.f32 %v3099, %v3375
          %v3434 = vadd.f32 %v3100, %v3378
          %v3435 = vadd.f32 %v3101, %v3383
          %v3436 = vadd.f32 %v3102, %v3386
          %v3437 = vadd.f32 %v3103, %v3391
          %v3438 = vadd.f32 %v3104, %v3394
          %v3439 = vadd.f32 %v3105, %v3399
          %v3440 = vadd.f32 %v3106, %v3402
          %v3441 = vld [vmem:[%s2] sm:$0x1]
          %v3443 = vlaneseq
          %v3444 = vshrl.u32 %v3443, 7
          %v3445 = vsub.s32 0, %v3444
          %v3446 = vrot.slane %v3441, %v3445
          %v3448 = vadd.f32 %v3405, %v3446
          %v3449 = vadd.f32 %v3406, %v3446
          %v3450 = vadd.f32 %v3407, %v3446
          %v3451 = vadd.f32 %v3408, %v3446
          %v3452 = vadd.f32 %v3409, %v3446
          %v3453 = vadd.f32 %v3410, %v3446
          %v3454 = vadd.f32 %v3411, %v3446
          %v3455 = vadd.f32 %v3412, %v3446
          %v3456 = vadd.f32 %v3413, %v3446
          %v3457 = vadd.f32 %v3414, %v3446
          %v3458 = vadd.f32 %v3415, %v3446
          %v3459 = vadd.f32 %v3416, %v3446
          %v3460 = vadd.f32 %v3417, %v3446
          %v3461 = vadd.f32 %v3418, %v3446
          %v3462 = vadd.f32 %v3419, %v3446
          %v3463 = vadd.f32 %v3420, %v3446
          %v3464 = vadd.f32 %v3421, %v3446
          %v3465 = vadd.f32 %v3422, %v3446
          %v3466 = vadd.f32 %v3423, %v3446
          %v3467 = vadd.f32 %v3424, %v3446
          %v3468 = vadd.f32 %v3425, %v3446
          %v3469 = vadd.f32 %v3426, %v3446
          %v3470 = vadd.f32 %v3427, %v3446
          %v3471 = vadd.f32 %v3428, %v3446
          %v3472 = vadd.f32 %v3429, %v3446
          %v3473 = vadd.f32 %v3430, %v3446
          %v3474 = vadd.f32 %v3431, %v3446
          %v3475 = vadd.f32 %v3432, %v3446
          %v3476 = vadd.f32 %v3433, %v3446
          %v3477 = vadd.f32 %v3434, %v3446
          %v3478 = vadd.f32 %v3435, %v3446
          %v3479 = vadd.f32 %v3436, %v3446
          %v3480 = vadd.f32 %v3437, %v3446
          %v3481 = vadd.f32 %v3438, %v3446
          %v3482 = vadd.f32 %v3439, %v3446
          %v3483 = vadd.f32 %v3440, %v3446
          %v3484 = vmax.f32 %v3448, 0.0
          %v3485 = vmax.f32 %v3449, 0.0
          %v3486 = vmax.f32 %v3450, 0.0
          %v3487 = vmax.f32 %v3451, 0.0
          %v3488 = vmax.f32 %v3452, 0.0
          %v3489 = vmax.f32 %v3453, 0.0
          %v3490 = vmax.f32 %v3454, 0.0
          %v3491 = vmax.f32 %v3455, 0.0
          %v3492 = vmax.f32 %v3456, 0.0
          %v3493 = vmax.f32 %v3457, 0.0
          %v3494 = vmax.f32 %v3458, 0.0
          %v3495 = vmax.f32 %v3459, 0.0
          %v3496 = vmax.f32 %v3460, 0.0
          %v3497 = vmax.f32 %v3461, 0.0
          %v3498 = vmax.f32 %v3462, 0.0
          %v3499 = vmax.f32 %v3463, 0.0
          %v3500 = vmax.f32 %v3464, 0.0
          %v3501 = vmax.f32 %v3465, 0.0
          %v3502 = vmax.f32 %v3466, 0.0
          %v3503 = vmax.f32 %v3467, 0.0
          %v3504 = vmax.f32 %v3468, 0.0
          %v3505 = vmax.f32 %v3469, 0.0
          %v3506 = vmax.f32 %v3470, 0.0
          %v3507 = vmax.f32 %v3471, 0.0
          %v3508 = vmax.f32 %v3472, 0.0
          %v3509 = vmax.f32 %v3473, 0.0
          %v3510 = vmax.f32 %v3474, 0.0
          %v3511 = vmax.f32 %v3475, 0.0
          %v3512 = vmax.f32 %v3476, 0.0
          %v3513 = vmax.f32 %v3477, 0.0
          %v3514 = vmax.f32 %v3478, 0.0
          %v3515 = vmax.f32 %v3479, 0.0
          %v3516 = vmax.f32 %v3480, 0.0
          %v3517 = vmax.f32 %v3481, 0.0
          %v3518 = vmax.f32 %v3482, 0.0
          %v3519 = vmax.f32 %v3483, 0.0
          %v3520 = vpack.c.bf16 %v3485, %v3484
          %v3521 = vpack.c.bf16 %v3487, %v3486
          %v3522 = vpack.c.bf16 %v3489, %v3488
          %v3523 = vpack.c.bf16 %v3491, %v3490
          %v3524 = vpack.c.bf16 %v3493, %v3492
          %v3525 = vpack.c.bf16 %v3495, %v3494
          %v3526 = vpack.c.bf16 %v3497, %v3496
          %v3527 = vpack.c.bf16 %v3499, %v3498
          %v3528 = vpack.c.bf16 %v3501, %v3500
          %v3529 = vpack.c.bf16 %v3503, %v3502
          %v3530 = vpack.c.bf16 %v3505, %v3504
          %v3531 = vpack.c.bf16 %v3507, %v3506
          %v3532 = vpack.c.bf16 %v3509, %v3508
          %v3533 = vpack.c.bf16 %v3511, %v3510
          %v3534 = vpack.c.bf16 %v3513, %v3512
          %v3535 = vpack.c.bf16 %v3515, %v3514
          %v3536 = vpack.c.bf16 %v3517, %v3516
          %v3537 = vpack.c.bf16 %v3519, %v3518
          %v3538 = vld [vmem:[%s3] sm:$0xff]
          %v3539 = vld [vmem:[%s3 + $0x8] sm:$0xf]
          %v3540 = vld [vmem:[%s3 + $0xc] sm:$0xff]
          %v3541 = vld [vmem:[%s3 + $0x14] sm:$0xf]
          %v3542 = vld [vmem:[%s3 + $0x18] sm:$0xff]
          %v3543 = vld [vmem:[%s3 + $0x20] sm:$0xf]
          %v3544 = vld [vmem:[%s3 + $0x24] sm:$0xff]
          %v3545 = vld [vmem:[%s3 + $0x2c] sm:$0xf]
          %v3546 = vld [vmem:[%s3 + $0x30] sm:$0xff]
          %v3547 = vld [vmem:[%s3 + $0x38] sm:$0xf]
          %v3548 = vld [vmem:[%s3 + $0x3c] sm:$0xff]
          %v3549 = vld [vmem:[%s3 + $0x44] sm:$0xf]
          %v3550 = vld [vmem:[%s3 + $0x48] sm:$0xff]
          %v3551 = vld [vmem:[%s3 + $0x50] sm:$0xf]
          %v3552 = vld [vmem:[%s3 + $0x54] sm:$0xff]
          %v3553 = vld [vmem:[%s3 + $0x5c] sm:$0xf]
          %v3554 = vld [vmem:[%s3 + $0x60] sm:$0xff]
          %v3555 = vld [vmem:[%s3 + $0x68] sm:$0xf]
          %v3556 = vld [vmem:[%s3 + $0x6c] sm:$0xff]
          %v3557 = vld [vmem:[%s3 + $0x74] sm:$0xf]
          %v3558 = vld [vmem:[%s3 + $0x78] sm:$0xff]
          %v3559 = vld [vmem:[%s3 + $0x80] sm:$0xf]
          %v3560 = vld [vmem:[%s3 + $0x84] sm:$0xff]
          %v3561 = vld [vmem:[%s3 + $0x8c] sm:$0xf]
          %v3562 = vld [vmem:[%s3 + $0x90] sm:$0xff]
          %v3563 = vld [vmem:[%s3 + $0x98] sm:$0xf]
          %v3564 = vld [vmem:[%s3 + $0x9c] sm:$0xff]
          %v3565 = vld [vmem:[%s3 + $0xa4] sm:$0xf]
          %v3566 = vld [vmem:[%s3 + $0xa8] sm:$0xff]
          %v3567 = vld [vmem:[%s3 + $0xb0] sm:$0xf]
          %v3568 = vld [vmem:[%s3 + $0xb4] sm:$0xff]
          %v3569 = vld [vmem:[%s3 + $0xbc] sm:$0xf]
          %v3570 = vld [vmem:[%s3 + $0xc0] sm:$0xff]
          %v3571 = vld [vmem:[%s3 + $0xc8] sm:$0xf]
          %v3572 = vld [vmem:[%s3 + $0xcc] sm:$0xff]
          %v3573 = vld [vmem:[%s3 + $0xd4] sm:$0xf]
          %v3574 = vld [vmem:[%s3 + $0xd8] sm:$0xff]
          %v3575 = vld [vmem:[%s3 + $0xe0] sm:$0xf]
          %v3576 = vld [vmem:[%s3 + $0xe4] sm:$0xff]
          %v3577 = vld [vmem:[%s3 + $0xec] sm:$0xf]
          %v3578 = vld [vmem:[%s3 + $0xf0] sm:$0xff]
          %v3579 = vld [vmem:[%s3 + $0xf8] sm:$0xf]
          %v3580 = vld [vmem:[%s3 + $0xfc] sm:$0xff]
          %v3581 = vld [vmem:[%s3 + $0x104] sm:$0xf]
          %v3582 = vld [vmem:[%s3 + $0x108] sm:$0xff]
          %v3583 = vld [vmem:[%s3 + $0x110] sm:$0xf]
          %v3584 = vld [vmem:[%s3 + $0x114] sm:$0xff]
          %v3585 = vld [vmem:[%s3 + $0x11c] sm:$0xf]
          %v3586 = vld [vmem:[%s3 + $0x120] sm:$0xff]
          %v3587 = vld [vmem:[%s3 + $0x128] sm:$0xf]
          %v3588 = vld [vmem:[%s3 + $0x12c] sm:$0xff]
          %v3589 = vld [vmem:[%s3 + $0x134] sm:$0xf]
          %v3590 = vld [vmem:[%s3 + $0x138] sm:$0xff]
          %v3591 = vld [vmem:[%s3 + $0x140] sm:$0xf]
          %v3592 = vld [vmem:[%s3 + $0x144] sm:$0xff]
          %v3593 = vld [vmem:[%s3 + $0x14c] sm:$0xf]
          %v3594 = vld [vmem:[%s3 + $0x150] sm:$0xff]
          %v3595 = vld [vmem:[%s3 + $0x158] sm:$0xf]
          %v3596 = vld [vmem:[%s3 + $0x15c] sm:$0xff]
          %v3597 = vld [vmem:[%s3 + $0x164] sm:$0xf]
          %v3598 = vld [vmem:[%s3 + $0x168] sm:$0xff]
          %v3599 = vld [vmem:[%s3 + $0x170] sm:$0xf]
          %v3600 = vld [vmem:[%s3 + $0x174] sm:$0xff]
          %v3601 = vld [vmem:[%s3 + $0x17c] sm:$0xf]
          %v3602 = vld [vmem:[%s3 + $0x180] sm:$0xff]
          %v3603 = vld [vmem:[%s3 + $0x188] sm:$0xf]
          %v3604 = vld [vmem:[%s3 + $0x18c] sm:$0xff]
          %v3605 = vld [vmem:[%s3 + $0x194] sm:$0xf]
          %v3606 = vld [vmem:[%s3 + $0x198] sm:$0xff]
          %v3607 = vld [vmem:[%s3 + $0x1a0] sm:$0xf]
          %v3608 = vld [vmem:[%s3 + $0x1a4] sm:$0xff]
          %v3609 = vld [vmem:[%s3 + $0x1ac] sm:$0xf]
          %v3610 = vld [vmem:[%s3 + $0x1b0] sm:$0xff]
          %v3611 = vld [vmem:[%s3 + $0x1b8] sm:$0xf]
          %v3612 = vld [vmem:[%s3 + $0x1bc] sm:$0xff]
          %v3613 = vld [vmem:[%s3 + $0x1c4] sm:$0xf]
          %v3614 = vld [vmem:[%s3 + $0x1c8] sm:$0xff]
          %v3615 = vld [vmem:[%s3 + $0x1d0] sm:$0xf]
          %v3616 = vld [vmem:[%s3 + $0x1d4] sm:$0xff]
          %v3617 = vld [vmem:[%s3 + $0x1dc] sm:$0xf]
          %v3618 = vld [vmem:[%s3 + $0x1e0] sm:$0xff]
          %v3619 = vld [vmem:[%s3 + $0x1e8] sm:$0xf]
          %v3620 = vld [vmem:[%s3 + $0x1ec] sm:$0xff]
          %v3621 = vld [vmem:[%s3 + $0x1f4] sm:$0xf]
          %v3622 = vld [vmem:[%s3 + $0x1f8] sm:$0xff]
          %v3623 = vld [vmem:[%s3 + $0x200] sm:$0xf]
          %v3624 = vld [vmem:[%s3 + $0x204] sm:$0xff]
          %v3625 = vld [vmem:[%s3 + $0x20c] sm:$0xf]
          %v3626 = vld [vmem:[%s3 + $0x210] sm:$0xff]
          %v3627 = vld [vmem:[%s3 + $0x218] sm:$0xf]
          %v3628 = vld [vmem:[%s3 + $0x21c] sm:$0xff]
          %v3629 = vld [vmem:[%s3 + $0x224] sm:$0xf]
          %v3630 = vld [vmem:[%s3 + $0x228] sm:$0xff]
          %v3631 = vld [vmem:[%s3 + $0x230] sm:$0xf]
          %v3632 = vld [vmem:[%s3 + $0x234] sm:$0xff]
          %v3633 = vld [vmem:[%s3 + $0x23c] sm:$0xf]
          %v3634 = vld [vmem:[%s3 + $0x240] sm:$0xff]
          %v3635 = vld [vmem:[%s3 + $0x248] sm:$0xf]
          %v3636 = vld [vmem:[%s3 + $0x24c] sm:$0xff]
          %v3637 = vld [vmem:[%s3 + $0x254] sm:$0xf]
          %v3638 = vld [vmem:[%s3 + $0x258] sm:$0xff]
          %v3639 = vld [vmem:[%s3 + $0x260] sm:$0xf]
          %v3742 = vunpack.c.l.b16 %v3538
          %v3743 = vunpack.c.h.b16 %v3538
          %v3744 = vunpack.c.l.b16 %v3539
          %v3745 = vunpack.c.l.b16 %v3540
          %v3746 = vunpack.c.h.b16 %v3540
          %v3747 = vunpack.c.l.b16 %v3541
          %v3748 = vunpack.c.l.b16 %v3542
          %v3749 = vunpack.c.h.b16 %v3542
          %v3750 = vunpack.c.l.b16 %v3543
          %v3751 = vunpack.c.l.b16 %v3544
          %v3752 = vunpack.c.h.b16 %v3544
          %v3753 = vunpack.c.l.b16 %v3545
          %v3754 = vunpack.c.l.b16 %v3546
          %v3755 = vunpack.c.h.b16 %v3546
          %v3756 = vunpack.c.l.b16 %v3547
          %v3757 = vunpack.c.l.b16 %v3548
          %v3758 = vunpack.c.h.b16 %v3548
          %v3759 = vunpack.c.l.b16 %v3549
          %v3760 = vunpack.c.l.b16 %v3550
          %v3761 = vunpack.c.h.b16 %v3550
          %v3762 = vunpack.c.l.b16 %v3551
          %v3763 = vunpack.c.l.b16 %v3552
          %v3764 = vunpack.c.h.b16 %v3552
          %v3765 = vunpack.c.l.b16 %v3553
          %v3766 = vunpack.c.l.b16 %v3554
          %v3767 = vunpack.c.h.b16 %v3554
          %v3768 = vunpack.c.l.b16 %v3555
          %v3769 = vunpack.c.l.b16 %v3556
          %v3770 = vunpack.c.h.b16 %v3556
          %v3771 = vunpack.c.l.b16 %v3557
          %v3772 = vunpack.c.l.b16 %v3558
          %v3773 = vunpack.c.h.b16 %v3558
          %v3774 = vunpack.c.l.b16 %v3559
          %v3775 = vunpack.c.l.b16 %v3560
          %v3776 = vunpack.c.h.b16 %v3560
          %v3777 = vunpack.c.l.b16 %v3561
          %v3778 = vunpack.c.l.b16 %v3562
          %v3779 = vunpack.c.h.b16 %v3562
          %v3780 = vunpack.c.l.b16 %v3563
          %v3781 = vunpack.c.l.b16 %v3564
          %v3782 = vunpack.c.h.b16 %v3564
          %v3783 = vunpack.c.l.b16 %v3565
          %v3784 = vunpack.c.l.b16 %v3566
          %v3785 = vunpack.c.h.b16 %v3566
          %v3786 = vunpack.c.l.b16 %v3567
          %v3787 = vunpack.c.l.b16 %v3568
          %v3788 = vunpack.c.h.b16 %v3568
          %v3789 = vunpack.c.l.b16 %v3569
          %v3790 = vunpack.c.l.b16 %v3570
          %v3791 = vunpack.c.h.b16 %v3570
          %v3792 = vunpack.c.l.b16 %v3571
          %v3793 = vunpack.c.l.b16 %v3572
          %v3794 = vunpack.c.h.b16 %v3572
          %v3795 = vunpack.c.l.b16 %v3573
          %v3796 = vunpack.c.l.b16 %v3574
          %v3797 = vunpack.c.h.b16 %v3574
          %v3798 = vunpack.c.l.b16 %v3575
          %v3799 = vunpack.c.l.b16 %v3576
          %v3800 = vunpack.c.h.b16 %v3576
          %v3801 = vunpack.c.l.b16 %v3577
          %v3802 = vunpack.c.l.b16 %v3578
          %v3803 = vunpack.c.h.b16 %v3578
          %v3804 = vunpack.c.l.b16 %v3579
          %v3805 = vunpack.c.l.b16 %v3580
          %v3806 = vunpack.c.h.b16 %v3580
          %v3807 = vunpack.c.l.b16 %v3581
          %v3808 = vunpack.c.l.b16 %v3582
          %v3809 = vunpack.c.h.b16 %v3582
          %v3810 = vunpack.c.l.b16 %v3583
          %v3811 = vunpack.c.l.b16 %v3584
          %v3812 = vunpack.c.h.b16 %v3584
          %v3813 = vunpack.c.l.b16 %v3585
          %v3814 = vunpack.c.l.b16 %v3586
          %v3815 = vunpack.c.h.b16 %v3586
          %v3816 = vunpack.c.l.b16 %v3587
          %v3817 = vunpack.c.l.b16 %v3588
          %v3818 = vunpack.c.h.b16 %v3588
          %v3819 = vunpack.c.l.b16 %v3589
          %v3820 = vunpack.c.l.b16 %v3590
          %v3821 = vunpack.c.h.b16 %v3590
          %v3822 = vunpack.c.l.b16 %v3591
          %v3823 = vunpack.c.l.b16 %v3592
          %v3824 = vunpack.c.h.b16 %v3592
          %v3825 = vunpack.c.l.b16 %v3593
          %v3826 = vunpack.c.l.b16 %v3594
          %v3827 = vunpack.c.h.b16 %v3594
          %v3828 = vunpack.c.l.b16 %v3595
          %v3829 = vunpack.c.l.b16 %v3596
          %v3830 = vunpack.c.h.b16 %v3596
          %v3831 = vunpack.c.l.b16 %v3597
          %v3832 = vunpack.c.l.b16 %v3598
          %v3833 = vunpack.c.h.b16 %v3598
          %v3834 = vunpack.c.l.b16 %v3599
          %v3835 = vunpack.c.l.b16 %v3600
          %v3836 = vunpack.c.h.b16 %v3600
          %v3837 = vunpack.c.l.b16 %v3601
          %v3838 = vunpack.c.l.b16 %v3602
          %v3839 = vunpack.c.h.b16 %v3602
          %v3840 = vunpack.c.l.b16 %v3603
          %v3841 = vunpack.c.l.b16 %v3604
          %v3842 = vunpack.c.h.b16 %v3604
          %v3843 = vunpack.c.l.b16 %v3605
          %v3844 = vunpack.c.l.b16 %v3606
          %v3845 = vunpack.c.h.b16 %v3606
          %v3846 = vunpack.c.l.b16 %v3607
          %v3847 = vunpack.c.l.b16 %v3608
          %v3848 = vunpack.c.h.b16 %v3608
          %v3849 = vunpack.c.l.b16 %v3609
          %v3850 = vunpack.c.l.b16 %v3610
          %v3851 = vunpack.c.h.b16 %v3610
          %v3852 = vunpack.c.l.b16 %v3611
          %v3853 = vunpack.c.l.b16 %v3612
          %v3854 = vunpack.c.h.b16 %v3612
          %v3855 = vunpack.c.l.b16 %v3613
          %v3856 = vunpack.c.l.b16 %v3614
          %v3857 = vunpack.c.h.b16 %v3614
          %v3858 = vunpack.c.l.b16 %v3615
          %v3859 = vunpack.c.l.b16 %v3616
          %v3860 = vunpack.c.h.b16 %v3616
          %v3861 = vunpack.c.l.b16 %v3617
          %v3862 = vunpack.c.l.b16 %v3618
          %v3863 = vunpack.c.h.b16 %v3618
          %v3864 = vunpack.c.l.b16 %v3619
          %v3865 = vunpack.c.l.b16 %v3620
          %v3866 = vunpack.c.h.b16 %v3620
          %v3867 = vunpack.c.l.b16 %v3621
          %v3868 = vunpack.c.l.b16 %v3622
          %v3869 = vunpack.c.h.b16 %v3622
          %v3870 = vunpack.c.l.b16 %v3623
          %v3871 = vunpack.c.l.b16 %v3624
          %v3872 = vunpack.c.h.b16 %v3624
          %v3873 = vunpack.c.l.b16 %v3625
          %v3874 = vunpack.c.l.b16 %v3626
          %v3875 = vunpack.c.h.b16 %v3626
          %v3876 = vunpack.c.l.b16 %v3627
          %v3877 = vunpack.c.l.b16 %v3628
          %v3878 = vunpack.c.h.b16 %v3628
          %v3879 = vunpack.c.l.b16 %v3629
          %v3880 = vunpack.c.l.b16 %v3630
          %v3881 = vunpack.c.h.b16 %v3630
          %v3882 = vunpack.c.l.b16 %v3631
          %v3883 = vunpack.c.l.b16 %v3632
          %v3884 = vunpack.c.h.b16 %v3632
          %v3885 = vunpack.c.l.b16 %v3633
          %v3886 = vunpack.c.l.b16 %v3634
          %v3887 = vunpack.c.h.b16 %v3634
          %v3888 = vunpack.c.l.b16 %v3635
          %v3889 = vunpack.c.l.b16 %v3636
          %v3890 = vunpack.c.h.b16 %v3636
          %v3891 = vunpack.c.l.b16 %v3637
          %v3892 = vunpack.c.l.b16 %v3638
          %v3893 = vunpack.c.h.b16 %v3638
          %v3894 = vunpack.c.l.b16 %v3639
          %v3895 = vpack.c.b16 %v3745, %v3742
          %v3896 = vpack.c.b16 %v3746, %v3743
          %v3897 = vpack.c.b16 %v3747, %v3744
          %v3898 = vpack.c.b16 %v3751, %v3748
          %v3899 = vpack.c.b16 %v3752, %v3749
          %v3900 = vpack.c.b16 %v3753, %v3750
          %v3901 = vpack.c.b16 %v3757, %v3754
          %v3902 = vpack.c.b16 %v3758, %v3755
          %v3903 = vpack.c.b16 %v3759, %v3756
          %v3904 = vpack.c.b16 %v3763, %v3760
          %v3905 = vpack.c.b16 %v3764, %v3761
          %v3906 = vpack.c.b16 %v3765, %v3762
          %v3907 = vpack.c.b16 %v3769, %v3766
          %v3908 = vpack.c.b16 %v3770, %v3767
          %v3909 = vpack.c.b16 %v3771, %v3768
          %v3910 = vpack.c.b16 %v3775, %v3772
          %v3911 = vpack.c.b16 %v3776, %v3773
          %v3912 = vpack.c.b16 %v3777, %v3774
          %v3913 = vpack.c.b16 %v3781, %v3778
          %v3914 = vpack.c.b16 %v3782, %v3779
          %v3915 = vpack.c.b16 %v3783, %v3780
          %v3916 = vpack.c.b16 %v3787, %v3784
          %v3917 = vpack.c.b16 %v3788, %v3785
          %v3918 = vpack.c.b16 %v3789, %v3786
          %v3919 = vpack.c.b16 %v3793, %v3790
          %v3920 = vpack.c.b16 %v3794, %v3791
          %v3921 = vpack.c.b16 %v3795, %v3792
          %v3922 = vpack.c.b16 %v3799, %v3796
          %v3923 = vpack.c.b16 %v3800, %v3797
          %v3924 = vpack.c.b16 %v3801, %v3798
          %v3925 = vpack.c.b16 %v3805, %v3802
          %v3926 = vpack.c.b16 %v3806, %v3803
          %v3927 = vpack.c.b16 %v3807, %v3804
          %v3928 = vpack.c.b16 %v3811, %v3808
          %v3929 = vpack.c.b16 %v3812, %v3809
          %v3930 = vpack.c.b16 %v3813, %v3810
          %v3931 = vpack.c.b16 %v3817, %v3814
          %v3932 = vpack.c.b16 %v3818, %v3815
          %v3933 = vpack.c.b16 %v3819, %v3816
          %v3934 = vpack.c.b16 %v3823, %v3820
          %v3935 = vpack.c.b16 %v3824, %v3821
          %v3936 = vpack.c.b16 %v3825, %v3822
          %v3937 = vpack.c.b16 %v3829, %v3826
          %v3938 = vpack.c.b16 %v3830, %v3827
          %v3939 = vpack.c.b16 %v3831, %v3828
          %v3940 = vpack.c.b16 %v3835, %v3832
          %v3941 = vpack.c.b16 %v3836, %v3833
          %v3942 = vpack.c.b16 %v3837, %v3834
          %v3943 = vpack.c.b16 %v3841, %v3838
          %v3944 = vpack.c.b16 %v3842, %v3839
          %v3945 = vpack.c.b16 %v3843, %v3840
          %v3946 = vpack.c.b16 %v3847, %v3844
          %v3947 = vpack.c.b16 %v3848, %v3845
          %v3948 = vpack.c.b16 %v3849, %v3846
          %v3949 = vpack.c.b16 %v3853, %v3850
          %v3950 = vpack.c.b16 %v3854, %v3851
          %v3951 = vpack.c.b16 %v3855, %v3852
          %v3952 = vpack.c.b16 %v3859, %v3856
          %v3953 = vpack.c.b16 %v3860, %v3857
          %v3954 = vpack.c.b16 %v3861, %v3858
          %v3955 = vpack.c.b16 %v3865, %v3862
          %v3956 = vpack.c.b16 %v3866, %v3863
          %v3957 = vpack.c.b16 %v3867, %v3864
          %v3958 = vpack.c.b16 %v3871, %v3868
          %v3959 = vpack.c.b16 %v3872, %v3869
          %v3960 = vpack.c.b16 %v3873, %v3870
          %v3961 = vpack.c.b16 %v3877, %v3874
          %v3962 = vpack.c.b16 %v3878, %v3875
          %v3963 = vpack.c.b16 %v3879, %v3876
          %v3964 = vpack.c.b16 %v3883, %v3880
          %v3965 = vpack.c.b16 %v3884, %v3881
          %v3966 = vpack.c.b16 %v3885, %v3882
          %v3967 = vpack.c.b16 %v3889, %v3886
          %v3968 = vpack.c.b16 %v3890, %v3887
          %v3969 = vpack.c.b16 %v3891, %v3888
          %v3970 = vpack.c.b16 %v3892, %v3892
          %v3971 = vpack.c.b16 %v3893, %v3893
          %v3972 = vpack.c.b16 %v3894, %v3894
          %vm4025 = vcmask 261120
          %v4027 = vsel %vm4025, %v3897, 0
          %v4030 = vsel %vm4025, %v3900, 0
          %v4033 = vsel %vm4025, %v3903, 0
          %v4036 = vsel %vm4025, %v3906, 0
          %v4039 = vsel %vm4025, %v3909, 0
          %v4042 = vsel %vm4025, %v3912, 0
          %v4045 = vsel %vm4025, %v3915, 0
          %v4048 = vsel %vm4025, %v3918, 0
          %v4051 = vsel %vm4025, %v3921, 0
          %v4054 = vsel %vm4025, %v3924, 0
          %v4057 = vsel %vm4025, %v3927, 0
          %v4060 = vsel %vm4025, %v3930, 0
          %v4063 = vsel %vm4025, %v3933, 0
          %v4066 = vsel %vm4025, %v3936, 0
          %v4069 = vsel %vm4025, %v3939, 0
          %v4072 = vsel %vm4025, %v3942, 0
          %v4075 = vsel %vm4025, %v3945, 0
          %v4078 = vsel %vm4025, %v3948, 0
          %v4081 = vsel %vm4025, %v3951, 0
          %v4084 = vsel %vm4025, %v3954, 0
          %v4087 = vsel %vm4025, %v3957, 0
          %v4090 = vsel %vm4025, %v3960, 0
          %v4093 = vsel %vm4025, %v3963, 0
          %v4096 = vsel %vm4025, %v3966, 0
          %v4099 = vsel %vm4025, %v3969, 0
          %v4102 = vsel %vm4025, %v3972, 0
          %4104 = vmatprep.subr.bf16.mxu0 0
          %4105 = vmatpush1.bf16.msra.mxu0 %v3520
          %4106 = vmatprep.subr.bf16.mxu0 0
          %4107 = vmatpush1.bf16.msra.mxu0 %v3521
          %4108 = vmatprep.subr.bf16.mxu0 0
          %4109 = vmatpush1.bf16.msra.mxu0 %v3522
          %4110 = vmatprep.subr.bf16.mxu0 0
          %4111 = vmatpush1.bf16.msra.mxu0 %v3523
          %4112 = vmatprep.subr.bf16.mxu0 0
          %4113 = vmatpush1.bf16.msra.mxu0 %v3524
          %4114 = vmatprep.subr.bf16.mxu0 0
          %4115 = vmatpush1.bf16.msra.mxu0 %v3525
          %4116 = vmatprep.subr.bf16.mxu0 0
          %4117 = vmatpush1.bf16.msra.mxu0 %v3526
          %4118 = vmatprep.subr.bf16.mxu0 0
          %4119 = vmatpush1.bf16.msra.mxu0 %v3527
          %4120 = vmatprep.subr.bf16.mxu0 0
          %4121 = vmatpush1.bf16.msra.mxu0 %v3528
          %4122 = vmatprep.subr.bf16.mxu0 0
          %4123 = vmatpush1.bf16.msra.mxu0 %v3529
          %4124 = vmatprep.subr.bf16.mxu0 0
          %4125 = vmatpush1.bf16.msra.mxu0 %v3530
          %4126 = vmatprep.subr.bf16.mxu0 0
          %4127 = vmatpush1.bf16.msra.mxu0 %v3531
          %4128 = vmatprep.subr.bf16.mxu0 0
          %4129 = vmatpush1.bf16.msra.mxu0 %v3532
          %4130 = vmatprep.subr.bf16.mxu0 0
          %4131 = vmatpush1.bf16.msra.mxu0 %v3533
          %4132 = vmatprep.subr.bf16.mxu0 0
          %4133 = vmatpush1.bf16.msra.mxu0 %v3534
          %4134 = vmatprep.subr.bf16.mxu0 0
          %4135 = vmatpush1.bf16.msra.mxu0 %v3535
          %4136 = vmatprep.mubr.bf16.mxu0 %v3896
          %4137 = vmatmul.mubr.bf16.gmra.mrb[0].mxu0 %v3895
          %v4138 = vpop.f32.mrb[0].mxu0
          %v4139 = vadd.f32 0.0, %v4138
          %v4140 = vpop.f32.mrb[0].mxu0
          %v4141 = vpop.f32.mrb[0].mxu0
          %v4142 = vadd.f32 0.0, %v4141
          %v4143 = vpop.f32.mrb[0].mxu0
          %4144 = vmatprep.mubr.bf16.mxu0 %v3899
          %4145 = vmatmul.mubr.bf16.gmra.mrb[0].mxu0 %v3898
          %v4146 = vpop.f32.mrb[0].mxu0
          %v4147 = vadd.f32 0.0, %v4146
          %v4148 = vpop.f32.mrb[0].mxu0
          %v4149 = vpop.f32.mrb[0].mxu0
          %v4150 = vadd.f32 0.0, %v4149
          %v4151 = vpop.f32.mrb[0].mxu0
          %4152 = vmatprep.mubr.bf16.mxu0 %v3902
          %4153 = vmatmul.mubr.bf16.gmra.mrb[0].mxu0 %v3901
          %v4154 = vpop.f32.mrb[0].mxu0
          %v4155 = vadd.f32 0.0, %v4154
          %v4156 = vpop.f32.mrb[0].mxu0
          %v4157 = vpop.f32.mrb[0].mxu0
          %v4158 = vadd.f32 0.0, %v4157
          %v4159 = vpop.f32.mrb[0].mxu0
          %4160 = vmatprep.mubr.bf16.mxu0 %v3905
          %4161 = vmatmul.mubr.bf16.gmra.mrb[0].mxu0 %v3904
          %v4162 = vpop.f32.mrb[0].mxu0
          %v4163 = vadd.f32 0.0, %v4162
          %v4164 = vpop.f32.mrb[0].mxu0
          %v4165 = vpop.f32.mrb[0].mxu0
          %v4166 = vadd.f32 0.0, %v4165
          %v4167 = vpop.f32.mrb[0].mxu0
          %4168 = vmatprep.mubr.bf16.mxu0 %v3908
          %4169 = vmatmul.mubr.bf16.gmra.mrb[0].mxu0 %v3907
          %v4170 = vpop.f32.mrb[0].mxu0
          %v4171 = vadd.f32 0.0, %v4170
          %v4172 = vpop.f32.mrb[0].mxu0
          %v4173 = vpop.f32.mrb[0].mxu0
          %v4174 = vadd.f32 0.0, %v4173
          %v4175 = vpop.f32.mrb[0].mxu0
          %4176 = vmatprep.mubr.bf16.mxu0 %v3911
          %4177 = vmatmul.mubr.bf16.gmra.mrb[0].mxu0 %v3910
          %v4178 = vpop.f32.mrb[0].mxu0
          %v4179 = vadd.f32 0.0, %v4178
          %v4180 = vpop.f32.mrb[0].mxu0
          %v4181 = vpop.f32.mrb[0].mxu0
          %v4182 = vadd.f32 0.0, %v4181
          %v4183 = vpop.f32.mrb[0].mxu0
          %4184 = vmatprep.mubr.bf16.mxu0 %v3914
          %4185 = vmatmul.mubr.bf16.gmra.mrb[0].mxu0 %v3913
          %v4186 = vpop.f32.mrb[0].mxu0
          %v4187 = vadd.f32 0.0, %v4186
          %v4188 = vpop.f32.mrb[0].mxu0
          %v4189 = vpop.f32.mrb[0].mxu0
          %v4190 = vadd.f32 0.0, %v4189
          %v4191 = vpop.f32.mrb[0].mxu0
          %4192 = vmatprep.mubr.bf16.mxu0 %v3917
          %4193 = vmatmul.mubr.bf16.gmra.mrb[0].mxu0 %v3916
          %v4194 = vpop.f32.mrb[0].mxu0
          %v4195 = vadd.f32 0.0, %v4194
          %v4196 = vpop.f32.mrb[0].mxu0
          %v4197 = vpop.f32.mrb[0].mxu0
          %v4198 = vadd.f32 0.0, %v4197
          %v4199 = vpop.f32.mrb[0].mxu0
          %4200 = vmatprep.mubr.bf16.mxu0 %v3920
          %4201 = vmatmul.mubr.bf16.gmra.mrb[0].mxu0 %v3919
          %v4202 = vpop.f32.mrb[0].mxu0
          %v4203 = vadd.f32 0.0, %v4202
          %v4204 = vpop.f32.mrb[0].mxu0
          %v4205 = vpop.f32.mrb[0].mxu0
          %v4206 = vadd.f32 0.0, %v4205
          %v4207 = vpop.f32.mrb[0].mxu0
          %4208 = vmatprep.mubr.bf16.mxu0 %v3923
          %4209 = vmatmul.mubr.bf16.gmra.mrb[0].mxu0 %v3922
          %v4210 = vpop.f32.mrb[0].mxu0
          %v4211 = vadd.f32 0.0, %v4210
          %v4212 = vpop.f32.mrb[0].mxu0
          %v4213 = vpop.f32.mrb[0].mxu0
          %v4214 = vadd.f32 0.0, %v4213
          %v4215 = vpop.f32.mrb[0].mxu0
          %4216 = vmatprep.mubr.bf16.mxu0 %v3926
          %4217 = vmatmul.mubr.bf16.gmra.mrb[0].mxu0 %v3925
          %v4218 = vpop.f32.mrb[0].mxu0
          %v4219 = vadd.f32 0.0, %v4218
          %v4220 = vpop.f32.mrb[0].mxu0
          %v4221 = vpop.f32.mrb[0].mxu0
          %v4222 = vadd.f32 0.0, %v4221
          %v4223 = vpop.f32.mrb[0].mxu0
          %4224 = vmatprep.mubr.bf16.mxu0 %v3929
          %4225 = vmatmul.mubr.bf16.gmra.mrb[0].mxu0 %v3928
          %v4226 = vpop.f32.mrb[0].mxu0
          %v4227 = vadd.f32 0.0, %v4226
          %v4228 = vpop.f32.mrb[0].mxu0
          %v4229 = vpop.f32.mrb[0].mxu0
          %v4230 = vadd.f32 0.0, %v4229
          %v4231 = vpop.f32.mrb[0].mxu0
          %4232 = vmatprep.mubr.bf16.mxu0 %v3932
          %4233 = vmatmul.mubr.bf16.gmra.mrb[0].mxu0 %v3931
          %v4234 = vpop.f32.mrb[0].mxu0
          %v4235 = vadd.f32 0.0, %v4234
          %v4236 = vpop.f32.mrb[0].mxu0
          %v4237 = vpop.f32.mrb[0].mxu0
          %v4238 = vadd.f32 0.0, %v4237
          %v4239 = vpop.f32.mrb[0].mxu0
          %4240 = vmatprep.mubr.bf16.mxu0 %v3935
          %4241 = vmatmul.mubr.bf16.gmra.mrb[0].mxu0 %v3934
          %v4242 = vpop.f32.mrb[0].mxu0
          %v4243 = vadd.f32 0.0, %v4242
          %v4244 = vpop.f32.mrb[0].mxu0
          %v4245 = vpop.f32.mrb[0].mxu0
          %v4246 = vadd.f32 0.0, %v4245
          %v4247 = vpop.f32.mrb[0].mxu0
          %4248 = vmatprep.mubr.bf16.mxu0 %v3938
          %4249 = vmatmul.mubr.bf16.gmra.mrb[0].mxu0 %v3937
          %v4250 = vpop.f32.mrb[0].mxu0
          %v4251 = vadd.f32 0.0, %v4250
          %v4252 = vpop.f32.mrb[0].mxu0
          %v4253 = vpop.f32.mrb[0].mxu0
          %v4254 = vadd.f32 0.0, %v4253
          %v4255 = vpop.f32.mrb[0].mxu0
          %4256 = vmatprep.mubr.bf16.mxu0 %v3941
          %4257 = vmatmul.mubr.bf16.gmra.mrb[0].mxu0 %v3940
          %v4258 = vpop.f32.mrb[0].mxu0
          %v4259 = vadd.f32 0.0, %v4258
          %v4260 = vpop.f32.mrb[0].mxu0
          %v4261 = vpop.f32.mrb[0].mxu0
          %v4262 = vadd.f32 0.0, %v4261
          %v4263 = vpop.f32.mrb[0].mxu0
          %4264 = vmatprep.mubr.bf16.mxu0 %v3944
          %4265 = vmatmul.mubr.bf16.gmra.mrb[0].mxu0 %v3943
          %v4266 = vpop.f32.mrb[0].mxu0
          %v4267 = vadd.f32 0.0, %v4266
          %v4268 = vpop.f32.mrb[0].mxu0
          %v4269 = vpop.f32.mrb[0].mxu0
          %v4270 = vadd.f32 0.0, %v4269
          %v4271 = vpop.f32.mrb[0].mxu0
          %4272 = vmatprep.mubr.bf16.mxu0 %v3947
          %4273 = vmatmul.mubr.bf16.gmra.mrb[0].mxu0 %v3946
          %v4274 = vpop.f32.mrb[0].mxu0
          %v4275 = vadd.f32 0.0, %v4274
          %v4276 = vpop.f32.mrb[0].mxu0
          %v4277 = vpop.f32.mrb[0].mxu0
          %v4278 = vadd.f32 0.0, %v4277
          %v4279 = vpop.f32.mrb[0].mxu0
          %4280 = vmatprep.mubr.bf16.mxu0 %v3950
          %4281 = vmatmul.mubr.bf16.gmra.mrb[0].mxu0 %v3949
          %v4282 = vpop.f32.mrb[0].mxu0
          %v4283 = vadd.f32 0.0, %v4282
          %v4284 = vpop.f32.mrb[0].mxu0
          %v4285 = vpop.f32.mrb[0].mxu0
          %v4286 = vadd.f32 0.0, %v4285
          %v4287 = vpop.f32.mrb[0].mxu0
          %4288 = vmatprep.mubr.bf16.mxu0 %v3953
          %4289 = vmatmul.mubr.bf16.gmra.mrb[0].mxu0 %v3952
          %v4290 = vpop.f32.mrb[0].mxu0
          %v4291 = vadd.f32 0.0, %v4290
          %v4292 = vpop.f32.mrb[0].mxu0
          %v4293 = vpop.f32.mrb[0].mxu0
          %v4294 = vadd.f32 0.0, %v4293
          %v4295 = vpop.f32.mrb[0].mxu0
          %4296 = vmatprep.mubr.bf16.mxu0 %v3956
          %4297 = vmatmul.mubr.bf16.gmra.mrb[0].mxu0 %v3955
          %v4298 = vpop.f32.mrb[0].mxu0
          %v4299 = vadd.f32 0.0, %v4298
          %v4300 = vpop.f32.mrb[0].mxu0
          %v4301 = vpop.f32.mrb[0].mxu0
          %v4302 = vadd.f32 0.0, %v4301
          %v4303 = vpop.f32.mrb[0].mxu0
          %4304 = vmatprep.mubr.bf16.mxu0 %v3959
          %4305 = vmatmul.mubr.bf16.gmra.mrb[0].mxu0 %v3958
          %v4306 = vpop.f32.mrb[0].mxu0
          %v4307 = vadd.f32 0.0, %v4306
          %v4308 = vpop.f32.mrb[0].mxu0
          %v4309 = vpop.f32.mrb[0].mxu0
          %v4310 = vadd.f32 0.0, %v4309
          %v4311 = vpop.f32.mrb[0].mxu0
          %4312 = vmatprep.mubr.bf16.mxu0 %v3962
          %4313 = vmatmul.mubr.bf16.gmra.mrb[0].mxu0 %v3961
          %v4314 = vpop.f32.mrb[0].mxu0
          %v4315 = vadd.f32 0.0, %v4314
          %v4316 = vpop.f32.mrb[0].mxu0
          %v4317 = vpop.f32.mrb[0].mxu0
          %v4318 = vadd.f32 0.0, %v4317
          %v4319 = vpop.f32.mrb[0].mxu0
          %4320 = vmatprep.mubr.bf16.mxu0 %v3965
          %4321 = vmatmul.mubr.bf16.gmra.mrb[0].mxu0 %v3964
          %v4322 = vpop.f32.mrb[0].mxu0
          %v4323 = vadd.f32 0.0, %v4322
          %v4324 = vpop.f32.mrb[0].mxu0
          %v4325 = vpop.f32.mrb[0].mxu0
          %v4326 = vadd.f32 0.0, %v4325
          %v4327 = vpop.f32.mrb[0].mxu0
          %4328 = vmatprep.mubr.bf16.mxu0 %v3968
          %4329 = vmatmul.mubr.bf16.gmra.mrb[0].mxu0 %v3967
          %v4330 = vpop.f32.mrb[0].mxu0
          %v4331 = vadd.f32 0.0, %v4330
          %v4332 = vpop.f32.mrb[0].mxu0
          %v4333 = vpop.f32.mrb[0].mxu0
          %v4334 = vadd.f32 0.0, %v4333
          %v4335 = vpop.f32.mrb[0].mxu0
          %4336 = vmatprep.mubr.bf16.mxu0 %v3971
          %4337 = vmatmul.mubr.bf16.gmra.mrb[0].mxu0 %v3970
          %v4338 = vpop.f32.mrb[0].mxu0
          %v4339 = vadd.f32 0.0, %v4338
          %v4340 = vpop.f32.mrb[0].mxu0
          %v4341 = vpop.f32.mrb[0].mxu0
          %v4342 = vpop.f32.mrb[0].mxu0
          %4343 = vdwg.mxu0
          %4344 = vmatprep.subr.bf16.mxu0 0
          %4345 = vmatpush1.bf16.msra.mxu0 %v3536
          %4346 = vmatprep.subr.bf16.mxu0 0
          %4347 = vmatpush1.bf16.msra.mxu0 %v3537
          %4348 = vmatprep.subr.bf16.mxu0 0
          %4349 = vmatpush1.bf16.msra.mxu0 0
          %4350 = vmatprep.subr.bf16.mxu0 0
          %4351 = vmatpush1.bf16.msra.mxu0 0
          %4352 = vmatprep.subr.bf16.mxu0 0
          %4353 = vmatpush1.bf16.msra.mxu0 0
          %4354 = vmatprep.subr.bf16.mxu0 0
          %4355 = vmatpush1.bf16.msra.mxu0 0
          %4356 = vmatprep.subr.bf16.mxu0 0
          %4357 = vmatpush1.bf16.msra.mxu0 0
          %4358 = vmatprep.subr.bf16.mxu0 0
          %4359 = vmatpush1.bf16.msra.mxu0 0
          %4360 = vmatprep.subr.bf16.mxu0 0
          %4361 = vmatpush1.bf16.msra.mxu0 0
          %4362 = vmatprep.subr.bf16.mxu0 0
          %4363 = vmatpush1.bf16.msra.mxu0 0
          %4364 = vmatprep.subr.bf16.mxu0 0
          %4365 = vmatpush1.bf16.msra.mxu0 0
          %4366 = vmatprep.subr.bf16.mxu0 0
          %4367 = vmatpush1.bf16.msra.mxu0 0
          %4368 = vmatprep.subr.bf16.mxu0 0
          %4369 = vmatpush1.bf16.msra.mxu0 0
          %4370 = vmatprep.subr.bf16.mxu0 0
          %4371 = vmatpush1.bf16.msra.mxu0 0
          %4372 = vmatprep.subr.bf16.mxu0 0
          %4373 = vmatpush1.bf16.msra.mxu0 0
          %4374 = vmatprep.subr.bf16.mxu0 0
          %4375 = vmatpush1.bf16.msra.mxu0 0
          %4376 = vmatprep.mubr.bf16.mxu0 0
          %4377 = vmatmul.mubr.bf16.gmra.mrb[0].mxu0 %v4027
          %v4378 = vpop.f32.mrb[0].mxu0
          %v4379 = vadd.f32 %v4139, %v4378
          %v4380 = vpop.f32.mrb[0].mxu0
          %v4381 = vpop.f32.mrb[0].mxu0
          %v4382 = vadd.f32 %v4142, %v4381
          %v4383 = vpop.f32.mrb[0].mxu0
          %4384 = vmatprep.mubr.bf16.mxu0 0
          %4385 = vmatmul.mubr.bf16.gmra.mrb[0].mxu0 %v4030
          %v4386 = vpop.f32.mrb[0].mxu0
          %v4387 = vadd.f32 %v4147, %v4386
          %v4388 = vpop.f32.mrb[0].mxu0
          %v4389 = vpop.f32.mrb[0].mxu0
          %v4390 = vadd.f32 %v4150, %v4389
          %v4391 = vpop.f32.mrb[0].mxu0
          %4392 = vmatprep.mubr.bf16.mxu0 0
          %4393 = vmatmul.mubr.bf16.gmra.mrb[0].mxu0 %v4033
          %v4394 = vpop.f32.mrb[0].mxu0
          %v4395 = vadd.f32 %v4155, %v4394
          %v4396 = vpop.f32.mrb[0].mxu0
          %v4397 = vpop.f32.mrb[0].mxu0
          %v4398 = vadd.f32 %v4158, %v4397
          %v4399 = vpop.f32.mrb[0].mxu0
          %4400 = vmatprep.mubr.bf16.mxu0 0
          %4401 = vmatmul.mubr.bf16.gmra.mrb[0].mxu0 %v4036
          %v4402 = vpop.f32.mrb[0].mxu0
          %v4403 = vadd.f32 %v4163, %v4402
          %v4404 = vpop.f32.mrb[0].mxu0
          %v4405 = vpop.f32.mrb[0].mxu0
          %v4406 = vadd.f32 %v4166, %v4405
          %v4407 = vpop.f32.mrb[0].mxu0
          %4408 = vmatprep.mubr.bf16.mxu0 0
          %4409 = vmatmul.mubr.bf16.gmra.mrb[0].mxu0 %v4039
          %v4410 = vpop.f32.mrb[0].mxu0
          %v4411 = vadd.f32 %v4171, %v4410
          %v4412 = vpop.f32.mrb[0].mxu0
          %v4413 = vpop.f32.mrb[0].mxu0
          %v4414 = vadd.f32 %v4174, %v4413
          %v4415 = vpop.f32.mrb[0].mxu0
          %4416 = vmatprep.mubr.bf16.mxu0 0
          %4417 = vmatmul.mubr.bf16.gmra.mrb[0].mxu0 %v4042
          %v4418 = vpop.f32.mrb[0].mxu0
          %v4419 = vadd.f32 %v4179, %v4418
          %v4420 = vpop.f32.mrb[0].mxu0
          %v4421 = vpop.f32.mrb[0].mxu0
          %v4422 = vadd.f32 %v4182, %v4421
          %v4423 = vpop.f32.mrb[0].mxu0
          %4424 = vmatprep.mubr.bf16.mxu0 0
          %4425 = vmatmul.mubr.bf16.gmra.mrb[0].mxu0 %v4045
          %v4426 = vpop.f32.mrb[0].mxu0
          %v4427 = vadd.f32 %v4187, %v4426
          %v4428 = vpop.f32.mrb[0].mxu0
          %v4429 = vpop.f32.mrb[0].mxu0
          %v4430 = vadd.f32 %v4190, %v4429
          %v4431 = vpop.f32.mrb[0].mxu0
          %4432 = vmatprep.mubr.bf16.mxu0 0
          %4433 = vmatmul.mubr.bf16.gmra.mrb[0].mxu0 %v4048
          %v4434 = vpop.f32.mrb[0].mxu0
          %v4435 = vadd.f32 %v4195, %v4434
          %v4436 = vpop.f32.mrb[0].mxu0
          %v4437 = vpop.f32.mrb[0].mxu0
          %v4438 = vadd.f32 %v4198, %v4437
          %v4439 = vpop.f32.mrb[0].mxu0
          %4440 = vmatprep.mubr.bf16.mxu0 0
          %4441 = vmatmul.mubr.bf16.gmra.mrb[0].mxu0 %v4051
          %v4442 = vpop.f32.mrb[0].mxu0
          %v4443 = vadd.f32 %v4203, %v4442
          %v4444 = vpop.f32.mrb[0].mxu0
          %v4445 = vpop.f32.mrb[0].mxu0
          %v4446 = vadd.f32 %v4206, %v4445
          %v4447 = vpop.f32.mrb[0].mxu0
          %4448 = vmatprep.mubr.bf16.mxu0 0
          %4449 = vmatmul.mubr.bf16.gmra.mrb[0].mxu0 %v4054
          %v4450 = vpop.f32.mrb[0].mxu0
          %v4451 = vadd.f32 %v4211, %v4450
          %v4452 = vpop.f32.mrb[0].mxu0
          %v4453 = vpop.f32.mrb[0].mxu0
          %v4454 = vadd.f32 %v4214, %v4453
          %v4455 = vpop.f32.mrb[0].mxu0
          %4456 = vmatprep.mubr.bf16.mxu0 0
          %4457 = vmatmul.mubr.bf16.gmra.mrb[0].mxu0 %v4057
          %v4458 = vpop.f32.mrb[0].mxu0
          %v4459 = vadd.f32 %v4219, %v4458
          %v4460 = vpop.f32.mrb[0].mxu0
          %v4461 = vpop.f32.mrb[0].mxu0
          %v4462 = vadd.f32 %v4222, %v4461
          %v4463 = vpop.f32.mrb[0].mxu0
          %4464 = vmatprep.mubr.bf16.mxu0 0
          %4465 = vmatmul.mubr.bf16.gmra.mrb[0].mxu0 %v4060
          %v4466 = vpop.f32.mrb[0].mxu0
          %v4467 = vadd.f32 %v4227, %v4466
          %v4468 = vpop.f32.mrb[0].mxu0
          %v4469 = vpop.f32.mrb[0].mxu0
          %v4470 = vadd.f32 %v4230, %v4469
          %v4471 = vpop.f32.mrb[0].mxu0
          %4472 = vmatprep.mubr.bf16.mxu0 0
          %4473 = vmatmul.mubr.bf16.gmra.mrb[0].mxu0 %v4063
          %v4474 = vpop.f32.mrb[0].mxu0
          %v4475 = vadd.f32 %v4235, %v4474
          %v4476 = vpop.f32.mrb[0].mxu0
          %v4477 = vpop.f32.mrb[0].mxu0
          %v4478 = vadd.f32 %v4238, %v4477
          %v4479 = vpop.f32.mrb[0].mxu0
          %4480 = vmatprep.mubr.bf16.mxu0 0
          %4481 = vmatmul.mubr.bf16.gmra.mrb[0].mxu0 %v4066
          %v4482 = vpop.f32.mrb[0].mxu0
          %v4483 = vadd.f32 %v4243, %v4482
          %v4484 = vpop.f32.mrb[0].mxu0
          %v4485 = vpop.f32.mrb[0].mxu0
          %v4486 = vadd.f32 %v4246, %v4485
          %v4487 = vpop.f32.mrb[0].mxu0
          %4488 = vmatprep.mubr.bf16.mxu0 0
          %4489 = vmatmul.mubr.bf16.gmra.mrb[0].mxu0 %v4069
          %v4490 = vpop.f32.mrb[0].mxu0
          %v4491 = vadd.f32 %v4251, %v4490
          %v4492 = vpop.f32.mrb[0].mxu0
          %v4493 = vpop.f32.mrb[0].mxu0
          %v4494 = vadd.f32 %v4254, %v4493
          %v4495 = vpop.f32.mrb[0].mxu0
          %4496 = vmatprep.mubr.bf16.mxu0 0
          %4497 = vmatmul.mubr.bf16.gmra.mrb[0].mxu0 %v4072
          %v4498 = vpop.f32.mrb[0].mxu0
          %v4499 = vadd.f32 %v4259, %v4498
          %v4500 = vpop.f32.mrb[0].mxu0
          %v4501 = vpop.f32.mrb[0].mxu0
          %v4502 = vadd.f32 %v4262, %v4501
          %v4503 = vpop.f32.mrb[0].mxu0
          %4504 = vmatprep.mubr.bf16.mxu0 0
          %4505 = vmatmul.mubr.bf16.gmra.mrb[0].mxu0 %v4075
          %v4506 = vpop.f32.mrb[0].mxu0
          %v4507 = vadd.f32 %v4267, %v4506
          %v4508 = vpop.f32.mrb[0].mxu0
          %v4509 = vpop.f32.mrb[0].mxu0
          %v4510 = vadd.f32 %v4270, %v4509
          %v4511 = vpop.f32.mrb[0].mxu0
          %4512 = vmatprep.mubr.bf16.mxu0 0
          %4513 = vmatmul.mubr.bf16.gmra.mrb[0].mxu0 %v4078
          %v4514 = vpop.f32.mrb[0].mxu0
          %v4515 = vadd.f32 %v4275, %v4514
          %v4516 = vpop.f32.mrb[0].mxu0
          %v4517 = vpop.f32.mrb[0].mxu0
          %v4518 = vadd.f32 %v4278, %v4517
          %v4519 = vpop.f32.mrb[0].mxu0
          %4520 = vmatprep.mubr.bf16.mxu0 0
          %4521 = vmatmul.mubr.bf16.gmra.mrb[0].mxu0 %v4081
          %v4522 = vpop.f32.mrb[0].mxu0
          %v4523 = vadd.f32 %v4283, %v4522
          %v4524 = vpop.f32.mrb[0].mxu0
          %v4525 = vpop.f32.mrb[0].mxu0
          %v4526 = vadd.f32 %v4286, %v4525
          %v4527 = vpop.f32.mrb[0].mxu0
          %4528 = vmatprep.mubr.bf16.mxu0 0
          %4529 = vmatmul.mubr.bf16.gmra.mrb[0].mxu0 %v4084
          %v4530 = vpop.f32.mrb[0].mxu0
          %v4531 = vadd.f32 %v4291, %v4530
          %v4532 = vpop.f32.mrb[0].mxu0
          %v4533 = vpop.f32.mrb[0].mxu0
          %v4534 = vadd.f32 %v4294, %v4533
          %v4535 = vpop.f32.mrb[0].mxu0
          %4536 = vmatprep.mubr.bf16.mxu0 0
          %4537 = vmatmul.mubr.bf16.gmra.mrb[0].mxu0 %v4087
          %v4538 = vpop.f32.mrb[0].mxu0
          %v4539 = vadd.f32 %v4299, %v4538
          %v4540 = vpop.f32.mrb[0].mxu0
          %v4541 = vpop.f32.mrb[0].mxu0
          %v4542 = vadd.f32 %v4302, %v4541
          %v4543 = vpop.f32.mrb[0].mxu0
          %4544 = vmatprep.mubr.bf16.mxu0 0
          %4545 = vmatmul.mubr.bf16.gmra.mrb[0].mxu0 %v4090
          %v4546 = vpop.f32.mrb[0].mxu0
          %v4547 = vadd.f32 %v4307, %v4546
          %v4548 = vpop.f32.mrb[0].mxu0
          %v4549 = vpop.f32.mrb[0].mxu0
          %v4550 = vadd.f32 %v4310, %v4549
          %v4551 = vpop.f32.mrb[0].mxu0
          %4552 = vmatprep.mubr.bf16.mxu0 0
          %4553 = vmatmul.mubr.bf16.gmra.mrb[0].mxu0 %v4093
          %v4554 = vpop.f32.mrb[0].mxu0
          %v4555 = vadd.f32 %v4315, %v4554
          %v4556 = vpop.f32.mrb[0].mxu0
          %v4557 = vpop.f32.mrb[0].mxu0
          %v4558 = vadd.f32 %v4318, %v4557
          %v4559 = vpop.f32.mrb[0].mxu0
          %4560 = vmatprep.mubr.bf16.mxu0 0
          %4561 = vmatmul.mubr.bf16.gmra.mrb[0].mxu0 %v4096
          %v4562 = vpop.f32.mrb[0].mxu0
          %v4563 = vadd.f32 %v4323, %v4562
          %v4564 = vpop.f32.mrb[0].mxu0
          %v4565 = vpop.f32.mrb[0].mxu0
          %v4566 = vadd.f32 %v4326, %v4565
          %v4567 = vpop.f32.mrb[0].mxu0
          %4568 = vmatprep.mubr.bf16.mxu0 0
          %4569 = vmatmul.mubr.bf16.gmra.mrb[0].mxu0 %v4099
          %v4570 = vpop.f32.mrb[0].mxu0
          %v4571 = vadd.f32 %v4331, %v4570
          %v4572 = vpop.f32.mrb[0].mxu0
          %v4573 = vpop.f32.mrb[0].mxu0
          %v4574 = vadd.f32 %v4334, %v4573
          %v4575 = vpop.f32.mrb[0].mxu0
          %4576 = vmatprep.mubr.bf16.mxu0 0
          %4577 = vmatmul.mubr.bf16.gmra.mrb[0].mxu0 %v4102
          %v4578 = vpop.f32.mrb[0].mxu0
          %v4579 = vadd.f32 %v4339, %v4578
          %v4580 = vpop.f32.mrb[0].mxu0
          %v4581 = vpop.f32.mrb[0].mxu0
          %v4582 = vpop.f32.mrb[0].mxu0
          %4583 = vdwg.mxu0
          %vm4598 = vcmask 1041408
          %v4599 = vrot.slane %v4427, 6
          %v4600 = vrot.slane %v4430, 6
          %v4601 = vsel %vm4598, %v4599, %v4600
          %v4602 = vrot.slane %v4435, 6
          %v4603 = vsel %vm4598, %v4600, %v4602
          %v4604 = vrot.slane %v4438, 6
          %v4605 = vsel %vm4598, %v4602, %v4604
          %v4606 = vrot.slane %v4443, 6
          %v4607 = vsel %vm4598, %v4604, %v4606
          %v4608 = vrot.slane %v4446, 6
          %v4609 = vsel %vm4598, %v4606, %v4608
          %v4610 = vrot.slane %v4451, 6
          %v4611 = vsel %vm4598, %v4608, %v4610
          %v4612 = vrot.slane %v4454, 6
          %v4613 = vsel %vm4598, %v4610, %v4612
          %v4614 = vrot.slane %v4459, 6
          %v4615 = vsel %vm4598, %v4612, %v4614
          %v4616 = vrot.slane %v4462, 6
          %v4617 = vsel %vm4598, %v4614, %v4616
          %v4618 = vrot.slane %v4467, 6
          %v4619 = vsel %vm4598, %v4616, %v4618
          %v4620 = vrot.slane %v4470, 6
          %v4621 = vsel %vm4598, %v4618, %v4620
          %v4622 = vrot.slane %v4475, 6
          %v4623 = vsel %vm4598, %v4620, %v4622
          %v4624 = vrot.slane %v4478, 6
          %v4625 = vsel %vm4598, %v4622, %v4624
          %v4639 = vmax.f32 %v4379, %v4601
          %v4640 = vmax.f32 %v4382, %v4603
          %v4641 = vmax.f32 %v4387, %v4605
          %v4642 = vmax.f32 %v4390, %v4607
          %v4643 = vmax.f32 %v4395, %v4609
          %v4644 = vmax.f32 %v4398, %v4611
          %v4645 = vmax.f32 %v4403, %v4613
          %v4646 = vmax.f32 %v4406, %v4615
          %v4647 = vmax.f32 %v4411, %v4617
          %v4648 = vmax.f32 %v4414, %v4619
          %v4649 = vmax.f32 %v4419, %v4621
          %v4650 = vmax.f32 %v4422, %v4623
          %v4651 = vmax.f32 %v4427, %v4625
          %v4665 = vrot.slane %v4531, 6
          %v4666 = vrot.slane %v4534, 6
          %v4667 = vsel %vm4598, %v4665, %v4666
          %v4668 = vrot.slane %v4539, 6
          %v4669 = vsel %vm4598, %v4666, %v4668
          %v4670 = vrot.slane %v4542, 6
          %v4671 = vsel %vm4598, %v4668, %v4670
          %v4672 = vrot.slane %v4547, 6
          %v4673 = vsel %vm4598, %v4670, %v4672
          %v4674 = vrot.slane %v4550, 6
          %v4675 = vsel %vm4598, %v4672, %v4674
          %v4676 = vrot.slane %v4555, 6
          %v4677 = vsel %vm4598, %v4674, %v4676
          %v4678 = vrot.slane %v4558, 6
          %v4679 = vsel %vm4598, %v4676, %v4678
          %v4680 = vrot.slane %v4563, 6
          %v4681 = vsel %vm4598, %v4678, %v4680
          %v4682 = vrot.slane %v4566, 6
          %v4683 = vsel %vm4598, %v4680, %v4682
          %v4684 = vrot.slane %v4571, 6
          %v4685 = vsel %vm4598, %v4682, %v4684
          %v4686 = vrot.slane %v4574, 6
          %v4687 = vsel %vm4598, %v4684, %v4686
          %v4688 = vrot.slane %v4579, 6
          %v4689 = vsel %vm4598, %v4686, %v4688
          %v4704 = vmax.f32 %v4478, %v4665
          %v4705 = vmax.f32 %v4483, %v4667
          %v4706 = vmax.f32 %v4486, %v4669
          %v4707 = vmax.f32 %v4491, %v4671
          %v4708 = vmax.f32 %v4494, %v4673
          %v4709 = vmax.f32 %v4499, %v4675
          %v4710 = vmax.f32 %v4502, %v4677
          %v4711 = vmax.f32 %v4507, %v4679
          %v4712 = vmax.f32 %v4510, %v4681
          %v4713 = vmax.f32 %v4515, %v4683
          %v4714 = vmax.f32 %v4518, %v4685
          %v4715 = vmax.f32 %v4523, %v4687
          %v4716 = vmax.f32 %v4526, %v4689
          %v4717 = vmax.f32 %v4531, %v4688
          %vm4732 = vcmask 1043456
          %v4733 = vrot.slane %v4704, 4
          %v4734 = vrot.slane %v4705, 4
          %v4735 = vsel %vm4732, %v4733, %v4734
          %v4736 = vrot.slane %v4706, 4
          %v4737 = vsel %vm4732, %v4734, %v4736
          %v4738 = vrot.slane %v4707, 4
          %v4739 = vsel %vm4732, %v4736, %v4738
          %v4740 = vrot.slane %v4708, 4
          %v4741 = vsel %vm4732, %v4738, %v4740
          %v4742 = vrot.slane %v4709, 4
          %v4743 = vsel %vm4732, %v4740, %v4742
          %v4744 = vrot.slane %v4710, 4
          %v4745 = vsel %vm4732, %v4742, %v4744
          %v4746 = vrot.slane %v4711, 4
          %v4747 = vsel %vm4732, %v4744, %v4746
          %v4748 = vrot.slane %v4712, 4
          %v4749 = vsel %vm4732, %v4746, %v4748
          %v4750 = vrot.slane %v4713, 4
          %v4751 = vsel %vm4732, %v4748, %v4750
          %v4752 = vrot.slane %v4714, 4
          %v4753 = vsel %vm4732, %v4750, %v4752
          %v4754 = vrot.slane %v4715, 4
          %v4755 = vsel %vm4732, %v4752, %v4754
          %v4756 = vrot.slane %v4716, 4
          %v4757 = vsel %vm4732, %v4754, %v4756
          %v4758 = vrot.slane %v4717, 4
          %v4759 = vsel %vm4732, %v4756, %v4758
          %v4773 = vmax.f32 %v4639, %v4735
          %v4774 = vmax.f32 %v4640, %v4737
          %v4775 = vmax.f32 %v4641, %v4739
          %v4776 = vmax.f32 %v4642, %v4741
          %v4777 = vmax.f32 %v4643, %v4743
          %v4778 = vmax.f32 %v4644, %v4745
          %v4779 = vmax.f32 %v4645, %v4747
          %v4780 = vmax.f32 %v4646, %v4749
          %v4781 = vmax.f32 %v4647, %v4751
          %v4782 = vmax.f32 %v4648, %v4753
          %v4783 = vmax.f32 %v4649, %v4755
          %v4784 = vmax.f32 %v4650, %v4757
          %v4785 = vmax.f32 %v4651, %v4759
          %v4786 = vpack.c.bf16 %v4774, %v4773
          %v4787 = vpack.c.bf16 %v4776, %v4775
          %v4788 = vpack.c.bf16 %v4778, %v4777
          %v4789 = vpack.c.bf16 %v4780, %v4779
          %v4790 = vpack.c.bf16 %v4782, %v4781
          %v4791 = vpack.c.bf16 %v4784, %v4783
          %v4792 = vpack.c.bf16 %v4785, %v4785
          %s4793 = scalar_lea.vmem %s1, 576
          %v4794 = vld [vmem:[%s4793] sm:$0xf]
          %v4795 = vld [vmem:[%s4793 + $0x4] sm:$0xf]
          %v4796 = vld [vmem:[%s4793 + $0x8] sm:$0xf]
          %v4797 = vld [vmem:[%s4793 + $0xc] sm:$0xf]
          %v4798 = vld [vmem:[%s4793 + $0x10] sm:$0xf]
          %v4799 = vld [vmem:[%s4793 + $0x14] sm:$0xf]
          %v4800 = vld [vmem:[%s4793 + $0x18] sm:$0xf]
          %v4801 = vld [vmem:[%s4793 + $0x1c] sm:$0xf]
          %v4802 = vld [vmem:[%s4793 + $0x20] sm:$0xf]
          %v4803 = vld [vmem:[%s4793 + $0x24] sm:$0xf]
          %v4804 = vld [vmem:[%s4793 + $0x28] sm:$0xf]
          %v4805 = vld [vmem:[%s4793 + $0x2c] sm:$0xf]
          %v4806 = vld [vmem:[%s4793 + $0x30] sm:$0xf]
          %v4807 = vld [vmem:[%s4793 + $0x34] sm:$0xf]
          %v4808 = vld [vmem:[%s4793 + $0x38] sm:$0xf]
          %v4809 = vld [vmem:[%s4793 + $0x3c] sm:$0xf]
          %s4810 = scalar_lea.vmem %s1, 640
          %v4811 = vld [vmem:[%s4810] sm:$0xf]
          %v4812 = vld [vmem:[%s4810 + $0x4] sm:$0xf]
          %v4813 = vld [vmem:[%s4810 + $0x8] sm:$0xf]
          %v4814 = vld [vmem:[%s4810 + $0xc] sm:$0xf]
          %v4815 = vld [vmem:[%s4810 + $0x10] sm:$0xf]
          %v4816 = vld [vmem:[%s4810 + $0x14] sm:$0xf]
          %v4817 = vld [vmem:[%s4810 + $0x18] sm:$0xf]
          %v4818 = vld [vmem:[%s4810 + $0x1c] sm:$0xf]
          %v4819 = vld [vmem:[%s4810 + $0x20] sm:$0xf]
          %v4820 = vld [vmem:[%s4810 + $0x24] sm:$0xf]
          %v4821 = vld [vmem:[%s4810 + $0x28] sm:$0xf]
          %v4822 = vld [vmem:[%s4810 + $0x2c] sm:$0xf]
          %v4823 = vld [vmem:[%s4810 + $0x30] sm:$0xf]
          %v4824 = vld [vmem:[%s4810 + $0x34] sm:$0xf]
          %v4825 = vld [vmem:[%s4810 + $0x38] sm:$0xf]
          %v4826 = vld [vmem:[%s4810 + $0x3c] sm:$0xf]
          %v4828 = vshrl.u32 %v4786, 16
          %v4830 = vshll.u32 %v4786, 16
          %v4832 = vrot.slane %v4830, 1
          %v4833 = vor.u32 %v4828, %v4832
          %v4835 = vshll.u32 %v4787, 16
          %v4837 = vrot.slane %v4835, 1
          %v4838 = vsel %vm460, %v4833, %v4837
          %v4839 = vshrl.u32 %v4787, 16
          %v4841 = vor.u32 %v4839, %v4837
          %v4843 = vshll.u32 %v4788, 16
          %v4845 = vrot.slane %v4843, 1
          %v4846 = vsel %vm460, %v4841, %v4845
          %v4847 = vshrl.u32 %v4788, 16
          %v4849 = vor.u32 %v4847, %v4845
          %v4851 = vshll.u32 %v4789, 16
          %v4853 = vrot.slane %v4851, 1
          %v4854 = vsel %vm460, %v4849, %v4853
          %v4855 = vshrl.u32 %v4789, 16
          %v4857 = vor.u32 %v4855, %v4853
          %v4859 = vshll.u32 %v4790, 16
          %v4861 = vrot.slane %v4859, 1
          %v4862 = vsel %vm460, %v4857, %v4861
          %v4863 = vshrl.u32 %v4790, 16
          %v4865 = vor.u32 %v4863, %v4861
          %v4867 = vshll.u32 %v4791, 16
          %v4869 = vrot.slane %v4867, 1
          %v4870 = vsel %vm460, %v4865, %v4869
          %v4892 = vunpack.c.l.b16 %v4811
          %v4893 = vunpack.c.l.b16 %v4812
          %v4894 = vunpack.c.l.b16 %v4813
          %v4895 = vunpack.c.l.b16 %v4814
          %v4896 = vunpack.c.l.b16 %v4815
          %v4897 = vunpack.c.l.b16 %v4816
          %v4898 = vunpack.c.l.b16 %v4817
          %v4899 = vunpack.c.l.b16 %v4818
          %v4900 = vunpack.c.l.b16 %v4819
          %v4901 = vunpack.c.l.b16 %v4820
          %v4902 = vunpack.c.l.b16 %v4821
          %v4903 = vunpack.c.l.b16 %v4822
          %v4904 = vunpack.c.l.b16 %v4823
          %v4905 = vunpack.c.l.b16 %v4824
          %v4906 = vunpack.c.l.b16 %v4825
          %v4907 = vunpack.c.l.b16 %v4826
          %v4908 = vpack.c.b16 %v4893, %v4892
          %v4909 = vpack.c.b16 %v4895, %v4894
          %v4910 = vpack.c.b16 %v4897, %v4896
          %v4911 = vpack.c.b16 %v4899, %v4898
          %v4912 = vpack.c.b16 %v4901, %v4900
          %v4913 = vpack.c.b16 %v4903, %v4902
          %v4914 = vpack.c.b16 %v4905, %v4904
          %v4915 = vpack.c.b16 %v4907, %v4906
          %4924 = vmatprep.subr.bf16.mxu0 0
          %4925 = vmatpush1.bf16.msra.mxu0 %v4908
          %4926 = vmatprep.subr.bf16.mxu0 0
          %4927 = vmatpush1.bf16.msra.mxu0 %v4909
          %4928 = vmatprep.subr.bf16.mxu0 0
          %4929 = vmatpush1.bf16.msra.mxu0 %v4910
          %4930 = vmatprep.subr.bf16.mxu0 0
          %4931 = vmatpush1.bf16.msra.mxu0 %v4911
          %4932 = vmatprep.subr.bf16.mxu0 0
          %4933 = vmatpush1.bf16.msra.mxu0 %v4912
          %4934 = vmatprep.subr.bf16.mxu0 0
          %4935 = vmatpush1.bf16.msra.mxu0 %v4913
          %4936 = vmatprep.subr.bf16.mxu0 0
          %4937 = vmatpush1.bf16.msra.mxu0 %v4914
          %4938 = vmatprep.subr.bf16.mxu0 0
          %4939 = vmatpush1.bf16.msra.mxu0 %v4915
          %4940 = vmatprep.subr.bf16.mxu0 0
          %4941 = vmatpush1.bf16.msra.mxu0 0
          %4942 = vmatprep.subr.bf16.mxu0 0
          %4943 = vmatpush1.bf16.msra.mxu0 0
          %4944 = vmatprep.subr.bf16.mxu0 0
          %4945 = vmatpush1.bf16.msra.mxu0 0
          %4946 = vmatprep.subr.bf16.mxu0 0
          %4947 = vmatpush1.bf16.msra.mxu0 0
          %4948 = vmatprep.subr.bf16.mxu0 0
          %4949 = vmatpush1.bf16.msra.mxu0 0
          %4950 = vmatprep.subr.bf16.mxu0 0
          %4951 = vmatpush1.bf16.msra.mxu0 0
          %4952 = vmatprep.subr.bf16.mxu0 0
          %4953 = vmatpush1.bf16.msra.mxu0 0
          %4954 = vmatprep.subr.bf16.mxu0 0
          %4955 = vmatpush1.bf16.msra.mxu0 0
          %4956 = vmatprep.mubr.bf16.mxu0 0
          %4957 = vmatmul.mubr.bf16.gmra.mrb[0].mxu0 %v4838
          %v4958 = vpop.f32.mrb[0].mxu0
          %v4959 = vadd.f32 0.0, %v4958
          %v4960 = vpop.f32.mrb[0].mxu0
          %v4961 = vpop.f32.mrb[0].mxu0
          %v4962 = vadd.f32 0.0, %v4961
          %v4963 = vpop.f32.mrb[0].mxu0
          %4964 = vmatprep.mubr.bf16.mxu0 0
          %4965 = vmatmul.mubr.bf16.gmra.mrb[0].mxu0 %v4846
          %v4966 = vpop.f32.mrb[0].mxu0
          %v4967 = vadd.f32 0.0, %v4966
          %v4968 = vpop.f32.mrb[0].mxu0
          %v4969 = vpop.f32.mrb[0].mxu0
          %v4970 = vadd.f32 0.0, %v4969
          %v4971 = vpop.f32.mrb[0].mxu0
          %4972 = vmatprep.mubr.bf16.mxu0 0
          %4973 = vmatmul.mubr.bf16.gmra.mrb[0].mxu0 %v4854
          %v4974 = vpop.f32.mrb[0].mxu0
          %v4975 = vadd.f32 0.0, %v4974
          %v4976 = vpop.f32.mrb[0].mxu0
          %v4977 = vpop.f32.mrb[0].mxu0
          %v4978 = vadd.f32 0.0, %v4977
          %v4979 = vpop.f32.mrb[0].mxu0
          %4980 = vmatprep.mubr.bf16.mxu0 0
          %4981 = vmatmul.mubr.bf16.gmra.mrb[0].mxu0 %v4862
          %v4982 = vpop.f32.mrb[0].mxu0
          %v4983 = vadd.f32 0.0, %v4982
          %v4984 = vpop.f32.mrb[0].mxu0
          %v4985 = vpop.f32.mrb[0].mxu0
          %v4986 = vadd.f32 0.0, %v4985
          %v4987 = vpop.f32.mrb[0].mxu0
          %4988 = vmatprep.mubr.bf16.mxu0 0
          %4989 = vmatmul.mubr.bf16.gmra.mrb[0].mxu0 %v4870
          %v4990 = vpop.f32.mrb[0].mxu0
          %v4991 = vadd.f32 0.0, %v4990
          %v4992 = vpop.f32.mrb[0].mxu0
          %v4993 = vpop.f32.mrb[0].mxu0
          %v4994 = vadd.f32 0.0, %v4993
          %v4995 = vpop.f32.mrb[0].mxu0
          %4996 = vdwg.mxu0
          %v5013 = vunpack.c.l.b16 %v4794
          %v5014 = vunpack.c.l.b16 %v4795
          %v5015 = vunpack.c.l.b16 %v4796
          %v5016 = vunpack.c.l.b16 %v4797
          %v5017 = vunpack.c.l.b16 %v4798
          %v5018 = vunpack.c.l.b16 %v4799
          %v5019 = vunpack.c.l.b16 %v4800
          %v5020 = vunpack.c.l.b16 %v4801
          %v5021 = vunpack.c.l.b16 %v4802
          %v5022 = vunpack.c.l.b16 %v4803
          %v5023 = vunpack.c.l.b16 %v4804
          %v5024 = vunpack.c.l.b16 %v4805
          %v5025 = vunpack.c.l.b16 %v4806
          %v5026 = vunpack.c.l.b16 %v4807
          %v5027 = vunpack.c.l.b16 %v4808
          %v5028 = vunpack.c.l.b16 %v4809
          %v5029 = vpack.c.b16 %v5014, %v5013
          %v5030 = vpack.c.b16 %v5016, %v5015
          %v5031 = vpack.c.b16 %v5018, %v5017
          %v5032 = vpack.c.b16 %v5020, %v5019
          %v5033 = vpack.c.b16 %v5022, %v5021
          %v5034 = vpack.c.b16 %v5024, %v5023
          %v5035 = vpack.c.b16 %v5026, %v5025
          %v5036 = vpack.c.b16 %v5028, %v5027
          %5045 = vmatprep.subr.bf16.mxu0 0
          %5046 = vmatpush1.bf16.msra.mxu0 %v5029
          %5047 = vmatprep.subr.bf16.mxu0 0
          %5048 = vmatpush1.bf16.msra.mxu0 %v5030
          %5049 = vmatprep.subr.bf16.mxu0 0
          %5050 = vmatpush1.bf16.msra.mxu0 %v5031
          %5051 = vmatprep.subr.bf16.mxu0 0
          %5052 = vmatpush1.bf16.msra.mxu0 %v5032
          %5053 = vmatprep.subr.bf16.mxu0 0
          %5054 = vmatpush1.bf16.msra.mxu0 %v5033
          %5055 = vmatprep.subr.bf16.mxu0 0
          %5056 = vmatpush1.bf16.msra.mxu0 %v5034
          %5057 = vmatprep.subr.bf16.mxu0 0
          %5058 = vmatpush1.bf16.msra.mxu0 %v5035
          %5059 = vmatprep.subr.bf16.mxu0 0
          %5060 = vmatpush1.bf16.msra.mxu0 %v5036
          %5061 = vmatprep.subr.bf16.mxu0 0
          %5062 = vmatpush1.bf16.msra.mxu0 0
          %5063 = vmatprep.subr.bf16.mxu0 0
          %5064 = vmatpush1.bf16.msra.mxu0 0
          %5065 = vmatprep.subr.bf16.mxu0 0
          %5066 = vmatpush1.bf16.msra.mxu0 0
          %5067 = vmatprep.subr.bf16.mxu0 0
          %5068 = vmatpush1.bf16.msra.mxu0 0
          %5069 = vmatprep.subr.bf16.mxu0 0
          %5070 = vmatpush1.bf16.msra.mxu0 0
          %5071 = vmatprep.subr.bf16.mxu0 0
          %5072 = vmatpush1.bf16.msra.mxu0 0
          %5073 = vmatprep.subr.bf16.mxu0 0
          %5074 = vmatpush1.bf16.msra.mxu0 0
          %5075 = vmatprep.subr.bf16.mxu0 0
          %5076 = vmatpush1.bf16.msra.mxu0 0
          %5077 = vmatprep.mubr.bf16.mxu0 0
          %5078 = vmatmul.mubr.bf16.gmra.mrb[0].mxu0 %v4786
          %v5079 = vpop.f32.mrb[0].mxu0
          %v5080 = vadd.f32 %v4959, %v5079
          %v5081 = vpop.f32.mrb[0].mxu0
          %v5082 = vpop.f32.mrb[0].mxu0
          %v5083 = vadd.f32 %v4962, %v5082
          %v5084 = vpop.f32.mrb[0].mxu0
          %5085 = vmatprep.mubr.bf16.mxu0 0
          %5086 = vmatmul.mubr.bf16.gmra.mrb[0].mxu0 %v4787
          %v5087 = vpop.f32.mrb[0].mxu0
          %v5088 = vadd.f32 %v4967, %v5087
          %v5089 = vpop.f32.mrb[0].mxu0
          %v5090 = vpop.f32.mrb[0].mxu0
          %v5091 = vadd.f32 %v4970, %v5090
          %v5092 = vpop.f32.mrb[0].mxu0
          %5093 = vmatprep.mubr.bf16.mxu0 0
          %5094 = vmatmul.mubr.bf16.gmra.mrb[0].mxu0 %v4788
          %v5095 = vpop.f32.mrb[0].mxu0
          %v5096 = vadd.f32 %v4975, %v5095
          %v5097 = vpop.f32.mrb[0].mxu0
          %v5098 = vpop.f32.mrb[0].mxu0
          %v5099 = vadd.f32 %v4978, %v5098
          %v5100 = vpop.f32.mrb[0].mxu0
          %5101 = vmatprep.mubr.bf16.mxu0 0
          %5102 = vmatmul.mubr.bf16.gmra.mrb[0].mxu0 %v4789
          %v5103 = vpop.f32.mrb[0].mxu0
          %v5104 = vadd.f32 %v4983, %v5103
          %v5105 = vpop.f32.mrb[0].mxu0
          %v5106 = vpop.f32.mrb[0].mxu0
          %v5107 = vadd.f32 %v4986, %v5106
          %v5108 = vpop.f32.mrb[0].mxu0
          %5109 = vmatprep.mubr.bf16.mxu0 0
          %5110 = vmatmul.mubr.bf16.gmra.mrb[0].mxu0 %v4790
          %v5111 = vpop.f32.mrb[0].mxu0
          %v5112 = vadd.f32 %v4991, %v5111
          %v5113 = vpop.f32.mrb[0].mxu0
          %v5114 = vpop.f32.mrb[0].mxu0
          %v5115 = vadd.f32 %v4994, %v5114
          %v5116 = vpop.f32.mrb[0].mxu0
          %5117 = vdwg.mxu0
          %s5118 = scalar_lea.vmem %s1, 704
          %v5119 = vld [vmem:[%s5118] sm:$0xf]
          %v5120 = vld [vmem:[%s5118 + $0x4] sm:$0xf]
          %v5121 = vld [vmem:[%s5118 + $0x8] sm:$0xf]
          %v5122 = vld [vmem:[%s5118 + $0xc] sm:$0xf]
          %v5123 = vld [vmem:[%s5118 + $0x10] sm:$0xf]
          %v5124 = vld [vmem:[%s5118 + $0x14] sm:$0xf]
          %v5125 = vld [vmem:[%s5118 + $0x18] sm:$0xf]
          %v5126 = vld [vmem:[%s5118 + $0x1c] sm:$0xf]
          %v5127 = vld [vmem:[%s5118 + $0x20] sm:$0xf]
          %v5128 = vld [vmem:[%s5118 + $0x24] sm:$0xf]
          %v5129 = vld [vmem:[%s5118 + $0x28] sm:$0xf]
          %v5130 = vld [vmem:[%s5118 + $0x2c] sm:$0xf]
          %v5131 = vld [vmem:[%s5118 + $0x30] sm:$0xf]
          %v5132 = vld [vmem:[%s5118 + $0x34] sm:$0xf]
          %v5133 = vld [vmem:[%s5118 + $0x38] sm:$0xf]
          %v5134 = vld [vmem:[%s5118 + $0x3c] sm:$0xf]
          %v5141 = vrot.slane %v4786, 1
          %v5142 = vrot.slane %v4787, 1
          %v5143 = vsel %vm1112, %v5141, %v5142
          %v5144 = vrot.slane %v4788, 1
          %v5145 = vsel %vm1112, %v5142, %v5144
          %v5146 = vrot.slane %v4789, 1
          %v5147 = vsel %vm1112, %v5144, %v5146
          %v5148 = vrot.slane %v4790, 1
          %v5149 = vsel %vm1112, %v5146, %v5148
          %v5150 = vrot.slane %v4791, 1
          %v5151 = vsel %vm1112, %v5148, %v5150
          %v5173 = vunpack.c.l.b16 %v5119
          %v5174 = vunpack.c.l.b16 %v5120
          %v5175 = vunpack.c.l.b16 %v5121
          %v5176 = vunpack.c.l.b16 %v5122
          %v5177 = vunpack.c.l.b16 %v5123
          %v5178 = vunpack.c.l.b16 %v5124
          %v5179 = vunpack.c.l.b16 %v5125
          %v5180 = vunpack.c.l.b16 %v5126
          %v5181 = vunpack.c.l.b16 %v5127
          %v5182 = vunpack.c.l.b16 %v5128
          %v5183 = vunpack.c.l.b16 %v5129
          %v5184 = vunpack.c.l.b16 %v5130
          %v5185 = vunpack.c.l.b16 %v5131
          %v5186 = vunpack.c.l.b16 %v5132
          %v5187 = vunpack.c.l.b16 %v5133
          %v5188 = vunpack.c.l.b16 %v5134
          %v5189 = vpack.c.b16 %v5174, %v5173
          %v5190 = vpack.c.b16 %v5176, %v5175
          %v5191 = vpack.c.b16 %v5178, %v5177
          %v5192 = vpack.c.b16 %v5180, %v5179
          %v5193 = vpack.c.b16 %v5182, %v5181
          %v5194 = vpack.c.b16 %v5184, %v5183
          %v5195 = vpack.c.b16 %v5186, %v5185
          %v5196 = vpack.c.b16 %v5188, %v5187
          %5205 = vmatprep.subr.bf16.mxu0 0
          %5206 = vmatpush1.bf16.msra.mxu0 %v5189
          %5207 = vmatprep.subr.bf16.mxu0 0
          %5208 = vmatpush1.bf16.msra.mxu0 %v5190
          %5209 = vmatprep.subr.bf16.mxu0 0
          %5210 = vmatpush1.bf16.msra.mxu0 %v5191
          %5211 = vmatprep.subr.bf16.mxu0 0
          %5212 = vmatpush1.bf16.msra.mxu0 %v5192
          %5213 = vmatprep.subr.bf16.mxu0 0
          %5214 = vmatpush1.bf16.msra.mxu0 %v5193
          %5215 = vmatprep.subr.bf16.mxu0 0
          %5216 = vmatpush1.bf16.msra.mxu0 %v5194
          %5217 = vmatprep.subr.bf16.mxu0 0
          %5218 = vmatpush1.bf16.msra.mxu0 %v5195
          %5219 = vmatprep.subr.bf16.mxu0 0
          %5220 = vmatpush1.bf16.msra.mxu0 %v5196
          %5221 = vmatprep.subr.bf16.mxu0 0
          %5222 = vmatpush1.bf16.msra.mxu0 0
          %5223 = vmatprep.subr.bf16.mxu0 0
          %5224 = vmatpush1.bf16.msra.mxu0 0
          %5225 = vmatprep.subr.bf16.mxu0 0
          %5226 = vmatpush1.bf16.msra.mxu0 0
          %5227 = vmatprep.subr.bf16.mxu0 0
          %5228 = vmatpush1.bf16.msra.mxu0 0
          %5229 = vmatprep.subr.bf16.mxu0 0
          %5230 = vmatpush1.bf16.msra.mxu0 0
          %5231 = vmatprep.subr.bf16.mxu0 0
          %5232 = vmatpush1.bf16.msra.mxu0 0
          %5233 = vmatprep.subr.bf16.mxu0 0
          %5234 = vmatpush1.bf16.msra.mxu0 0
          %5235 = vmatprep.subr.bf16.mxu0 0
          %5236 = vmatpush1.bf16.msra.mxu0 0
          %5237 = vmatprep.mubr.bf16.mxu0 0
          %5238 = vmatmul.mubr.bf16.gmra.mrb[0].mxu0 %v5143
          %v5239 = vpop.f32.mrb[0].mxu0
          %v5240 = vadd.f32 0.0, %v5239
          %v5241 = vpop.f32.mrb[0].mxu0
          %v5242 = vpop.f32.mrb[0].mxu0
          %v5243 = vadd.f32 0.0, %v5242
          %v5244 = vpop.f32.mrb[0].mxu0
          %5245 = vmatprep.mubr.bf16.mxu0 0
          %5246 = vmatmul.mubr.bf16.gmra.mrb[0].mxu0 %v5145
          %v5247 = vpop.f32.mrb[0].mxu0
          %v5248 = vadd.f32 0.0, %v5247
          %v5249 = vpop.f32.mrb[0].mxu0
          %v5250 = vpop.f32.mrb[0].mxu0
          %v5251 = vadd.f32 0.0, %v5250
          %v5252 = vpop.f32.mrb[0].mxu0
          %5253 = vmatprep.mubr.bf16.mxu0 0
          %5254 = vmatmul.mubr.bf16.gmra.mrb[0].mxu0 %v5147
          %v5255 = vpop.f32.mrb[0].mxu0
          %v5256 = vadd.f32 0.0, %v5255
          %v5257 = vpop.f32.mrb[0].mxu0
          %v5258 = vpop.f32.mrb[0].mxu0
          %v5259 = vadd.f32 0.0, %v5258
          %v5260 = vpop.f32.mrb[0].mxu0
          %5261 = vmatprep.mubr.bf16.mxu0 0
          %5262 = vmatmul.mubr.bf16.gmra.mrb[0].mxu0 %v5149
          %v5263 = vpop.f32.mrb[0].mxu0
          %v5264 = vadd.f32 0.0, %v5263
          %v5265 = vpop.f32.mrb[0].mxu0
          %v5266 = vpop.f32.mrb[0].mxu0
          %v5267 = vadd.f32 0.0, %v5266
          %v5268 = vpop.f32.mrb[0].mxu0
          %5269 = vmatprep.mubr.bf16.mxu0 0
          %5270 = vmatmul.mubr.bf16.gmra.mrb[0].mxu0 %v5151
          %v5271 = vpop.f32.mrb[0].mxu0
          %v5272 = vadd.f32 0.0, %v5271
          %v5273 = vpop.f32.mrb[0].mxu0
          %v5274 = vpop.f32.mrb[0].mxu0
          %v5275 = vadd.f32 0.0, %v5274
          %v5276 = vpop.f32.mrb[0].mxu0
          %5277 = vdwg.mxu0
          %v5278 = vadd.f32 %v5080, %v5240
          %v5279 = vadd.f32 %v5083, %v5243
          %v5280 = vadd.f32 %v5088, %v5248
          %v5281 = vadd.f32 %v5091, %v5251
          %v5282 = vadd.f32 %v5096, %v5256
          %v5283 = vadd.f32 %v5099, %v5259
          %v5284 = vadd.f32 %v5104, %v5264
          %v5285 = vadd.f32 %v5107, %v5267
          %v5286 = vadd.f32 %v5112, %v5272
          %v5287 = vadd.f32 %v5115, %v5275
          %s5288 = scalar_lea.vmem %s1, 768
          %v5289 = vld [vmem:[%s5288] sm:$0xf]
          %v5290 = vld [vmem:[%s5288 + $0x4] sm:$0xf]
          %v5291 = vld [vmem:[%s5288 + $0x8] sm:$0xf]
          %v5292 = vld [vmem:[%s5288 + $0xc] sm:$0xf]
          %v5293 = vld [vmem:[%s5288 + $0x10] sm:$0xf]
          %v5294 = vld [vmem:[%s5288 + $0x14] sm:$0xf]
          %v5295 = vld [vmem:[%s5288 + $0x18] sm:$0xf]
          %v5296 = vld [vmem:[%s5288 + $0x1c] sm:$0xf]
          %v5297 = vld [vmem:[%s5288 + $0x20] sm:$0xf]
          %v5298 = vld [vmem:[%s5288 + $0x24] sm:$0xf]
          %v5299 = vld [vmem:[%s5288 + $0x28] sm:$0xf]
          %v5300 = vld [vmem:[%s5288 + $0x2c] sm:$0xf]
          %v5301 = vld [vmem:[%s5288 + $0x30] sm:$0xf]
          %v5302 = vld [vmem:[%s5288 + $0x34] sm:$0xf]
          %v5303 = vld [vmem:[%s5288 + $0x38] sm:$0xf]
          %v5304 = vld [vmem:[%s5288 + $0x3c] sm:$0xf]
          %vm5305 = vcmask 1042432
          %v5306 = vrot.slane %v4786, 5
          %v5307 = vrot.slane %v4787, 5
          %v5308 = vsel %vm5305, %v5306, %v5307
          %v5309 = vrot.slane %v4788, 5
          %v5310 = vsel %vm5305, %v5307, %v5309
          %v5311 = vrot.slane %v4789, 5
          %v5312 = vsel %vm5305, %v5309, %v5311
          %v5313 = vrot.slane %v4790, 5
          %v5314 = vsel %vm5305, %v5311, %v5313
          %v5315 = vrot.slane %v4791, 5
          %v5316 = vsel %vm5305, %v5313, %v5315
          %v5338 = vunpack.c.l.b16 %v5289
          %v5339 = vunpack.c.l.b16 %v5290
          %v5340 = vunpack.c.l.b16 %v5291
          %v5341 = vunpack.c.l.b16 %v5292
          %v5342 = vunpack.c.l.b16 %v5293
          %v5343 = vunpack.c.l.b16 %v5294
          %v5344 = vunpack.c.l.b16 %v5295
          %v5345 = vunpack.c.l.b16 %v5296
          %v5346 = vunpack.c.l.b16 %v5297
          %v5347 = vunpack.c.l.b16 %v5298
          %v5348 = vunpack.c.l.b16 %v5299
          %v5349 = vunpack.c.l.b16 %v5300
          %v5350 = vunpack.c.l.b16 %v5301
          %v5351 = vunpack.c.l.b16 %v5302
          %v5352 = vunpack.c.l.b16 %v5303
          %v5353 = vunpack.c.l.b16 %v5304
          %v5354 = vpack.c.b16 %v5339, %v5338
          %v5355 = vpack.c.b16 %v5341, %v5340
          %v5356 = vpack.c.b16 %v5343, %v5342
          %v5357 = vpack.c.b16 %v5345, %v5344
          %v5358 = vpack.c.b16 %v5347, %v5346
          %v5359 = vpack.c.b16 %v5349, %v5348
          %v5360 = vpack.c.b16 %v5351, %v5350
          %v5361 = vpack.c.b16 %v5353, %v5352
          %5370 = vmatprep.subr.bf16.mxu0 0
          %5371 = vmatpush1.bf16.msra.mxu0 %v5354
          %5372 = vmatprep.subr.bf16.mxu0 0
          %5373 = vmatpush1.bf16.msra.mxu0 %v5355
          %5374 = vmatprep.subr.bf16.mxu0 0
          %5375 = vmatpush1.bf16.msra.mxu0 %v5356
          %5376 = vmatprep.subr.bf16.mxu0 0
          %5377 = vmatpush1.bf16.msra.mxu0 %v5357
          %5378 = vmatprep.subr.bf16.mxu0 0
          %5379 = vmatpush1.bf16.msra.mxu0 %v5358
          %5380 = vmatprep.subr.bf16.mxu0 0
          %5381 = vmatpush1.bf16.msra.mxu0 %v5359
          %5382 = vmatprep.subr.bf16.mxu0 0
          %5383 = vmatpush1.bf16.msra.mxu0 %v5360
          %5384 = vmatprep.subr.bf16.mxu0 0
          %5385 = vmatpush1.bf16.msra.mxu0 %v5361
          %5386 = vmatprep.subr.bf16.mxu0 0
          %5387 = vmatpush1.bf16.msra.mxu0 0
          %5388 = vmatprep.subr.bf16.mxu0 0
          %5389 = vmatpush1.bf16.msra.mxu0 0
          %5390 = vmatprep.subr.bf16.mxu0 0
          %5391 = vmatpush1.bf16.msra.mxu0 0
          %5392 = vmatprep.subr.bf16.mxu0 0
          %5393 = vmatpush1.bf16.msra.mxu0 0
          %5394 = vmatprep.subr.bf16.mxu0 0
          %5395 = vmatpush1.bf16.msra.mxu0 0
          %5396 = vmatprep.subr.bf16.mxu0 0
          %5397 = vmatpush1.bf16.msra.mxu0 0
          %5398 = vmatprep.subr.bf16.mxu0 0
          %5399 = vmatpush1.bf16.msra.mxu0 0
          %5400 = vmatprep.subr.bf16.mxu0 0
          %5401 = vmatpush1.bf16.msra.mxu0 0
          %5402 = vmatprep.mubr.bf16.mxu0 0
          %5403 = vmatmul.mubr.bf16.gmra.mrb[0].mxu0 %v5308
          %v5404 = vpop.f32.mrb[0].mxu0
          %v5405 = vadd.f32 0.0, %v5404
          %v5406 = vpop.f32.mrb[0].mxu0
          %v5407 = vpop.f32.mrb[0].mxu0
          %v5408 = vadd.f32 0.0, %v5407
          %v5409 = vpop.f32.mrb[0].mxu0
          %5410 = vmatprep.mubr.bf16.mxu0 0
          %5411 = vmatmul.mubr.bf16.gmra.mrb[0].mxu0 %v5310
          %v5412 = vpop.f32.mrb[0].mxu0
          %v5413 = vadd.f32 0.0, %v5412
          %v5414 = vpop.f32.mrb[0].mxu0
          %v5415 = vpop.f32.mrb[0].mxu0
          %v5416 = vadd.f32 0.0, %v5415
          %v5417 = vpop.f32.mrb[0].mxu0
          %5418 = vmatprep.mubr.bf16.mxu0 0
          %5419 = vmatmul.mubr.bf16.gmra.mrb[0].mxu0 %v5312
          %v5420 = vpop.f32.mrb[0].mxu0
          %v5421 = vadd.f32 0.0, %v5420
          %v5422 = vpop.f32.mrb[0].mxu0
          %v5423 = vpop.f32.mrb[0].mxu0
          %v5424 = vadd.f32 0.0, %v5423
          %v5425 = vpop.f32.mrb[0].mxu0
          %5426 = vmatprep.mubr.bf16.mxu0 0
          %5427 = vmatmul.mubr.bf16.gmra.mrb[0].mxu0 %v5314
          %v5428 = vpop.f32.mrb[0].mxu0
          %v5429 = vadd.f32 0.0, %v5428
          %v5430 = vpop.f32.mrb[0].mxu0
          %v5431 = vpop.f32.mrb[0].mxu0
          %v5432 = vadd.f32 0.0, %v5431
          %v5433 = vpop.f32.mrb[0].mxu0
          %5434 = vmatprep.mubr.bf16.mxu0 0
          %5435 = vmatmul.mubr.bf16.gmra.mrb[0].mxu0 %v5316
          %v5436 = vpop.f32.mrb[0].mxu0
          %v5437 = vadd.f32 0.0, %v5436
          %v5438 = vpop.f32.mrb[0].mxu0
          %v5439 = vpop.f32.mrb[0].mxu0
          %v5440 = vadd.f32 0.0, %v5439
          %v5441 = vpop.f32.mrb[0].mxu0
          %5442 = vdwg.mxu0
          %v5443 = vadd.f32 %v5278, %v5405
          %v5444 = vadd.f32 %v5279, %v5408
          %v5445 = vadd.f32 %v5280, %v5413
          %v5446 = vadd.f32 %v5281, %v5416
          %v5447 = vadd.f32 %v5282, %v5421
          %v5448 = vadd.f32 %v5283, %v5424
          %v5449 = vadd.f32 %v5284, %v5429
          %v5450 = vadd.f32 %v5285, %v5432
          %v5451 = vadd.f32 %v5286, %v5437
          %v5452 = vadd.f32 %v5287, %v5440
          %s5453 = scalar_lea.vmem %s1, 832
          %v5454 = vld [vmem:[%s5453] sm:$0xf]
          %v5455 = vld [vmem:[%s5453 + $0x4] sm:$0xf]
          %v5456 = vld [vmem:[%s5453 + $0x8] sm:$0xf]
          %v5457 = vld [vmem:[%s5453 + $0xc] sm:$0xf]
          %v5458 = vld [vmem:[%s5453 + $0x10] sm:$0xf]
          %v5459 = vld [vmem:[%s5453 + $0x14] sm:$0xf]
          %v5460 = vld [vmem:[%s5453 + $0x18] sm:$0xf]
          %v5461 = vld [vmem:[%s5453 + $0x1c] sm:$0xf]
          %v5462 = vld [vmem:[%s5453 + $0x20] sm:$0xf]
          %v5463 = vld [vmem:[%s5453 + $0x24] sm:$0xf]
          %v5464 = vld [vmem:[%s5453 + $0x28] sm:$0xf]
          %v5465 = vld [vmem:[%s5453 + $0x2c] sm:$0xf]
          %v5466 = vld [vmem:[%s5453 + $0x30] sm:$0xf]
          %v5467 = vld [vmem:[%s5453 + $0x34] sm:$0xf]
          %v5468 = vld [vmem:[%s5453 + $0x38] sm:$0xf]
          %v5469 = vld [vmem:[%s5453 + $0x3c] sm:$0xf]
          %vm5470 = vsmask.f32 2304
          %v5471 = vrot.slane %v4828, 5
          %v5472 = vrot.slane %v4830, 6
          %v5473 = vor.u32 %v5471, %v5472
          %v5474 = vrot.slane %v4839, 5
          %v5475 = vrot.slane %v4835, 6
          %v5476 = vor.u32 %v5474, %v5475
          %v5477 = vsel %vm5470, %v5473, %v5476
          %v5478 = vrot.slane %v4847, 5
          %v5479 = vrot.slane %v4843, 6
          %v5480 = vor.u32 %v5478, %v5479
          %v5481 = vsel %vm5470, %v5476, %v5480
          %v5482 = vrot.slane %v4855, 5
          %v5483 = vrot.slane %v4851, 6
          %v5484 = vor.u32 %v5482, %v5483
          %v5485 = vsel %vm5470, %v5480, %v5484
          %v5486 = vrot.slane %v4863, 5
          %v5487 = vrot.slane %v4859, 6
          %v5488 = vor.u32 %v5486, %v5487
          %v5489 = vsel %vm5470, %v5484, %v5488
          %v5490 = vshrl.u32 %v4791, 16
          %v5492 = vrot.slane %v5490, 5
          %v5493 = vrot.slane %v4867, 6
          %v5494 = vor.u32 %v5492, %v5493
          %v5495 = vsel %vm5470, %v5488, %v5494
          %v5517 = vunpack.c.l.b16 %v5454
          %v5518 = vunpack.c.l.b16 %v5455
          %v5519 = vunpack.c.l.b16 %v5456
          %v5520 = vunpack.c.l.b16 %v5457
          %v5521 = vunpack.c.l.b16 %v5458
          %v5522 = vunpack.c.l.b16 %v5459
          %v5523 = vunpack.c.l.b16 %v5460
          %v5524 = vunpack.c.l.b16 %v5461
          %v5525 = vunpack.c.l.b16 %v5462
          %v5526 = vunpack.c.l.b16 %v5463
          %v5527 = vunpack.c.l.b16 %v5464
          %v5528 = vunpack.c.l.b16 %v5465
          %v5529 = vunpack.c.l.b16 %v5466
          %v5530 = vunpack.c.l.b16 %v5467
          %v5531 = vunpack.c.l.b16 %v5468
          %v5532 = vunpack.c.l.b16 %v5469
          %v5533 = vpack.c.b16 %v5518, %v5517
          %v5534 = vpack.c.b16 %v5520, %v5519
          %v5535 = vpack.c.b16 %v5522, %v5521
          %v5536 = vpack.c.b16 %v5524, %v5523
          %v5537 = vpack.c.b16 %v5526, %v5525
          %v5538 = vpack.c.b16 %v5528, %v5527
          %v5539 = vpack.c.b16 %v5530, %v5529
          %v5540 = vpack.c.b16 %v5532, %v5531
          %5549 = vmatprep.subr.bf16.mxu0 0
          %5550 = vmatpush1.bf16.msra.mxu0 %v5533
          %5551 = vmatprep.subr.bf16.mxu0 0
          %5552 = vmatpush1.bf16.msra.mxu0 %v5534
          %5553 = vmatprep.subr.bf16.mxu0 0
          %5554 = vmatpush1.bf16.msra.mxu0 %v5535
          %5555 = vmatprep.subr.bf16.mxu0 0
          %5556 = vmatpush1.bf16.msra.mxu0 %v5536
          %5557 = vmatprep.subr.bf16.mxu0 0
          %5558 = vmatpush1.bf16.msra.mxu0 %v5537
          %5559 = vmatprep.subr.bf16.mxu0 0
          %5560 = vmatpush1.bf16.msra.mxu0 %v5538
          %5561 = vmatprep.subr.bf16.mxu0 0
          %5562 = vmatpush1.bf16.msra.mxu0 %v5539
          %5563 = vmatprep.subr.bf16.mxu0 0
          %5564 = vmatpush1.bf16.msra.mxu0 %v5540
          %5565 = vmatprep.subr.bf16.mxu0 0
          %5566 = vmatpush1.bf16.msra.mxu0 0
          %5567 = vmatprep.subr.bf16.mxu0 0
          %5568 = vmatpush1.bf16.msra.mxu0 0
          %5569 = vmatprep.subr.bf16.mxu0 0
          %5570 = vmatpush1.bf16.msra.mxu0 0
          %5571 = vmatprep.subr.bf16.mxu0 0
          %5572 = vmatpush1.bf16.msra.mxu0 0
          %5573 = vmatprep.subr.bf16.mxu0 0
          %5574 = vmatpush1.bf16.msra.mxu0 0
          %5575 = vmatprep.subr.bf16.mxu0 0
          %5576 = vmatpush1.bf16.msra.mxu0 0
          %5577 = vmatprep.subr.bf16.mxu0 0
          %5578 = vmatpush1.bf16.msra.mxu0 0
          %5579 = vmatprep.subr.bf16.mxu0 0
          %5580 = vmatpush1.bf16.msra.mxu0 0
          %5581 = vmatprep.mubr.bf16.mxu0 0
          %5582 = vmatmul.mubr.bf16.gmra.mrb[0].mxu0 %v5477
          %v5583 = vpop.f32.mrb[0].mxu0
          %v5584 = vadd.f32 0.0, %v5583
          %v5585 = vpop.f32.mrb[0].mxu0
          %v5586 = vpop.f32.mrb[0].mxu0
          %v5587 = vadd.f32 0.0, %v5586
          %v5588 = vpop.f32.mrb[0].mxu0
          %5589 = vmatprep.mubr.bf16.mxu0 0
          %5590 = vmatmul.mubr.bf16.gmra.mrb[0].mxu0 %v5481
          %v5591 = vpop.f32.mrb[0].mxu0
          %v5592 = vadd.f32 0.0, %v5591
          %v5593 = vpop.f32.mrb[0].mxu0
          %v5594 = vpop.f32.mrb[0].mxu0
          %v5595 = vadd.f32 0.0, %v5594
          %v5596 = vpop.f32.mrb[0].mxu0
          %5597 = vmatprep.mubr.bf16.mxu0 0
          %5598 = vmatmul.mubr.bf16.gmra.mrb[0].mxu0 %v5485
          %v5599 = vpop.f32.mrb[0].mxu0
          %v5600 = vadd.f32 0.0, %v5599
          %v5601 = vpop.f32.mrb[0].mxu0
          %v5602 = vpop.f32.mrb[0].mxu0
          %v5603 = vadd.f32 0.0, %v5602
          %v5604 = vpop.f32.mrb[0].mxu0
          %5605 = vmatprep.mubr.bf16.mxu0 0
          %5606 = vmatmul.mubr.bf16.gmra.mrb[0].mxu0 %v5489
          %v5607 = vpop.f32.mrb[0].mxu0
          %v5608 = vadd.f32 0.0, %v5607
          %v5609 = vpop.f32.mrb[0].mxu0
          %v5610 = vpop.f32.mrb[0].mxu0
          %v5611 = vadd.f32 0.0, %v5610
          %v5612 = vpop.f32.mrb[0].mxu0
          %5613 = vmatprep.mubr.bf16.mxu0 0
          %5614 = vmatmul.mubr.bf16.gmra.mrb[0].mxu0 %v5495
          %v5615 = vpop.f32.mrb[0].mxu0
          %v5616 = vadd.f32 0.0, %v5615
          %v5617 = vpop.f32.mrb[0].mxu0
          %v5618 = vpop.f32.mrb[0].mxu0
          %v5619 = vadd.f32 0.0, %v5618
          %v5620 = vpop.f32.mrb[0].mxu0
          %5621 = vdwg.mxu0
          %v5622 = vadd.f32 %v5443, %v5584
          %v5623 = vadd.f32 %v5444, %v5587
          %v5624 = vadd.f32 %v5445, %v5592
          %v5625 = vadd.f32 %v5446, %v5595
          %v5626 = vadd.f32 %v5447, %v5600
          %v5627 = vadd.f32 %v5448, %v5603
          %v5628 = vadd.f32 %v5449, %v5608
          %v5629 = vadd.f32 %v5450, %v5611
          %v5630 = vadd.f32 %v5451, %v5616
          %v5631 = vadd.f32 %v5452, %v5619
          %s5632 = scalar_lea.vmem %s1, 896
          %v5633 = vld [vmem:[%s5632] sm:$0xf]
          %v5634 = vld [vmem:[%s5632 + $0x4] sm:$0xf]
          %v5635 = vld [vmem:[%s5632 + $0x8] sm:$0xf]
          %v5636 = vld [vmem:[%s5632 + $0xc] sm:$0xf]
          %v5637 = vld [vmem:[%s5632 + $0x10] sm:$0xf]
          %v5638 = vld [vmem:[%s5632 + $0x14] sm:$0xf]
          %v5639 = vld [vmem:[%s5632 + $0x18] sm:$0xf]
          %v5640 = vld [vmem:[%s5632 + $0x1c] sm:$0xf]
          %v5641 = vld [vmem:[%s5632 + $0x20] sm:$0xf]
          %v5642 = vld [vmem:[%s5632 + $0x24] sm:$0xf]
          %v5643 = vld [vmem:[%s5632 + $0x28] sm:$0xf]
          %v5644 = vld [vmem:[%s5632 + $0x2c] sm:$0xf]
          %v5645 = vld [vmem:[%s5632 + $0x30] sm:$0xf]
          %v5646 = vld [vmem:[%s5632 + $0x34] sm:$0xf]
          %v5647 = vld [vmem:[%s5632 + $0x38] sm:$0xf]
          %v5648 = vld [vmem:[%s5632 + $0x3c] sm:$0xf]
          %vm5649 = vcmask 1041408
          %v5650 = vrot.slane %v4786, 6
          %v5651 = vrot.slane %v4787, 6
          %v5652 = vsel %vm5649, %v5650, %v5651
          %v5653 = vrot.slane %v4788, 6
          %v5654 = vsel %vm5649, %v5651, %v5653
          %v5655 = vrot.slane %v4789, 6
          %v5656 = vsel %vm5649, %v5653, %v5655
          %v5657 = vrot.slane %v4790, 6
          %v5658 = vsel %vm5649, %v5655, %v5657
          %v5659 = vrot.slane %v4791, 6
          %v5660 = vsel %vm5649, %v5657, %v5659
          %v5682 = vunpack.c.l.b16 %v5633
          %v5683 = vunpack.c.l.b16 %v5634
          %v5684 = vunpack.c.l.b16 %v5635
          %v5685 = vunpack.c.l.b16 %v5636
          %v5686 = vunpack.c.l.b16 %v5637
          %v5687 = vunpack.c.l.b16 %v5638
          %v5688 = vunpack.c.l.b16 %v5639
          %v5689 = vunpack.c.l.b16 %v5640
          %v5690 = vunpack.c.l.b16 %v5641
          %v5691 = vunpack.c.l.b16 %v5642
          %v5692 = vunpack.c.l.b16 %v5643
          %v5693 = vunpack.c.l.b16 %v5644
          %v5694 = vunpack.c.l.b16 %v5645
          %v5695 = vunpack.c.l.b16 %v5646
          %v5696 = vunpack.c.l.b16 %v5647
          %v5697 = vunpack.c.l.b16 %v5648
          %v5698 = vpack.c.b16 %v5683, %v5682
          %v5699 = vpack.c.b16 %v5685, %v5684
          %v5700 = vpack.c.b16 %v5687, %v5686
          %v5701 = vpack.c.b16 %v5689, %v5688
          %v5702 = vpack.c.b16 %v5691, %v5690
          %v5703 = vpack.c.b16 %v5693, %v5692
          %v5704 = vpack.c.b16 %v5695, %v5694
          %v5705 = vpack.c.b16 %v5697, %v5696
          %5714 = vmatprep.subr.bf16.mxu0 0
          %5715 = vmatpush1.bf16.msra.mxu0 %v5698
          %5716 = vmatprep.subr.bf16.mxu0 0
          %5717 = vmatpush1.bf16.msra.mxu0 %v5699
          %5718 = vmatprep.subr.bf16.mxu0 0
          %5719 = vmatpush1.bf16.msra.mxu0 %v5700
          %5720 = vmatprep.subr.bf16.mxu0 0
          %5721 = vmatpush1.bf16.msra.mxu0 %v5701
          %5722 = vmatprep.subr.bf16.mxu0 0
          %5723 = vmatpush1.bf16.msra.mxu0 %v5702
          %5724 = vmatprep.subr.bf16.mxu0 0
          %5725 = vmatpush1.bf16.msra.mxu0 %v5703
          %5726 = vmatprep.subr.bf16.mxu0 0
          %5727 = vmatpush1.bf16.msra.mxu0 %v5704
          %5728 = vmatprep.subr.bf16.mxu0 0
          %5729 = vmatpush1.bf16.msra.mxu0 %v5705
          %5730 = vmatprep.subr.bf16.mxu0 0
          %5731 = vmatpush1.bf16.msra.mxu0 0
          %5732 = vmatprep.subr.bf16.mxu0 0
          %5733 = vmatpush1.bf16.msra.mxu0 0
          %5734 = vmatprep.subr.bf16.mxu0 0
          %5735 = vmatpush1.bf16.msra.mxu0 0
          %5736 = vmatprep.subr.bf16.mxu0 0
          %5737 = vmatpush1.bf16.msra.mxu0 0
          %5738 = vmatprep.subr.bf16.mxu0 0
          %5739 = vmatpush1.bf16.msra.mxu0 0
          %5740 = vmatprep.subr.bf16.mxu0 0
          %5741 = vmatpush1.bf16.msra.mxu0 0
          %5742 = vmatprep.subr.bf16.mxu0 0
          %5743 = vmatpush1.bf16.msra.mxu0 0
          %5744 = vmatprep.subr.bf16.mxu0 0
          %5745 = vmatpush1.bf16.msra.mxu0 0
          %5746 = vmatprep.mubr.bf16.mxu0 0
          %5747 = vmatmul.mubr.bf16.gmra.mrb[0].mxu0 %v5652
          %v5748 = vpop.f32.mrb[0].mxu0
          %v5749 = vadd.f32 0.0, %v5748
          %v5750 = vpop.f32.mrb[0].mxu0
          %v5751 = vpop.f32.mrb[0].mxu0
          %v5752 = vadd.f32 0.0, %v5751
          %v5753 = vpop.f32.mrb[0].mxu0
          %5754 = vmatprep.mubr.bf16.mxu0 0
          %5755 = vmatmul.mubr.bf16.gmra.mrb[0].mxu0 %v5654
          %v5756 = vpop.f32.mrb[0].mxu0
          %v5757 = vadd.f32 0.0, %v5756
          %v5758 = vpop.f32.mrb[0].mxu0
          %v5759 = vpop.f32.mrb[0].mxu0
          %v5760 = vadd.f32 0.0, %v5759
          %v5761 = vpop.f32.mrb[0].mxu0
          %5762 = vmatprep.mubr.bf16.mxu0 0
          %5763 = vmatmul.mubr.bf16.gmra.mrb[0].mxu0 %v5656
          %v5764 = vpop.f32.mrb[0].mxu0
          %v5765 = vadd.f32 0.0, %v5764
          %v5766 = vpop.f32.mrb[0].mxu0
          %v5767 = vpop.f32.mrb[0].mxu0
          %v5768 = vadd.f32 0.0, %v5767
          %v5769 = vpop.f32.mrb[0].mxu0
          %5770 = vmatprep.mubr.bf16.mxu0 0
          %5771 = vmatmul.mubr.bf16.gmra.mrb[0].mxu0 %v5658
          %v5772 = vpop.f32.mrb[0].mxu0
          %v5773 = vadd.f32 0.0, %v5772
          %v5774 = vpop.f32.mrb[0].mxu0
          %v5775 = vpop.f32.mrb[0].mxu0
          %v5776 = vadd.f32 0.0, %v5775
          %v5777 = vpop.f32.mrb[0].mxu0
          %5778 = vmatprep.mubr.bf16.mxu0 0
          %5779 = vmatmul.mubr.bf16.gmra.mrb[0].mxu0 %v5660
          %v5780 = vpop.f32.mrb[0].mxu0
          %v5781 = vadd.f32 0.0, %v5780
          %v5782 = vpop.f32.mrb[0].mxu0
          %v5783 = vpop.f32.mrb[0].mxu0
          %v5784 = vadd.f32 0.0, %v5783
          %v5785 = vpop.f32.mrb[0].mxu0
          %5786 = vdwg.mxu0
          %v5787 = vadd.f32 %v5622, %v5749
          %v5788 = vadd.f32 %v5623, %v5752
          %v5789 = vadd.f32 %v5624, %v5757
          %v5790 = vadd.f32 %v5625, %v5760
          %v5791 = vadd.f32 %v5626, %v5765
          %v5792 = vadd.f32 %v5627, %v5768
          %v5793 = vadd.f32 %v5628, %v5773
          %v5794 = vadd.f32 %v5629, %v5776
          %v5795 = vadd.f32 %v5630, %v5781
          %v5796 = vadd.f32 %v5631, %v5784
          %s5797 = scalar_lea.vmem %s1, 960
          %v5798 = vld [vmem:[%s5797] sm:$0xf]
          %v5799 = vld [vmem:[%s5797 + $0x4] sm:$0xf]
          %v5800 = vld [vmem:[%s5797 + $0x8] sm:$0xf]
          %v5801 = vld [vmem:[%s5797 + $0xc] sm:$0xf]
          %v5802 = vld [vmem:[%s5797 + $0x10] sm:$0xf]
          %v5803 = vld [vmem:[%s5797 + $0x14] sm:$0xf]
          %v5804 = vld [vmem:[%s5797 + $0x18] sm:$0xf]
          %v5805 = vld [vmem:[%s5797 + $0x1c] sm:$0xf]
          %v5806 = vld [vmem:[%s5797 + $0x20] sm:$0xf]
          %v5807 = vld [vmem:[%s5797 + $0x24] sm:$0xf]
          %v5808 = vld [vmem:[%s5797 + $0x28] sm:$0xf]
          %v5809 = vld [vmem:[%s5797 + $0x2c] sm:$0xf]
          %v5810 = vld [vmem:[%s5797 + $0x30] sm:$0xf]
          %v5811 = vld [vmem:[%s5797 + $0x34] sm:$0xf]
          %v5812 = vld [vmem:[%s5797 + $0x38] sm:$0xf]
          %v5813 = vld [vmem:[%s5797 + $0x3c] sm:$0xf]
          %v5815 = vrot.slane %v4787, 2
          %v5816 = vrot.slane %v4788, 2
          %v5817 = vsel %vm2118, %v5815, %v5816
          %v5818 = vrot.slane %v4789, 2
          %v5819 = vsel %vm2118, %v5816, %v5818
          %v5820 = vrot.slane %v4790, 2
          %v5821 = vsel %vm2118, %v5818, %v5820
          %v5822 = vrot.slane %v4791, 2
          %v5823 = vsel %vm2118, %v5820, %v5822
          %v5824 = vrot.slane %v4792, 2
          %v5825 = vsel %vm2118, %v5822, %v5824
          %v5847 = vunpack.c.l.b16 %v5798
          %v5848 = vunpack.c.l.b16 %v5799
          %v5849 = vunpack.c.l.b16 %v5800
          %v5850 = vunpack.c.l.b16 %v5801
          %v5851 = vunpack.c.l.b16 %v5802
          %v5852 = vunpack.c.l.b16 %v5803
          %v5853 = vunpack.c.l.b16 %v5804
          %v5854 = vunpack.c.l.b16 %v5805
          %v5855 = vunpack.c.l.b16 %v5806
          %v5856 = vunpack.c.l.b16 %v5807
          %v5857 = vunpack.c.l.b16 %v5808
          %v5858 = vunpack.c.l.b16 %v5809
          %v5859 = vunpack.c.l.b16 %v5810
          %v5860 = vunpack.c.l.b16 %v5811
          %v5861 = vunpack.c.l.b16 %v5812
          %v5862 = vunpack.c.l.b16 %v5813
          %v5863 = vpack.c.b16 %v5848, %v5847
          %v5864 = vpack.c.b16 %v5850, %v5849
          %v5865 = vpack.c.b16 %v5852, %v5851
          %v5866 = vpack.c.b16 %v5854, %v5853
          %v5867 = vpack.c.b16 %v5856, %v5855
          %v5868 = vpack.c.b16 %v5858, %v5857
          %v5869 = vpack.c.b16 %v5860, %v5859
          %v5870 = vpack.c.b16 %v5862, %v5861
          %5879 = vmatprep.subr.bf16.mxu0 0
          %5880 = vmatpush1.bf16.msra.mxu0 %v5863
          %5881 = vmatprep.subr.bf16.mxu0 0
          %5882 = vmatpush1.bf16.msra.mxu0 %v5864
          %5883 = vmatprep.subr.bf16.mxu0 0
          %5884 = vmatpush1.bf16.msra.mxu0 %v5865
          %5885 = vmatprep.subr.bf16.mxu0 0
          %5886 = vmatpush1.bf16.msra.mxu0 %v5866
          %5887 = vmatprep.subr.bf16.mxu0 0
          %5888 = vmatpush1.bf16.msra.mxu0 %v5867
          %5889 = vmatprep.subr.bf16.mxu0 0
          %5890 = vmatpush1.bf16.msra.mxu0 %v5868
          %5891 = vmatprep.subr.bf16.mxu0 0
          %5892 = vmatpush1.bf16.msra.mxu0 %v5869
          %5893 = vmatprep.subr.bf16.mxu0 0
          %5894 = vmatpush1.bf16.msra.mxu0 %v5870
          %5895 = vmatprep.subr.bf16.mxu0 0
          %5896 = vmatpush1.bf16.msra.mxu0 0
          %5897 = vmatprep.subr.bf16.mxu0 0
          %5898 = vmatpush1.bf16.msra.mxu0 0
          %5899 = vmatprep.subr.bf16.mxu0 0
          %5900 = vmatpush1.bf16.msra.mxu0 0
          %5901 = vmatprep.subr.bf16.mxu0 0
          %5902 = vmatpush1.bf16.msra.mxu0 0
          %5903 = vmatprep.subr.bf16.mxu0 0
          %5904 = vmatpush1.bf16.msra.mxu0 0
          %5905 = vmatprep.subr.bf16.mxu0 0
          %5906 = vmatpush1.bf16.msra.mxu0 0
          %5907 = vmatprep.subr.bf16.mxu0 0
          %5908 = vmatpush1.bf16.msra.mxu0 0
          %5909 = vmatprep.subr.bf16.mxu0 0
          %5910 = vmatpush1.bf16.msra.mxu0 0
          %5911 = vmatprep.mubr.bf16.mxu0 0
          %5912 = vmatmul.mubr.bf16.gmra.mrb[0].mxu0 %v5817
          %v5913 = vpop.f32.mrb[0].mxu0
          %v5914 = vadd.f32 0.0, %v5913
          %v5915 = vpop.f32.mrb[0].mxu0
          %v5916 = vpop.f32.mrb[0].mxu0
          %v5917 = vadd.f32 0.0, %v5916
          %v5918 = vpop.f32.mrb[0].mxu0
          %5919 = vmatprep.mubr.bf16.mxu0 0
          %5920 = vmatmul.mubr.bf16.gmra.mrb[0].mxu0 %v5819
          %v5921 = vpop.f32.mrb[0].mxu0
          %v5922 = vadd.f32 0.0, %v5921
          %v5923 = vpop.f32.mrb[0].mxu0
          %v5924 = vpop.f32.mrb[0].mxu0
          %v5925 = vadd.f32 0.0, %v5924
          %v5926 = vpop.f32.mrb[0].mxu0
          %5927 = vmatprep.mubr.bf16.mxu0 0
          %5928 = vmatmul.mubr.bf16.gmra.mrb[0].mxu0 %v5821
          %v5929 = vpop.f32.mrb[0].mxu0
          %v5930 = vadd.f32 0.0, %v5929
          %v5931 = vpop.f32.mrb[0].mxu0
          %v5932 = vpop.f32.mrb[0].mxu0
          %v5933 = vadd.f32 0.0, %v5932
          %v5934 = vpop.f32.mrb[0].mxu0
          %5935 = vmatprep.mubr.bf16.mxu0 0
          %5936 = vmatmul.mubr.bf16.gmra.mrb[0].mxu0 %v5823
          %v5937 = vpop.f32.mrb[0].mxu0
          %v5938 = vadd.f32 0.0, %v5937
          %v5939 = vpop.f32.mrb[0].mxu0
          %v5940 = vpop.f32.mrb[0].mxu0
          %v5941 = vadd.f32 0.0, %v5940
          %v5942 = vpop.f32.mrb[0].mxu0
          %5943 = vmatprep.mubr.bf16.mxu0 0
          %5944 = vmatmul.mubr.bf16.gmra.mrb[0].mxu0 %v5825
          %v5945 = vpop.f32.mrb[0].mxu0
          %v5946 = vadd.f32 0.0, %v5945
          %v5947 = vpop.f32.mrb[0].mxu0
          %v5948 = vpop.f32.mrb[0].mxu0
          %v5949 = vadd.f32 0.0, %v5948
          %v5950 = vpop.f32.mrb[0].mxu0
          %5951 = vdwg.mxu0
          %v5952 = vadd.f32 %v5787, %v5914
          %v5953 = vadd.f32 %v5788, %v5917
          %v5954 = vadd.f32 %v5789, %v5922
          %v5955 = vadd.f32 %v5790, %v5925
          %v5956 = vadd.f32 %v5791, %v5930
          %v5957 = vadd.f32 %v5792, %v5933
          %v5958 = vadd.f32 %v5793, %v5938
          %v5959 = vadd.f32 %v5794, %v5941
          %v5960 = vadd.f32 %v5795, %v5946
          %v5961 = vadd.f32 %v5796, %v5949
          %s5962 = scalar_lea.vmem %s1, 1024
          %v5963 = vld [vmem:[%s5962] sm:$0xf]
          %v5964 = vld [vmem:[%s5962 + $0x4] sm:$0xf]
          %v5965 = vld [vmem:[%s5962 + $0x8] sm:$0xf]
          %v5966 = vld [vmem:[%s5962 + $0xc] sm:$0xf]
          %v5967 = vld [vmem:[%s5962 + $0x10] sm:$0xf]
          %v5968 = vld [vmem:[%s5962 + $0x14] sm:$0xf]
          %v5969 = vld [vmem:[%s5962 + $0x18] sm:$0xf]
          %v5970 = vld [vmem:[%s5962 + $0x1c] sm:$0xf]
          %v5971 = vld [vmem:[%s5962 + $0x20] sm:$0xf]
          %v5972 = vld [vmem:[%s5962 + $0x24] sm:$0xf]
          %v5973 = vld [vmem:[%s5962 + $0x28] sm:$0xf]
          %v5974 = vld [vmem:[%s5962 + $0x2c] sm:$0xf]
          %v5975 = vld [vmem:[%s5962 + $0x30] sm:$0xf]
          %v5976 = vld [vmem:[%s5962 + $0x34] sm:$0xf]
          %v5977 = vld [vmem:[%s5962 + $0x38] sm:$0xf]
          %v5978 = vld [vmem:[%s5962 + $0x3c] sm:$0xf]
          %v5979 = vrot.slane %v4839, 2
          %v5980 = vrot.slane %v4835, 3
          %v5981 = vor.u32 %v5979, %v5980
          %v5982 = vrot.slane %v4847, 2
          %v5983 = vrot.slane %v4843, 3
          %v5984 = vor.u32 %v5982, %v5983
          %v5985 = vsel %vm2742, %v5981, %v5984
          %v5986 = vrot.slane %v4855, 2
          %v5987 = vrot.slane %v4851, 3
          %v5988 = vor.u32 %v5986, %v5987
          %v5989 = vsel %vm2742, %v5984, %v5988
          %v5990 = vrot.slane %v4863, 2
          %v5991 = vrot.slane %v4859, 3
          %v5992 = vor.u32 %v5990, %v5991
          %v5993 = vsel %vm2742, %v5988, %v5992
          %v5994 = vrot.slane %v5490, 2
          %v5995 = vrot.slane %v4867, 3
          %v5996 = vor.u32 %v5994, %v5995
          %v5997 = vsel %vm2742, %v5992, %v5996
          %v5999 = vshrl.u32 %v4792, 16
          %v6001 = vrot.slane %v5999, 2
          %v6002 = vshll.u32 %v4792, 16
          %v6004 = vrot.slane %v6002, 3
          %v6005 = vor.u32 %v6001, %v6004
          %v6006 = vsel %vm2742, %v5996, %v6005
          %v6028 = vunpack.c.l.b16 %v5963
          %v6029 = vunpack.c.l.b16 %v5964
          %v6030 = vunpack.c.l.b16 %v5965
          %v6031 = vunpack.c.l.b16 %v5966
          %v6032 = vunpack.c.l.b16 %v5967
          %v6033 = vunpack.c.l.b16 %v5968
          %v6034 = vunpack.c.l.b16 %v5969
          %v6035 = vunpack.c.l.b16 %v5970
          %v6036 = vunpack.c.l.b16 %v5971
          %v6037 = vunpack.c.l.b16 %v5972
          %v6038 = vunpack.c.l.b16 %v5973
          %v6039 = vunpack.c.l.b16 %v5974
          %v6040 = vunpack.c.l.b16 %v5975
          %v6041 = vunpack.c.l.b16 %v5976
          %v6042 = vunpack.c.l.b16 %v5977
          %v6043 = vunpack.c.l.b16 %v5978
          %v6044 = vpack.c.b16 %v6029, %v6028
          %v6045 = vpack.c.b16 %v6031, %v6030
          %v6046 = vpack.c.b16 %v6033, %v6032
          %v6047 = vpack.c.b16 %v6035, %v6034
          %v6048 = vpack.c.b16 %v6037, %v6036
          %v6049 = vpack.c.b16 %v6039, %v6038
          %v6050 = vpack.c.b16 %v6041, %v6040
          %v6051 = vpack.c.b16 %v6043, %v6042
          %6060 = vmatprep.subr.bf16.mxu0 0
          %6061 = vmatpush1.bf16.msra.mxu0 %v6044
          %6062 = vmatprep.subr.bf16.mxu0 0
          %6063 = vmatpush1.bf16.msra.mxu0 %v6045
          %6064 = vmatprep.subr.bf16.mxu0 0
          %6065 = vmatpush1.bf16.msra.mxu0 %v6046
          %6066 = vmatprep.subr.bf16.mxu0 0
          %6067 = vmatpush1.bf16.msra.mxu0 %v6047
          %6068 = vmatprep.subr.bf16.mxu0 0
          %6069 = vmatpush1.bf16.msra.mxu0 %v6048
          %6070 = vmatprep.subr.bf16.mxu0 0
          %6071 = vmatpush1.bf16.msra.mxu0 %v6049
          %6072 = vmatprep.subr.bf16.mxu0 0
          %6073 = vmatpush1.bf16.msra.mxu0 %v6050
          %6074 = vmatprep.subr.bf16.mxu0 0
          %6075 = vmatpush1.bf16.msra.mxu0 %v6051
          %6076 = vmatprep.subr.bf16.mxu0 0
          %6077 = vmatpush1.bf16.msra.mxu0 0
          %6078 = vmatprep.subr.bf16.mxu0 0
          %6079 = vmatpush1.bf16.msra.mxu0 0
          %6080 = vmatprep.subr.bf16.mxu0 0
          %6081 = vmatpush1.bf16.msra.mxu0 0
          %6082 = vmatprep.subr.bf16.mxu0 0
          %6083 = vmatpush1.bf16.msra.mxu0 0
          %6084 = vmatprep.subr.bf16.mxu0 0
          %6085 = vmatpush1.bf16.msra.mxu0 0
          %6086 = vmatprep.subr.bf16.mxu0 0
          %6087 = vmatpush1.bf16.msra.mxu0 0
          %6088 = vmatprep.subr.bf16.mxu0 0
          %6089 = vmatpush1.bf16.msra.mxu0 0
          %6090 = vmatprep.subr.bf16.mxu0 0
          %6091 = vmatpush1.bf16.msra.mxu0 0
          %6092 = vmatprep.mubr.bf16.mxu0 0
          %6093 = vmatmul.mubr.bf16.gmra.mrb[0].mxu0 %v5985
          %v6094 = vpop.f32.mrb[0].mxu0
          %v6095 = vadd.f32 0.0, %v6094
          %v6096 = vpop.f32.mrb[0].mxu0
          %v6097 = vpop.f32.mrb[0].mxu0
          %v6098 = vadd.f32 0.0, %v6097
          %v6099 = vpop.f32.mrb[0].mxu0
          %6100 = vmatprep.mubr.bf16.mxu0 0
          %6101 = vmatmul.mubr.bf16.gmra.mrb[0].mxu0 %v5989
          %v6102 = vpop.f32.mrb[0].mxu0
          %v6103 = vadd.f32 0.0, %v6102
          %v6104 = vpop.f32.mrb[0].mxu0
          %v6105 = vpop.f32.mrb[0].mxu0
          %v6106 = vadd.f32 0.0, %v6105
          %v6107 = vpop.f32.mrb[0].mxu0
          %6108 = vmatprep.mubr.bf16.mxu0 0
          %6109 = vmatmul.mubr.bf16.gmra.mrb[0].mxu0 %v5993
          %v6110 = vpop.f32.mrb[0].mxu0
          %v6111 = vadd.f32 0.0, %v6110
          %v6112 = vpop.f32.mrb[0].mxu0
          %v6113 = vpop.f32.mrb[0].mxu0
          %v6114 = vadd.f32 0.0, %v6113
          %v6115 = vpop.f32.mrb[0].mxu0
          %6116 = vmatprep.mubr.bf16.mxu0 0
          %6117 = vmatmul.mubr.bf16.gmra.mrb[0].mxu0 %v5997
          %v6118 = vpop.f32.mrb[0].mxu0
          %v6119 = vadd.f32 0.0, %v6118
          %v6120 = vpop.f32.mrb[0].mxu0
          %v6121 = vpop.f32.mrb[0].mxu0
          %v6122 = vadd.f32 0.0, %v6121
          %v6123 = vpop.f32.mrb[0].mxu0
          %6124 = vmatprep.mubr.bf16.mxu0 0
          %6125 = vmatmul.mubr.bf16.gmra.mrb[0].mxu0 %v6006
          %v6126 = vpop.f32.mrb[0].mxu0
          %v6127 = vadd.f32 0.0, %v6126
          %v6128 = vpop.f32.mrb[0].mxu0
          %v6129 = vpop.f32.mrb[0].mxu0
          %v6130 = vadd.f32 0.0, %v6129
          %v6131 = vpop.f32.mrb[0].mxu0
          %6132 = vdwg.mxu0
          %v6133 = vadd.f32 %v5952, %v6095
          %v6134 = vadd.f32 %v5953, %v6098
          %v6135 = vadd.f32 %v5954, %v6103
          %v6136 = vadd.f32 %v5955, %v6106
          %v6137 = vadd.f32 %v5956, %v6111
          %v6138 = vadd.f32 %v5957, %v6114
          %v6139 = vadd.f32 %v5958, %v6119
          %v6140 = vadd.f32 %v5959, %v6122
          %v6141 = vadd.f32 %v5960, %v6127
          %v6142 = vadd.f32 %v5961, %v6130
          %s6143 = scalar_lea.vmem %s1, 1088
          %v6144 = vld [vmem:[%s6143] sm:$0xf]
          %v6145 = vld [vmem:[%s6143 + $0x4] sm:$0xf]
          %v6146 = vld [vmem:[%s6143 + $0x8] sm:$0xf]
          %v6147 = vld [vmem:[%s6143 + $0xc] sm:$0xf]
          %v6148 = vld [vmem:[%s6143 + $0x10] sm:$0xf]
          %v6149 = vld [vmem:[%s6143 + $0x14] sm:$0xf]
          %v6150 = vld [vmem:[%s6143 + $0x18] sm:$0xf]
          %v6151 = vld [vmem:[%s6143 + $0x1c] sm:$0xf]
          %v6152 = vld [vmem:[%s6143 + $0x20] sm:$0xf]
          %v6153 = vld [vmem:[%s6143 + $0x24] sm:$0xf]
          %v6154 = vld [vmem:[%s6143 + $0x28] sm:$0xf]
          %v6155 = vld [vmem:[%s6143 + $0x2c] sm:$0xf]
          %v6156 = vld [vmem:[%s6143 + $0x30] sm:$0xf]
          %v6157 = vld [vmem:[%s6143 + $0x34] sm:$0xf]
          %v6158 = vld [vmem:[%s6143 + $0x38] sm:$0xf]
          %v6159 = vld [vmem:[%s6143 + $0x3c] sm:$0xf]
          %v6160 = vrot.slane %v4787, 3
          %v6161 = vrot.slane %v4788, 3
          %v6162 = vsel %vm3124, %v6160, %v6161
          %v6163 = vrot.slane %v4789, 3
          %v6164 = vsel %vm3124, %v6161, %v6163
          %v6165 = vrot.slane %v4790, 3
          %v6166 = vsel %vm3124, %v6163, %v6165
          %v6167 = vrot.slane %v4791, 3
          %v6168 = vsel %vm3124, %v6165, %v6167
          %v6169 = vrot.slane %v4792, 3
          %v6170 = vsel %vm3124, %v6167, %v6169
          %v6192 = vunpack.c.l.b16 %v6144
          %v6193 = vunpack.c.l.b16 %v6145
          %v6194 = vunpack.c.l.b16 %v6146
          %v6195 = vunpack.c.l.b16 %v6147
          %v6196 = vunpack.c.l.b16 %v6148
          %v6197 = vunpack.c.l.b16 %v6149
          %v6198 = vunpack.c.l.b16 %v6150
          %v6199 = vunpack.c.l.b16 %v6151
          %v6200 = vunpack.c.l.b16 %v6152
          %v6201 = vunpack.c.l.b16 %v6153
          %v6202 = vunpack.c.l.b16 %v6154
          %v6203 = vunpack.c.l.b16 %v6155
          %v6204 = vunpack.c.l.b16 %v6156
          %v6205 = vunpack.c.l.b16 %v6157
          %v6206 = vunpack.c.l.b16 %v6158
          %v6207 = vunpack.c.l.b16 %v6159
          %v6208 = vpack.c.b16 %v6193, %v6192
          %v6209 = vpack.c.b16 %v6195, %v6194
          %v6210 = vpack.c.b16 %v6197, %v6196
          %v6211 = vpack.c.b16 %v6199, %v6198
          %v6212 = vpack.c.b16 %v6201, %v6200
          %v6213 = vpack.c.b16 %v6203, %v6202
          %v6214 = vpack.c.b16 %v6205, %v6204
          %v6215 = vpack.c.b16 %v6207, %v6206
          %6224 = vmatprep.subr.bf16.mxu0 0
          %6225 = vmatpush1.bf16.msra.mxu0 %v6208
          %6226 = vmatprep.subr.bf16.mxu0 0
          %6227 = vmatpush1.bf16.msra.mxu0 %v6209
          %6228 = vmatprep.subr.bf16.mxu0 0
          %6229 = vmatpush1.bf16.msra.mxu0 %v6210
          %6230 = vmatprep.subr.bf16.mxu0 0
          %6231 = vmatpush1.bf16.msra.mxu0 %v6211
          %6232 = vmatprep.subr.bf16.mxu0 0
          %6233 = vmatpush1.bf16.msra.mxu0 %v6212
          %6234 = vmatprep.subr.bf16.mxu0 0
          %6235 = vmatpush1.bf16.msra.mxu0 %v6213
          %6236 = vmatprep.subr.bf16.mxu0 0
          %6237 = vmatpush1.bf16.msra.mxu0 %v6214
          %6238 = vmatprep.subr.bf16.mxu0 0
          %6239 = vmatpush1.bf16.msra.mxu0 %v6215
          %6240 = vmatprep.subr.bf16.mxu0 0
          %6241 = vmatpush1.bf16.msra.mxu0 0
          %6242 = vmatprep.subr.bf16.mxu0 0
          %6243 = vmatpush1.bf16.msra.mxu0 0
          %6244 = vmatprep.subr.bf16.mxu0 0
          %6245 = vmatpush1.bf16.msra.mxu0 0
          %6246 = vmatprep.subr.bf16.mxu0 0
          %6247 = vmatpush1.bf16.msra.mxu0 0
          %6248 = vmatprep.subr.bf16.mxu0 0
          %6249 = vmatpush1.bf16.msra.mxu0 0
          %6250 = vmatprep.subr.bf16.mxu0 0
          %6251 = vmatpush1.bf16.msra.mxu0 0
          %6252 = vmatprep.subr.bf16.mxu0 0
          %6253 = vmatpush1.bf16.msra.mxu0 0
          %6254 = vmatprep.subr.bf16.mxu0 0
          %6255 = vmatpush1.bf16.msra.mxu0 0
          %6256 = vmatprep.mubr.bf16.mxu0 0
          %6257 = vmatmul.mubr.bf16.gmra.mrb[0].mxu0 %v6162
          %v6258 = vpop.f32.mrb[0].mxu0
          %v6259 = vadd.f32 0.0, %v6258
          %v6260 = vpop.f32.mrb[0].mxu0
          %v6261 = vpop.f32.mrb[0].mxu0
          %v6262 = vadd.f32 0.0, %v6261
          %v6263 = vpop.f32.mrb[0].mxu0
          %6264 = vmatprep.mubr.bf16.mxu0 0
          %6265 = vmatmul.mubr.bf16.gmra.mrb[0].mxu0 %v6164
          %v6266 = vpop.f32.mrb[0].mxu0
          %v6267 = vadd.f32 0.0, %v6266
          %v6268 = vpop.f32.mrb[0].mxu0
          %v6269 = vpop.f32.mrb[0].mxu0
          %v6270 = vadd.f32 0.0, %v6269
          %v6271 = vpop.f32.mrb[0].mxu0
          %6272 = vmatprep.mubr.bf16.mxu0 0
          %6273 = vmatmul.mubr.bf16.gmra.mrb[0].mxu0 %v6166
          %v6274 = vpop.f32.mrb[0].mxu0
          %v6275 = vadd.f32 0.0, %v6274
          %v6276 = vpop.f32.mrb[0].mxu0
          %v6277 = vpop.f32.mrb[0].mxu0
          %v6278 = vadd.f32 0.0, %v6277
          %v6279 = vpop.f32.mrb[0].mxu0
          %6280 = vmatprep.mubr.bf16.mxu0 0
          %6281 = vmatmul.mubr.bf16.gmra.mrb[0].mxu0 %v6168
          %v6282 = vpop.f32.mrb[0].mxu0
          %v6283 = vadd.f32 0.0, %v6282
          %v6284 = vpop.f32.mrb[0].mxu0
          %v6285 = vpop.f32.mrb[0].mxu0
          %v6286 = vadd.f32 0.0, %v6285
          %v6287 = vpop.f32.mrb[0].mxu0
          %6288 = vmatprep.mubr.bf16.mxu0 0
          %6289 = vmatmul.mubr.bf16.gmra.mrb[0].mxu0 %v6170
          %v6290 = vpop.f32.mrb[0].mxu0
          %v6291 = vadd.f32 0.0, %v6290
          %v6292 = vpop.f32.mrb[0].mxu0
          %v6293 = vpop.f32.mrb[0].mxu0
          %v6294 = vadd.f32 0.0, %v6293
          %v6295 = vpop.f32.mrb[0].mxu0
          %6296 = vdwg.mxu0
          %v6297 = vadd.f32 %v6133, %v6259
          %v6298 = vadd.f32 %v6134, %v6262
          %v6299 = vadd.f32 %v6135, %v6267
          %v6300 = vadd.f32 %v6136, %v6270
          %v6301 = vadd.f32 %v6137, %v6275
          %v6302 = vadd.f32 %v6138, %v6278
          %v6303 = vadd.f32 %v6139, %v6283
          %v6304 = vadd.f32 %v6140, %v6286
          %v6305 = vadd.f32 %v6141, %v6291
          %v6306 = vadd.f32 %v6142, %v6294
          %s6307 = scalar_lea.vmem %s2, 1
          %v6308 = vld [vmem:[%s6307] sm:$0x1]
          %v6310 = vlaneseq
          %v6311 = vshrl.u32 %v6310, 7
          %v6312 = vsub.s32 0, %v6311
          %v6313 = vrot.slane %v6308, %v6312
          %v6315 = vadd.f32 %v6297, %v6313
          %v6316 = vadd.f32 %v6298, %v6313
          %v6317 = vadd.f32 %v6299, %v6313
          %v6318 = vadd.f32 %v6300, %v6313
          %v6319 = vadd.f32 %v6301, %v6313
          %v6320 = vadd.f32 %v6302, %v6313
          %v6321 = vadd.f32 %v6303, %v6313
          %v6322 = vadd.f32 %v6304, %v6313
          %v6323 = vadd.f32 %v6305, %v6313
          %v6324 = vadd.f32 %v6306, %v6313
          %v6325 = vmax.f32 %v6315, 0.0
          %v6326 = vmax.f32 %v6316, 0.0
          %v6327 = vmax.f32 %v6317, 0.0
          %v6328 = vmax.f32 %v6318, 0.0
          %v6329 = vmax.f32 %v6319, 0.0
          %v6330 = vmax.f32 %v6320, 0.0
          %v6331 = vmax.f32 %v6321, 0.0
          %v6332 = vmax.f32 %v6322, 0.0
          %v6333 = vmax.f32 %v6323, 0.0
          %v6334 = vmax.f32 %v6324, 0.0
          %v6335 = vpack.c.bf16 %v6326, %v6325
          %v6336 = vpack.c.bf16 %v6328, %v6327
          %v6337 = vpack.c.bf16 %v6330, %v6329
          %v6338 = vpack.c.bf16 %v6332, %v6331
          %v6339 = vpack.c.bf16 %v6334, %v6333
          %v6340 = vld [vmem:[%s4] sm:$0xf]
          %v6341 = vld [vmem:[%s4 + $0x4] sm:$0xf]
          %v6342 = vld [vmem:[%s4 + $0x8] sm:$0xf]
          %v6343 = vld [vmem:[%s4 + $0xc] sm:$0xf]
          %v6344 = vld [vmem:[%s4 + $0x10] sm:$0xf]
          %v6345 = vld [vmem:[%s4 + $0x14] sm:$0xf]
          %v6346 = vld [vmem:[%s4 + $0x18] sm:$0xf]
          %v6347 = vld [vmem:[%s4 + $0x1c] sm:$0xf]
          %v6348 = vld [vmem:[%s4 + $0x20] sm:$0xf]
          %v6349 = vld [vmem:[%s4 + $0x24] sm:$0xf]
          %v6350 = vld [vmem:[%s4 + $0x28] sm:$0xf]
          %v6351 = vld [vmem:[%s4 + $0x2c] sm:$0xf]
          %v6352 = vld [vmem:[%s4 + $0x30] sm:$0xf]
          %v6353 = vld [vmem:[%s4 + $0x34] sm:$0xf]
          %v6354 = vld [vmem:[%s4 + $0x38] sm:$0xf]
          %v6355 = vld [vmem:[%s4 + $0x3c] sm:$0xf]
          %v6356 = vld [vmem:[%s4 + $0x40] sm:$0xf]
          %v6357 = vld [vmem:[%s4 + $0x44] sm:$0xf]
          %v6358 = vld [vmem:[%s4 + $0x48] sm:$0xf]
          %v6378 = vunpack.c.l.b16 %v6340
          %v6379 = vunpack.c.l.b16 %v6341
          %v6380 = vunpack.c.l.b16 %v6342
          %v6381 = vunpack.c.l.b16 %v6343
          %v6382 = vunpack.c.l.b16 %v6344
          %v6383 = vunpack.c.l.b16 %v6345
          %v6384 = vunpack.c.l.b16 %v6346
          %v6385 = vunpack.c.l.b16 %v6347
          %v6386 = vunpack.c.l.b16 %v6348
          %v6387 = vunpack.c.l.b16 %v6349
          %v6388 = vunpack.c.l.b16 %v6350
          %v6389 = vunpack.c.l.b16 %v6351
          %v6390 = vunpack.c.l.b16 %v6352
          %v6391 = vunpack.c.l.b16 %v6353
          %v6392 = vunpack.c.l.b16 %v6354
          %v6393 = vunpack.c.l.b16 %v6355
          %v6394 = vunpack.c.l.b16 %v6356
          %v6395 = vunpack.c.l.b16 %v6357
          %v6396 = vunpack.c.l.b16 %v6358
          %v6397 = vpack.c.b16 %v6379, %v6378
          %v6398 = vpack.c.b16 %v6381, %v6380
          %v6399 = vpack.c.b16 %v6383, %v6382
          %v6400 = vpack.c.b16 %v6385, %v6384
          %v6401 = vpack.c.b16 %v6387, %v6386
          %v6402 = vpack.c.b16 %v6389, %v6388
          %v6403 = vpack.c.b16 %v6391, %v6390
          %v6404 = vpack.c.b16 %v6393, %v6392
          %v6405 = vpack.c.b16 %v6395, %v6394
          %v6406 = vpack.c.b16 %v6396, %v6396
          %vm6407 = vcmask 654336
          %v6409 = vsel %vm6407, %v6397, 0
          %v6412 = vsel %vm6407, %v6398, 0
          %v6415 = vsel %vm6407, %v6399, 0
          %v6418 = vsel %vm6407, %v6400, 0
          %v6421 = vsel %vm6407, %v6401, 0
          %v6424 = vsel %vm6407, %v6402, 0
          %v6427 = vsel %vm6407, %v6403, 0
          %v6430 = vsel %vm6407, %v6404, 0
          %v6433 = vsel %vm6407, %v6405, 0
          %v6436 = vsel %vm6407, %v6406, 0
          %6438 = vmatprep.subr.bf16.mxu0 0
          %6439 = vmatpush1.bf16.msra.mxu0 %v6335
          %6440 = vmatprep.subr.bf16.mxu0 0
          %6441 = vmatpush1.bf16.msra.mxu0 %v6336
          %6442 = vmatprep.subr.bf16.mxu0 0
          %6443 = vmatpush1.bf16.msra.mxu0 %v6337
          %6444 = vmatprep.subr.bf16.mxu0 0
          %6445 = vmatpush1.bf16.msra.mxu0 %v6338
          %6446 = vmatprep.subr.bf16.mxu0 0
          %6447 = vmatpush1.bf16.msra.mxu0 %v6339
          %6448 = vmatprep.subr.bf16.mxu0 0
          %6449 = vmatpush1.bf16.msra.mxu0 0
          %6450 = vmatprep.subr.bf16.mxu0 0
          %6451 = vmatpush1.bf16.msra.mxu0 0
          %6452 = vmatprep.subr.bf16.mxu0 0
          %6453 = vmatpush1.bf16.msra.mxu0 0
          %6454 = vmatprep.subr.bf16.mxu0 0
          %6455 = vmatpush1.bf16.msra.mxu0 0
          %6456 = vmatprep.subr.bf16.mxu0 0
          %6457 = vmatpush1.bf16.msra.mxu0 0
          %6458 = vmatprep.subr.bf16.mxu0 0
          %6459 = vmatpush1.bf16.msra.mxu0 0
          %6460 = vmatprep.subr.bf16.mxu0 0
          %6461 = vmatpush1.bf16.msra.mxu0 0
          %6462 = vmatprep.subr.bf16.mxu0 0
          %6463 = vmatpush1.bf16.msra.mxu0 0
          %6464 = vmatprep.subr.bf16.mxu0 0
          %6465 = vmatpush1.bf16.msra.mxu0 0
          %6466 = vmatprep.subr.bf16.mxu0 0
          %6467 = vmatpush1.bf16.msra.mxu0 0
          %6468 = vmatprep.subr.bf16.mxu0 0
          %6469 = vmatpush1.bf16.msra.mxu0 0
          %6470 = vmatprep.mubr.bf16.mxu0 0
          %6471 = vmatmul.mubr.bf16.gmra.mrb[0].mxu0 %v6409
          %v6472 = vpop.f32.mrb[0].mxu0
          %v6473 = vadd.f32 0.0, %v6472
          %v6474 = vpop.f32.mrb[0].mxu0
          %v6475 = vpop.f32.mrb[0].mxu0
          %v6476 = vadd.f32 0.0, %v6475
          %v6477 = vpop.f32.mrb[0].mxu0
          %6478 = vmatprep.mubr.bf16.mxu0 0
          %6479 = vmatmul.mubr.bf16.gmra.mrb[0].mxu0 %v6412
          %v6480 = vpop.f32.mrb[0].mxu0
          %v6481 = vadd.f32 0.0, %v6480
          %v6482 = vpop.f32.mrb[0].mxu0
          %v6483 = vpop.f32.mrb[0].mxu0
          %v6484 = vadd.f32 0.0, %v6483
          %v6485 = vpop.f32.mrb[0].mxu0
          %6486 = vmatprep.mubr.bf16.mxu0 0
          %6487 = vmatmul.mubr.bf16.gmra.mrb[0].mxu0 %v6415
          %v6488 = vpop.f32.mrb[0].mxu0
          %v6489 = vadd.f32 0.0, %v6488
          %v6490 = vpop.f32.mrb[0].mxu0
          %v6491 = vpop.f32.mrb[0].mxu0
          %v6492 = vadd.f32 0.0, %v6491
          %v6493 = vpop.f32.mrb[0].mxu0
          %6494 = vmatprep.mubr.bf16.mxu0 0
          %6495 = vmatmul.mubr.bf16.gmra.mrb[0].mxu0 %v6418
          %v6496 = vpop.f32.mrb[0].mxu0
          %v6497 = vadd.f32 0.0, %v6496
          %v6498 = vpop.f32.mrb[0].mxu0
          %v6499 = vpop.f32.mrb[0].mxu0
          %v6500 = vadd.f32 0.0, %v6499
          %v6501 = vpop.f32.mrb[0].mxu0
          %6502 = vmatprep.mubr.bf16.mxu0 0
          %6503 = vmatmul.mubr.bf16.gmra.mrb[0].mxu0 %v6421
          %v6504 = vpop.f32.mrb[0].mxu0
          %v6505 = vadd.f32 0.0, %v6504
          %v6506 = vpop.f32.mrb[0].mxu0
          %v6507 = vpop.f32.mrb[0].mxu0
          %v6508 = vadd.f32 0.0, %v6507
          %v6509 = vpop.f32.mrb[0].mxu0
          %6510 = vmatprep.mubr.bf16.mxu0 0
          %6511 = vmatmul.mubr.bf16.gmra.mrb[0].mxu0 %v6424
          %v6512 = vpop.f32.mrb[0].mxu0
          %v6513 = vadd.f32 0.0, %v6512
          %v6514 = vpop.f32.mrb[0].mxu0
          %v6515 = vpop.f32.mrb[0].mxu0
          %v6516 = vadd.f32 0.0, %v6515
          %v6517 = vpop.f32.mrb[0].mxu0
          %6518 = vmatprep.mubr.bf16.mxu0 0
          %6519 = vmatmul.mubr.bf16.gmra.mrb[0].mxu0 %v6427
          %v6520 = vpop.f32.mrb[0].mxu0
          %v6521 = vadd.f32 0.0, %v6520
          %v6522 = vpop.f32.mrb[0].mxu0
          %v6523 = vpop.f32.mrb[0].mxu0
          %v6524 = vadd.f32 0.0, %v6523
          %v6525 = vpop.f32.mrb[0].mxu0
          %6526 = vmatprep.mubr.bf16.mxu0 0
          %6527 = vmatmul.mubr.bf16.gmra.mrb[0].mxu0 %v6430
          %v6528 = vpop.f32.mrb[0].mxu0
          %v6529 = vadd.f32 0.0, %v6528
          %v6530 = vpop.f32.mrb[0].mxu0
          %v6531 = vpop.f32.mrb[0].mxu0
          %v6532 = vadd.f32 0.0, %v6531
          %v6533 = vpop.f32.mrb[0].mxu0
          %6534 = vmatprep.mubr.bf16.mxu0 0
          %6535 = vmatmul.mubr.bf16.gmra.mrb[0].mxu0 %v6433
          %v6536 = vpop.f32.mrb[0].mxu0
          %v6537 = vadd.f32 0.0, %v6536
          %v6538 = vpop.f32.mrb[0].mxu0
          %v6539 = vpop.f32.mrb[0].mxu0
          %v6540 = vadd.f32 0.0, %v6539
          %v6541 = vpop.f32.mrb[0].mxu0
          %6542 = vmatprep.mubr.bf16.mxu0 0
          %6543 = vmatmul.mubr.bf16.gmra.mrb[0].mxu0 %v6436
          %v6544 = vpop.f32.mrb[0].mxu0
          %v6545 = vadd.f32 0.0, %v6544
          %v6546 = vpop.f32.mrb[0].mxu0
          %v6547 = vpop.f32.mrb[0].mxu0
          %v6548 = vpop.f32.mrb[0].mxu0
          %6549 = vdwg.mxu0
          %v6556 = vrot.slane %v6489, 6
          %v6557 = vrot.slane %v6492, 6
          %v6558 = vsel %vm4598, %v6556, %v6557
          %v6559 = vrot.slane %v6497, 6
          %v6560 = vsel %vm4598, %v6557, %v6559
          %v6561 = vrot.slane %v6500, 6
          %v6562 = vsel %vm4598, %v6559, %v6561
          %v6563 = vrot.slane %v6505, 6
          %v6564 = vsel %vm4598, %v6561, %v6563
          %v6565 = vrot.slane %v6508, 6
          %v6566 = vsel %vm4598, %v6563, %v6565
          %v6572 = vmax.f32 %v6473, %v6558
          %v6573 = vmax.f32 %v6476, %v6560
          %v6574 = vmax.f32 %v6481, %v6562
          %v6575 = vmax.f32 %v6484, %v6564
          %v6576 = vmax.f32 %v6489, %v6566
          %v6582 = vrot.slane %v6529, 6
          %v6583 = vrot.slane %v6532, 6
          %v6584 = vsel %vm4598, %v6582, %v6583
          %v6585 = vrot.slane %v6537, 6
          %v6586 = vsel %vm4598, %v6583, %v6585
          %v6587 = vrot.slane %v6540, 6
          %v6588 = vsel %vm4598, %v6585, %v6587
          %v6589 = vrot.slane %v6545, 6
          %v6590 = vsel %vm4598, %v6587, %v6589
          %v6597 = vmax.f32 %v6508, %v6582
          %v6598 = vmax.f32 %v6513, %v6584
          %v6599 = vmax.f32 %v6516, %v6586
          %v6600 = vmax.f32 %v6521, %v6588
          %v6601 = vmax.f32 %v6524, %v6590
          %v6602 = vmax.f32 %v6529, %v6589
          %v6609 = vrot.slane %v6597, 4
          %v6610 = vrot.slane %v6598, 4
          %v6611 = vsel %vm4732, %v6609, %v6610
          %v6612 = vrot.slane %v6599, 4
          %v6613 = vsel %vm4732, %v6610, %v6612
          %v6614 = vrot.slane %v6600, 4
          %v6615 = vsel %vm4732, %v6612, %v6614
          %v6616 = vrot.slane %v6601, 4
          %v6617 = vsel %vm4732, %v6614, %v6616
          %v6618 = vrot.slane %v6602, 4
          %v6619 = vsel %vm4732, %v6616, %v6618
          %v6625 = vmax.f32 %v6572, %v6611
          %v6626 = vmax.f32 %v6573, %v6613
          %v6627 = vmax.f32 %v6574, %v6615
          %v6628 = vmax.f32 %v6575, %v6617
          %v6629 = vmax.f32 %v6576, %v6619
          %v6630 = vpack.c.bf16 %v6626, %v6625
          %v6631 = vpack.c.bf16 %v6628, %v6627
          %v6632 = vpack.c.bf16 %v6629, %v6629
          %s6633 = scalar_lea.vmem %s1, 1152
          %v6634 = vld [vmem:[%s6633] sm:$0xf]
          %v6635 = vld [vmem:[%s6633 + $0x4] sm:$0xf]
          %v6636 = vld [vmem:[%s6633 + $0x8] sm:$0xf]
          %v6637 = vld [vmem:[%s6633 + $0xc] sm:$0xf]
          %v6638 = vld [vmem:[%s6633 + $0x10] sm:$0xf]
          %v6639 = vld [vmem:[%s6633 + $0x14] sm:$0xf]
          %v6640 = vld [vmem:[%s6633 + $0x18] sm:$0xf]
          %v6641 = vld [vmem:[%s6633 + $0x1c] sm:$0xf]
          %v6642 = vld [vmem:[%s6633 + $0x20] sm:$0xf]
          %v6643 = vld [vmem:[%s6633 + $0x24] sm:$0xf]
          %v6644 = vld [vmem:[%s6633 + $0x28] sm:$0xf]
          %v6645 = vld [vmem:[%s6633 + $0x2c] sm:$0xf]
          %v6646 = vld [vmem:[%s6633 + $0x30] sm:$0xf]
          %v6647 = vld [vmem:[%s6633 + $0x34] sm:$0xf]
          %v6648 = vld [vmem:[%s6633 + $0x38] sm:$0xf]
          %v6649 = vld [vmem:[%s6633 + $0x3c] sm:$0xf]
          %s6650 = scalar_lea.vmem %s1, 1216
          %v6651 = vld [vmem:[%s6650] sm:$0xf]
          %v6652 = vld [vmem:[%s6650 + $0x4] sm:$0xf]
          %v6653 = vld [vmem:[%s6650 + $0x8] sm:$0xf]
          %v6654 = vld [vmem:[%s6650 + $0xc] sm:$0xf]
          %v6655 = vld [vmem:[%s6650 + $0x10] sm:$0xf]
          %v6656 = vld [vmem:[%s6650 + $0x14] sm:$0xf]
          %v6657 = vld [vmem:[%s6650 + $0x18] sm:$0xf]
          %v6658 = vld [vmem:[%s6650 + $0x1c] sm:$0xf]
          %v6659 = vld [vmem:[%s6650 + $0x20] sm:$0xf]
          %v6660 = vld [vmem:[%s6650 + $0x24] sm:$0xf]
          %v6661 = vld [vmem:[%s6650 + $0x28] sm:$0xf]
          %v6662 = vld [vmem:[%s6650 + $0x2c] sm:$0xf]
          %v6663 = vld [vmem:[%s6650 + $0x30] sm:$0xf]
          %v6664 = vld [vmem:[%s6650 + $0x34] sm:$0xf]
          %v6665 = vld [vmem:[%s6650 + $0x38] sm:$0xf]
          %v6666 = vld [vmem:[%s6650 + $0x3c] sm:$0xf]
          %v6668 = vshrl.u32 %v6630, 16
          %v6670 = vshll.u32 %v6630, 16
          %v6672 = vrot.slane %v6670, 1
          %v6673 = vor.u32 %v6668, %v6672
          %v6675 = vshll.u32 %v6631, 16
          %v6677 = vrot.slane %v6675, 1
          %v6678 = vsel %vm460, %v6673, %v6677
          %v6679 = vshrl.u32 %v6631, 16
          %v6681 = vor.u32 %v6679, %v6677
          %v6700 = vunpack.c.l.b16 %v6651
          %v6701 = vunpack.c.l.b16 %v6652
          %v6702 = vunpack.c.l.b16 %v6653
          %v6703 = vunpack.c.l.b16 %v6654
          %v6704 = vunpack.c.l.b16 %v6655
          %v6705 = vunpack.c.l.b16 %v6656
          %v6706 = vunpack.c.l.b16 %v6657
          %v6707 = vunpack.c.l.b16 %v6658
          %v6708 = vunpack.c.l.b16 %v6659
          %v6709 = vunpack.c.l.b16 %v6660
          %v6710 = vunpack.c.l.b16 %v6661
          %v6711 = vunpack.c.l.b16 %v6662
          %v6712 = vunpack.c.l.b16 %v6663
          %v6713 = vunpack.c.l.b16 %v6664
          %v6714 = vunpack.c.l.b16 %v6665
          %v6715 = vunpack.c.l.b16 %v6666
          %v6716 = vpack.c.b16 %v6701, %v6700
          %v6717 = vpack.c.b16 %v6703, %v6702
          %v6718 = vpack.c.b16 %v6705, %v6704
          %v6719 = vpack.c.b16 %v6707, %v6706
          %v6720 = vpack.c.b16 %v6709, %v6708
          %v6721 = vpack.c.b16 %v6711, %v6710
          %v6722 = vpack.c.b16 %v6713, %v6712
          %v6723 = vpack.c.b16 %v6715, %v6714
          %6732 = vmatprep.subr.bf16.mxu0 0
          %6733 = vmatpush1.bf16.msra.mxu0 %v6716
          %6734 = vmatprep.subr.bf16.mxu0 0
          %6735 = vmatpush1.bf16.msra.mxu0 %v6717
          %6736 = vmatprep.subr.bf16.mxu0 0
          %6737 = vmatpush1.bf16.msra.mxu0 %v6718
          %6738 = vmatprep.subr.bf16.mxu0 0
          %6739 = vmatpush1.bf16.msra.mxu0 %v6719
          %6740 = vmatprep.subr.bf16.mxu0 0
          %6741 = vmatpush1.bf16.msra.mxu0 %v6720
          %6742 = vmatprep.subr.bf16.mxu0 0
          %6743 = vmatpush1.bf16.msra.mxu0 %v6721
          %6744 = vmatprep.subr.bf16.mxu0 0
          %6745 = vmatpush1.bf16.msra.mxu0 %v6722
          %6746 = vmatprep.subr.bf16.mxu0 0
          %6747 = vmatpush1.bf16.msra.mxu0 %v6723
          %6748 = vmatprep.subr.bf16.mxu0 0
          %6749 = vmatpush1.bf16.msra.mxu0 0
          %6750 = vmatprep.subr.bf16.mxu0 0
          %6751 = vmatpush1.bf16.msra.mxu0 0
          %6752 = vmatprep.subr.bf16.mxu0 0
          %6753 = vmatpush1.bf16.msra.mxu0 0
          %6754 = vmatprep.subr.bf16.mxu0 0
          %6755 = vmatpush1.bf16.msra.mxu0 0
          %6756 = vmatprep.subr.bf16.mxu0 0
          %6757 = vmatpush1.bf16.msra.mxu0 0
          %6758 = vmatprep.subr.bf16.mxu0 0
          %6759 = vmatpush1.bf16.msra.mxu0 0
          %6760 = vmatprep.subr.bf16.mxu0 0
          %6761 = vmatpush1.bf16.msra.mxu0 0
          %6762 = vmatprep.subr.bf16.mxu0 0
          %6763 = vmatpush1.bf16.msra.mxu0 0
          %6764 = vmatprep.mubr.bf16.mxu0 0
          %6765 = vmatmul.mubr.bf16.gmra.mrb[0].mxu0 %v6678
          %v6766 = vpop.f32.mrb[0].mxu0
          %v6767 = vadd.f32 0.0, %v6766
          %v6768 = vpop.f32.mrb[0].mxu0
          %v6769 = vpop.f32.mrb[0].mxu0
          %v6770 = vadd.f32 0.0, %v6769
          %v6771 = vpop.f32.mrb[0].mxu0
          %6772 = vmatprep.mubr.bf16.mxu0 0
          %6773 = vmatmul.mubr.bf16.gmra.mrb[0].mxu0 %v6681
          %v6774 = vpop.f32.mrb[0].mxu0
          %v6775 = vadd.f32 0.0, %v6774
          %v6776 = vpop.f32.mrb[0].mxu0
          %v6777 = vpop.f32.mrb[0].mxu0
          %v6778 = vpop.f32.mrb[0].mxu0
          %6779 = vdwg.mxu0
          %v6796 = vunpack.c.l.b16 %v6634
          %v6797 = vunpack.c.l.b16 %v6635
          %v6798 = vunpack.c.l.b16 %v6636
          %v6799 = vunpack.c.l.b16 %v6637
          %v6800 = vunpack.c.l.b16 %v6638
          %v6801 = vunpack.c.l.b16 %v6639
          %v6802 = vunpack.c.l.b16 %v6640
          %v6803 = vunpack.c.l.b16 %v6641
          %v6804 = vunpack.c.l.b16 %v6642
          %v6805 = vunpack.c.l.b16 %v6643
          %v6806 = vunpack.c.l.b16 %v6644
          %v6807 = vunpack.c.l.b16 %v6645
          %v6808 = vunpack.c.l.b16 %v6646
          %v6809 = vunpack.c.l.b16 %v6647
          %v6810 = vunpack.c.l.b16 %v6648
          %v6811 = vunpack.c.l.b16 %v6649
          %v6812 = vpack.c.b16 %v6797, %v6796
          %v6813 = vpack.c.b16 %v6799, %v6798
          %v6814 = vpack.c.b16 %v6801, %v6800
          %v6815 = vpack.c.b16 %v6803, %v6802
          %v6816 = vpack.c.b16 %v6805, %v6804
          %v6817 = vpack.c.b16 %v6807, %v6806
          %v6818 = vpack.c.b16 %v6809, %v6808
          %v6819 = vpack.c.b16 %v6811, %v6810
          %6828 = vmatprep.subr.bf16.mxu0 0
          %6829 = vmatpush1.bf16.msra.mxu0 %v6812
          %6830 = vmatprep.subr.bf16.mxu0 0
          %6831 = vmatpush1.bf16.msra.mxu0 %v6813
          %6832 = vmatprep.subr.bf16.mxu0 0
          %6833 = vmatpush1.bf16.msra.mxu0 %v6814
          %6834 = vmatprep.subr.bf16.mxu0 0
          %6835 = vmatpush1.bf16.msra.mxu0 %v6815
          %6836 = vmatprep.subr.bf16.mxu0 0
          %6837 = vmatpush1.bf16.msra.mxu0 %v6816
          %6838 = vmatprep.subr.bf16.mxu0 0
          %6839 = vmatpush1.bf16.msra.mxu0 %v6817
          %6840 = vmatprep.subr.bf16.mxu0 0
          %6841 = vmatpush1.bf16.msra.mxu0 %v6818
          %6842 = vmatprep.subr.bf16.mxu0 0
          %6843 = vmatpush1.bf16.msra.mxu0 %v6819
          %6844 = vmatprep.subr.bf16.mxu0 0
          %6845 = vmatpush1.bf16.msra.mxu0 0
          %6846 = vmatprep.subr.bf16.mxu0 0
          %6847 = vmatpush1.bf16.msra.mxu0 0
          %6848 = vmatprep.subr.bf16.mxu0 0
          %6849 = vmatpush1.bf16.msra.mxu0 0
          %6850 = vmatprep.subr.bf16.mxu0 0
          %6851 = vmatpush1.bf16.msra.mxu0 0
          %6852 = vmatprep.subr.bf16.mxu0 0
          %6853 = vmatpush1.bf16.msra.mxu0 0
          %6854 = vmatprep.subr.bf16.mxu0 0
          %6855 = vmatpush1.bf16.msra.mxu0 0
          %6856 = vmatprep.subr.bf16.mxu0 0
          %6857 = vmatpush1.bf16.msra.mxu0 0
          %6858 = vmatprep.subr.bf16.mxu0 0
          %6859 = vmatpush1.bf16.msra.mxu0 0
          %6860 = vmatprep.mubr.bf16.mxu0 0
          %6861 = vmatmul.mubr.bf16.gmra.mrb[0].mxu0 %v6630
          %v6862 = vpop.f32.mrb[0].mxu0
          %v6863 = vadd.f32 %v6767, %v6862
          %v6864 = vpop.f32.mrb[0].mxu0
          %v6865 = vpop.f32.mrb[0].mxu0
          %v6866 = vadd.f32 %v6770, %v6865
          %v6867 = vpop.f32.mrb[0].mxu0
          %6868 = vmatprep.mubr.bf16.mxu0 0
          %6869 = vmatmul.mubr.bf16.gmra.mrb[0].mxu0 %v6631
          %v6870 = vpop.f32.mrb[0].mxu0
          %v6871 = vadd.f32 %v6775, %v6870
          %v6872 = vpop.f32.mrb[0].mxu0
          %v6873 = vpop.f32.mrb[0].mxu0
          %v6874 = vpop.f32.mrb[0].mxu0
          %6875 = vdwg.mxu0
          %s6876 = scalar_lea.vmem %s1, 1280
          %v6877 = vld [vmem:[%s6876] sm:$0xf]
          %v6878 = vld [vmem:[%s6876 + $0x4] sm:$0xf]
          %v6879 = vld [vmem:[%s6876 + $0x8] sm:$0xf]
          %v6880 = vld [vmem:[%s6876 + $0xc] sm:$0xf]
          %v6881 = vld [vmem:[%s6876 + $0x10] sm:$0xf]
          %v6882 = vld [vmem:[%s6876 + $0x14] sm:$0xf]
          %v6883 = vld [vmem:[%s6876 + $0x18] sm:$0xf]
          %v6884 = vld [vmem:[%s6876 + $0x1c] sm:$0xf]
          %v6885 = vld [vmem:[%s6876 + $0x20] sm:$0xf]
          %v6886 = vld [vmem:[%s6876 + $0x24] sm:$0xf]
          %v6887 = vld [vmem:[%s6876 + $0x28] sm:$0xf]
          %v6888 = vld [vmem:[%s6876 + $0x2c] sm:$0xf]
          %v6889 = vld [vmem:[%s6876 + $0x30] sm:$0xf]
          %v6890 = vld [vmem:[%s6876 + $0x34] sm:$0xf]
          %v6891 = vld [vmem:[%s6876 + $0x38] sm:$0xf]
          %v6892 = vld [vmem:[%s6876 + $0x3c] sm:$0xf]
          %v6895 = vrot.slane %v6630, 1
          %v6896 = vrot.slane %v6631, 1
          %v6897 = vsel %vm1112, %v6895, %v6896
          %v6916 = vunpack.c.l.b16 %v6877
          %v6917 = vunpack.c.l.b16 %v6878
          %v6918 = vunpack.c.l.b16 %v6879
          %v6919 = vunpack.c.l.b16 %v6880
          %v6920 = vunpack.c.l.b16 %v6881
          %v6921 = vunpack.c.l.b16 %v6882
          %v6922 = vunpack.c.l.b16 %v6883
          %v6923 = vunpack.c.l.b16 %v6884
          %v6924 = vunpack.c.l.b16 %v6885
          %v6925 = vunpack.c.l.b16 %v6886
          %v6926 = vunpack.c.l.b16 %v6887
          %v6927 = vunpack.c.l.b16 %v6888
          %v6928 = vunpack.c.l.b16 %v6889
          %v6929 = vunpack.c.l.b16 %v6890
          %v6930 = vunpack.c.l.b16 %v6891
          %v6931 = vunpack.c.l.b16 %v6892
          %v6932 = vpack.c.b16 %v6917, %v6916
          %v6933 = vpack.c.b16 %v6919, %v6918
          %v6934 = vpack.c.b16 %v6921, %v6920
          %v6935 = vpack.c.b16 %v6923, %v6922
          %v6936 = vpack.c.b16 %v6925, %v6924
          %v6937 = vpack.c.b16 %v6927, %v6926
          %v6938 = vpack.c.b16 %v6929, %v6928
          %v6939 = vpack.c.b16 %v6931, %v6930
          %6948 = vmatprep.subr.bf16.mxu0 0
          %6949 = vmatpush1.bf16.msra.mxu0 %v6932
          %6950 = vmatprep.subr.bf16.mxu0 0
          %6951 = vmatpush1.bf16.msra.mxu0 %v6933
          %6952 = vmatprep.subr.bf16.mxu0 0
          %6953 = vmatpush1.bf16.msra.mxu0 %v6934
          %6954 = vmatprep.subr.bf16.mxu0 0
          %6955 = vmatpush1.bf16.msra.mxu0 %v6935
          %6956 = vmatprep.subr.bf16.mxu0 0
          %6957 = vmatpush1.bf16.msra.mxu0 %v6936
          %6958 = vmatprep.subr.bf16.mxu0 0
          %6959 = vmatpush1.bf16.msra.mxu0 %v6937
          %6960 = vmatprep.subr.bf16.mxu0 0
          %6961 = vmatpush1.bf16.msra.mxu0 %v6938
          %6962 = vmatprep.subr.bf16.mxu0 0
          %6963 = vmatpush1.bf16.msra.mxu0 %v6939
          %6964 = vmatprep.subr.bf16.mxu0 0
          %6965 = vmatpush1.bf16.msra.mxu0 0
          %6966 = vmatprep.subr.bf16.mxu0 0
          %6967 = vmatpush1.bf16.msra.mxu0 0
          %6968 = vmatprep.subr.bf16.mxu0 0
          %6969 = vmatpush1.bf16.msra.mxu0 0
          %6970 = vmatprep.subr.bf16.mxu0 0
          %6971 = vmatpush1.bf16.msra.mxu0 0
          %6972 = vmatprep.subr.bf16.mxu0 0
          %6973 = vmatpush1.bf16.msra.mxu0 0
          %6974 = vmatprep.subr.bf16.mxu0 0
          %6975 = vmatpush1.bf16.msra.mxu0 0
          %6976 = vmatprep.subr.bf16.mxu0 0
          %6977 = vmatpush1.bf16.msra.mxu0 0
          %6978 = vmatprep.subr.bf16.mxu0 0
          %6979 = vmatpush1.bf16.msra.mxu0 0
          %6980 = vmatprep.mubr.bf16.mxu0 0
          %6981 = vmatmul.mubr.bf16.gmra.mrb[0].mxu0 %v6897
          %v6982 = vpop.f32.mrb[0].mxu0
          %v6983 = vadd.f32 0.0, %v6982
          %v6984 = vpop.f32.mrb[0].mxu0
          %v6985 = vpop.f32.mrb[0].mxu0
          %v6986 = vadd.f32 0.0, %v6985
          %v6987 = vpop.f32.mrb[0].mxu0
          %6988 = vmatprep.mubr.bf16.mxu0 0
          %6989 = vmatmul.mubr.bf16.gmra.mrb[0].mxu0 %v6896
          %v6990 = vpop.f32.mrb[0].mxu0
          %v6991 = vadd.f32 0.0, %v6990
          %v6992 = vpop.f32.mrb[0].mxu0
          %v6993 = vpop.f32.mrb[0].mxu0
          %v6994 = vpop.f32.mrb[0].mxu0
          %6995 = vdwg.mxu0
          %v6996 = vadd.f32 %v6863, %v6983
          %v6997 = vadd.f32 %v6866, %v6986
          %v6998 = vadd.f32 %v6871, %v6991
          %s6999 = scalar_lea.vmem %s1, 1344
          %v7000 = vld [vmem:[%s6999] sm:$0xf]
          %v7001 = vld [vmem:[%s6999 + $0x4] sm:$0xf]
          %v7002 = vld [vmem:[%s6999 + $0x8] sm:$0xf]
          %v7003 = vld [vmem:[%s6999 + $0xc] sm:$0xf]
          %v7004 = vld [vmem:[%s6999 + $0x10] sm:$0xf]
          %v7005 = vld [vmem:[%s6999 + $0x14] sm:$0xf]
          %v7006 = vld [vmem:[%s6999 + $0x18] sm:$0xf]
          %v7007 = vld [vmem:[%s6999 + $0x1c] sm:$0xf]
          %v7008 = vld [vmem:[%s6999 + $0x20] sm:$0xf]
          %v7009 = vld [vmem:[%s6999 + $0x24] sm:$0xf]
          %v7010 = vld [vmem:[%s6999 + $0x28] sm:$0xf]
          %v7011 = vld [vmem:[%s6999 + $0x2c] sm:$0xf]
          %v7012 = vld [vmem:[%s6999 + $0x30] sm:$0xf]
          %v7013 = vld [vmem:[%s6999 + $0x34] sm:$0xf]
          %v7014 = vld [vmem:[%s6999 + $0x38] sm:$0xf]
          %v7015 = vld [vmem:[%s6999 + $0x3c] sm:$0xf]
          %v7016 = vrot.slane %v6630, 3
          %v7017 = vrot.slane %v6631, 3
          %v7018 = vsel %vm3124, %v7016, %v7017
          %v7037 = vunpack.c.l.b16 %v7000
          %v7038 = vunpack.c.l.b16 %v7001
          %v7039 = vunpack.c.l.b16 %v7002
          %v7040 = vunpack.c.l.b16 %v7003
          %v7041 = vunpack.c.l.b16 %v7004
          %v7042 = vunpack.c.l.b16 %v7005
          %v7043 = vunpack.c.l.b16 %v7006
          %v7044 = vunpack.c.l.b16 %v7007
          %v7045 = vunpack.c.l.b16 %v7008
          %v7046 = vunpack.c.l.b16 %v7009
          %v7047 = vunpack.c.l.b16 %v7010
          %v7048 = vunpack.c.l.b16 %v7011
          %v7049 = vunpack.c.l.b16 %v7012
          %v7050 = vunpack.c.l.b16 %v7013
          %v7051 = vunpack.c.l.b16 %v7014
          %v7052 = vunpack.c.l.b16 %v7015
          %v7053 = vpack.c.b16 %v7038, %v7037
          %v7054 = vpack.c.b16 %v7040, %v7039
          %v7055 = vpack.c.b16 %v7042, %v7041
          %v7056 = vpack.c.b16 %v7044, %v7043
          %v7057 = vpack.c.b16 %v7046, %v7045
          %v7058 = vpack.c.b16 %v7048, %v7047
          %v7059 = vpack.c.b16 %v7050, %v7049
          %v7060 = vpack.c.b16 %v7052, %v7051
          %7069 = vmatprep.subr.bf16.mxu0 0
          %7070 = vmatpush1.bf16.msra.mxu0 %v7053
          %7071 = vmatprep.subr.bf16.mxu0 0
          %7072 = vmatpush1.bf16.msra.mxu0 %v7054
          %7073 = vmatprep.subr.bf16.mxu0 0
          %7074 = vmatpush1.bf16.msra.mxu0 %v7055
          %7075 = vmatprep.subr.bf16.mxu0 0
          %7076 = vmatpush1.bf16.msra.mxu0 %v7056
          %7077 = vmatprep.subr.bf16.mxu0 0
          %7078 = vmatpush1.bf16.msra.mxu0 %v7057
          %7079 = vmatprep.subr.bf16.mxu0 0
          %7080 = vmatpush1.bf16.msra.mxu0 %v7058
          %7081 = vmatprep.subr.bf16.mxu0 0
          %7082 = vmatpush1.bf16.msra.mxu0 %v7059
          %7083 = vmatprep.subr.bf16.mxu0 0
          %7084 = vmatpush1.bf16.msra.mxu0 %v7060
          %7085 = vmatprep.subr.bf16.mxu0 0
          %7086 = vmatpush1.bf16.msra.mxu0 0
          %7087 = vmatprep.subr.bf16.mxu0 0
          %7088 = vmatpush1.bf16.msra.mxu0 0
          %7089 = vmatprep.subr.bf16.mxu0 0
          %7090 = vmatpush1.bf16.msra.mxu0 0
          %7091 = vmatprep.subr.bf16.mxu0 0
          %7092 = vmatpush1.bf16.msra.mxu0 0
          %7093 = vmatprep.subr.bf16.mxu0 0
          %7094 = vmatpush1.bf16.msra.mxu0 0
          %7095 = vmatprep.subr.bf16.mxu0 0
          %7096 = vmatpush1.bf16.msra.mxu0 0
          %7097 = vmatprep.subr.bf16.mxu0 0
          %7098 = vmatpush1.bf16.msra.mxu0 0
          %7099 = vmatprep.subr.bf16.mxu0 0
          %7100 = vmatpush1.bf16.msra.mxu0 0
          %7101 = vmatprep.mubr.bf16.mxu0 0
          %7102 = vmatmul.mubr.bf16.gmra.mrb[0].mxu0 %v7018
          %v7103 = vpop.f32.mrb[0].mxu0
          %v7104 = vadd.f32 0.0, %v7103
          %v7105 = vpop.f32.mrb[0].mxu0
          %v7106 = vpop.f32.mrb[0].mxu0
          %v7107 = vadd.f32 0.0, %v7106
          %v7108 = vpop.f32.mrb[0].mxu0
          %7109 = vmatprep.mubr.bf16.mxu0 0
          %7110 = vmatmul.mubr.bf16.gmra.mrb[0].mxu0 %v7017
          %v7111 = vpop.f32.mrb[0].mxu0
          %v7112 = vadd.f32 0.0, %v7111
          %v7113 = vpop.f32.mrb[0].mxu0
          %v7114 = vpop.f32.mrb[0].mxu0
          %v7115 = vpop.f32.mrb[0].mxu0
          %7116 = vdwg.mxu0
          %v7117 = vadd.f32 %v6996, %v7104
          %v7118 = vadd.f32 %v6997, %v7107
          %v7119 = vadd.f32 %v6998, %v7112
          %s7120 = scalar_lea.vmem %s1, 1408
          %v7121 = vld [vmem:[%s7120] sm:$0xf]
          %v7122 = vld [vmem:[%s7120 + $0x4] sm:$0xf]
          %v7123 = vld [vmem:[%s7120 + $0x8] sm:$0xf]
          %v7124 = vld [vmem:[%s7120 + $0xc] sm:$0xf]
          %v7125 = vld [vmem:[%s7120 + $0x10] sm:$0xf]
          %v7126 = vld [vmem:[%s7120 + $0x14] sm:$0xf]
          %v7127 = vld [vmem:[%s7120 + $0x18] sm:$0xf]
          %v7128 = vld [vmem:[%s7120 + $0x1c] sm:$0xf]
          %v7129 = vld [vmem:[%s7120 + $0x20] sm:$0xf]
          %v7130 = vld [vmem:[%s7120 + $0x24] sm:$0xf]
          %v7131 = vld [vmem:[%s7120 + $0x28] sm:$0xf]
          %v7132 = vld [vmem:[%s7120 + $0x2c] sm:$0xf]
          %v7133 = vld [vmem:[%s7120 + $0x30] sm:$0xf]
          %v7134 = vld [vmem:[%s7120 + $0x34] sm:$0xf]
          %v7135 = vld [vmem:[%s7120 + $0x38] sm:$0xf]
          %v7136 = vld [vmem:[%s7120 + $0x3c] sm:$0xf]
          %vm7137 = vsmask.f32 4352
          %v7138 = vrot.slane %v6668, 3
          %v7139 = vrot.slane %v6670, 4
          %v7140 = vor.u32 %v7138, %v7139
          %v7141 = vrot.slane %v6679, 3
          %v7142 = vrot.slane %v6675, 4
          %v7143 = vor.u32 %v7141, %v7142
          %v7144 = vsel %vm7137, %v7140, %v7143
          %v7163 = vunpack.c.l.b16 %v7121
          %v7164 = vunpack.c.l.b16 %v7122
          %v7165 = vunpack.c.l.b16 %v7123
          %v7166 = vunpack.c.l.b16 %v7124
          %v7167 = vunpack.c.l.b16 %v7125
          %v7168 = vunpack.c.l.b16 %v7126
          %v7169 = vunpack.c.l.b16 %v7127
          %v7170 = vunpack.c.l.b16 %v7128
          %v7171 = vunpack.c.l.b16 %v7129
          %v7172 = vunpack.c.l.b16 %v7130
          %v7173 = vunpack.c.l.b16 %v7131
          %v7174 = vunpack.c.l.b16 %v7132
          %v7175 = vunpack.c.l.b16 %v7133
          %v7176 = vunpack.c.l.b16 %v7134
          %v7177 = vunpack.c.l.b16 %v7135
          %v7178 = vunpack.c.l.b16 %v7136
          %v7179 = vpack.c.b16 %v7164, %v7163
          %v7180 = vpack.c.b16 %v7166, %v7165
          %v7181 = vpack.c.b16 %v7168, %v7167
          %v7182 = vpack.c.b16 %v7170, %v7169
          %v7183 = vpack.c.b16 %v7172, %v7171
          %v7184 = vpack.c.b16 %v7174, %v7173
          %v7185 = vpack.c.b16 %v7176, %v7175
          %v7186 = vpack.c.b16 %v7178, %v7177
          %7195 = vmatprep.subr.bf16.mxu0 0
          %7196 = vmatpush1.bf16.msra.mxu0 %v7179
          %7197 = vmatprep.subr.bf16.mxu0 0
          %7198 = vmatpush1.bf16.msra.mxu0 %v7180
          %7199 = vmatprep.subr.bf16.mxu0 0
          %7200 = vmatpush1.bf16.msra.mxu0 %v7181
          %7201 = vmatprep.subr.bf16.mxu0 0
          %7202 = vmatpush1.bf16.msra.mxu0 %v7182
          %7203 = vmatprep.subr.bf16.mxu0 0
          %7204 = vmatpush1.bf16.msra.mxu0 %v7183
          %7205 = vmatprep.subr.bf16.mxu0 0
          %7206 = vmatpush1.bf16.msra.mxu0 %v7184
          %7207 = vmatprep.subr.bf16.mxu0 0
          %7208 = vmatpush1.bf16.msra.mxu0 %v7185
          %7209 = vmatprep.subr.bf16.mxu0 0
          %7210 = vmatpush1.bf16.msra.mxu0 %v7186
          %7211 = vmatprep.subr.bf16.mxu0 0
          %7212 = vmatpush1.bf16.msra.mxu0 0
          %7213 = vmatprep.subr.bf16.mxu0 0
          %7214 = vmatpush1.bf16.msra.mxu0 0
          %7215 = vmatprep.subr.bf16.mxu0 0
          %7216 = vmatpush1.bf16.msra.mxu0 0
          %7217 = vmatprep.subr.bf16.mxu0 0
          %7218 = vmatpush1.bf16.msra.mxu0 0
          %7219 = vmatprep.subr.bf16.mxu0 0
          %7220 = vmatpush1.bf16.msra.mxu0 0
          %7221 = vmatprep.subr.bf16.mxu0 0
          %7222 = vmatpush1.bf16.msra.mxu0 0
          %7223 = vmatprep.subr.bf16.mxu0 0
          %7224 = vmatpush1.bf16.msra.mxu0 0
          %7225 = vmatprep.subr.bf16.mxu0 0
          %7226 = vmatpush1.bf16.msra.mxu0 0
          %7227 = vmatprep.mubr.bf16.mxu0 0
          %7228 = vmatmul.mubr.bf16.gmra.mrb[0].mxu0 %v7144
          %v7229 = vpop.f32.mrb[0].mxu0
          %v7230 = vadd.f32 0.0, %v7229
          %v7231 = vpop.f32.mrb[0].mxu0
          %v7232 = vpop.f32.mrb[0].mxu0
          %v7233 = vadd.f32 0.0, %v7232
          %v7234 = vpop.f32.mrb[0].mxu0
          %7235 = vmatprep.mubr.bf16.mxu0 0
          %7236 = vmatmul.mubr.bf16.gmra.mrb[0].mxu0 %v7143
          %v7237 = vpop.f32.mrb[0].mxu0
          %v7238 = vadd.f32 0.0, %v7237
          %v7239 = vpop.f32.mrb[0].mxu0
          %v7240 = vpop.f32.mrb[0].mxu0
          %v7241 = vpop.f32.mrb[0].mxu0
          %7242 = vdwg.mxu0
          %v7243 = vadd.f32 %v7117, %v7230
          %v7244 = vadd.f32 %v7118, %v7233
          %v7245 = vadd.f32 %v7119, %v7238
          %s7246 = scalar_lea.vmem %s1, 1472
          %v7247 = vld [vmem:[%s7246] sm:$0xf]
          %v7248 = vld [vmem:[%s7246 + $0x4] sm:$0xf]
          %v7249 = vld [vmem:[%s7246 + $0x8] sm:$0xf]
          %v7250 = vld [vmem:[%s7246 + $0xc] sm:$0xf]
          %v7251 = vld [vmem:[%s7246 + $0x10] sm:$0xf]
          %v7252 = vld [vmem:[%s7246 + $0x14] sm:$0xf]
          %v7253 = vld [vmem:[%s7246 + $0x18] sm:$0xf]
          %v7254 = vld [vmem:[%s7246 + $0x1c] sm:$0xf]
          %v7255 = vld [vmem:[%s7246 + $0x20] sm:$0xf]
          %v7256 = vld [vmem:[%s7246 + $0x24] sm:$0xf]
          %v7257 = vld [vmem:[%s7246 + $0x28] sm:$0xf]
          %v7258 = vld [vmem:[%s7246 + $0x2c] sm:$0xf]
          %v7259 = vld [vmem:[%s7246 + $0x30] sm:$0xf]
          %v7260 = vld [vmem:[%s7246 + $0x34] sm:$0xf]
          %v7261 = vld [vmem:[%s7246 + $0x38] sm:$0xf]
          %v7262 = vld [vmem:[%s7246 + $0x3c] sm:$0xf]
          %vm7263 = vcmask 1043456
          %v7264 = vrot.slane %v6630, 4
          %v7265 = vrot.slane %v6631, 4
          %v7266 = vsel %vm7263, %v7264, %v7265
          %v7285 = vunpack.c.l.b16 %v7247
          %v7286 = vunpack.c.l.b16 %v7248
          %v7287 = vunpack.c.l.b16 %v7249
          %v7288 = vunpack.c.l.b16 %v7250
          %v7289 = vunpack.c.l.b16 %v7251
          %v7290 = vunpack.c.l.b16 %v7252
          %v7291 = vunpack.c.l.b16 %v7253
          %v7292 = vunpack.c.l.b16 %v7254
          %v7293 = vunpack.c.l.b16 %v7255
          %v7294 = vunpack.c.l.b16 %v7256
          %v7295 = vunpack.c.l.b16 %v7257
          %v7296 = vunpack.c.l.b16 %v7258
          %v7297 = vunpack.c.l.b16 %v7259
          %v7298 = vunpack.c.l.b16 %v7260
          %v7299 = vunpack.c.l.b16 %v7261
          %v7300 = vunpack.c.l.b16 %v7262
          %v7301 = vpack.c.b16 %v7286, %v7285
          %v7302 = vpack.c.b16 %v7288, %v7287
          %v7303 = vpack.c.b16 %v7290, %v7289
          %v7304 = vpack.c.b16 %v7292, %v7291
          %v7305 = vpack.c.b16 %v7294, %v7293
          %v7306 = vpack.c.b16 %v7296, %v7295
          %v7307 = vpack.c.b16 %v7298, %v7297
          %v7308 = vpack.c.b16 %v7300, %v7299
          %7317 = vmatprep.subr.bf16.mxu0 0
          %7318 = vmatpush1.bf16.msra.mxu0 %v7301
          %7319 = vmatprep.subr.bf16.mxu0 0
          %7320 = vmatpush1.bf16.msra.mxu0 %v7302
          %7321 = vmatprep.subr.bf16.mxu0 0
          %7322 = vmatpush1.bf16.msra.mxu0 %v7303
          %7323 = vmatprep.subr.bf16.mxu0 0
          %7324 = vmatpush1.bf16.msra.mxu0 %v7304
          %7325 = vmatprep.subr.bf16.mxu0 0
          %7326 = vmatpush1.bf16.msra.mxu0 %v7305
          %7327 = vmatprep.subr.bf16.mxu0 0
          %7328 = vmatpush1.bf16.msra.mxu0 %v7306
          %7329 = vmatprep.subr.bf16.mxu0 0
          %7330 = vmatpush1.bf16.msra.mxu0 %v7307
          %7331 = vmatprep.subr.bf16.mxu0 0
          %7332 = vmatpush1.bf16.msra.mxu0 %v7308
          %7333 = vmatprep.subr.bf16.mxu0 0
          %7334 = vmatpush1.bf16.msra.mxu0 0
          %7335 = vmatprep.subr.bf16.mxu0 0
          %7336 = vmatpush1.bf16.msra.mxu0 0
          %7337 = vmatprep.subr.bf16.mxu0 0
          %7338 = vmatpush1.bf16.msra.mxu0 0
          %7339 = vmatprep.subr.bf16.mxu0 0
          %7340 = vmatpush1.bf16.msra.mxu0 0
          %7341 = vmatprep.subr.bf16.mxu0 0
          %7342 = vmatpush1.bf16.msra.mxu0 0
          %7343 = vmatprep.subr.bf16.mxu0 0
          %7344 = vmatpush1.bf16.msra.mxu0 0
          %7345 = vmatprep.subr.bf16.mxu0 0
          %7346 = vmatpush1.bf16.msra.mxu0 0
          %7347 = vmatprep.subr.bf16.mxu0 0
          %7348 = vmatpush1.bf16.msra.mxu0 0
          %7349 = vmatprep.mubr.bf16.mxu0 0
          %7350 = vmatmul.mubr.bf16.gmra.mrb[0].mxu0 %v7266
          %v7351 = vpop.f32.mrb[0].mxu0
          %v7352 = vadd.f32 0.0, %v7351
          %v7353 = vpop.f32.mrb[0].mxu0
          %v7354 = vpop.f32.mrb[0].mxu0
          %v7355 = vadd.f32 0.0, %v7354
          %v7356 = vpop.f32.mrb[0].mxu0
          %7357 = vmatprep.mubr.bf16.mxu0 0
          %7358 = vmatmul.mubr.bf16.gmra.mrb[0].mxu0 %v7265
          %v7359 = vpop.f32.mrb[0].mxu0
          %v7360 = vadd.f32 0.0, %v7359
          %v7361 = vpop.f32.mrb[0].mxu0
          %v7362 = vpop.f32.mrb[0].mxu0
          %v7363 = vpop.f32.mrb[0].mxu0
          %7364 = vdwg.mxu0
          %v7365 = vadd.f32 %v7243, %v7352
          %v7366 = vadd.f32 %v7244, %v7355
          %v7367 = vadd.f32 %v7245, %v7360
          %s7368 = scalar_lea.vmem %s1, 1536
          %v7369 = vld [vmem:[%s7368] sm:$0xf]
          %v7370 = vld [vmem:[%s7368 + $0x4] sm:$0xf]
          %v7371 = vld [vmem:[%s7368 + $0x8] sm:$0xf]
          %v7372 = vld [vmem:[%s7368 + $0xc] sm:$0xf]
          %v7373 = vld [vmem:[%s7368 + $0x10] sm:$0xf]
          %v7374 = vld [vmem:[%s7368 + $0x14] sm:$0xf]
          %v7375 = vld [vmem:[%s7368 + $0x18] sm:$0xf]
          %v7376 = vld [vmem:[%s7368 + $0x1c] sm:$0xf]
          %v7377 = vld [vmem:[%s7368 + $0x20] sm:$0xf]
          %v7378 = vld [vmem:[%s7368 + $0x24] sm:$0xf]
          %v7379 = vld [vmem:[%s7368 + $0x28] sm:$0xf]
          %v7380 = vld [vmem:[%s7368 + $0x2c] sm:$0xf]
          %v7381 = vld [vmem:[%s7368 + $0x30] sm:$0xf]
          %v7382 = vld [vmem:[%s7368 + $0x34] sm:$0xf]
          %v7383 = vld [vmem:[%s7368 + $0x38] sm:$0xf]
          %v7384 = vld [vmem:[%s7368 + $0x3c] sm:$0xf]
          %v7386 = vrot.slane %v6630, 6
          %v7387 = vrot.slane %v6631, 6
          %v7388 = vsel %vm5649, %v7386, %v7387
          %v7389 = vrot.slane %v6632, 6
          %v7390 = vsel %vm5649, %v7387, %v7389
          %v7409 = vunpack.c.l.b16 %v7369
          %v7410 = vunpack.c.l.b16 %v7370
          %v7411 = vunpack.c.l.b16 %v7371
          %v7412 = vunpack.c.l.b16 %v7372
          %v7413 = vunpack.c.l.b16 %v7373
          %v7414 = vunpack.c.l.b16 %v7374
          %v7415 = vunpack.c.l.b16 %v7375
          %v7416 = vunpack.c.l.b16 %v7376
          %v7417 = vunpack.c.l.b16 %v7377
          %v7418 = vunpack.c.l.b16 %v7378
          %v7419 = vunpack.c.l.b16 %v7379
          %v7420 = vunpack.c.l.b16 %v7380
          %v7421 = vunpack.c.l.b16 %v7381
          %v7422 = vunpack.c.l.b16 %v7382
          %v7423 = vunpack.c.l.b16 %v7383
          %v7424 = vunpack.c.l.b16 %v7384
          %v7425 = vpack.c.b16 %v7410, %v7409
          %v7426 = vpack.c.b16 %v7412, %v7411
          %v7427 = vpack.c.b16 %v7414, %v7413
          %v7428 = vpack.c.b16 %v7416, %v7415
          %v7429 = vpack.c.b16 %v7418, %v7417
          %v7430 = vpack.c.b16 %v7420, %v7419
          %v7431 = vpack.c.b16 %v7422, %v7421
          %v7432 = vpack.c.b16 %v7424, %v7423
          %7441 = vmatprep.subr.bf16.mxu0 0
          %7442 = vmatpush1.bf16.msra.mxu0 %v7425
          %7443 = vmatprep.subr.bf16.mxu0 0
          %7444 = vmatpush1.bf16.msra.mxu0 %v7426
          %7445 = vmatprep.subr.bf16.mxu0 0
          %7446 = vmatpush1.bf16.msra.mxu0 %v7427
          %7447 = vmatprep.subr.bf16.mxu0 0
          %7448 = vmatpush1.bf16.msra.mxu0 %v7428
          %7449 = vmatprep.subr.bf16.mxu0 0
          %7450 = vmatpush1.bf16.msra.mxu0 %v7429
          %7451 = vmatprep.subr.bf16.mxu0 0
          %7452 = vmatpush1.bf16.msra.mxu0 %v7430
          %7453 = vmatprep.subr.bf16.mxu0 0
          %7454 = vmatpush1.bf16.msra.mxu0 %v7431
          %7455 = vmatprep.subr.bf16.mxu0 0
          %7456 = vmatpush1.bf16.msra.mxu0 %v7432
          %7457 = vmatprep.subr.bf16.mxu0 0
          %7458 = vmatpush1.bf16.msra.mxu0 0
          %7459 = vmatprep.subr.bf16.mxu0 0
          %7460 = vmatpush1.bf16.msra.mxu0 0
          %7461 = vmatprep.subr.bf16.mxu0 0
          %7462 = vmatpush1.bf16.msra.mxu0 0
          %7463 = vmatprep.subr.bf16.mxu0 0
          %7464 = vmatpush1.bf16.msra.mxu0 0
          %7465 = vmatprep.subr.bf16.mxu0 0
          %7466 = vmatpush1.bf16.msra.mxu0 0
          %7467 = vmatprep.subr.bf16.mxu0 0
          %7468 = vmatpush1.bf16.msra.mxu0 0
          %7469 = vmatprep.subr.bf16.mxu0 0
          %7470 = vmatpush1.bf16.msra.mxu0 0
          %7471 = vmatprep.subr.bf16.mxu0 0
          %7472 = vmatpush1.bf16.msra.mxu0 0
          %7473 = vmatprep.mubr.bf16.mxu0 0
          %7474 = vmatmul.mubr.bf16.gmra.mrb[0].mxu0 %v7388
          %v7475 = vpop.f32.mrb[0].mxu0
          %v7476 = vadd.f32 0.0, %v7475
          %v7477 = vpop.f32.mrb[0].mxu0
          %v7478 = vpop.f32.mrb[0].mxu0
          %v7479 = vadd.f32 0.0, %v7478
          %v7480 = vpop.f32.mrb[0].mxu0
          %7481 = vmatprep.mubr.bf16.mxu0 0
          %7482 = vmatmul.mubr.bf16.gmra.mrb[0].mxu0 %v7390
          %v7483 = vpop.f32.mrb[0].mxu0
          %v7484 = vadd.f32 0.0, %v7483
          %v7485 = vpop.f32.mrb[0].mxu0
          %v7486 = vpop.f32.mrb[0].mxu0
          %v7487 = vpop.f32.mrb[0].mxu0
          %7488 = vdwg.mxu0
          %v7489 = vadd.f32 %v7365, %v7476
          %v7490 = vadd.f32 %v7366, %v7479
          %v7491 = vadd.f32 %v7367, %v7484
          %s7492 = scalar_lea.vmem %s1, 1600
          %v7493 = vld [vmem:[%s7492] sm:$0xf]
          %v7494 = vld [vmem:[%s7492 + $0x4] sm:$0xf]
          %v7495 = vld [vmem:[%s7492 + $0x8] sm:$0xf]
          %v7496 = vld [vmem:[%s7492 + $0xc] sm:$0xf]
          %v7497 = vld [vmem:[%s7492 + $0x10] sm:$0xf]
          %v7498 = vld [vmem:[%s7492 + $0x14] sm:$0xf]
          %v7499 = vld [vmem:[%s7492 + $0x18] sm:$0xf]
          %v7500 = vld [vmem:[%s7492 + $0x1c] sm:$0xf]
          %v7501 = vld [vmem:[%s7492 + $0x20] sm:$0xf]
          %v7502 = vld [vmem:[%s7492 + $0x24] sm:$0xf]
          %v7503 = vld [vmem:[%s7492 + $0x28] sm:$0xf]
          %v7504 = vld [vmem:[%s7492 + $0x2c] sm:$0xf]
          %v7505 = vld [vmem:[%s7492 + $0x30] sm:$0xf]
          %v7506 = vld [vmem:[%s7492 + $0x34] sm:$0xf]
          %v7507 = vld [vmem:[%s7492 + $0x38] sm:$0xf]
          %v7508 = vld [vmem:[%s7492 + $0x3c] sm:$0xf]
          %vm7509 = vsmask.f32 1280
          %v7510 = vrot.slane %v6668, 6
          %v7511 = vrot.slane %v6670, 7
          %v7512 = vor.u32 %v7510, %v7511
          %v7513 = vrot.slane %v6679, 6
          %v7514 = vrot.slane %v6675, 7
          %v7515 = vor.u32 %v7513, %v7514
          %v7516 = vsel %vm7509, %v7512, %v7515
          %v7518 = vshrl.u32 %v6632, 16
          %v7520 = vrot.slane %v7518, 6
          %v7521 = vshll.u32 %v6632, 16
          %v7523 = vrot.slane %v7521, 7
          %v7524 = vor.u32 %v7520, %v7523
          %v7525 = vsel %vm7509, %v7515, %v7524
          %v7544 = vunpack.c.l.b16 %v7493
          %v7545 = vunpack.c.l.b16 %v7494
          %v7546 = vunpack.c.l.b16 %v7495
          %v7547 = vunpack.c.l.b16 %v7496
          %v7548 = vunpack.c.l.b16 %v7497
          %v7549 = vunpack.c.l.b16 %v7498
          %v7550 = vunpack.c.l.b16 %v7499
          %v7551 = vunpack.c.l.b16 %v7500
          %v7552 = vunpack.c.l.b16 %v7501
          %v7553 = vunpack.c.l.b16 %v7502
          %v7554 = vunpack.c.l.b16 %v7503
          %v7555 = vunpack.c.l.b16 %v7504
          %v7556 = vunpack.c.l.b16 %v7505
          %v7557 = vunpack.c.l.b16 %v7506
          %v7558 = vunpack.c.l.b16 %v7507
          %v7559 = vunpack.c.l.b16 %v7508
          %v7560 = vpack.c.b16 %v7545, %v7544
          %v7561 = vpack.c.b16 %v7547, %v7546
          %v7562 = vpack.c.b16 %v7549, %v7548
          %v7563 = vpack.c.b16 %v7551, %v7550
          %v7564 = vpack.c.b16 %v7553, %v7552
          %v7565 = vpack.c.b16 %v7555, %v7554
          %v7566 = vpack.c.b16 %v7557, %v7556
          %v7567 = vpack.c.b16 %v7559, %v7558
          %7576 = vmatprep.subr.bf16.mxu0 0
          %7577 = vmatpush1.bf16.msra.mxu0 %v7560
          %7578 = vmatprep.subr.bf16.mxu0 0
          %7579 = vmatpush1.bf16.msra.mxu0 %v7561
          %7580 = vmatprep.subr.bf16.mxu0 0
          %7581 = vmatpush1.bf16.msra.mxu0 %v7562
          %7582 = vmatprep.subr.bf16.mxu0 0
          %7583 = vmatpush1.bf16.msra.mxu0 %v7563
          %7584 = vmatprep.subr.bf16.mxu0 0
          %7585 = vmatpush1.bf16.msra.mxu0 %v7564
          %7586 = vmatprep.subr.bf16.mxu0 0
          %7587 = vmatpush1.bf16.msra.mxu0 %v7565
          %7588 = vmatprep.subr.bf16.mxu0 0
          %7589 = vmatpush1.bf16.msra.mxu0 %v7566
          %7590 = vmatprep.subr.bf16.mxu0 0
          %7591 = vmatpush1.bf16.msra.mxu0 %v7567
          %7592 = vmatprep.subr.bf16.mxu0 0
          %7593 = vmatpush1.bf16.msra.mxu0 0
          %7594 = vmatprep.subr.bf16.mxu0 0
          %7595 = vmatpush1.bf16.msra.mxu0 0
          %7596 = vmatprep.subr.bf16.mxu0 0
          %7597 = vmatpush1.bf16.msra.mxu0 0
          %7598 = vmatprep.subr.bf16.mxu0 0
          %7599 = vmatpush1.bf16.msra.mxu0 0
          %7600 = vmatprep.subr.bf16.mxu0 0
          %7601 = vmatpush1.bf16.msra.mxu0 0
          %7602 = vmatprep.subr.bf16.mxu0 0
          %7603 = vmatpush1.bf16.msra.mxu0 0
          %7604 = vmatprep.subr.bf16.mxu0 0
          %7605 = vmatpush1.bf16.msra.mxu0 0
          %7606 = vmatprep.subr.bf16.mxu0 0
          %7607 = vmatpush1.bf16.msra.mxu0 0
          %7608 = vmatprep.mubr.bf16.mxu0 0
          %7609 = vmatmul.mubr.bf16.gmra.mrb[0].mxu0 %v7516
          %v7610 = vpop.f32.mrb[0].mxu0
          %v7611 = vadd.f32 0.0, %v7610
          %v7612 = vpop.f32.mrb[0].mxu0
          %v7613 = vpop.f32.mrb[0].mxu0
          %v7614 = vadd.f32 0.0, %v7613
          %v7615 = vpop.f32.mrb[0].mxu0
          %7616 = vmatprep.mubr.bf16.mxu0 0
          %7617 = vmatmul.mubr.bf16.gmra.mrb[0].mxu0 %v7525
          %v7618 = vpop.f32.mrb[0].mxu0
          %v7619 = vadd.f32 0.0, %v7618
          %v7620 = vpop.f32.mrb[0].mxu0
          %v7621 = vpop.f32.mrb[0].mxu0
          %v7622 = vpop.f32.mrb[0].mxu0
          %7623 = vdwg.mxu0
          %v7624 = vadd.f32 %v7489, %v7611
          %v7625 = vadd.f32 %v7490, %v7614
          %v7626 = vadd.f32 %v7491, %v7619
          %s7627 = scalar_lea.vmem %s1, 1664
          %v7628 = vld [vmem:[%s7627] sm:$0xf]
          %v7629 = vld [vmem:[%s7627 + $0x4] sm:$0xf]
          %v7630 = vld [vmem:[%s7627 + $0x8] sm:$0xf]
          %v7631 = vld [vmem:[%s7627 + $0xc] sm:$0xf]
          %v7632 = vld [vmem:[%s7627 + $0x10] sm:$0xf]
          %v7633 = vld [vmem:[%s7627 + $0x14] sm:$0xf]
          %v7634 = vld [vmem:[%s7627 + $0x18] sm:$0xf]
          %v7635 = vld [vmem:[%s7627 + $0x1c] sm:$0xf]
          %v7636 = vld [vmem:[%s7627 + $0x20] sm:$0xf]
          %v7637 = vld [vmem:[%s7627 + $0x24] sm:$0xf]
          %v7638 = vld [vmem:[%s7627 + $0x28] sm:$0xf]
          %v7639 = vld [vmem:[%s7627 + $0x2c] sm:$0xf]
          %v7640 = vld [vmem:[%s7627 + $0x30] sm:$0xf]
          %v7641 = vld [vmem:[%s7627 + $0x34] sm:$0xf]
          %v7642 = vld [vmem:[%s7627 + $0x38] sm:$0xf]
          %v7643 = vld [vmem:[%s7627 + $0x3c] sm:$0xf]
          %vm7644 = vcmask 1040384
          %v7645 = vrot.slane %v6630, 7
          %v7646 = vrot.slane %v6631, 7
          %v7647 = vsel %vm7644, %v7645, %v7646
          %v7648 = vrot.slane %v6632, 7
          %v7649 = vsel %vm7644, %v7646, %v7648
          %v7668 = vunpack.c.l.b16 %v7628
          %v7669 = vunpack.c.l.b16 %v7629
          %v7670 = vunpack.c.l.b16 %v7630
          %v7671 = vunpack.c.l.b16 %v7631
          %v7672 = vunpack.c.l.b16 %v7632
          %v7673 = vunpack.c.l.b16 %v7633
          %v7674 = vunpack.c.l.b16 %v7634
          %v7675 = vunpack.c.l.b16 %v7635
          %v7676 = vunpack.c.l.b16 %v7636
          %v7677 = vunpack.c.l.b16 %v7637
          %v7678 = vunpack.c.l.b16 %v7638
          %v7679 = vunpack.c.l.b16 %v7639
          %v7680 = vunpack.c.l.b16 %v7640
          %v7681 = vunpack.c.l.b16 %v7641
          %v7682 = vunpack.c.l.b16 %v7642
          %v7683 = vunpack.c.l.b16 %v7643
          %v7684 = vpack.c.b16 %v7669, %v7668
          %v7685 = vpack.c.b16 %v7671, %v7670
          %v7686 = vpack.c.b16 %v7673, %v7672
          %v7687 = vpack.c.b16 %v7675, %v7674
          %v7688 = vpack.c.b16 %v7677, %v7676
          %v7689 = vpack.c.b16 %v7679, %v7678
          %v7690 = vpack.c.b16 %v7681, %v7680
          %v7691 = vpack.c.b16 %v7683, %v7682
          %7700 = vmatprep.subr.bf16.mxu0 0
          %7701 = vmatpush1.bf16.msra.mxu0 %v7684
          %7702 = vmatprep.subr.bf16.mxu0 0
          %7703 = vmatpush1.bf16.msra.mxu0 %v7685
          %7704 = vmatprep.subr.bf16.mxu0 0
          %7705 = vmatpush1.bf16.msra.mxu0 %v7686
          %7706 = vmatprep.subr.bf16.mxu0 0
          %7707 = vmatpush1.bf16.msra.mxu0 %v7687
          %7708 = vmatprep.subr.bf16.mxu0 0
          %7709 = vmatpush1.bf16.msra.mxu0 %v7688
          %7710 = vmatprep.subr.bf16.mxu0 0
          %7711 = vmatpush1.bf16.msra.mxu0 %v7689
          %7712 = vmatprep.subr.bf16.mxu0 0
          %7713 = vmatpush1.bf16.msra.mxu0 %v7690
          %7714 = vmatprep.subr.bf16.mxu0 0
          %7715 = vmatpush1.bf16.msra.mxu0 %v7691
          %7716 = vmatprep.subr.bf16.mxu0 0
          %7717 = vmatpush1.bf16.msra.mxu0 0
          %7718 = vmatprep.subr.bf16.mxu0 0
          %7719 = vmatpush1.bf16.msra.mxu0 0
          %7720 = vmatprep.subr.bf16.mxu0 0
          %7721 = vmatpush1.bf16.msra.mxu0 0
          %7722 = vmatprep.subr.bf16.mxu0 0
          %7723 = vmatpush1.bf16.msra.mxu0 0
          %7724 = vmatprep.subr.bf16.mxu0 0
          %7725 = vmatpush1.bf16.msra.mxu0 0
          %7726 = vmatprep.subr.bf16.mxu0 0
          %7727 = vmatpush1.bf16.msra.mxu0 0
          %7728 = vmatprep.subr.bf16.mxu0 0
          %7729 = vmatpush1.bf16.msra.mxu0 0
          %7730 = vmatprep.subr.bf16.mxu0 0
          %7731 = vmatpush1.bf16.msra.mxu0 0
          %7732 = vmatprep.mubr.bf16.mxu0 0
          %7733 = vmatmul.mubr.bf16.gmra.mrb[0].mxu0 %v7647
          %v7734 = vpop.f32.mrb[0].mxu0
          %v7735 = vadd.f32 0.0, %v7734
          %v7736 = vpop.f32.mrb[0].mxu0
          %v7737 = vpop.f32.mrb[0].mxu0
          %v7738 = vadd.f32 0.0, %v7737
          %v7739 = vpop.f32.mrb[0].mxu0
          %7740 = vmatprep.mubr.bf16.mxu0 0
          %7741 = vmatmul.mubr.bf16.gmra.mrb[0].mxu0 %v7649
          %v7742 = vpop.f32.mrb[0].mxu0
          %v7743 = vadd.f32 0.0, %v7742
          %v7744 = vpop.f32.mrb[0].mxu0
          %v7745 = vpop.f32.mrb[0].mxu0
          %v7746 = vpop.f32.mrb[0].mxu0
          %7747 = vdwg.mxu0
          %v7748 = vadd.f32 %v7624, %v7735
          %v7749 = vadd.f32 %v7625, %v7738
          %v7750 = vadd.f32 %v7626, %v7743
          %s7751 = scalar_lea.vmem %s2, 2
          %v7752 = vld [vmem:[%s7751] sm:$0x1]
          %v7754 = vlaneseq
          %v7755 = vshrl.u32 %v7754, 7
          %v7756 = vsub.s32 0, %v7755
          %v7757 = vrot.slane %v7752, %v7756
          %v7759 = vadd.f32 %v7748, %v7757
          %v7760 = vadd.f32 %v7749, %v7757
          %v7761 = vadd.f32 %v7750, %v7757
          %v7762 = vmax.f32 %v7759, 0.0
          %v7763 = vmax.f32 %v7760, 0.0
          %v7764 = vmax.f32 %v7761, 0.0
          %v7765 = vpack.c.bf16 %v7763, %v7762
          %v7766 = vpack.c.bf16 %v7764, %v7764
          %v7767 = vld [vmem:[%s5] sm:$0xf]
          %v7768 = vld [vmem:[%s5 + $0x4] sm:$0xf]
          %v7769 = vld [vmem:[%s5 + $0x8] sm:$0xf]
          %v7770 = vld [vmem:[%s5 + $0xc] sm:$0xf]
          %v7771 = vld [vmem:[%s5 + $0x10] sm:$0xf]
          %v7772 = vld [vmem:[%s5 + $0x14] sm:$0xf]
          %v7773 = vld [vmem:[%s5 + $0x18] sm:$0xf]
          %v7774 = vld [vmem:[%s5 + $0x1c] sm:$0xf]
          %v7775 = vld [vmem:[%s5 + $0x20] sm:$0xf]
          %v7785 = vunpack.c.l.b16 %v7767
          %v7786 = vunpack.c.l.b16 %v7768
          %v7787 = vunpack.c.l.b16 %v7769
          %v7788 = vunpack.c.l.b16 %v7770
          %v7789 = vunpack.c.l.b16 %v7771
          %v7790 = vunpack.c.l.b16 %v7772
          %v7791 = vunpack.c.l.b16 %v7773
          %v7792 = vunpack.c.l.b16 %v7774
          %v7793 = vunpack.c.l.b16 %v7775
          %v7794 = vpack.c.b16 %v7786, %v7785
          %v7795 = vpack.c.b16 %v7788, %v7787
          %v7796 = vpack.c.b16 %v7790, %v7789
          %v7797 = vpack.c.b16 %v7792, %v7791
          %v7798 = vpack.c.b16 %v7793, %v7793
          %vm7799 = vcmask 195584
          %v7801 = vsel %vm7799, %v7794, 0
          %v7804 = vsel %vm7799, %v7795, 0
          %v7807 = vsel %vm7799, %v7796, 0
          %v7810 = vsel %vm7799, %v7797, 0
          %v7813 = vsel %vm7799, %v7798, 0
          %v7816 = vsel %vm4732, %v7766, 0
          %7818 = vmatprep.subr.bf16.mxu0 0
          %7819 = vmatpush1.bf16.msra.mxu0 %v7765
          %7820 = vmatprep.subr.bf16.mxu0 0
          %7821 = vmatpush1.bf16.msra.mxu0 %v7816
          %7822 = vmatprep.subr.bf16.mxu0 0
          %7823 = vmatpush1.bf16.msra.mxu0 0
          %7824 = vmatprep.subr.bf16.mxu0 0
          %7825 = vmatpush1.bf16.msra.mxu0 0
          %7826 = vmatprep.subr.bf16.mxu0 0
          %7827 = vmatpush1.bf16.msra.mxu0 0
          %7828 = vmatprep.subr.bf16.mxu0 0
          %7829 = vmatpush1.bf16.msra.mxu0 0
          %7830 = vmatprep.subr.bf16.mxu0 0
          %7831 = vmatpush1.bf16.msra.mxu0 0
          %7832 = vmatprep.subr.bf16.mxu0 0
          %7833 = vmatpush1.bf16.msra.mxu0 0
          %7834 = vmatprep.subr.bf16.mxu0 0
          %7835 = vmatpush1.bf16.msra.mxu0 0
          %7836 = vmatprep.subr.bf16.mxu0 0
          %7837 = vmatpush1.bf16.msra.mxu0 0
          %7838 = vmatprep.subr.bf16.mxu0 0
          %7839 = vmatpush1.bf16.msra.mxu0 0
          %7840 = vmatprep.subr.bf16.mxu0 0
          %7841 = vmatpush1.bf16.msra.mxu0 0
          %7842 = vmatprep.subr.bf16.mxu0 0
          %7843 = vmatpush1.bf16.msra.mxu0 0
          %7844 = vmatprep.subr.bf16.mxu0 0
          %7845 = vmatpush1.bf16.msra.mxu0 0
          %7846 = vmatprep.subr.bf16.mxu0 0
          %7847 = vmatpush1.bf16.msra.mxu0 0
          %7848 = vmatprep.subr.bf16.mxu0 0
          %7849 = vmatpush1.bf16.msra.mxu0 0
          %7850 = vmatprep.mubr.bf16.mxu0 0
          %7851 = vmatmul.mubr.bf16.gmra.mrb[0].mxu0 %v7801
          %v7852 = vpop.f32.mrb[0].mxu0
          %v7853 = vadd.f32 0.0, %v7852
          %v7854 = vpop.f32.mrb[0].mxu0
          %v7855 = vpop.f32.mrb[0].mxu0
          %v7856 = vadd.f32 0.0, %v7855
          %v7857 = vpop.f32.mrb[0].mxu0
          %7858 = vmatprep.mubr.bf16.mxu0 0
          %7859 = vmatmul.mubr.bf16.gmra.mrb[0].mxu0 %v7804
          %v7860 = vpop.f32.mrb[0].mxu0
          %v7861 = vadd.f32 0.0, %v7860
          %v7862 = vpop.f32.mrb[0].mxu0
          %v7863 = vpop.f32.mrb[0].mxu0
          %v7864 = vadd.f32 0.0, %v7863
          %v7865 = vpop.f32.mrb[0].mxu0
          %7866 = vmatprep.mubr.bf16.mxu0 0
          %7867 = vmatmul.mubr.bf16.gmra.mrb[0].mxu0 %v7807
          %v7868 = vpop.f32.mrb[0].mxu0
          %v7869 = vadd.f32 0.0, %v7868
          %v7870 = vpop.f32.mrb[0].mxu0
          %v7871 = vpop.f32.mrb[0].mxu0
          %v7872 = vadd.f32 0.0, %v7871
          %v7873 = vpop.f32.mrb[0].mxu0
          %7874 = vmatprep.mubr.bf16.mxu0 0
          %7875 = vmatmul.mubr.bf16.gmra.mrb[0].mxu0 %v7810
          %v7876 = vpop.f32.mrb[0].mxu0
          %v7877 = vadd.f32 0.0, %v7876
          %v7878 = vpop.f32.mrb[0].mxu0
          %v7879 = vpop.f32.mrb[0].mxu0
          %v7880 = vadd.f32 0.0, %v7879
          %v7881 = vpop.f32.mrb[0].mxu0
          %7882 = vmatprep.mubr.bf16.mxu0 0
          %7883 = vmatmul.mubr.bf16.gmra.mrb[0].mxu0 %v7813
          %v7884 = vpop.f32.mrb[0].mxu0
          %v7885 = vadd.f32 0.0, %v7884
          %v7886 = vpop.f32.mrb[0].mxu0
          %v7887 = vpop.f32.mrb[0].mxu0
          %v7888 = vpop.f32.mrb[0].mxu0
          %7889 = vdwg.mxu0
          %vm7893 = vcmask 1045504
          %v7894 = vrot.slane %v7861, 2
          %v7895 = vrot.slane %v7864, 2
          %v7896 = vsel %vm7893, %v7894, %v7895
          %v7897 = vrot.slane %v7869, 2
          %v7898 = vsel %vm7893, %v7895, %v7897
          %v7902 = vmax.f32 %v7853, %v7896
          %v7903 = vmax.f32 %v7856, %v7898
          %v7904 = vmax.f32 %v7861, %v7897
          %v7908 = vrot.slane %v7877, 2
          %v7909 = vrot.slane %v7880, 2
          %v7910 = vsel %vm7893, %v7908, %v7909
          %v7911 = vrot.slane %v7885, 2
          %v7912 = vsel %vm7893, %v7909, %v7911
          %v7916 = vmax.f32 %v7869, %v7910
          %v7917 = vmax.f32 %v7872, %v7912
          %v7918 = vmax.f32 %v7877, %v7911
          %v7922 = vrot.slane %v7916, 4
          %v7923 = vrot.slane %v7917, 4
          %v7924 = vsel %vm4732, %v7922, %v7923
          %v7925 = vrot.slane %v7918, 4
          %v7926 = vsel %vm4732, %v7923, %v7925
          %v7930 = vmax.f32 %v7902, %v7924
          %v7931 = vmax.f32 %v7903, %v7926
          %v7932 = vmax.f32 %v7904, %v7925
          %v7933 = vpack.c.bf16 %v7931, %v7930
          %v7934 = vpack.c.bf16 %v7932, %v7932
          %s7935 = scalar_lea.vmem %s1, 1728
          %v7936 = vld [vmem:[%s7935] sm:$0xf]
          %v7937 = vld [vmem:[%s7935 + $0x4] sm:$0xf]
          %v7938 = vld [vmem:[%s7935 + $0x8] sm:$0xf]
          %v7939 = vld [vmem:[%s7935 + $0xc] sm:$0xf]
          %v7940 = vld [vmem:[%s7935 + $0x10] sm:$0xf]
          %v7941 = vld [vmem:[%s7935 + $0x14] sm:$0xf]
          %v7942 = vld [vmem:[%s7935 + $0x18] sm:$0xf]
          %v7943 = vld [vmem:[%s7935 + $0x1c] sm:$0xf]
          %v7944 = vld [vmem:[%s7935 + $0x20] sm:$0xf]
          %v7945 = vld [vmem:[%s7935 + $0x24] sm:$0xf]
          %v7946 = vld [vmem:[%s7935 + $0x28] sm:$0xf]
          %v7947 = vld [vmem:[%s7935 + $0x2c] sm:$0xf]
          %v7948 = vld [vmem:[%s7935 + $0x30] sm:$0xf]
          %v7949 = vld [vmem:[%s7935 + $0x34] sm:$0xf]
          %v7950 = vld [vmem:[%s7935 + $0x38] sm:$0xf]
          %v7951 = vld [vmem:[%s7935 + $0x3c] sm:$0xf]
          %s7952 = scalar_lea.vmem %s1, 1792
          %v7953 = vld [vmem:[%s7952] sm:$0xf]
          %v7954 = vld [vmem:[%s7952 + $0x4] sm:$0xf]
          %v7955 = vld [vmem:[%s7952 + $0x8] sm:$0xf]
          %v7956 = vld [vmem:[%s7952 + $0xc] sm:$0xf]
          %v7957 = vld [vmem:[%s7952 + $0x10] sm:$0xf]
          %v7958 = vld [vmem:[%s7952 + $0x14] sm:$0xf]
          %v7959 = vld [vmem:[%s7952 + $0x18] sm:$0xf]
          %v7960 = vld [vmem:[%s7952 + $0x1c] sm:$0xf]
          %v7961 = vld [vmem:[%s7952 + $0x20] sm:$0xf]
          %v7962 = vld [vmem:[%s7952 + $0x24] sm:$0xf]
          %v7963 = vld [vmem:[%s7952 + $0x28] sm:$0xf]
          %v7964 = vld [vmem:[%s7952 + $0x2c] sm:$0xf]
          %v7965 = vld [vmem:[%s7952 + $0x30] sm:$0xf]
          %v7966 = vld [vmem:[%s7952 + $0x34] sm:$0xf]
          %v7967 = vld [vmem:[%s7952 + $0x38] sm:$0xf]
          %v7968 = vld [vmem:[%s7952 + $0x3c] sm:$0xf]
          %v7970 = vshrl.u32 %v7933, 16
          %v7972 = vshll.u32 %v7933, 16
          %v7974 = vrot.slane %v7972, 1
          %v7975 = vor.u32 %v7970, %v7974
          %v7993 = vunpack.c.l.b16 %v7953
          %v7994 = vunpack.c.l.b16 %v7954
          %v7995 = vunpack.c.l.b16 %v7955
          %v7996 = vunpack.c.l.b16 %v7956
          %v7997 = vunpack.c.l.b16 %v7957
          %v7998 = vunpack.c.l.b16 %v7958
          %v7999 = vunpack.c.l.b16 %v7959
          %v8000 = vunpack.c.l.b16 %v7960
          %v8001 = vunpack.c.l.b16 %v7961
          %v8002 = vunpack.c.l.b16 %v7962
          %v8003 = vunpack.c.l.b16 %v7963
          %v8004 = vunpack.c.l.b16 %v7964
          %v8005 = vunpack.c.l.b16 %v7965
          %v8006 = vunpack.c.l.b16 %v7966
          %v8007 = vunpack.c.l.b16 %v7967
          %v8008 = vunpack.c.l.b16 %v7968
          %v8009 = vpack.c.b16 %v7994, %v7993
          %v8010 = vpack.c.b16 %v7996, %v7995
          %v8011 = vpack.c.b16 %v7998, %v7997
          %v8012 = vpack.c.b16 %v8000, %v7999
          %v8013 = vpack.c.b16 %v8002, %v8001
          %v8014 = vpack.c.b16 %v8004, %v8003
          %v8015 = vpack.c.b16 %v8006, %v8005
          %v8016 = vpack.c.b16 %v8008, %v8007
          %8025 = vmatprep.subr.bf16.mxu0 0
          %8026 = vmatpush1.bf16.msra.mxu0 %v8009
          %8027 = vmatprep.subr.bf16.mxu0 0
          %8028 = vmatpush1.bf16.msra.mxu0 %v8010
          %8029 = vmatprep.subr.bf16.mxu0 0
          %8030 = vmatpush1.bf16.msra.mxu0 %v8011
          %8031 = vmatprep.subr.bf16.mxu0 0
          %8032 = vmatpush1.bf16.msra.mxu0 %v8012
          %8033 = vmatprep.subr.bf16.mxu0 0
          %8034 = vmatpush1.bf16.msra.mxu0 %v8013
          %8035 = vmatprep.subr.bf16.mxu0 0
          %8036 = vmatpush1.bf16.msra.mxu0 %v8014
          %8037 = vmatprep.subr.bf16.mxu0 0
          %8038 = vmatpush1.bf16.msra.mxu0 %v8015
          %8039 = vmatprep.subr.bf16.mxu0 0
          %8040 = vmatpush1.bf16.msra.mxu0 %v8016
          %8041 = vmatprep.subr.bf16.mxu0 0
          %8042 = vmatpush1.bf16.msra.mxu0 0
          %8043 = vmatprep.subr.bf16.mxu0 0
          %8044 = vmatpush1.bf16.msra.mxu0 0
          %8045 = vmatprep.subr.bf16.mxu0 0
          %8046 = vmatpush1.bf16.msra.mxu0 0
          %8047 = vmatprep.subr.bf16.mxu0 0
          %8048 = vmatpush1.bf16.msra.mxu0 0
          %8049 = vmatprep.subr.bf16.mxu0 0
          %8050 = vmatpush1.bf16.msra.mxu0 0
          %8051 = vmatprep.subr.bf16.mxu0 0
          %8052 = vmatpush1.bf16.msra.mxu0 0
          %8053 = vmatprep.subr.bf16.mxu0 0
          %8054 = vmatpush1.bf16.msra.mxu0 0
          %8055 = vmatprep.subr.bf16.mxu0 0
          %8056 = vmatpush1.bf16.msra.mxu0 0
          %8057 = vmatprep.mubr.bf16.mxu0 0
          %8058 = vmatmul.mubr.bf16.gmra.mrb[0].mxu0 %v7975
          %v8059 = vpop.f32.mrb[0].mxu0
          %v8060 = vadd.f32 0.0, %v8059
          %v8061 = vpop.f32.mrb[0].mxu0
          %v8062 = vpop.f32.mrb[0].mxu0
          %v8063 = vpop.f32.mrb[0].mxu0
          %8064 = vdwg.mxu0
          %v8081 = vunpack.c.l.b16 %v7936
          %v8082 = vunpack.c.l.b16 %v7937
          %v8083 = vunpack.c.l.b16 %v7938
          %v8084 = vunpack.c.l.b16 %v7939
          %v8085 = vunpack.c.l.b16 %v7940
          %v8086 = vunpack.c.l.b16 %v7941
          %v8087 = vunpack.c.l.b16 %v7942
          %v8088 = vunpack.c.l.b16 %v7943
          %v8089 = vunpack.c.l.b16 %v7944
          %v8090 = vunpack.c.l.b16 %v7945
          %v8091 = vunpack.c.l.b16 %v7946
          %v8092 = vunpack.c.l.b16 %v7947
          %v8093 = vunpack.c.l.b16 %v7948
          %v8094 = vunpack.c.l.b16 %v7949
          %v8095 = vunpack.c.l.b16 %v7950
          %v8096 = vunpack.c.l.b16 %v7951
          %v8097 = vpack.c.b16 %v8082, %v8081
          %v8098 = vpack.c.b16 %v8084, %v8083
          %v8099 = vpack.c.b16 %v8086, %v8085
          %v8100 = vpack.c.b16 %v8088, %v8087
          %v8101 = vpack.c.b16 %v8090, %v8089
          %v8102 = vpack.c.b16 %v8092, %v8091
          %v8103 = vpack.c.b16 %v8094, %v8093
          %v8104 = vpack.c.b16 %v8096, %v8095
          %8113 = vmatprep.subr.bf16.mxu0 0
          %8114 = vmatpush1.bf16.msra.mxu0 %v8097
          %8115 = vmatprep.subr.bf16.mxu0 0
          %8116 = vmatpush1.bf16.msra.mxu0 %v8098
          %8117 = vmatprep.subr.bf16.mxu0 0
          %8118 = vmatpush1.bf16.msra.mxu0 %v8099
          %8119 = vmatprep.subr.bf16.mxu0 0
          %8120 = vmatpush1.bf16.msra.mxu0 %v8100
          %8121 = vmatprep.subr.bf16.mxu0 0
          %8122 = vmatpush1.bf16.msra.mxu0 %v8101
          %8123 = vmatprep.subr.bf16.mxu0 0
          %8124 = vmatpush1.bf16.msra.mxu0 %v8102
          %8125 = vmatprep.subr.bf16.mxu0 0
          %8126 = vmatpush1.bf16.msra.mxu0 %v8103
          %8127 = vmatprep.subr.bf16.mxu0 0
          %8128 = vmatpush1.bf16.msra.mxu0 %v8104
          %8129 = vmatprep.subr.bf16.mxu0 0
          %8130 = vmatpush1.bf16.msra.mxu0 0
          %8131 = vmatprep.subr.bf16.mxu0 0
          %8132 = vmatpush1.bf16.msra.mxu0 0
          %8133 = vmatprep.subr.bf16.mxu0 0
          %8134 = vmatpush1.bf16.msra.mxu0 0
          %8135 = vmatprep.subr.bf16.mxu0 0
          %8136 = vmatpush1.bf16.msra.mxu0 0
          %8137 = vmatprep.subr.bf16.mxu0 0
          %8138 = vmatpush1.bf16.msra.mxu0 0
          %8139 = vmatprep.subr.bf16.mxu0 0
          %8140 = vmatpush1.bf16.msra.mxu0 0
          %8141 = vmatprep.subr.bf16.mxu0 0
          %8142 = vmatpush1.bf16.msra.mxu0 0
          %8143 = vmatprep.subr.bf16.mxu0 0
          %8144 = vmatpush1.bf16.msra.mxu0 0
          %8145 = vmatprep.mubr.bf16.mxu0 0
          %8146 = vmatmul.mubr.bf16.gmra.mrb[0].mxu0 %v7933
          %v8147 = vpop.f32.mrb[0].mxu0
          %v8148 = vadd.f32 %v8060, %v8147
          %v8149 = vpop.f32.mrb[0].mxu0
          %v8150 = vpop.f32.mrb[0].mxu0
          %v8151 = vpop.f32.mrb[0].mxu0
          %8152 = vdwg.mxu0
          %s8153 = scalar_lea.vmem %s1, 1856
          %v8154 = vld [vmem:[%s8153] sm:$0xf]
          %v8155 = vld [vmem:[%s8153 + $0x4] sm:$0xf]
          %v8156 = vld [vmem:[%s8153 + $0x8] sm:$0xf]
          %v8157 = vld [vmem:[%s8153 + $0xc] sm:$0xf]
          %v8158 = vld [vmem:[%s8153 + $0x10] sm:$0xf]
          %v8159 = vld [vmem:[%s8153 + $0x14] sm:$0xf]
          %v8160 = vld [vmem:[%s8153 + $0x18] sm:$0xf]
          %v8161 = vld [vmem:[%s8153 + $0x1c] sm:$0xf]
          %v8162 = vld [vmem:[%s8153 + $0x20] sm:$0xf]
          %v8163 = vld [vmem:[%s8153 + $0x24] sm:$0xf]
          %v8164 = vld [vmem:[%s8153 + $0x28] sm:$0xf]
          %v8165 = vld [vmem:[%s8153 + $0x2c] sm:$0xf]
          %v8166 = vld [vmem:[%s8153 + $0x30] sm:$0xf]
          %v8167 = vld [vmem:[%s8153 + $0x34] sm:$0xf]
          %v8168 = vld [vmem:[%s8153 + $0x38] sm:$0xf]
          %v8169 = vld [vmem:[%s8153 + $0x3c] sm:$0xf]
          %v8171 = vrot.slane %v7933, 1
          %v8189 = vunpack.c.l.b16 %v8154
          %v8190 = vunpack.c.l.b16 %v8155
          %v8191 = vunpack.c.l.b16 %v8156
          %v8192 = vunpack.c.l.b16 %v8157
          %v8193 = vunpack.c.l.b16 %v8158
          %v8194 = vunpack.c.l.b16 %v8159
          %v8195 = vunpack.c.l.b16 %v8160
          %v8196 = vunpack.c.l.b16 %v8161
          %v8197 = vunpack.c.l.b16 %v8162
          %v8198 = vunpack.c.l.b16 %v8163
          %v8199 = vunpack.c.l.b16 %v8164
          %v8200 = vunpack.c.l.b16 %v8165
          %v8201 = vunpack.c.l.b16 %v8166
          %v8202 = vunpack.c.l.b16 %v8167
          %v8203 = vunpack.c.l.b16 %v8168
          %v8204 = vunpack.c.l.b16 %v8169
          %v8205 = vpack.c.b16 %v8190, %v8189
          %v8206 = vpack.c.b16 %v8192, %v8191
          %v8207 = vpack.c.b16 %v8194, %v8193
          %v8208 = vpack.c.b16 %v8196, %v8195
          %v8209 = vpack.c.b16 %v8198, %v8197
          %v8210 = vpack.c.b16 %v8200, %v8199
          %v8211 = vpack.c.b16 %v8202, %v8201
          %v8212 = vpack.c.b16 %v8204, %v8203
          %8221 = vmatprep.subr.bf16.mxu0 0
          %8222 = vmatpush1.bf16.msra.mxu0 %v8205
          %8223 = vmatprep.subr.bf16.mxu0 0
          %8224 = vmatpush1.bf16.msra.mxu0 %v8206
          %8225 = vmatprep.subr.bf16.mxu0 0
          %8226 = vmatpush1.bf16.msra.mxu0 %v8207
          %8227 = vmatprep.subr.bf16.mxu0 0
          %8228 = vmatpush1.bf16.msra.mxu0 %v8208
          %8229 = vmatprep.subr.bf16.mxu0 0
          %8230 = vmatpush1.bf16.msra.mxu0 %v8209
          %8231 = vmatprep.subr.bf16.mxu0 0
          %8232 = vmatpush1.bf16.msra.mxu0 %v8210
          %8233 = vmatprep.subr.bf16.mxu0 0
          %8234 = vmatpush1.bf16.msra.mxu0 %v8211
          %8235 = vmatprep.subr.bf16.mxu0 0
          %8236 = vmatpush1.bf16.msra.mxu0 %v8212
          %8237 = vmatprep.subr.bf16.mxu0 0
          %8238 = vmatpush1.bf16.msra.mxu0 0
          %8239 = vmatprep.subr.bf16.mxu0 0
          %8240 = vmatpush1.bf16.msra.mxu0 0
          %8241 = vmatprep.subr.bf16.mxu0 0
          %8242 = vmatpush1.bf16.msra.mxu0 0
          %8243 = vmatprep.subr.bf16.mxu0 0
          %8244 = vmatpush1.bf16.msra.mxu0 0
          %8245 = vmatprep.subr.bf16.mxu0 0
          %8246 = vmatpush1.bf16.msra.mxu0 0
          %8247 = vmatprep.subr.bf16.mxu0 0
          %8248 = vmatpush1.bf16.msra.mxu0 0
          %8249 = vmatprep.subr.bf16.mxu0 0
          %8250 = vmatpush1.bf16.msra.mxu0 0
          %8251 = vmatprep.subr.bf16.mxu0 0
          %8252 = vmatpush1.bf16.msra.mxu0 0
          %8253 = vmatprep.mubr.bf16.mxu0 0
          %8254 = vmatmul.mubr.bf16.gmra.mrb[0].mxu0 %v8171
          %v8255 = vpop.f32.mrb[0].mxu0
          %v8256 = vadd.f32 0.0, %v8255
          %v8257 = vpop.f32.mrb[0].mxu0
          %v8258 = vpop.f32.mrb[0].mxu0
          %v8259 = vpop.f32.mrb[0].mxu0
          %8260 = vdwg.mxu0
          %v8261 = vadd.f32 %v8148, %v8256
          %s8262 = scalar_lea.vmem %s1, 1920
          %v8263 = vld [vmem:[%s8262] sm:$0xf]
          %v8264 = vld [vmem:[%s8262 + $0x4] sm:$0xf]
          %v8265 = vld [vmem:[%s8262 + $0x8] sm:$0xf]
          %v8266 = vld [vmem:[%s8262 + $0xc] sm:$0xf]
          %v8267 = vld [vmem:[%s8262 + $0x10] sm:$0xf]
          %v8268 = vld [vmem:[%s8262 + $0x14] sm:$0xf]
          %v8269 = vld [vmem:[%s8262 + $0x18] sm:$0xf]
          %v8270 = vld [vmem:[%s8262 + $0x1c] sm:$0xf]
          %v8271 = vld [vmem:[%s8262 + $0x20] sm:$0xf]
          %v8272 = vld [vmem:[%s8262 + $0x24] sm:$0xf]
          %v8273 = vld [vmem:[%s8262 + $0x28] sm:$0xf]
          %v8274 = vld [vmem:[%s8262 + $0x2c] sm:$0xf]
          %v8275 = vld [vmem:[%s8262 + $0x30] sm:$0xf]
          %v8276 = vld [vmem:[%s8262 + $0x34] sm:$0xf]
          %v8277 = vld [vmem:[%s8262 + $0x38] sm:$0xf]
          %v8278 = vld [vmem:[%s8262 + $0x3c] sm:$0xf]
          %v8279 = vrot.slane %v7933, 2
          %v8297 = vunpack.c.l.b16 %v8263
          %v8298 = vunpack.c.l.b16 %v8264
          %v8299 = vunpack.c.l.b16 %v8265
          %v8300 = vunpack.c.l.b16 %v8266
          %v8301 = vunpack.c.l.b16 %v8267
          %v8302 = vunpack.c.l.b16 %v8268
          %v8303 = vunpack.c.l.b16 %v8269
          %v8304 = vunpack.c.l.b16 %v8270
          %v8305 = vunpack.c.l.b16 %v8271
          %v8306 = vunpack.c.l.b16 %v8272
          %v8307 = vunpack.c.l.b16 %v8273
          %v8308 = vunpack.c.l.b16 %v8274
          %v8309 = vunpack.c.l.b16 %v8275
          %v8310 = vunpack.c.l.b16 %v8276
          %v8311 = vunpack.c.l.b16 %v8277
          %v8312 = vunpack.c.l.b16 %v8278
          %v8313 = vpack.c.b16 %v8298, %v8297
          %v8314 = vpack.c.b16 %v8300, %v8299
          %v8315 = vpack.c.b16 %v8302, %v8301
          %v8316 = vpack.c.b16 %v8304, %v8303
          %v8317 = vpack.c.b16 %v8306, %v8305
          %v8318 = vpack.c.b16 %v8308, %v8307
          %v8319 = vpack.c.b16 %v8310, %v8309
          %v8320 = vpack.c.b16 %v8312, %v8311
          %8329 = vmatprep.subr.bf16.mxu0 0
          %8330 = vmatpush1.bf16.msra.mxu0 %v8313
          %8331 = vmatprep.subr.bf16.mxu0 0
          %8332 = vmatpush1.bf16.msra.mxu0 %v8314
          %8333 = vmatprep.subr.bf16.mxu0 0
          %8334 = vmatpush1.bf16.msra.mxu0 %v8315
          %8335 = vmatprep.subr.bf16.mxu0 0
          %8336 = vmatpush1.bf16.msra.mxu0 %v8316
          %8337 = vmatprep.subr.bf16.mxu0 0
          %8338 = vmatpush1.bf16.msra.mxu0 %v8317
          %8339 = vmatprep.subr.bf16.mxu0 0
          %8340 = vmatpush1.bf16.msra.mxu0 %v8318
          %8341 = vmatprep.subr.bf16.mxu0 0
          %8342 = vmatpush1.bf16.msra.mxu0 %v8319
          %8343 = vmatprep.subr.bf16.mxu0 0
          %8344 = vmatpush1.bf16.msra.mxu0 %v8320
          %8345 = vmatprep.subr.bf16.mxu0 0
          %8346 = vmatpush1.bf16.msra.mxu0 0
          %8347 = vmatprep.subr.bf16.mxu0 0
          %8348 = vmatpush1.bf16.msra.mxu0 0
          %8349 = vmatprep.subr.bf16.mxu0 0
          %8350 = vmatpush1.bf16.msra.mxu0 0
          %8351 = vmatprep.subr.bf16.mxu0 0
          %8352 = vmatpush1.bf16.msra.mxu0 0
          %8353 = vmatprep.subr.bf16.mxu0 0
          %8354 = vmatpush1.bf16.msra.mxu0 0
          %8355 = vmatprep.subr.bf16.mxu0 0
          %8356 = vmatpush1.bf16.msra.mxu0 0
          %8357 = vmatprep.subr.bf16.mxu0 0
          %8358 = vmatpush1.bf16.msra.mxu0 0
          %8359 = vmatprep.subr.bf16.mxu0 0
          %8360 = vmatpush1.bf16.msra.mxu0 0
          %8361 = vmatprep.mubr.bf16.mxu0 0
          %8362 = vmatmul.mubr.bf16.gmra.mrb[0].mxu0 %v8279
          %v8363 = vpop.f32.mrb[0].mxu0
          %v8364 = vadd.f32 0.0, %v8363
          %v8365 = vpop.f32.mrb[0].mxu0
          %v8366 = vpop.f32.mrb[0].mxu0
          %v8367 = vpop.f32.mrb[0].mxu0
          %8368 = vdwg.mxu0
          %v8369 = vadd.f32 %v8261, %v8364
          %s8370 = scalar_lea.vmem %s1, 1984
          %v8371 = vld [vmem:[%s8370] sm:$0xf]
          %v8372 = vld [vmem:[%s8370 + $0x4] sm:$0xf]
          %v8373 = vld [vmem:[%s8370 + $0x8] sm:$0xf]
          %v8374 = vld [vmem:[%s8370 + $0xc] sm:$0xf]
          %v8375 = vld [vmem:[%s8370 + $0x10] sm:$0xf]
          %v8376 = vld [vmem:[%s8370 + $0x14] sm:$0xf]
          %v8377 = vld [vmem:[%s8370 + $0x18] sm:$0xf]
          %v8378 = vld [vmem:[%s8370 + $0x1c] sm:$0xf]
          %v8379 = vld [vmem:[%s8370 + $0x20] sm:$0xf]
          %v8380 = vld [vmem:[%s8370 + $0x24] sm:$0xf]
          %v8381 = vld [vmem:[%s8370 + $0x28] sm:$0xf]
          %v8382 = vld [vmem:[%s8370 + $0x2c] sm:$0xf]
          %v8383 = vld [vmem:[%s8370 + $0x30] sm:$0xf]
          %v8384 = vld [vmem:[%s8370 + $0x34] sm:$0xf]
          %v8385 = vld [vmem:[%s8370 + $0x38] sm:$0xf]
          %v8386 = vld [vmem:[%s8370 + $0x3c] sm:$0xf]
          %v8387 = vrot.slane %v7970, 2
          %v8388 = vrot.slane %v7972, 3
          %v8389 = vor.u32 %v8387, %v8388
          %v8407 = vunpack.c.l.b16 %v8371
          %v8408 = vunpack.c.l.b16 %v8372
          %v8409 = vunpack.c.l.b16 %v8373
          %v8410 = vunpack.c.l.b16 %v8374
          %v8411 = vunpack.c.l.b16 %v8375
          %v8412 = vunpack.c.l.b16 %v8376
          %v8413 = vunpack.c.l.b16 %v8377
          %v8414 = vunpack.c.l.b16 %v8378
          %v8415 = vunpack.c.l.b16 %v8379
          %v8416 = vunpack.c.l.b16 %v8380
          %v8417 = vunpack.c.l.b16 %v8381
          %v8418 = vunpack.c.l.b16 %v8382
          %v8419 = vunpack.c.l.b16 %v8383
          %v8420 = vunpack.c.l.b16 %v8384
          %v8421 = vunpack.c.l.b16 %v8385
          %v8422 = vunpack.c.l.b16 %v8386
          %v8423 = vpack.c.b16 %v8408, %v8407
          %v8424 = vpack.c.b16 %v8410, %v8409
          %v8425 = vpack.c.b16 %v8412, %v8411
          %v8426 = vpack.c.b16 %v8414, %v8413
          %v8427 = vpack.c.b16 %v8416, %v8415
          %v8428 = vpack.c.b16 %v8418, %v8417
          %v8429 = vpack.c.b16 %v8420, %v8419
          %v8430 = vpack.c.b16 %v8422, %v8421
          %8439 = vmatprep.subr.bf16.mxu0 0
          %8440 = vmatpush1.bf16.msra.mxu0 %v8423
          %8441 = vmatprep.subr.bf16.mxu0 0
          %8442 = vmatpush1.bf16.msra.mxu0 %v8424
          %8443 = vmatprep.subr.bf16.mxu0 0
          %8444 = vmatpush1.bf16.msra.mxu0 %v8425
          %8445 = vmatprep.subr.bf16.mxu0 0
          %8446 = vmatpush1.bf16.msra.mxu0 %v8426
          %8447 = vmatprep.subr.bf16.mxu0 0
          %8448 = vmatpush1.bf16.msra.mxu0 %v8427
          %8449 = vmatprep.subr.bf16.mxu0 0
          %8450 = vmatpush1.bf16.msra.mxu0 %v8428
          %8451 = vmatprep.subr.bf16.mxu0 0
          %8452 = vmatpush1.bf16.msra.mxu0 %v8429
          %8453 = vmatprep.subr.bf16.mxu0 0
          %8454 = vmatpush1.bf16.msra.mxu0 %v8430
          %8455 = vmatprep.subr.bf16.mxu0 0
          %8456 = vmatpush1.bf16.msra.mxu0 0
          %8457 = vmatprep.subr.bf16.mxu0 0
          %8458 = vmatpush1.bf16.msra.mxu0 0
          %8459 = vmatprep.subr.bf16.mxu0 0
          %8460 = vmatpush1.bf16.msra.mxu0 0
          %8461 = vmatprep.subr.bf16.mxu0 0
          %8462 = vmatpush1.bf16.msra.mxu0 0
          %8463 = vmatprep.subr.bf16.mxu0 0
          %8464 = vmatpush1.bf16.msra.mxu0 0
          %8465 = vmatprep.subr.bf16.mxu0 0
          %8466 = vmatpush1.bf16.msra.mxu0 0
          %8467 = vmatprep.subr.bf16.mxu0 0
          %8468 = vmatpush1.bf16.msra.mxu0 0
          %8469 = vmatprep.subr.bf16.mxu0 0
          %8470 = vmatpush1.bf16.msra.mxu0 0
          %8471 = vmatprep.mubr.bf16.mxu0 0
          %8472 = vmatmul.mubr.bf16.gmra.mrb[0].mxu0 %v8389
          %v8473 = vpop.f32.mrb[0].mxu0
          %v8474 = vadd.f32 0.0, %v8473
          %v8475 = vpop.f32.mrb[0].mxu0
          %v8476 = vpop.f32.mrb[0].mxu0
          %v8477 = vpop.f32.mrb[0].mxu0
          %8478 = vdwg.mxu0
          %v8479 = vadd.f32 %v8369, %v8474
          %s8480 = scalar_lea.vmem %s1, 2048
          %v8481 = vld [vmem:[%s8480] sm:$0xf]
          %v8482 = vld [vmem:[%s8480 + $0x4] sm:$0xf]
          %v8483 = vld [vmem:[%s8480 + $0x8] sm:$0xf]
          %v8484 = vld [vmem:[%s8480 + $0xc] sm:$0xf]
          %v8485 = vld [vmem:[%s8480 + $0x10] sm:$0xf]
          %v8486 = vld [vmem:[%s8480 + $0x14] sm:$0xf]
          %v8487 = vld [vmem:[%s8480 + $0x18] sm:$0xf]
          %v8488 = vld [vmem:[%s8480 + $0x1c] sm:$0xf]
          %v8489 = vld [vmem:[%s8480 + $0x20] sm:$0xf]
          %v8490 = vld [vmem:[%s8480 + $0x24] sm:$0xf]
          %v8491 = vld [vmem:[%s8480 + $0x28] sm:$0xf]
          %v8492 = vld [vmem:[%s8480 + $0x2c] sm:$0xf]
          %v8493 = vld [vmem:[%s8480 + $0x30] sm:$0xf]
          %v8494 = vld [vmem:[%s8480 + $0x34] sm:$0xf]
          %v8495 = vld [vmem:[%s8480 + $0x38] sm:$0xf]
          %v8496 = vld [vmem:[%s8480 + $0x3c] sm:$0xf]
          %v8497 = vrot.slane %v7933, 3
          %v8515 = vunpack.c.l.b16 %v8481
          %v8516 = vunpack.c.l.b16 %v8482
          %v8517 = vunpack.c.l.b16 %v8483
          %v8518 = vunpack.c.l.b16 %v8484
          %v8519 = vunpack.c.l.b16 %v8485
          %v8520 = vunpack.c.l.b16 %v8486
          %v8521 = vunpack.c.l.b16 %v8487
          %v8522 = vunpack.c.l.b16 %v8488
          %v8523 = vunpack.c.l.b16 %v8489
          %v8524 = vunpack.c.l.b16 %v8490
          %v8525 = vunpack.c.l.b16 %v8491
          %v8526 = vunpack.c.l.b16 %v8492
          %v8527 = vunpack.c.l.b16 %v8493
          %v8528 = vunpack.c.l.b16 %v8494
          %v8529 = vunpack.c.l.b16 %v8495
          %v8530 = vunpack.c.l.b16 %v8496
          %v8531 = vpack.c.b16 %v8516, %v8515
          %v8532 = vpack.c.b16 %v8518, %v8517
          %v8533 = vpack.c.b16 %v8520, %v8519
          %v8534 = vpack.c.b16 %v8522, %v8521
          %v8535 = vpack.c.b16 %v8524, %v8523
          %v8536 = vpack.c.b16 %v8526, %v8525
          %v8537 = vpack.c.b16 %v8528, %v8527
          %v8538 = vpack.c.b16 %v8530, %v8529
          %8547 = vmatprep.subr.bf16.mxu0 0
          %8548 = vmatpush1.bf16.msra.mxu0 %v8531
          %8549 = vmatprep.subr.bf16.mxu0 0
          %8550 = vmatpush1.bf16.msra.mxu0 %v8532
          %8551 = vmatprep.subr.bf16.mxu0 0
          %8552 = vmatpush1.bf16.msra.mxu0 %v8533
          %8553 = vmatprep.subr.bf16.mxu0 0
          %8554 = vmatpush1.bf16.msra.mxu0 %v8534
          %8555 = vmatprep.subr.bf16.mxu0 0
          %8556 = vmatpush1.bf16.msra.mxu0 %v8535
          %8557 = vmatprep.subr.bf16.mxu0 0
          %8558 = vmatpush1.bf16.msra.mxu0 %v8536
          %8559 = vmatprep.subr.bf16.mxu0 0
          %8560 = vmatpush1.bf16.msra.mxu0 %v8537
          %8561 = vmatprep.subr.bf16.mxu0 0
          %8562 = vmatpush1.bf16.msra.mxu0 %v8538
          %8563 = vmatprep.subr.bf16.mxu0 0
          %8564 = vmatpush1.bf16.msra.mxu0 0
          %8565 = vmatprep.subr.bf16.mxu0 0
          %8566 = vmatpush1.bf16.msra.mxu0 0
          %8567 = vmatprep.subr.bf16.mxu0 0
          %8568 = vmatpush1.bf16.msra.mxu0 0
          %8569 = vmatprep.subr.bf16.mxu0 0
          %8570 = vmatpush1.bf16.msra.mxu0 0
          %8571 = vmatprep.subr.bf16.mxu0 0
          %8572 = vmatpush1.bf16.msra.mxu0 0
          %8573 = vmatprep.subr.bf16.mxu0 0
          %8574 = vmatpush1.bf16.msra.mxu0 0
          %8575 = vmatprep.subr.bf16.mxu0 0
          %8576 = vmatpush1.bf16.msra.mxu0 0
          %8577 = vmatprep.subr.bf16.mxu0 0
          %8578 = vmatpush1.bf16.msra.mxu0 0
          %8579 = vmatprep.mubr.bf16.mxu0 0
          %8580 = vmatmul.mubr.bf16.gmra.mrb[0].mxu0 %v8497
          %v8581 = vpop.f32.mrb[0].mxu0
          %v8582 = vadd.f32 0.0, %v8581
          %v8583 = vpop.f32.mrb[0].mxu0
          %v8584 = vpop.f32.mrb[0].mxu0
          %v8585 = vpop.f32.mrb[0].mxu0
          %8586 = vdwg.mxu0
          %v8587 = vadd.f32 %v8479, %v8582
          %s8588 = scalar_lea.vmem %s1, 2112
          %v8589 = vld [vmem:[%s8588] sm:$0xf]
          %v8590 = vld [vmem:[%s8588 + $0x4] sm:$0xf]
          %v8591 = vld [vmem:[%s8588 + $0x8] sm:$0xf]
          %v8592 = vld [vmem:[%s8588 + $0xc] sm:$0xf]
          %v8593 = vld [vmem:[%s8588 + $0x10] sm:$0xf]
          %v8594 = vld [vmem:[%s8588 + $0x14] sm:$0xf]
          %v8595 = vld [vmem:[%s8588 + $0x18] sm:$0xf]
          %v8596 = vld [vmem:[%s8588 + $0x1c] sm:$0xf]
          %v8597 = vld [vmem:[%s8588 + $0x20] sm:$0xf]
          %v8598 = vld [vmem:[%s8588 + $0x24] sm:$0xf]
          %v8599 = vld [vmem:[%s8588 + $0x28] sm:$0xf]
          %v8600 = vld [vmem:[%s8588 + $0x2c] sm:$0xf]
          %v8601 = vld [vmem:[%s8588 + $0x30] sm:$0xf]
          %v8602 = vld [vmem:[%s8588 + $0x34] sm:$0xf]
          %v8603 = vld [vmem:[%s8588 + $0x38] sm:$0xf]
          %v8604 = vld [vmem:[%s8588 + $0x3c] sm:$0xf]
          %v8605 = vrot.slane %v7933, 4
          %v8623 = vunpack.c.l.b16 %v8589
          %v8624 = vunpack.c.l.b16 %v8590
          %v8625 = vunpack.c.l.b16 %v8591
          %v8626 = vunpack.c.l.b16 %v8592
          %v8627 = vunpack.c.l.b16 %v8593
          %v8628 = vunpack.c.l.b16 %v8594
          %v8629 = vunpack.c.l.b16 %v8595
          %v8630 = vunpack.c.l.b16 %v8596
          %v8631 = vunpack.c.l.b16 %v8597
          %v8632 = vunpack.c.l.b16 %v8598
          %v8633 = vunpack.c.l.b16 %v8599
          %v8634 = vunpack.c.l.b16 %v8600
          %v8635 = vunpack.c.l.b16 %v8601
          %v8636 = vunpack.c.l.b16 %v8602
          %v8637 = vunpack.c.l.b16 %v8603
          %v8638 = vunpack.c.l.b16 %v8604
          %v8639 = vpack.c.b16 %v8624, %v8623
          %v8640 = vpack.c.b16 %v8626, %v8625
          %v8641 = vpack.c.b16 %v8628, %v8627
          %v8642 = vpack.c.b16 %v8630, %v8629
          %v8643 = vpack.c.b16 %v8632, %v8631
          %v8644 = vpack.c.b16 %v8634, %v8633
          %v8645 = vpack.c.b16 %v8636, %v8635
          %v8646 = vpack.c.b16 %v8638, %v8637
          %8655 = vmatprep.subr.bf16.mxu0 0
          %8656 = vmatpush1.bf16.msra.mxu0 %v8639
          %8657 = vmatprep.subr.bf16.mxu0 0
          %8658 = vmatpush1.bf16.msra.mxu0 %v8640
          %8659 = vmatprep.subr.bf16.mxu0 0
          %8660 = vmatpush1.bf16.msra.mxu0 %v8641
          %8661 = vmatprep.subr.bf16.mxu0 0
          %8662 = vmatpush1.bf16.msra.mxu0 %v8642
          %8663 = vmatprep.subr.bf16.mxu0 0
          %8664 = vmatpush1.bf16.msra.mxu0 %v8643
          %8665 = vmatprep.subr.bf16.mxu0 0
          %8666 = vmatpush1.bf16.msra.mxu0 %v8644
          %8667 = vmatprep.subr.bf16.mxu0 0
          %8668 = vmatpush1.bf16.msra.mxu0 %v8645
          %8669 = vmatprep.subr.bf16.mxu0 0
          %8670 = vmatpush1.bf16.msra.mxu0 %v8646
          %8671 = vmatprep.subr.bf16.mxu0 0
          %8672 = vmatpush1.bf16.msra.mxu0 0
          %8673 = vmatprep.subr.bf16.mxu0 0
          %8674 = vmatpush1.bf16.msra.mxu0 0
          %8675 = vmatprep.subr.bf16.mxu0 0
          %8676 = vmatpush1.bf16.msra.mxu0 0
          %8677 = vmatprep.subr.bf16.mxu0 0
          %8678 = vmatpush1.bf16.msra.mxu0 0
          %8679 = vmatprep.subr.bf16.mxu0 0
          %8680 = vmatpush1.bf16.msra.mxu0 0
          %8681 = vmatprep.subr.bf16.mxu0 0
          %8682 = vmatpush1.bf16.msra.mxu0 0
          %8683 = vmatprep.subr.bf16.mxu0 0
          %8684 = vmatpush1.bf16.msra.mxu0 0
          %8685 = vmatprep.subr.bf16.mxu0 0
          %8686 = vmatpush1.bf16.msra.mxu0 0
          %8687 = vmatprep.mubr.bf16.mxu0 0
          %8688 = vmatmul.mubr.bf16.gmra.mrb[0].mxu0 %v8605
          %v8689 = vpop.f32.mrb[0].mxu0
          %v8690 = vadd.f32 0.0, %v8689
          %v8691 = vpop.f32.mrb[0].mxu0
          %v8692 = vpop.f32.mrb[0].mxu0
          %v8693 = vpop.f32.mrb[0].mxu0
          %8694 = vdwg.mxu0
          %v8695 = vadd.f32 %v8587, %v8690
          %s8696 = scalar_lea.vmem %s1, 2176
          %v8697 = vld [vmem:[%s8696] sm:$0xf]
          %v8698 = vld [vmem:[%s8696 + $0x4] sm:$0xf]
          %v8699 = vld [vmem:[%s8696 + $0x8] sm:$0xf]
          %v8700 = vld [vmem:[%s8696 + $0xc] sm:$0xf]
          %v8701 = vld [vmem:[%s8696 + $0x10] sm:$0xf]
          %v8702 = vld [vmem:[%s8696 + $0x14] sm:$0xf]
          %v8703 = vld [vmem:[%s8696 + $0x18] sm:$0xf]
          %v8704 = vld [vmem:[%s8696 + $0x1c] sm:$0xf]
          %v8705 = vld [vmem:[%s8696 + $0x20] sm:$0xf]
          %v8706 = vld [vmem:[%s8696 + $0x24] sm:$0xf]
          %v8707 = vld [vmem:[%s8696 + $0x28] sm:$0xf]
          %v8708 = vld [vmem:[%s8696 + $0x2c] sm:$0xf]
          %v8709 = vld [vmem:[%s8696 + $0x30] sm:$0xf]
          %v8710 = vld [vmem:[%s8696 + $0x34] sm:$0xf]
          %v8711 = vld [vmem:[%s8696 + $0x38] sm:$0xf]
          %v8712 = vld [vmem:[%s8696 + $0x3c] sm:$0xf]
          %vm8713 = vsmask.f32 3328
          %v8714 = vrot.slane %v7970, 4
          %v8715 = vrot.slane %v7972, 5
          %v8716 = vor.u32 %v8714, %v8715
          %v8718 = vshll.u32 %v7934, 16
          %v8720 = vrot.slane %v8718, 5
          %v8721 = vsel %vm8713, %v8716, %v8720
          %v8739 = vunpack.c.l.b16 %v8697
          %v8740 = vunpack.c.l.b16 %v8698
          %v8741 = vunpack.c.l.b16 %v8699
          %v8742 = vunpack.c.l.b16 %v8700
          %v8743 = vunpack.c.l.b16 %v8701
          %v8744 = vunpack.c.l.b16 %v8702
          %v8745 = vunpack.c.l.b16 %v8703
          %v8746 = vunpack.c.l.b16 %v8704
          %v8747 = vunpack.c.l.b16 %v8705
          %v8748 = vunpack.c.l.b16 %v8706
          %v8749 = vunpack.c.l.b16 %v8707
          %v8750 = vunpack.c.l.b16 %v8708
          %v8751 = vunpack.c.l.b16 %v8709
          %v8752 = vunpack.c.l.b16 %v8710
          %v8753 = vunpack.c.l.b16 %v8711
          %v8754 = vunpack.c.l.b16 %v8712
          %v8755 = vpack.c.b16 %v8740, %v8739
          %v8756 = vpack.c.b16 %v8742, %v8741
          %v8757 = vpack.c.b16 %v8744, %v8743
          %v8758 = vpack.c.b16 %v8746, %v8745
          %v8759 = vpack.c.b16 %v8748, %v8747
          %v8760 = vpack.c.b16 %v8750, %v8749
          %v8761 = vpack.c.b16 %v8752, %v8751
          %v8762 = vpack.c.b16 %v8754, %v8753
          %8771 = vmatprep.subr.bf16.mxu0 0
          %8772 = vmatpush1.bf16.msra.mxu0 %v8755
          %8773 = vmatprep.subr.bf16.mxu0 0
          %8774 = vmatpush1.bf16.msra.mxu0 %v8756
          %8775 = vmatprep.subr.bf16.mxu0 0
          %8776 = vmatpush1.bf16.msra.mxu0 %v8757
          %8777 = vmatprep.subr.bf16.mxu0 0
          %8778 = vmatpush1.bf16.msra.mxu0 %v8758
          %8779 = vmatprep.subr.bf16.mxu0 0
          %8780 = vmatpush1.bf16.msra.mxu0 %v8759
          %8781 = vmatprep.subr.bf16.mxu0 0
          %8782 = vmatpush1.bf16.msra.mxu0 %v8760
          %8783 = vmatprep.subr.bf16.mxu0 0
          %8784 = vmatpush1.bf16.msra.mxu0 %v8761
          %8785 = vmatprep.subr.bf16.mxu0 0
          %8786 = vmatpush1.bf16.msra.mxu0 %v8762
          %8787 = vmatprep.subr.bf16.mxu0 0
          %8788 = vmatpush1.bf16.msra.mxu0 0
          %8789 = vmatprep.subr.bf16.mxu0 0
          %8790 = vmatpush1.bf16.msra.mxu0 0
          %8791 = vmatprep.subr.bf16.mxu0 0
          %8792 = vmatpush1.bf16.msra.mxu0 0
          %8793 = vmatprep.subr.bf16.mxu0 0
          %8794 = vmatpush1.bf16.msra.mxu0 0
          %8795 = vmatprep.subr.bf16.mxu0 0
          %8796 = vmatpush1.bf16.msra.mxu0 0
          %8797 = vmatprep.subr.bf16.mxu0 0
          %8798 = vmatpush1.bf16.msra.mxu0 0
          %8799 = vmatprep.subr.bf16.mxu0 0
          %8800 = vmatpush1.bf16.msra.mxu0 0
          %8801 = vmatprep.subr.bf16.mxu0 0
          %8802 = vmatpush1.bf16.msra.mxu0 0
          %8803 = vmatprep.mubr.bf16.mxu0 0
          %8804 = vmatmul.mubr.bf16.gmra.mrb[0].mxu0 %v8721
          %v8805 = vpop.f32.mrb[0].mxu0
          %v8806 = vadd.f32 0.0, %v8805
          %v8807 = vpop.f32.mrb[0].mxu0
          %v8808 = vpop.f32.mrb[0].mxu0
          %v8809 = vpop.f32.mrb[0].mxu0
          %8810 = vdwg.mxu0
          %v8811 = vadd.f32 %v8695, %v8806
          %s8812 = scalar_lea.vmem %s1, 2240
          %v8813 = vld [vmem:[%s8812] sm:$0xf]
          %v8814 = vld [vmem:[%s8812 + $0x4] sm:$0xf]
          %v8815 = vld [vmem:[%s8812 + $0x8] sm:$0xf]
          %v8816 = vld [vmem:[%s8812 + $0xc] sm:$0xf]
          %v8817 = vld [vmem:[%s8812 + $0x10] sm:$0xf]
          %v8818 = vld [vmem:[%s8812 + $0x14] sm:$0xf]
          %v8819 = vld [vmem:[%s8812 + $0x18] sm:$0xf]
          %v8820 = vld [vmem:[%s8812 + $0x1c] sm:$0xf]
          %v8821 = vld [vmem:[%s8812 + $0x20] sm:$0xf]
          %v8822 = vld [vmem:[%s8812 + $0x24] sm:$0xf]
          %v8823 = vld [vmem:[%s8812 + $0x28] sm:$0xf]
          %v8824 = vld [vmem:[%s8812 + $0x2c] sm:$0xf]
          %v8825 = vld [vmem:[%s8812 + $0x30] sm:$0xf]
          %v8826 = vld [vmem:[%s8812 + $0x34] sm:$0xf]
          %v8827 = vld [vmem:[%s8812 + $0x38] sm:$0xf]
          %v8828 = vld [vmem:[%s8812 + $0x3c] sm:$0xf]
          %v8830 = vrot.slane %v7933, 5
          %v8831 = vrot.slane %v7934, 5
          %v8832 = vsel %vm5305, %v8830, %v8831
          %v8850 = vunpack.c.l.b16 %v8813
          %v8851 = vunpack.c.l.b16 %v8814
          %v8852 = vunpack.c.l.b16 %v8815
          %v8853 = vunpack.c.l.b16 %v8816
          %v8854 = vunpack.c.l.b16 %v8817
          %v8855 = vunpack.c.l.b16 %v8818
          %v8856 = vunpack.c.l.b16 %v8819
          %v8857 = vunpack.c.l.b16 %v8820
          %v8858 = vunpack.c.l.b16 %v8821
          %v8859 = vunpack.c.l.b16 %v8822
          %v8860 = vunpack.c.l.b16 %v8823
          %v8861 = vunpack.c.l.b16 %v8824
          %v8862 = vunpack.c.l.b16 %v8825
          %v8863 = vunpack.c.l.b16 %v8826
          %v8864 = vunpack.c.l.b16 %v8827
          %v8865 = vunpack.c.l.b16 %v8828
          %v8866 = vpack.c.b16 %v8851, %v8850
          %v8867 = vpack.c.b16 %v8853, %v8852
          %v8868 = vpack.c.b16 %v8855, %v8854
          %v8869 = vpack.c.b16 %v8857, %v8856
          %v8870 = vpack.c.b16 %v8859, %v8858
          %v8871 = vpack.c.b16 %v8861, %v8860
          %v8872 = vpack.c.b16 %v8863, %v8862
          %v8873 = vpack.c.b16 %v8865, %v8864
          %8882 = vmatprep.subr.bf16.mxu0 0
          %8883 = vmatpush1.bf16.msra.mxu0 %v8866
          %8884 = vmatprep.subr.bf16.mxu0 0
          %8885 = vmatpush1.bf16.msra.mxu0 %v8867
          %8886 = vmatprep.subr.bf16.mxu0 0
          %8887 = vmatpush1.bf16.msra.mxu0 %v8868
          %8888 = vmatprep.subr.bf16.mxu0 0
          %8889 = vmatpush1.bf16.msra.mxu0 %v8869
          %8890 = vmatprep.subr.bf16.mxu0 0
          %8891 = vmatpush1.bf16.msra.mxu0 %v8870
          %8892 = vmatprep.subr.bf16.mxu0 0
          %8893 = vmatpush1.bf16.msra.mxu0 %v8871
          %8894 = vmatprep.subr.bf16.mxu0 0
          %8895 = vmatpush1.bf16.msra.mxu0 %v8872
          %8896 = vmatprep.subr.bf16.mxu0 0
          %8897 = vmatpush1.bf16.msra.mxu0 %v8873
          %8898 = vmatprep.subr.bf16.mxu0 0
          %8899 = vmatpush1.bf16.msra.mxu0 0
          %8900 = vmatprep.subr.bf16.mxu0 0
          %8901 = vmatpush1.bf16.msra.mxu0 0
          %8902 = vmatprep.subr.bf16.mxu0 0
          %8903 = vmatpush1.bf16.msra.mxu0 0
          %8904 = vmatprep.subr.bf16.mxu0 0
          %8905 = vmatpush1.bf16.msra.mxu0 0
          %8906 = vmatprep.subr.bf16.mxu0 0
          %8907 = vmatpush1.bf16.msra.mxu0 0
          %8908 = vmatprep.subr.bf16.mxu0 0
          %8909 = vmatpush1.bf16.msra.mxu0 0
          %8910 = vmatprep.subr.bf16.mxu0 0
          %8911 = vmatpush1.bf16.msra.mxu0 0
          %8912 = vmatprep.subr.bf16.mxu0 0
          %8913 = vmatpush1.bf16.msra.mxu0 0
          %8914 = vmatprep.mubr.bf16.mxu0 0
          %8915 = vmatmul.mubr.bf16.gmra.mrb[0].mxu0 %v8832
          %v8916 = vpop.f32.mrb[0].mxu0
          %v8917 = vadd.f32 0.0, %v8916
          %v8918 = vpop.f32.mrb[0].mxu0
          %v8919 = vpop.f32.mrb[0].mxu0
          %v8920 = vpop.f32.mrb[0].mxu0
          %8921 = vdwg.mxu0
          %v8922 = vadd.f32 %v8811, %v8917
          %s8923 = scalar_lea.vmem %s2, 3
          %v8924 = vld [vmem:[%s8923] sm:$0x1]
          %v8926 = vlaneseq
          %v8927 = vshrl.u32 %v8926, 7
          %v8928 = vsub.s32 0, %v8927
          %v8929 = vrot.slane %v8924, %v8928
          %v8931 = vadd.f32 %v8922, %v8929
          %v8932 = vmax.f32 %v8931, 0.0
          %v8933 = vpack.c.bf16 %v8932, %v8932
          %v8934 = vld [vmem:[%s6] sm:$0x3]
          %vm8935 = vcmask 64512
          %v8937 = vsel %vm8935, %v8934, 0
          %v8940 = vsel %vm4732, %v8933, 0
          %8942 = vmatprep.subr.bf16.mxu0 0
          %8943 = vmatpush1.bf16.msra.mxu0 %v8940
          %8944 = vmatprep.subr.bf16.mxu0 0
          %8945 = vmatpush1.bf16.msra.mxu0 0
          %8946 = vmatprep.subr.bf16.mxu0 0
          %8947 = vmatpush1.bf16.msra.mxu0 0
          %8948 = vmatprep.subr.bf16.mxu0 0
          %8949 = vmatpush1.bf16.msra.mxu0 0
          %8950 = vmatprep.subr.bf16.mxu0 0
          %8951 = vmatpush1.bf16.msra.mxu0 0
          %8952 = vmatprep.subr.bf16.mxu0 0
          %8953 = vmatpush1.bf16.msra.mxu0 0
          %8954 = vmatprep.subr.bf16.mxu0 0
          %8955 = vmatpush1.bf16.msra.mxu0 0
          %8956 = vmatprep.subr.bf16.mxu0 0
          %8957 = vmatpush1.bf16.msra.mxu0 0
          %8958 = vmatprep.subr.bf16.mxu0 0
          %8959 = vmatpush1.bf16.msra.mxu0 0
          %8960 = vmatprep.subr.bf16.mxu0 0
          %8961 = vmatpush1.bf16.msra.mxu0 0
          %8962 = vmatprep.subr.bf16.mxu0 0
          %8963 = vmatpush1.bf16.msra.mxu0 0
          %8964 = vmatprep.subr.bf16.mxu0 0
          %8965 = vmatpush1.bf16.msra.mxu0 0
          %8966 = vmatprep.subr.bf16.mxu0 0
          %8967 = vmatpush1.bf16.msra.mxu0 0
          %8968 = vmatprep.subr.bf16.mxu0 0
          %8969 = vmatpush1.bf16.msra.mxu0 0
          %8970 = vmatprep.subr.bf16.mxu0 0
          %8971 = vmatpush1.bf16.msra.mxu0 0
          %8972 = vmatprep.subr.bf16.mxu0 0
          %8973 = vmatpush1.bf16.msra.mxu0 0
          %8974 = vmatprep.mubr.bf16.mxu0 0
          %8975 = vmatmul.mubr.bf16.gmra.mrb[0].mxu0 %v8937
          %v8976 = vpop.f32.mrb[0].mxu0
          %v8977 = vadd.f32 0.0, %v8976
          %v8978 = vpop.f32.mrb[0].mxu0
          %v8979 = vpop.f32.mrb[0].mxu0
          %v8980 = vpop.f32.mrb[0].mxu0
          %8981 = vdwg.mxu0
          %v8983 = vrot.slane %v8977, 1
          %v8985 = vmax.f32 %v8977, %v8983
          %v8987 = vrot.slane %v8985, 2
          %v8989 = vmax.f32 %v8985, %v8987
          %s8990 = scalar_lea.vmem %s274, %s285 [#allocation2]
          %8991 = vst [vmem:[%s8990] sm:$0x1] %v8989
        $region53: #{mnist_cnn_forward.1} parent=47 // loop_footer
          %s289 = sadd.s32 1, %s285
        $region54: #{mnist_cnn_forward.1} parent=47 // loop_footer_branch
          %284 = sbr.rel target = $region50
        $region55: #{mnist_cnn_forward.1} parent=47 // loop_exit
          _
        %s8992 = sand.u32 %s181, 1
        %s8993 = scalar_lea.sflag [#allocation3], %s8992
        %s8994 = sand.u32 %s181, 1
        %s8995 = smul.addr %s8994, 8
        %s8996 = scalar_lea.vmem [#allocation2], %s8995
        // Predicated region
        $region56: #{mnist_cnn_forward.1} parent=47 // pred_check
          %p8997 = pneg %p191
        $region57: #{mnist_cnn_forward.1} parent=47 // pred_check_branch
          %8999 = sbr.rel (%p8997) target = $region59
        $region58: #{mnist_cnn_forward.1} parent=47 // pred_region
          %s9000 = smul.u32 8, %s21
          %s9002 = ssub.s32 128, 128
          %9003 = vsyncadd %s8993, %s9002
          %s9004 = smul.addr %s9000, 16
          %s9005 = scalar_lea.hbm %s7, %s9004
          %s9006 = sshll.u32 %s8996, 4
          %s9007 = int_to_ptr.vmem [resolvable:$true] %s9006
          %9012 = dma.vmem_to_hbm [thread:$0]  %s9007, 128, %s9005, %s8993, 16, 16, 1
        $region59: #{mnist_cnn_forward.1} parent=47 // pred_fallthru
          _
      $region48: #{mnist_cnn_forward.1} parent=5 // pred_fallthru
        _
      %p9013 = scmp.le.s32.totalorder 2, %s16
      // Predicated region
      $region60: #{mnist_cnn_forward.1} parent=5 // pred_check
        %p9014 = pneg %p9013
      $region61: #{mnist_cnn_forward.1} parent=5 // pred_check_branch
        %9016 = sbr.rel (%p9014) target = $region63
      $region62: #{mnist_cnn_forward.1} parent=5 // pred_region
        %s9017 = ssub.s32 %s16, 2
        // Predicated region
        $region64: #{mnist_cnn_forward.1} parent=62 // pred_check
          %p9018 = pneg %p197
        $region65: #{mnist_cnn_forward.1} parent=62 // pred_check_branch
          %9020 = sbr.rel (%p9018) target = $region67
        $region66: #{mnist_cnn_forward.1} parent=62 // pred_region
          %s9021 = sand.u32 %s182, 1
          %s9022 = scalar_lea.sflag [#allocation3], %s9021
          %s9023 = sand.u32 %s182, 1
          %s9024 = smul.addr %s9023, 8
          %s9025 = scalar_lea.vmem [#allocation2], %s9024
          %9026 = dma.done %s9022, 128
        $region67: #{mnist_cnn_forward.1} parent=62 // pred_fallthru
          _
      $region63: #{mnist_cnn_forward.1} parent=5 // pred_fallthru
        _
    $region6: #{mnist_cnn_forward.1} parent=1 // loop_footer
      %s20 = sadd.s32 1, %s16
    $region7: #{mnist_cnn_forward.1} parent=1 // loop_footer_branch
      %15 = sbr.rel target = $region3
    $region8: #{mnist_cnn_forward.1} parent=1 // loop_exit
      _
    %9027 = vsyncpa [#allocation3], 1
    %s9028 = scalar_lea.sflag [#allocation3], 1
    %9029 = vsyncpa %s9028, 1

</llo_original>
